<compile_context>
chip_gen: v7x
topology: tpu7x:2x2x1
jax: 0.10.0
libtpu: 0.0.40
codegen_flags: <defaults>
</compile_context>

<pallas_src>
import jax
import jax.numpy as jnp
from jax.experimental import pallas as pl
from jax.experimental.pallas import tpu as pltpu

_MM_DTYPE = jnp.bfloat16            # MXU operand dtype (accumulation is always f32)
_VMEM_LIMIT_BYTES = 48 * 1024 * 1024  # scoped VMEM request; leaves headroom on v7x (64 MiB phys)


# ------------------------------- fused kernel ------------------------------- #

def _cnn_fused_kernel(p1_ref, w1_ref, b1_ref, w2_ref, b2_ref, wf_ref, bf_ref,
                      out_ref, a1_ref, f2_ref):
    # p1_ref : (Bt*200, 100) conv1 im2col, quadrant-packed lanes (q*25+k), 196->200 rows/img
    # w1_ref : (100, 64) block-diagonal conv1 weight       b1_ref: (1, 16)
    # w2_ref : (5, 288, 448) banded conv2 weight (per dy)  b2_ref: (1, 448)
    # wf_ref : (1568, 10) FC weight in (h3, w3, c) order   bf_ref: (1, 10)
    # out_ref: (Bt, 1, 10)
    # a1_ref : VMEM (Bt, 18, 288)  lane-dense (w*16+c) zero-padded conv2 input
    # f2_ref : VMEM (Bt, 1568)     flattened FC input
    Bt = a1_ref.shape[0]
    f32 = jnp.float32

    # ---- conv1 (5x5, pad 2) + maxpool1: ONE block-diagonal matmul, max of 4 column groups ----
    y = jnp.dot(p1_ref[...], w1_ref[...], preferred_element_type=f32)       # (Bt*200, 64)
    m = jnp.maximum(jnp.maximum(y[:, 0:16], y[:, 16:32]),
                    jnp.maximum(y[:, 32:48], y[:, 48:64]))                  # quadrant max
    pooled1 = jnp.maximum(m + b1_ref[...], 0.0)        # bias + ReLU commute with the max
    pooled1 = pooled1.reshape(Bt, 200, 16)[:, :196, :]  # drop the 4 alignment pad rows / image
    pooled1 = pooled1.reshape(Bt, 14, 14, 16).astype(a1_ref.dtype)

    # ---- stage the zero-padded conv2 input (lane-dense: lanes = w_in*16 + c) ----
    # zero only the pad halo; the interior is fully overwritten every step.
    a1_ref[:, 0:2, :] = jnp.zeros((Bt, 2, 288), a1_ref.dtype)
    a1_ref[:, 16:18, :] = jnp.zeros((Bt, 2, 288), a1_ref.dtype)
    a1_ref[:, 2:16, 0:32] = jnp.zeros((Bt, 14, 32), a1_ref.dtype)
    a1_ref[:, 2:16, 256:288] = jnp.zeros((Bt, 14, 32), a1_ref.dtype)
    for w2 in range(14):
        a1_ref[:, 2:16, (2 + w2) * 16:(3 + w2) * 16] = pooled1[:, :, w2, :]

    # ---- conv2 (5x5, pad 2): 5 banded matmuls (K=288, N=448), f32 accumulation ----
    # output column ordering n = wq*224 + w3*32 + co  (wq = horizontal pool position)
    acc = jnp.dot(a1_ref[:, 0:14, :].reshape(Bt * 14, 288), w2_ref[0],
                  preferred_element_type=f32)                               # (Bt*14, 448)
    for dy in range(1, 5):
        lhs = a1_ref[:, dy:dy + 14, :].reshape(Bt * 14, 288)
        acc = acc + jnp.dot(lhs, w2_ref[dy], preferred_element_type=f32)
    y2 = jnp.maximum(acc + b2_ref[...], 0.0)                                # (Bt*14, 448)

    # ---- maxpool2 (2x2): wq halves live in lanes, hq pairs live in rows ----
    pw = jnp.maximum(y2[:, 0:224], y2[:, 224:448])                          # (Bt*14, 224)
    t = pw.reshape(Bt, 7, 2, 224)                                           # (b, h3, hq, w3*32+c)
    p2 = jnp.maximum(t[:, :, 0, :], t[:, :, 1, :]).astype(f2_ref.dtype)     # (Bt, 7, 224)

    # ---- flatten with 7 lane-wide (224) stores ----
    for h3 in range(7):
        f2_ref[:, h3 * 224:(h3 + 1) * 224] = p2[:, h3, :]

    # ---- fc (weight rows pre-permuted in the wrapper to this exact flatten order) ----
    logits = jnp.dot(f2_ref[...], wf_ref[...], preferred_element_type=f32) + bf_ref[...]
    out_ref[...] = logits.reshape(Bt, 1, 10)


# -------------------------------- JAX wrapper -------------------------------- #

def _pick_batch_tile(batch, vmem_limit_bytes=_VMEM_LIMIT_BYTES):
    # Rough per-image VMEM working set (bytes): double-buffered p1 block, the scratch buffers and
    # the dominant f32 intermediates (all with lane padding to the 128-lane tile).
    per_image = (
        2 * 200 * 128 * 2      # p1 block (lanes 100->128), double buffered
        + 18 * 384 * 2         # a1 scratch (lanes 288->384)
        + 1664 * 2             # f2 scratch (lanes 1568->1664)
        + 2 * 200 * 128 * 4    # conv1 f32 matmul result + max/relu temporaries (64->128 lanes)
        + 2 * 14 * 512 * 4     # conv2 f32 accumulator + temporaries (448->512 lanes)
        + 2 * 14 * 384 * 2     # conv2 lhs staging loads
    )
    fixed = 12 * 1024 * 1024   # weights (double buffered) + headroom
    cap = max(1, (vmem_limit_bytes - fixed) // per_image)
    cap = int(min(cap, 64))    # review guidance: 32-64 on v7x, more fits on v5e/v6e's 128 MiB
    best_single = None
    for bt in range(min(cap, batch), 0, -1):
        if batch % bt == 0:
            if batch // bt >= 2:
                return bt      # keep >= 2 grid steps so both v7x TensorCores get work
            if best_single is None:
                best_single = bt
    return best_single if best_single is not None else 1


@jax.jit
def cnn_forward(x, params):
    w1, b1, w2, b2, wf, bf = params
    B = x.shape[0]
    assert x.shape[1:] == (1, 28, 28)

    # ---- conv1 im2col, quadrant-packed into lanes: (B*200, 100) ----
    xpad = jnp.pad(x[:, 0], ((0, 0), (2, 2), (2, 2)))                           # (B, 32, 32)
    shifts = jnp.stack([xpad[:, dy:dy + 28, dx:dx + 28]
                        for dy in range(5) for dx in range(5)], axis=-1)        # (B, 28, 28, 25)
    t = shifts.reshape(B, 14, 2, 14, 2, 25)                                     # (b,h2,qy,w2,qx,k)
    t = jnp.transpose(t, (0, 1, 3, 2, 4, 5))                                    # (b,h2,w2,qy,qx,k)
    p1 = t.reshape(B, 196, 100)
    p1 = jnp.pad(p1, ((0, 0), (0, 4), (0, 0)))                                  # rows 196 -> 200
    p1 = p1.reshape(B * 200, 100).astype(_MM_DTYPE)

    # ---- conv1 weight: block-diagonal over the 4 pool quadrants: (100, 64) ----
    w1m = w1.reshape(16, 25).T                                                  # (k=dy*5+dx, co)
    w1bd = jnp.kron(jnp.eye(4, dtype=w1m.dtype), w1m).astype(_MM_DTYPE)         # (100, 64)
    b1r = b1.reshape(1, 16).astype(jnp.float32)

    # ---- conv2 weight: 5 banded (288, 448) slabs (one per kernel row dy) ----
    # lhs lane l = wi*16 + c (wi = padded input column), out column n = wq*224 + w3*32 + co
    w2r = jnp.transpose(w2, (2, 3, 1, 0))                                       # (dy, dx, c, co)
    wi = jnp.arange(18)
    wo = jnp.arange(14)
    dxm = wi[:, None] - wo[None, :]                                             # (18, 14)
    valid = (dxm >= 0) & (dxm < 5)
    band = w2r[:, jnp.clip(dxm, 0, 4), :, :]                                    # (dy, wi, w, c, co)
    band = jnp.where(valid[None, :, :, None, None], band, 0.0)
    band = band.reshape(5, 18, 7, 2, 16, 32)                                    # (dy, wi, w3, wq, c, co)
    band = jnp.transpose(band, (0, 1, 4, 3, 2, 5))                              # (dy, wi, c, wq, w3, co)
    w2band = band.reshape(5, 288, 448).astype(_MM_DTYPE)
    b2n = jnp.tile(b2, 14).reshape(1, 448).astype(jnp.float32)

    # ---- fc weight permuted to the kernel flatten order (h3, w3, c) ----
    # PyTorch FC input order is c*49 + (h3*7 + w3); kernel order is (h3*7 + w3)*32 + c.
    wft = jnp.transpose(wf.reshape(10, 32, 7, 7), (2, 3, 1, 0)).reshape(1568, 10).astype(_MM_DTYPE)
    bfr = bf.reshape(1, 10).astype(jnp.float32)

    Bt = _pick_batch_tile(B)

    out = pl.pallas_call(
        _cnn_fused_kernel,
        out_shape=jax.ShapeDtypeStruct((B, 1, 10), jnp.float32),
        grid=(B // Bt,),
        in_specs=[
            pl.BlockSpec((Bt * 200, 100), lambda i: (i, 0)),
            pl.BlockSpec((100, 64), lambda i: (0, 0)),
            pl.BlockSpec((1, 16), lambda i: (0, 0)),
            pl.BlockSpec((5, 288, 448), lambda i: (0, 0, 0)),
            pl.BlockSpec((1, 448), lambda i: (0, 0)),
            pl.BlockSpec((1568, 10), lambda i: (0, 0)),
            pl.BlockSpec((1, 10), lambda i: (0, 0)),
        ],
        out_specs=pl.BlockSpec((Bt, 1, 10), lambda i: (i, 0, 0)),
        scratch_shapes=[
            pltpu.VMEM((Bt, 18, 288), _MM_DTYPE),   # lane-dense padded conv2 input
            pltpu.VMEM((Bt, 1568), _MM_DTYPE),      # flattened FC input
        ],
        compiler_params=pltpu.CompilerParams(
            dimension_semantics=("parallel",),
            vmem_limit_bytes=_VMEM_LIMIT_BYTES),
    )(p1, w1bd, b1r, w2band, b2n, wft, bfr)
    return out.reshape(B, 10)


# ------------------------------ pure-JAX reference ------------------------------ #

def _reference_forward(x, params):
    w1, b1, w2, b2, wf, bf = params

    def block(h, w, b):
        y = jax.lax.conv_general_dilated(h, w, window_strides=(1, 1),
                                         padding=((2, 2), (2, 2)),
                                         dimension_numbers=("NCHW", "OIHW", "NCHW"))
        y = jnp.maximum(y + b[None, :, None, None], 0.0)
        return jax.lax.reduce_window(y, -jnp.inf, jax.lax.max,
                                     (1, 1, 2, 2), (1, 1, 2, 2), "VALID")

    h = block(x, w1, b1)
    h = block(h, w2, b2)
    return h.reshape(h.shape[0], -1) @ wf.T + bf


# ------------------------------------ main ------------------------------------- #

if __name__ == "__main__":
    key = jax.random.PRNGKey(0)
    k_x, k_w1, k_b1, k_w2, k_b2, k_wf, k_bf = jax.random.split(key, 7)

    B = 2
    x = jax.random.normal(k_x, (B, 1, 28, 28), dtype=jnp.float32)

    # Deterministic synthetic parameters (shapes from the module's __init__).
    w1 = jax.random.normal(k_w1, (16, 1, 5, 5), dtype=jnp.float32) * 0.05
    b1 = jax.random.normal(k_b1, (16,), dtype=jnp.float32) * 0.05
    w2 = jax.random.normal(k_w2, (32, 16, 5, 5), dtype=jnp.float32) * 0.05
    b2 = jax.random.normal(k_b2, (32,), dtype=jnp.float32) * 0.05
    wf = jax.random.normal(k_wf, (10, 32 * 7 * 7), dtype=jnp.float32) * 0.05
    bf = jax.random.normal(k_bf, (10,), dtype=jnp.float32) * 0.05

    params = (w1, b1, w2, b2, wf, bf)
    out = cnn_forward(x, params)
    out = jax.block_until_ready(out)
    assert out.shape == (B, 10) and out.dtype == jnp.float32

    ref = _reference_forward(x, params)
    err = float(jnp.max(jnp.abs(out - ref)))
    assert err < 0.1, f"mismatch vs reference: {err}"

    print("KERNEL_OK")
</pallas_src>

<mosaic_0001>
module attributes {stable_mosaic.version = 11 : i64} {
  func.func @_cnn_fused_kernel(%arg0: i32, %arg1: memref<200x100xbf16, #tpu.memory_space<vmem>>, %arg2: memref<100x64xbf16, #tpu.memory_space<vmem>>, %arg3: memref<1x16xf32, #tpu.memory_space<vmem>>, %arg4: memref<5x288x448xbf16, #tpu.memory_space<vmem>>, %arg5: memref<1x448xf32, #tpu.memory_space<vmem>>, %arg6: memref<1568x10xbf16, #tpu.memory_space<vmem>>, %arg7: memref<1x10xf32, #tpu.memory_space<vmem>>, %arg8: memref<1x1x10xf32, #tpu.memory_space<vmem>>, %arg9: memref<1x18x288xbf16, #tpu.memory_space<vmem>>, %arg10: memref<1x1568xbf16, #tpu.memory_space<vmem>>) attributes {dimension_semantics = [#tpu.dimension_semantics<parallel>], iteration_bounds = array<i64: 2>, scalar_prefetch = 0 : i64, scratch_operands = 2 : i64, tpu.core_type = #tpu.core_type<tc>, window_params = [{transform_indices = @transform_0, window_bounds = array<i64: 200, 100>}, {pipeline_mode = #tpu.pipeline_mode<synchronous>, transform_indices = @transform_1, window_bounds = array<i64: 100, 64>}, {pipeline_mode = #tpu.pipeline_mode<synchronous>, transform_indices = @transform_2, window_bounds = array<i64: 1, 16>}, {pipeline_mode = #tpu.pipeline_mode<synchronous>, transform_indices = @transform_3, window_bounds = array<i64: 5, 288, 448>}, {pipeline_mode = #tpu.pipeline_mode<synchronous>, transform_indices = @transform_4, window_bounds = array<i64: 1, 448>}, {pipeline_mode = #tpu.pipeline_mode<synchronous>, transform_indices = @transform_5, window_bounds = array<i64: 1568, 10>}, {pipeline_mode = #tpu.pipeline_mode<synchronous>, transform_indices = @transform_6, window_bounds = array<i64: 1, 10>}, {transform_indices = @transform_7, window_bounds = array<i64: 1, 1, 10>}]} {
    %c0 = arith.constant 0 : index
    %c0_0 = arith.constant 0 : index
    %0 = vector.load %arg1[%c0, %c0_0] : memref<200x100xbf16, #tpu.memory_space<vmem>>, vector<200x100xbf16>
    %c0_1 = arith.constant 0 : index
    %c0_2 = arith.constant 0 : index
    %1 = vector.load %arg2[%c0_1, %c0_2] : memref<100x64xbf16, #tpu.memory_space<vmem>>, vector<100x64xbf16>
    %cst = arith.constant dense<0.000000e+00> : vector<200x64xf32>
    %2 = tpu.matmul %0, %1, %cst {dimension_numbers = #tpu.dot_dimension_numbers<[1], [0], [0], [1], [0, 0, 1, 1], [], []>} : vector<200x100xbf16>, vector<100x64xbf16>, vector<200x64xf32> -> vector<200x64xf32>
    %3 = vector.extract_strided_slice %2 {offsets = [0, 0], sizes = [200, 16], strides = [1, 1]} : vector<200x64xf32> to vector<200x16xf32>
    %4 = vector.extract_strided_slice %2 {offsets = [0, 16], sizes = [200, 16], strides = [1, 1]} : vector<200x64xf32> to vector<200x16xf32>
    %5 = arith.maximumf %3, %4 : vector<200x16xf32>
    %6 = vector.extract_strided_slice %2 {offsets = [0, 32], sizes = [200, 16], strides = [1, 1]} : vector<200x64xf32> to vector<200x16xf32>
    %7 = vector.extract_strided_slice %2 {offsets = [0, 48], sizes = [200, 16], strides = [1, 1]} : vector<200x64xf32> to vector<200x16xf32>
    %8 = arith.maximumf %6, %7 : vector<200x16xf32>
    %9 = arith.maximumf %5, %8 : vector<200x16xf32>
    %c0_3 = arith.constant 0 : index
    %c0_4 = arith.constant 0 : index
    %10 = vector.load %arg3[%c0_3, %c0_4] : memref<1x16xf32, #tpu.memory_space<vmem>>, vector<1x16xf32>
    %11 = vector.broadcast %10 : vector<1x16xf32> to vector<200x16xf32>
    %12 = arith.addf %9, %11 : vector<200x16xf32>
    %cst_5 = arith.constant 0.000000e+00 : f32
    %13 = vector.broadcast %cst_5 : f32 to vector<200x16xf32>
    %14 = arith.maximumf %12, %13 : vector<200x16xf32>
    %15 = vector.shape_cast %14 : vector<200x16xf32> to vector<1x200x16xf32>
    %16 = vector.extract_strided_slice %15 {offsets = [0, 0, 0], sizes = [1, 196, 16], strides = [1, 1, 1]} : vector<1x200x16xf32> to vector<1x196x16xf32>
    %17 = vector.shape_cast %16 : vector<1x196x16xf32> to vector<1x14x14x16xf32>
    %18 = arith.truncf %17 : vector<1x14x14x16xf32> to vector<1x14x14x16xbf16>
    %cst_6 = arith.constant 0.000000e+00 : bf16
    %19 = vector.broadcast %cst_6 : bf16 to vector<1x2x288xbf16>
    %c0_7 = arith.constant 0 : index
    %c0_8 = arith.constant 0 : index
    %c0_9 = arith.constant 0 : index
    %20 = vector.load %arg9[%c0_7, %c0_8, %c0_9] : memref<1x18x288xbf16, #tpu.memory_space<vmem>>, vector<1x2x288xbf16>
    tpu.vector_store %arg9[%c0_7, %c0_8, %c0_9], %19 {strides = array<i32>} : memref<1x18x288xbf16, #tpu.memory_space<vmem>>, vector<1x2x288xbf16>,
    %cst_10 = arith.constant 0.000000e+00 : bf16
    %21 = vector.broadcast %cst_10 : bf16 to vector<1x2x288xbf16>
    %c0_11 = arith.constant 0 : index
    %c16 = arith.constant 16 : index
    %c0_12 = arith.constant 0 : index
    %22 = vector.load %arg9[%c0_11, %c16, %c0_12] : memref<1x18x288xbf16, #tpu.memory_space<vmem>>, vector<1x2x288xbf16>
    tpu.vector_store %arg9[%c0_11, %c16, %c0_12], %21 {strides = array<i32>} : memref<1x18x288xbf16, #tpu.memory_space<vmem>>, vector<1x2x288xbf16>,
    %cst_13 = arith.constant 0.000000e+00 : bf16
    %23 = vector.broadcast %cst_13 : bf16 to vector<1x14x32xbf16>
    %c0_14 = arith.constant 0 : index
    %c2 = arith.constant 2 : index
    %c0_15 = arith.constant 0 : index
    %24 = vector.load %arg9[%c0_14, %c2, %c0_15] : memref<1x18x288xbf16, #tpu.memory_space<vmem>>, vector<1x14x32xbf16>
    tpu.vector_store %arg9[%c0_14, %c2, %c0_15], %23 {strides = array<i32>} : memref<1x18x288xbf16, #tpu.memory_space<vmem>>, vector<1x14x32xbf16>,
    %cst_16 = arith.constant 0.000000e+00 : bf16
    %25 = vector.broadcast %cst_16 : bf16 to vector<1x14x32xbf16>
    %c0_17 = arith.constant 0 : index
    %c2_18 = arith.constant 2 : index
    %c256 = arith.constant 256 : index
    %26 = vector.load %arg9[%c0_17, %c2_18, %c256] : memref<1x18x288xbf16, #tpu.memory_space<vmem>>, vector<1x14x32xbf16>
    tpu.vector_store %arg9[%c0_17, %c2_18, %c256], %25 {strides = array<i32>} : memref<1x18x288xbf16, #tpu.memory_space<vmem>>, vector<1x14x32xbf16>,
    %27 = vector.extract_strided_slice %18 {offsets = [0, 0, 0, 0], sizes = [1, 14, 1, 16], strides = [1, 1, 1, 1]} : vector<1x14x14x16xbf16> to vector<1x14x1x16xbf16>
    %28 = vector.shape_cast %27 : vector<1x14x1x16xbf16> to vector<1x14x16xbf16>
    %c0_19 = arith.constant 0 : index
    %c2_20 = arith.constant 2 : index
    %c32 = arith.constant 32 : index
    %29 = vector.load %arg9[%c0_19, %c2_20, %c32] : memref<1x18x288xbf16, #tpu.memory_space<vmem>>, vector<1x14x16xbf16>
    tpu.vector_store %arg9[%c0_19, %c2_20, %c32], %28 {strides = array<i32>} : memref<1x18x288xbf16, #tpu.memory_space<vmem>>, vector<1x14x16xbf16>,
    %30 = vector.extract_strided_slice %18 {offsets = [0, 0, 1, 0], sizes = [1, 14, 1, 16], strides = [1, 1, 1, 1]} : vector<1x14x14x16xbf16> to vector<1x14x1x16xbf16>
    %31 = vector.shape_cast %30 : vector<1x14x1x16xbf16> to vector<1x14x16xbf16>
    %c0_21 = arith.constant 0 : index
    %c2_22 = arith.constant 2 : index
    %c48 = arith.constant 48 : index
    %32 = vector.load %arg9[%c0_21, %c2_22, %c48] : memref<1x18x288xbf16, #tpu.memory_space<vmem>>, vector<1x14x16xbf16>
    tpu.vector_store %arg9[%c0_21, %c2_22, %c48], %31 {strides = array<i32>} : memref<1x18x288xbf16, #tpu.memory_space<vmem>>, vector<1x14x16xbf16>,
    %33 = vector.extract_strided_slice %18 {offsets = [0, 0, 2, 0], sizes = [1, 14, 1, 16], strides = [1, 1, 1, 1]} : vector<1x14x14x16xbf16> to vector<1x14x1x16xbf16>
    %34 = vector.shape_cast %33 : vector<1x14x1x16xbf16> to vector<1x14x16xbf16>
    %c0_23 = arith.constant 0 : index
    %c2_24 = arith.constant 2 : index
    %c64 = arith.constant 64 : index
    %35 = vector.load %arg9[%c0_23, %c2_24, %c64] : memref<1x18x288xbf16, #tpu.memory_space<vmem>>, vector<1x14x16xbf16>
    tpu.vector_store %arg9[%c0_23, %c2_24, %c64], %34 {strides = array<i32>} : memref<1x18x288xbf16, #tpu.memory_space<vmem>>, vector<1x14x16xbf16>,
    %36 = vector.extract_strided_slice %18 {offsets = [0, 0, 3, 0], sizes = [1, 14, 1, 16], strides = [1, 1, 1, 1]} : vector<1x14x14x16xbf16> to vector<1x14x1x16xbf16>
    %37 = vector.shape_cast %36 : vector<1x14x1x16xbf16> to vector<1x14x16xbf16>
    %c0_25 = arith.constant 0 : index
    %c2_26 = arith.constant 2 : index
    %c80 = arith.constant 80 : index
    %38 = vector.load %arg9[%c0_25, %c2_26, %c80] : memref<1x18x288xbf16, #tpu.memory_space<vmem>>, vector<1x14x16xbf16>
    tpu.vector_store %arg9[%c0_25, %c2_26, %c80], %37 {strides = array<i32>} : memref<1x18x288xbf16, #tpu.memory_space<vmem>>, vector<1x14x16xbf16>,
    %39 = vector.extract_strided_slice %18 {offsets = [0, 0, 4, 0], sizes = [1, 14, 1, 16], strides = [1, 1, 1, 1]} : vector<1x14x14x16xbf16> to vector<1x14x1x16xbf16>
    %40 = vector.shape_cast %39 : vector<1x14x1x16xbf16> to vector<1x14x16xbf16>
    %c0_27 = arith.constant 0 : index
    %c2_28 = arith.constant 2 : index
    %c96 = arith.constant 96 : index
    %41 = vector.load %arg9[%c0_27, %c2_28, %c96] : memref<1x18x288xbf16, #tpu.memory_space<vmem>>, vector<1x14x16xbf16>
    tpu.vector_store %arg9[%c0_27, %c2_28, %c96], %40 {strides = array<i32>} : memref<1x18x288xbf16, #tpu.memory_space<vmem>>, vector<1x14x16xbf16>,
    %42 = vector.extract_strided_slice %18 {offsets = [0, 0, 5, 0], sizes = [1, 14, 1, 16], strides = [1, 1, 1, 1]} : vector<1x14x14x16xbf16> to vector<1x14x1x16xbf16>
    %43 = vector.shape_cast %42 : vector<1x14x1x16xbf16> to vector<1x14x16xbf16>
    %c0_29 = arith.constant 0 : index
    %c2_30 = arith.constant 2 : index
    %c112 = arith.constant 112 : index
    %44 = vector.load %arg9[%c0_29, %c2_30, %c112] : memref<1x18x288xbf16, #tpu.memory_space<vmem>>, vector<1x14x16xbf16>
    tpu.vector_store %arg9[%c0_29, %c2_30, %c112], %43 {strides = array<i32>} : memref<1x18x288xbf16, #tpu.memory_space<vmem>>, vector<1x14x16xbf16>,
    %45 = vector.extract_strided_slice %18 {offsets = [0, 0, 6, 0], sizes = [1, 14, 1, 16], strides = [1, 1, 1, 1]} : vector<1x14x14x16xbf16> to vector<1x14x1x16xbf16>
    %46 = vector.shape_cast %45 : vector<1x14x1x16xbf16> to vector<1x14x16xbf16>
    %c0_31 = arith.constant 0 : index
    %c2_32 = arith.constant 2 : index
    %c128 = arith.constant 128 : index
    %47 = vector.load %arg9[%c0_31, %c2_32, %c128] : memref<1x18x288xbf16, #tpu.memory_space<vmem>>, vector<1x14x16xbf16>
    tpu.vector_store %arg9[%c0_31, %c2_32, %c128], %46 {strides = array<i32>} : memref<1x18x288xbf16, #tpu.memory_space<vmem>>, vector<1x14x16xbf16>,
    %48 = vector.extract_strided_slice %18 {offsets = [0, 0, 7, 0], sizes = [1, 14, 1, 16], strides = [1, 1, 1, 1]} : vector<1x14x14x16xbf16> to vector<1x14x1x16xbf16>
    %49 = vector.shape_cast %48 : vector<1x14x1x16xbf16> to vector<1x14x16xbf16>
    %c0_33 = arith.constant 0 : index
    %c2_34 = arith.constant 2 : index
    %c144 = arith.constant 144 : index
    %50 = vector.load %arg9[%c0_33, %c2_34, %c144] : memref<1x18x288xbf16, #tpu.memory_space<vmem>>, vector<1x14x16xbf16>
    tpu.vector_store %arg9[%c0_33, %c2_34, %c144], %49 {strides = array<i32>} : memref<1x18x288xbf16, #tpu.memory_space<vmem>>, vector<1x14x16xbf16>,
    %51 = vector.extract_strided_slice %18 {offsets = [0, 0, 8, 0], sizes = [1, 14, 1, 16], strides = [1, 1, 1, 1]} : vector<1x14x14x16xbf16> to vector<1x14x1x16xbf16>
    %52 = vector.shape_cast %51 : vector<1x14x1x16xbf16> to vector<1x14x16xbf16>
    %c0_35 = arith.constant 0 : index
    %c2_36 = arith.constant 2 : index
    %c160 = arith.constant 160 : index
    %53 = vector.load %arg9[%c0_35, %c2_36, %c160] : memref<1x18x288xbf16, #tpu.memory_space<vmem>>, vector<1x14x16xbf16>
    tpu.vector_store %arg9[%c0_35, %c2_36, %c160], %52 {strides = array<i32>} : memref<1x18x288xbf16, #tpu.memory_space<vmem>>, vector<1x14x16xbf16>,
    %54 = vector.extract_strided_slice %18 {offsets = [0, 0, 9, 0], sizes = [1, 14, 1, 16], strides = [1, 1, 1, 1]} : vector<1x14x14x16xbf16> to vector<1x14x1x16xbf16>
    %55 = vector.shape_cast %54 : vector<1x14x1x16xbf16> to vector<1x14x16xbf16>
    %c0_37 = arith.constant 0 : index
    %c2_38 = arith.constant 2 : index
    %c176 = arith.constant 176 : index
    %56 = vector.load %arg9[%c0_37, %c2_38, %c176] : memref<1x18x288xbf16, #tpu.memory_space<vmem>>, vector<1x14x16xbf16>
    tpu.vector_store %arg9[%c0_37, %c2_38, %c176], %55 {strides = array<i32>} : memref<1x18x288xbf16, #tpu.memory_space<vmem>>, vector<1x14x16xbf16>,
    %57 = vector.extract_strided_slice %18 {offsets = [0, 0, 10, 0], sizes = [1, 14, 1, 16], strides = [1, 1, 1, 1]} : vector<1x14x14x16xbf16> to vector<1x14x1x16xbf16>
    %58 = vector.shape_cast %57 : vector<1x14x1x16xbf16> to vector<1x14x16xbf16>
    %c0_39 = arith.constant 0 : index
    %c2_40 = arith.constant 2 : index
    %c192 = arith.constant 192 : index
    %59 = vector.load %arg9[%c0_39, %c2_40, %c192] : memref<1x18x288xbf16, #tpu.memory_space<vmem>>, vector<1x14x16xbf16>
    tpu.vector_store %arg9[%c0_39, %c2_40, %c192], %58 {strides = array<i32>} : memref<1x18x288xbf16, #tpu.memory_space<vmem>>, vector<1x14x16xbf16>,
    %60 = vector.extract_strided_slice %18 {offsets = [0, 0, 11, 0], sizes = [1, 14, 1, 16], strides = [1, 1, 1, 1]} : vector<1x14x14x16xbf16> to vector<1x14x1x16xbf16>
    %61 = vector.shape_cast %60 : vector<1x14x1x16xbf16> to vector<1x14x16xbf16>
    %c0_41 = arith.constant 0 : index
    %c2_42 = arith.constant 2 : index
    %c208 = arith.constant 208 : index
    %62 = vector.load %arg9[%c0_41, %c2_42, %c208] : memref<1x18x288xbf16, #tpu.memory_space<vmem>>, vector<1x14x16xbf16>
    tpu.vector_store %arg9[%c0_41, %c2_42, %c208], %61 {strides = array<i32>} : memref<1x18x288xbf16, #tpu.memory_space<vmem>>, vector<1x14x16xbf16>,
    %63 = vector.extract_strided_slice %18 {offsets = [0, 0, 12, 0], sizes = [1, 14, 1, 16], strides = [1, 1, 1, 1]} : vector<1x14x14x16xbf16> to vector<1x14x1x16xbf16>
    %64 = vector.shape_cast %63 : vector<1x14x1x16xbf16> to vector<1x14x16xbf16>
    %c0_43 = arith.constant 0 : index
    %c2_44 = arith.constant 2 : index
    %c224 = arith.constant 224 : index
    %65 = vector.load %arg9[%c0_43, %c2_44, %c224] : memref<1x18x288xbf16, #tpu.memory_space<vmem>>, vector<1x14x16xbf16>
    tpu.vector_store %arg9[%c0_43, %c2_44, %c224], %64 {strides = array<i32>} : memref<1x18x288xbf16, #tpu.memory_space<vmem>>, vector<1x14x16xbf16>,
    %66 = vector.extract_strided_slice %18 {offsets = [0, 0, 13, 0], sizes = [1, 14, 1, 16], strides = [1, 1, 1, 1]} : vector<1x14x14x16xbf16> to vector<1x14x1x16xbf16>
    %67 = vector.shape_cast %66 : vector<1x14x1x16xbf16> to vector<1x14x16xbf16>
    %c0_45 = arith.constant 0 : index
    %c2_46 = arith.constant 2 : index
    %c240 = arith.constant 240 : index
    %68 = vector.load %arg9[%c0_45, %c2_46, %c240] : memref<1x18x288xbf16, #tpu.memory_space<vmem>>, vector<1x14x16xbf16>
    tpu.vector_store %arg9[%c0_45, %c2_46, %c240], %67 {strides = array<i32>} : memref<1x18x288xbf16, #tpu.memory_space<vmem>>, vector<1x14x16xbf16>,
    %c0_47 = arith.constant 0 : index
    %c0_48 = arith.constant 0 : index
    %c0_49 = arith.constant 0 : index
    %69 = vector.load %arg9[%c0_47, %c0_48, %c0_49] : memref<1x18x288xbf16, #tpu.memory_space<vmem>>, vector<1x14x288xbf16>
    %70 = vector.shape_cast %69 : vector<1x14x288xbf16> to vector<14x288xbf16>
    %c0_50 = arith.constant 0 : index
    %c0_51 = arith.constant 0 : index
    %c0_52 = arith.constant 0 : index
    %71 = vector.load %arg4[%c0_50, %c0_51, %c0_52] : memref<5x288x448xbf16, #tpu.memory_space<vmem>>, vector<1x288x448xbf16>
    %72 = vector.shape_cast %71 : vector<1x288x448xbf16> to vector<288x448xbf16>
    %cst_53 = arith.constant dense<0.000000e+00> : vector<14x448xf32>
    %73 = tpu.matmul %70, %72, %cst_53 {dimension_numbers = #tpu.dot_dimension_numbers<[1], [0], [0], [1], [0, 0, 1, 1], [], []>} : vector<14x288xbf16>, vector<288x448xbf16>, vector<14x448xf32> -> vector<14x448xf32>
    %c0_54 = arith.constant 0 : index
    %c1 = arith.constant 1 : index
    %c0_55 = arith.constant 0 : index
    %74 = vector.load %arg9[%c0_54, %c1, %c0_55] : memref<1x18x288xbf16, #tpu.memory_space<vmem>>, vector<1x14x288xbf16>
    %75 = vector.shape_cast %74 : vector<1x14x288xbf16> to vector<14x288xbf16>
    %c1_56 = arith.constant 1 : index
    %c0_57 = arith.constant 0 : index
    %c0_58 = arith.constant 0 : index
    %76 = vector.load %arg4[%c1_56, %c0_57, %c0_58] : memref<5x288x448xbf16, #tpu.memory_space<vmem>>, vector<1x288x448xbf16>
    %77 = vector.shape_cast %76 : vector<1x288x448xbf16> to vector<288x448xbf16>
    %cst_59 = arith.constant dense<0.000000e+00> : vector<14x448xf32>
    %78 = tpu.matmul %75, %77, %cst_59 {dimension_numbers = #tpu.dot_dimension_numbers<[1], [0], [0], [1], [0, 0, 1, 1], [], []>} : vector<14x288xbf16>, vector<288x448xbf16>, vector<14x448xf32> -> vector<14x448xf32>
    %79 = arith.addf %73, %78 : vector<14x448xf32>
    %c0_60 = arith.constant 0 : index
    %c2_61 = arith.constant 2 : index
    %c0_62 = arith.constant 0 : index
    %80 = vector.load %arg9[%c0_60, %c2_61, %c0_62] : memref<1x18x288xbf16, #tpu.memory_space<vmem>>, vector<1x14x288xbf16>
    %81 = vector.shape_cast %80 : vector<1x14x288xbf16> to vector<14x288xbf16>
    %c2_63 = arith.constant 2 : index
    %c0_64 = arith.constant 0 : index
    %c0_65 = arith.constant 0 : index
    %82 = vector.load %arg4[%c2_63, %c0_64, %c0_65] : memref<5x288x448xbf16, #tpu.memory_space<vmem>>, vector<1x288x448xbf16>
    %83 = vector.shape_cast %82 : vector<1x288x448xbf16> to vector<288x448xbf16>
    %cst_66 = arith.constant dense<0.000000e+00> : vector<14x448xf32>
    %84 = tpu.matmul %81, %83, %cst_66 {dimension_numbers = #tpu.dot_dimension_numbers<[1], [0], [0], [1], [0, 0, 1, 1], [], []>} : vector<14x288xbf16>, vector<288x448xbf16>, vector<14x448xf32> -> vector<14x448xf32>
    %85 = arith.addf %79, %84 : vector<14x448xf32>
    %c0_67 = arith.constant 0 : index
    %c3 = arith.constant 3 : index
    %c0_68 = arith.constant 0 : index
    %86 = vector.load %arg9[%c0_67, %c3, %c0_68] : memref<1x18x288xbf16, #tpu.memory_space<vmem>>, vector<1x14x288xbf16>
    %87 = vector.shape_cast %86 : vector<1x14x288xbf16> to vector<14x288xbf16>
    %c3_69 = arith.constant 3 : index
    %c0_70 = arith.constant 0 : index
    %c0_71 = arith.constant 0 : index
    %88 = vector.load %arg4[%c3_69, %c0_70, %c0_71] : memref<5x288x448xbf16, #tpu.memory_space<vmem>>, vector<1x288x448xbf16>
    %89 = vector.shape_cast %88 : vector<1x288x448xbf16> to vector<288x448xbf16>
    %cst_72 = arith.constant dense<0.000000e+00> : vector<14x448xf32>
    %90 = tpu.matmul %87, %89, %cst_72 {dimension_numbers = #tpu.dot_dimension_numbers<[1], [0], [0], [1], [0, 0, 1, 1], [], []>} : vector<14x288xbf16>, vector<288x448xbf16>, vector<14x448xf32> -> vector<14x448xf32>
    %91 = arith.addf %85, %90 : vector<14x448xf32>
    %c0_73 = arith.constant 0 : index
    %c4 = arith.constant 4 : index
    %c0_74 = arith.constant 0 : index
    %92 = vector.load %arg9[%c0_73, %c4, %c0_74] : memref<1x18x288xbf16, #tpu.memory_space<vmem>>, vector<1x14x288xbf16>
    %93 = vector.shape_cast %92 : vector<1x14x288xbf16> to vector<14x288xbf16>
    %c4_75 = arith.constant 4 : index
    %c0_76 = arith.constant 0 : index
    %c0_77 = arith.constant 0 : index
    %94 = vector.load %arg4[%c4_75, %c0_76, %c0_77] : memref<5x288x448xbf16, #tpu.memory_space<vmem>>, vector<1x288x448xbf16>
    %95 = vector.shape_cast %94 : vector<1x288x448xbf16> to vector<288x448xbf16>
    %cst_78 = arith.constant dense<0.000000e+00> : vector<14x448xf32>
    %96 = tpu.matmul %93, %95, %cst_78 {dimension_numbers = #tpu.dot_dimension_numbers<[1], [0], [0], [1], [0, 0, 1, 1], [], []>} : vector<14x288xbf16>, vector<288x448xbf16>, vector<14x448xf32> -> vector<14x448xf32>
    %97 = arith.addf %91, %96 : vector<14x448xf32>
    %c0_79 = arith.constant 0 : index
    %c0_80 = arith.constant 0 : index
    %98 = vector.load %arg5[%c0_79, %c0_80] : memref<1x448xf32, #tpu.memory_space<vmem>>, vector<1x448xf32>
    %99 = vector.broadcast %98 : vector<1x448xf32> to vector<14x448xf32>
    %100 = arith.addf %97, %99 : vector<14x448xf32>
    %cst_81 = arith.constant 0.000000e+00 : f32
    %101 = vector.broadcast %cst_81 : f32 to vector<14x448xf32>
    %102 = arith.maximumf %100, %101 : vector<14x448xf32>
    %103 = vector.extract_strided_slice %102 {offsets = [0, 0], sizes = [14, 224], strides = [1, 1]} : vector<14x448xf32> to vector<14x224xf32>
    %104 = vector.extract_strided_slice %102 {offsets = [0, 224], sizes = [14, 224], strides = [1, 1]} : vector<14x448xf32> to vector<14x224xf32>
    %105 = arith.maximumf %103, %104 : vector<14x224xf32>
    %106 = vector.shape_cast %105 : vector<14x224xf32> to vector<1x7x2x224xf32>
    %107 = vector.extract_strided_slice %106 {offsets = [0, 0, 0, 0], sizes = [1, 7, 1, 224], strides = [1, 1, 1, 1]} : vector<1x7x2x224xf32> to vector<1x7x1x224xf32>
    %108 = vector.shape_cast %107 : vector<1x7x1x224xf32> to vector<1x7x224xf32>
    %109 = vector.extract_strided_slice %106 {offsets = [0, 0, 1, 0], sizes = [1, 7, 1, 224], strides = [1, 1, 1, 1]} : vector<1x7x2x224xf32> to vector<1x7x1x224xf32>
    %110 = vector.shape_cast %109 : vector<1x7x1x224xf32> to vector<1x7x224xf32>
    %111 = arith.maximumf %108, %110 : vector<1x7x224xf32>
    %112 = arith.truncf %111 : vector<1x7x224xf32> to vector<1x7x224xbf16>
    %113 = vector.extract_strided_slice %112 {offsets = [0, 0, 0], sizes = [1, 1, 224], strides = [1, 1, 1]} : vector<1x7x224xbf16> to vector<1x1x224xbf16>
    %114 = vector.shape_cast %113 : vector<1x1x224xbf16> to vector<1x224xbf16>
    %c0_82 = arith.constant 0 : index
    %c0_83 = arith.constant 0 : index
    %115 = vector.load %arg10[%c0_82, %c0_83] : memref<1x1568xbf16, #tpu.memory_space<vmem>>, vector<1x224xbf16>
    tpu.vector_store %arg10[%c0_82, %c0_83], %114 {strides = array<i32>} : memref<1x1568xbf16, #tpu.memory_space<vmem>>, vector<1x224xbf16>,
    %116 = vector.extract_strided_slice %112 {offsets = [0, 1, 0], sizes = [1, 1, 224], strides = [1, 1, 1]} : vector<1x7x224xbf16> to vector<1x1x224xbf16>
    %117 = vector.shape_cast %116 : vector<1x1x224xbf16> to vector<1x224xbf16>
    %c0_84 = arith.constant 0 : index
    %c224_85 = arith.constant 224 : index
    %118 = vector.load %arg10[%c0_84, %c224_85] : memref<1x1568xbf16, #tpu.memory_space<vmem>>, vector<1x224xbf16>
    tpu.vector_store %arg10[%c0_84, %c224_85], %117 {strides = array<i32>} : memref<1x1568xbf16, #tpu.memory_space<vmem>>, vector<1x224xbf16>,
    %119 = vector.extract_strided_slice %112 {offsets = [0, 2, 0], sizes = [1, 1, 224], strides = [1, 1, 1]} : vector<1x7x224xbf16> to vector<1x1x224xbf16>
    %120 = vector.shape_cast %119 : vector<1x1x224xbf16> to vector<1x224xbf16>
    %c0_86 = arith.constant 0 : index
    %c448 = arith.constant 448 : index
    %121 = vector.load %arg10[%c0_86, %c448] : memref<1x1568xbf16, #tpu.memory_space<vmem>>, vector<1x224xbf16>
    tpu.vector_store %arg10[%c0_86, %c448], %120 {strides = array<i32>} : memref<1x1568xbf16, #tpu.memory_space<vmem>>, vector<1x224xbf16>,
    %122 = vector.extract_strided_slice %112 {offsets = [0, 3, 0], sizes = [1, 1, 224], strides = [1, 1, 1]} : vector<1x7x224xbf16> to vector<1x1x224xbf16>
    %123 = vector.shape_cast %122 : vector<1x1x224xbf16> to vector<1x224xbf16>
    %c0_87 = arith.constant 0 : index
    %c672 = arith.constant 672 : index
    %124 = vector.load %arg10[%c0_87, %c672] : memref<1x1568xbf16, #tpu.memory_space<vmem>>, vector<1x224xbf16>
    tpu.vector_store %arg10[%c0_87, %c672], %123 {strides = array<i32>} : memref<1x1568xbf16, #tpu.memory_space<vmem>>, vector<1x224xbf16>,
    %125 = vector.extract_strided_slice %112 {offsets = [0, 4, 0], sizes = [1, 1, 224], strides = [1, 1, 1]} : vector<1x7x224xbf16> to vector<1x1x224xbf16>
    %126 = vector.shape_cast %125 : vector<1x1x224xbf16> to vector<1x224xbf16>
    %c0_88 = arith.constant 0 : index
    %c896 = arith.constant 896 : index
    %127 = vector.load %arg10[%c0_88, %c896] : memref<1x1568xbf16, #tpu.memory_space<vmem>>, vector<1x224xbf16>
    tpu.vector_store %arg10[%c0_88, %c896], %126 {strides = array<i32>} : memref<1x1568xbf16, #tpu.memory_space<vmem>>, vector<1x224xbf16>,
    %128 = vector.extract_strided_slice %112 {offsets = [0, 5, 0], sizes = [1, 1, 224], strides = [1, 1, 1]} : vector<1x7x224xbf16> to vector<1x1x224xbf16>
    %129 = vector.shape_cast %128 : vector<1x1x224xbf16> to vector<1x224xbf16>
    %c0_89 = arith.constant 0 : index
    %c1120 = arith.constant 1120 : index
    %130 = vector.load %arg10[%c0_89, %c1120] : memref<1x1568xbf16, #tpu.memory_space<vmem>>, vector<1x224xbf16>
    tpu.vector_store %arg10[%c0_89, %c1120], %129 {strides = array<i32>} : memref<1x1568xbf16, #tpu.memory_space<vmem>>, vector<1x224xbf16>,
    %131 = vector.extract_strided_slice %112 {offsets = [0, 6, 0], sizes = [1, 1, 224], strides = [1, 1, 1]} : vector<1x7x224xbf16> to vector<1x1x224xbf16>
    %132 = vector.shape_cast %131 : vector<1x1x224xbf16> to vector<1x224xbf16>
    %c0_90 = arith.constant 0 : index
    %c1344 = arith.constant 1344 : index
    %133 = vector.load %arg10[%c0_90, %c1344] : memref<1x1568xbf16, #tpu.memory_space<vmem>>, vector<1x224xbf16>
    tpu.vector_store %arg10[%c0_90, %c1344], %132 {strides = array<i32>} : memref<1x1568xbf16, #tpu.memory_space<vmem>>, vector<1x224xbf16>,
    %c0_91 = arith.constant 0 : index
    %c0_92 = arith.constant 0 : index
    %134 = vector.load %arg10[%c0_91, %c0_92] : memref<1x1568xbf16, #tpu.memory_space<vmem>>, vector<1x1568xbf16>
    %c0_93 = arith.constant 0 : index
    %c0_94 = arith.constant 0 : index
    %135 = vector.load %arg6[%c0_93, %c0_94] : memref<1568x10xbf16, #tpu.memory_space<vmem>>, vector<1568x10xbf16>
    %cst_95 = arith.constant dense<0.000000e+00> : vector<1x10xf32>
    %136 = tpu.matmul %134, %135, %cst_95 {dimension_numbers = #tpu.dot_dimension_numbers<[1], [0], [0], [1], [0, 0, 1, 1], [], []>} : vector<1x1568xbf16>, vector<1568x10xbf16>, vector<1x10xf32> -> vector<1x10xf32>
    %c0_96 = arith.constant 0 : index
    %c0_97 = arith.constant 0 : index
    %137 = vector.load %arg7[%c0_96, %c0_97] : memref<1x10xf32, #tpu.memory_space<vmem>>, vector<1x10xf32>
    %138 = arith.addf %136, %137 : vector<1x10xf32>
    %139 = vector.shape_cast %138 : vector<1x10xf32> to vector<1x1x10xf32>
    %c0_98 = arith.constant 0 : index
    %c0_99 = arith.constant 0 : index
    %c0_100 = arith.constant 0 : index
    %140 = vector.load %arg8[%c0_98, %c0_99, %c0_100] : memref<1x1x10xf32, #tpu.memory_space<vmem>>, vector<1x1x10xf32>
    tpu.vector_store %arg8[%c0_98, %c0_99, %c0_100], %139 {strides = array<i32>} : memref<1x1x10xf32, #tpu.memory_space<vmem>>, vector<1x1x10xf32>,
    return
  }
  func.func @transform_0(%arg0: i32) -> (i32, i32) {
    %c0_i32 = arith.constant 0 : i32
    %c0_i32_0 = arith.constant 0 : i32
    return %arg0, %c0_i32 : i32, i32
  }
  func.func @transform_1(%arg0: i32) -> (i32, i32) {
    %c0_i32 = arith.constant 0 : i32
    %c0_i32_0 = arith.constant 0 : i32
    %c0_i32_1 = arith.constant 0 : i32
    return %c0_i32, %c0_i32_0 : i32, i32
  }
  func.func @transform_2(%arg0: i32) -> (i32, i32) {
    %c0_i32 = arith.constant 0 : i32
    %c0_i32_0 = arith.constant 0 : i32
    %c0_i32_1 = arith.constant 0 : i32
    return %c0_i32, %c0_i32_0 : i32, i32
  }
  func.func @transform_3(%arg0: i32) -> (i32, i32, i32) {
    %c0_i32 = arith.constant 0 : i32
    %c0_i32_0 = arith.constant 0 : i32
    %c0_i32_1 = arith.constant 0 : i32
    %c0_i32_2 = arith.constant 0 : i32
    return %c0_i32, %c0_i32_0, %c0_i32_1 : i32, i32, i32
  }
  func.func @transform_4(%arg0: i32) -> (i32, i32) {
    %c0_i32 = arith.constant 0 : i32
    %c0_i32_0 = arith.constant 0 : i32
    %c0_i32_1 = arith.constant 0 : i32
    return %c0_i32, %c0_i32_0 : i32, i32
  }
  func.func @transform_5(%arg0: i32) -> (i32, i32) {
    %c0_i32 = arith.constant 0 : i32
    %c0_i32_0 = arith.constant 0 : i32
    %c0_i32_1 = arith.constant 0 : i32
    return %c0_i32, %c0_i32_0 : i32, i32
  }
  func.func @transform_6(%arg0: i32) -> (i32, i32) {
    %c0_i32 = arith.constant 0 : i32
    %c0_i32_0 = arith.constant 0 : i32
    %c0_i32_1 = arith.constant 0 : i32
    return %c0_i32, %c0_i32_0 : i32, i32
  }
  func.func @transform_7(%arg0: i32) -> (i32, i32, i32) {
    %c0_i32 = arith.constant 0 : i32
    %c0_i32_0 = arith.constant 0 : i32
    %c0_i32_1 = arith.constant 0 : i32
    return %arg0, %c0_i32, %c0_i32_0 : i32, i32, i32
  }
}

</mosaic_0001>

<llo_original>
// kernel: tile.8
$region0: #{tile.8}
  #allocation0 [shape = 's32[1]{0}', space=sflag, size = 0x4, scoped, tag = 'scoped memory for tile.8']
  %s0 = inlined_call_operand.vmem [shape: f32[32], index: 0, kind: input, shape index: {}]
  %s1 = inlined_call_operand.vmem [shape: f32[14,32], index: 1, kind: output, shape index: {}]
  // Predicated region
  $region2: #{tile.8} parent=0 // pred_check
    _
  $region3: #{tile.8} parent=0 // pred_check_branch
    %3 = sbr.rel (0) target = $region5
  $region4: #{tile.8} parent=0 // pred_region
    _
  $region5: #{tile.8} parent=0 // pred_fallthru
    _
  %v4 = vld [vmem:[%s0] ss:$0 sm:$0xff]
  %5 = vst [vmem:[%s1] sm:$0xff] %v4
  %s6 = scalar_lea.vmem %s1, 8
  %7 = vst [vmem:[%s6] sm:$0xff] %v4

// kernel: tile.9
$region0: #{tile.9}
  %s0 = inlined_call_operand.vmem [shape: f32[14,32], index: 0, kind: input, shape index: {}]
  %s1 = inlined_call_operand.vmem [shape: f32[1,448], index: 1, kind: output, shape index: {}]
  $region1: #{tile.9} parent=0
    #allocation0 [shape = 'u8[16384]{0}', space=vmem, size = 0x4000, scoped, tag = 'scoped mem for output reshape']
    %v2 = vld [vmem:[%s0] ss:$4 sm:$0xf]
    %vm3 = vcmask 261120
    %4 = vst.msk [vmem:[#allocation0] ss:$8 sm:$0xf] %vm3, %v2
    %s5 = scalar_lea.vmem %s0, 3
    %v6 = vld [vmem:[%s5] ss:$4 sm:$0x7]
    %7 = vrot.lane.b32.xlu0 %v6, 96
    %v8 = vpop.permute.xlu0 %7
    %vm9 = vcmask 1048320
    %10 = vst.msk [vmem:[#allocation0] ss:$8 sm:$0x7] %vm9, %v8
    %s11 = scalar_lea.vmem %s0, 2
    %v12 = vld [vmem:[%s11] ss:$4 sm:$0x7]
    %13 = vrot.lane.b32.xlu0 %v12, 64
    %v14 = vpop.permute.xlu0 %13
    %vm15 = vcmask 785920
    %16 = vst.msk [vmem:[#allocation0] ss:$8 sm:$0x7] %vm15, %v14
    %s17 = scalar_lea.vmem %s0, 1
    %v18 = vld [vmem:[%s17] ss:$4 sm:$0xf]
    %19 = vrot.lane.b32.xlu0 %v18, 32
    %v20 = vpop.permute.xlu0 %19
    %vm21 = vcmask 523520
    %22 = vst.msk [vmem:[#allocation0] ss:$8 sm:$0xf] %vm21, %v20
    %s24 = sshllo.u32 0, 1
    %v26 = vld [vmem:[#allocation0] sm:%s24]
    %s27 = sshllo.u32 0, 1
    %28 = vst [vmem:[%s1] sm:%s27] %v26
    %s29 = scalar_lea.vmem [#allocation0], 8
    %v30 = vld [vmem:[%s29] sm:%s24]
    %s31 = sshllo.u32 0, 1
    %s32 = scalar_lea.vmem %s1, 1
    %33 = vst [vmem:[%s32] sm:%s31] %v30
    %s34 = scalar_lea.vmem [#allocation0], 16
    %v35 = vld [vmem:[%s34] sm:%s24]
    %s36 = sshllo.u32 0, 1
    %s37 = smul.addr 1, 2
    %s38 = scalar_lea.vmem %s1, %s37
    %39 = vst [vmem:[%s38] sm:%s36] %v35
    %s40 = scalar_lea.vmem [#allocation0], 24
    %v41 = vld [vmem:[%s40] sm:%s24]
    %s42 = sshllo.u32 0, 1
    %s43 = smul.addr 1, 3
    %s44 = scalar_lea.vmem %s1, %s43
    %45 = vst [vmem:[%s44] sm:%s42] %v41

// kernel: cnn_forward.1
$region0: #{cnn_forward.1}
  #allocation0 [shape = 'u32[]', space=smem, size = 0x4, offset = 0x4, fixed_abs, tag = 'smem constant byte address 0x4 - core index']
  #allocation1 [shape = 'u32[144,128]{1,0:T(1,128)}', space=vmem, size = 0x12000, scoped, tag = 'internal scratch']
  #allocation2 [shape = 'bf16[1,18,288]{2,1,0:T(8,128)(2,1)}', space=vmem, size = 0x4800, scoped, tag = 'scratch operand']
  #allocation3 [shape = 'bf16[1,1568]{1,0:T(2,128)(2,1)}', space=vmem, size = 0x1a00, scoped, tag = 'scratch operand']
  %s0 = inlined_call_operand.vmem [shape: bf16[400,100], index: 0, kind: input, shape index: {}]
  %s1 = inlined_call_operand.vmem [shape: bf16[100,64], index: 1, kind: input, shape index: {}]
  %s2 = inlined_call_operand.vmem [shape: f32[1,16], index: 2, kind: input, shape index: {}]
  %s3 = inlined_call_operand.vmem [shape: bf16[5,288,448], index: 3, kind: input, shape index: {}]
  %s4 = inlined_call_operand.vmem [shape: f32[1,448], index: 4, kind: input, shape index: {}]
  %s5 = inlined_call_operand.vmem [shape: bf16[1568,10], index: 5, kind: input, shape index: {}]
  %s6 = inlined_call_operand.vmem [shape: f32[1,10], index: 6, kind: input, shape index: {}]
  %s7 = inlined_call_operand.hbm [shape: f32[2,1,10], index: 7, kind: output, shape index: {}]
  %s8 = sld [smem:[#allocation0]]
  $region61: #{cnn_forward.1} parent=0
    _
  %s10 = ssub.s32 1, %s8
  %s11 = scalar_select 0, %s10, %s8
  $region1: #{cnn_forward.1} parent=0
    #allocation4 [shape = 'u8[1024]{0}', space=vmem, size = 0x400, scoped, tag = 'output window, operand 0']
    #allocation5 [shape = 's32[2]{0}', space=sflag, size = 0x8, scoped, tag = 'scoped memory for cnn_forward.1']
    %12 = vsyncpa [#allocation5], 0
    %s13 = scalar_lea.sflag [#allocation5], 1
    %14 = vsyncpa %s13, 0
    loop: start=0, step=1, limit=4
    $region2: #{cnn_forward.1} parent=1 // loop_pre_header
      _
    $region3: #{cnn_forward.1} parent=1 // loop_header
      %s16 = sphi 0, %s20
      %p17 = scmp.ge.s32.totalorder %s16, 4
      %s26 = sphi 0, %s28
      %s29 = sphi 0, %s26
      %s30 = sphi 0, %s29
      %s46 = sphi 0, %s30
      %s50 = sphi 0, %s50
      %s52 = sphi 0, %s50
      %s53 = sphi 0, %s52
      %s67 = sphi 0, %s53
      %s71 = sphi 0, %s71
      %s73 = sphi 0, %s71
      %s74 = sphi 0, %s73
      %s88 = sphi 0, %s74
      %s92 = sphi 0, %s92
      %s94 = sphi 0, %s92
      %s95 = sphi 0, %s94
      %s109 = sphi 0, %s95
      %s113 = sphi 0, %s113
      %s115 = sphi 0, %s113
      %s116 = sphi 0, %s115
      %s130 = sphi 0, %s116
      %s134 = sphi 0, %s134
      %s136 = sphi 0, %s134
      %s137 = sphi 0, %s136
      %s151 = sphi 0, %s137
      %s155 = sphi 0, %s155
      %s157 = sphi 0, %s155
      %s158 = sphi 0, %s157
      %s172 = sphi 0, %s158
      %s178 = sphi 0, %s180
      %s181 = sphi 0, %s178
      %s182 = sphi 0, %s181
      %s198 = sphi 0, %s182
    $region4: #{cnn_forward.1} parent=1 // loop_header_branch
      %19 = sbr.rel (%p17) target = $region8
    $region5: #{cnn_forward.1} parent=1 // loop_body
      %s21 = ssub.s32 %s16, 1
      %s22 = ssub.s32 %s16, 2
      %s23 = sadd.s32 %s16, 1
      %s24 = ssub.s32 %s16, %s23
      %p25 = scmp.eq.s32.totalorder %s24, 0
      %s27 = sadd.s32 %s26, 1
      %s28 = scalar_select %p25, %s26, %s27
      %p31 = pneg %p25
      %p32 = scmp.eq.s32.totalorder %s16, 1
      %p33 = por %p31, %p32
      %p34 = scmp.ne.s32.totalorder %s26, %s29
      %p35 = scmp.eq.s32.totalorder %s16, 0
      %p36 = por %p34, %p35
      %p37 = scmp.ne.s32.totalorder %s26, %s29
      %p38 = scmp.eq.s32.totalorder %s21, 1
      %p39 = por %p37, %p38
      %p40 = scmp.ne.s32.totalorder %s29, %s30
      %p41 = scmp.eq.s32.totalorder %s21, 0
      %p42 = por %p40, %p41
      %p43 = scmp.ne.s32.totalorder %s29, %s30
      %p44 = scmp.eq.s32.totalorder %s22, 1
      %p45 = por %p43, %p44
      %p47 = scmp.ne.s32.totalorder %s30, %s46
      %p48 = scmp.eq.s32.totalorder %s22, 0
      %p49 = por %p47, %p48
      %s51 = sadd.s32 %s50, 1
      %p54 = scmp.eq.s32.totalorder %s16, 1
      %p55 = scmp.ne.s32.totalorder %s50, %s52
      %p56 = scmp.eq.s32.totalorder %s16, 0
      %p57 = por %p55, %p56
      %p58 = scmp.ne.s32.totalorder %s50, %s52
      %p59 = scmp.eq.s32.totalorder %s21, 1
      %p60 = por %p58, %p59
      %p61 = scmp.ne.s32.totalorder %s52, %s53
      %p62 = scmp.eq.s32.totalorder %s21, 0
      %p63 = por %p61, %p62
      %p64 = scmp.ne.s32.totalorder %s52, %s53
      %p65 = scmp.eq.s32.totalorder %s22, 1
      %p66 = por %p64, %p65
      %p68 = scmp.ne.s32.totalorder %s53, %s67
      %p69 = scmp.eq.s32.totalorder %s22, 0
      %p70 = por %p68, %p69
      %s72 = sadd.s32 %s71, 1
      %p75 = scmp.eq.s32.totalorder %s16, 1
      %p76 = scmp.ne.s32.totalorder %s71, %s73
      %p77 = scmp.eq.s32.totalorder %s16, 0
      %p78 = por %p76, %p77
      %p79 = scmp.ne.s32.totalorder %s71, %s73
      %p80 = scmp.eq.s32.totalorder %s21, 1
      %p81 = por %p79, %p80
      %p82 = scmp.ne.s32.totalorder %s73, %s74
      %p83 = scmp.eq.s32.totalorder %s21, 0
      %p84 = por %p82, %p83
      %p85 = scmp.ne.s32.totalorder %s73, %s74
      %p86 = scmp.eq.s32.totalorder %s22, 1
      %p87 = por %p85, %p86
      %p89 = scmp.ne.s32.totalorder %s74, %s88
      %p90 = scmp.eq.s32.totalorder %s22, 0
      %p91 = por %p89, %p90
      %s93 = sadd.s32 %s92, 1
      %p96 = scmp.eq.s32.totalorder %s16, 1
      %p97 = scmp.ne.s32.totalorder %s92, %s94
      %p98 = scmp.eq.s32.totalorder %s16, 0
      %p99 = por %p97, %p98
      %p100 = scmp.ne.s32.totalorder %s92, %s94
      %p101 = scmp.eq.s32.totalorder %s21, 1
      %p102 = por %p100, %p101
      %p103 = scmp.ne.s32.totalorder %s94, %s95
      %p104 = scmp.eq.s32.totalorder %s21, 0
      %p105 = por %p103, %p104
      %p106 = scmp.ne.s32.totalorder %s94, %s95
      %p107 = scmp.eq.s32.totalorder %s22, 1
      %p108 = por %p106, %p107
      %p110 = scmp.ne.s32.totalorder %s95, %s109
      %p111 = scmp.eq.s32.totalorder %s22, 0
      %p112 = por %p110, %p111
      %s114 = sadd.s32 %s113, 1
      %p117 = scmp.eq.s32.totalorder %s16, 1
      %p118 = scmp.ne.s32.totalorder %s113, %s115
      %p119 = scmp.eq.s32.totalorder %s16, 0
      %p120 = por %p118, %p119
      %p121 = scmp.ne.s32.totalorder %s113, %s115
      %p122 = scmp.eq.s32.totalorder %s21, 1
      %p123 = por %p121, %p122
      %p124 = scmp.ne.s32.totalorder %s115, %s116
      %p125 = scmp.eq.s32.totalorder %s21, 0
      %p126 = por %p124, %p125
      %p127 = scmp.ne.s32.totalorder %s115, %s116
      %p128 = scmp.eq.s32.totalorder %s22, 1
      %p129 = por %p127, %p128
      %p131 = scmp.ne.s32.totalorder %s116, %s130
      %p132 = scmp.eq.s32.totalorder %s22, 0
      %p133 = por %p131, %p132
      %s135 = sadd.s32 %s134, 1
      %p138 = scmp.eq.s32.totalorder %s16, 1
      %p139 = scmp.ne.s32.totalorder %s134, %s136
      %p140 = scmp.eq.s32.totalorder %s16, 0
      %p141 = por %p139, %p140
      %p142 = scmp.ne.s32.totalorder %s134, %s136
      %p143 = scmp.eq.s32.totalorder %s21, 1
      %p144 = por %p142, %p143
      %p145 = scmp.ne.s32.totalorder %s136, %s137
      %p146 = scmp.eq.s32.totalorder %s21, 0
      %p147 = por %p145, %p146
      %p148 = scmp.ne.s32.totalorder %s136, %s137
      %p149 = scmp.eq.s32.totalorder %s22, 1
      %p150 = por %p148, %p149
      %p152 = scmp.ne.s32.totalorder %s137, %s151
      %p153 = scmp.eq.s32.totalorder %s22, 0
      %p154 = por %p152, %p153
      %s156 = sadd.s32 %s155, 1
      %p159 = scmp.eq.s32.totalorder %s16, 1
      %p160 = scmp.ne.s32.totalorder %s155, %s157
      %p161 = scmp.eq.s32.totalorder %s16, 0
      %p162 = por %p160, %p161
      %p163 = scmp.ne.s32.totalorder %s155, %s157
      %p164 = scmp.eq.s32.totalorder %s21, 1
      %p165 = por %p163, %p164
      %p166 = scmp.ne.s32.totalorder %s157, %s158
      %p167 = scmp.eq.s32.totalorder %s21, 0
      %p168 = por %p166, %p167
      %p169 = scmp.ne.s32.totalorder %s157, %s158
      %p170 = scmp.eq.s32.totalorder %s22, 1
      %p171 = por %p169, %p170
      %p173 = scmp.ne.s32.totalorder %s158, %s172
      %p174 = scmp.eq.s32.totalorder %s22, 0
      %p175 = por %p173, %p174
      %s176 = ssub.s32 %s16, %s23
      %p177 = scmp.eq.s32.totalorder %s176, 0
      %s179 = sadd.s32 %s178, 1
      %s180 = scalar_select %p177, %s178, %s179
      %p183 = pneg %p177
      %p184 = scmp.eq.s32.totalorder %s16, 1
      %p185 = por %p183, %p184
      %p186 = scmp.ne.s32.totalorder %s178, %s181
      %p187 = scmp.eq.s32.totalorder %s16, 0
      %p188 = por %p186, %p187
      %p189 = scmp.ne.s32.totalorder %s178, %s181
      %p190 = scmp.eq.s32.totalorder %s21, 1
      %p191 = por %p189, %p190
      %p192 = scmp.ne.s32.totalorder %s181, %s182
      %p193 = scmp.eq.s32.totalorder %s21, 0
      %p194 = por %p192, %p193
      %p195 = scmp.ne.s32.totalorder %s181, %s182
      %p196 = scmp.eq.s32.totalorder %s22, 1
      %p197 = por %p195, %p196
      %p199 = scmp.ne.s32.totalorder %s182, %s198
      %p200 = scmp.eq.s32.totalorder %s22, 0
      %p201 = por %p199, %p200
      %p202 = scmp.le.s32.totalorder 1, %s16
      %p203 = scmp.lt.s32.totalorder %s16, 3
      %p204 = pnand %p202, %p203
      %p205 = pneg %p204
      // Predicated region
      $region9: #{cnn_forward.1} parent=5 // pred_check
        _
      $region10: #{cnn_forward.1} parent=5 // pred_check_branch
        %207 = sbr.rel (%p204) target = $region12
      $region11: #{cnn_forward.1} parent=5 // pred_region
        %s208 = ssub.s32 %s16, 1
        // Predicated region
        $region13: #{cnn_forward.1} parent=11 // pred_check
          %p209 = pneg %p63
        $region14: #{cnn_forward.1} parent=11 // pred_check_branch
          %211 = sbr.rel (%p209) target = $region16
        $region15: #{cnn_forward.1} parent=11 // pred_region
          _
        $region16: #{cnn_forward.1} parent=11 // pred_fallthru
          _
        // Predicated region
        $region17: #{cnn_forward.1} parent=11 // pred_check
          %p212 = pneg %p84
        $region18: #{cnn_forward.1} parent=11 // pred_check_branch
          %214 = sbr.rel (%p212) target = $region20
        $region19: #{cnn_forward.1} parent=11 // pred_region
          _
        $region20: #{cnn_forward.1} parent=11 // pred_fallthru
          _
        // Predicated region
        $region21: #{cnn_forward.1} parent=11 // pred_check
          %p215 = pneg %p105
        $region22: #{cnn_forward.1} parent=11 // pred_check_branch
          %217 = sbr.rel (%p215) target = $region24
        $region23: #{cnn_forward.1} parent=11 // pred_region
          _
        $region24: #{cnn_forward.1} parent=11 // pred_fallthru
          _
        // Predicated region
        $region25: #{cnn_forward.1} parent=11 // pred_check
          %p218 = pneg %p126
        $region26: #{cnn_forward.1} parent=11 // pred_check_branch
          %220 = sbr.rel (%p218) target = $region28
        $region27: #{cnn_forward.1} parent=11 // pred_region
          _
        $region28: #{cnn_forward.1} parent=11 // pred_fallthru
          _
        // Predicated region
        $region29: #{cnn_forward.1} parent=11 // pred_check
          %p221 = pneg %p147
        $region30: #{cnn_forward.1} parent=11 // pred_check_branch
          %223 = sbr.rel (%p221) target = $region32
        $region31: #{cnn_forward.1} parent=11 // pred_region
          _
        $region32: #{cnn_forward.1} parent=11 // pred_fallthru
          _
        // Predicated region
        $region33: #{cnn_forward.1} parent=11 // pred_check
          %p224 = pneg %p168
        $region34: #{cnn_forward.1} parent=11 // pred_check_branch
          %226 = sbr.rel (%p224) target = $region36
        $region35: #{cnn_forward.1} parent=11 // pred_region
          _
        $region36: #{cnn_forward.1} parent=11 // pred_fallthru
          _
      $region12: #{cnn_forward.1} parent=5 // pred_fallthru
        _
      %p227 = scmp.lt.s32.totalorder %s16, 2
      // Predicated region
      $region37: #{cnn_forward.1} parent=5 // pred_check
        %p228 = pneg %p227
      $region38: #{cnn_forward.1} parent=5 // pred_check_branch
        %230 = sbr.rel (%p228) target = $region40
      $region39: #{cnn_forward.1} parent=5 // pred_region
        // Predicated region
        $region41: #{cnn_forward.1} parent=39 // pred_check
          %p231 = pneg %p36
        $region42: #{cnn_forward.1} parent=39 // pred_check_branch
          %233 = sbr.rel (%p231) target = $region44
        $region43: #{cnn_forward.1} parent=39 // pred_region
          %s234 = smul.u32 25, %s16
          %p235 = scmp.lt.s32.totalorder %s234, 49
          %s236 = scalar_select %p235, %s234, 49
          %s237 = smul.addr %s236, 4
          %s238 = scalar_lea.vmem %s0, %s237
          %s239 = smul.u32 25, %s16
        $region44: #{cnn_forward.1} parent=39 // pred_fallthru
          _
      $region40: #{cnn_forward.1} parent=5 // pred_fallthru
        _
      %p240 = scmp.le.s32.totalorder 1, %s16
      %p241 = scmp.lt.s32.totalorder %s16, 3
      %p242 = pnand %p240, %p241
      %p243 = pneg %p242
      // Predicated region
      $region45: #{cnn_forward.1} parent=5 // pred_check
        _
      $region46: #{cnn_forward.1} parent=5 // pred_check_branch
        %245 = sbr.rel (%p242) target = $region48
      $region47: #{cnn_forward.1} parent=5 // pred_region
        %s246 = ssub.s32 %s16, 1
        %s247 = smul.u32 25, %s21
        %p248 = scmp.lt.s32.totalorder %s247, 49
        %s249 = scalar_select %p248, %s247, 49
        %s250 = smul.addr %s249, 4
        %s251 = scalar_lea.vmem %s0, %s250
        %p252 = pneg %p42
        %p253 = pneg %p39
        %p254 = pneg %p63
        %p255 = pneg %p60
        %p256 = pneg %p84
        %p257 = pneg %p81
        %p258 = pneg %p105
        %p259 = pneg %p102
        %p260 = pneg %p126
        %p261 = pneg %p123
        %p262 = pneg %p147
        %p263 = pneg %p144
        %p264 = pneg %p168
        %p265 = pneg %p165
        %p266 = pneg %p194
        %p267 = pneg %p191
        %s268 = sand.u32 %s181, 1
        %s269 = scalar_lea.sflag [#allocation5], %s268
        %s270 = sand.u32 %s181, 1
        %s271 = scalar_lea.vmem [#allocation4], %s270
        %s272 = smul.u32 25, %s21
        %p273 = scmp.lt.s32.totalorder %s272, 49
        %s274 = scalar_select %p273, %s272, 49
        %s275 = smul.addr %s274, 4
        %s276 = scalar_lea.vmem %s0, %s275
        %s277 = smul.u32 25, %s21
        %v279 = vld [vmem:[%s276] sm:$0xf]
        %v280 = vld [vmem:[%s276 + $0x4] sm:$0xf]
        %v281 = vld [vmem:[%s276 + $0x8] sm:$0xf]
        %v282 = vld [vmem:[%s276 + $0xc] sm:$0xf]
        %v283 = vld [vmem:[%s276 + $0x10] sm:$0xf]
        %v284 = vld [vmem:[%s276 + $0x14] sm:$0xf]
        %v285 = vld [vmem:[%s276 + $0x18] sm:$0xf]
        %v286 = vld [vmem:[%s276 + $0x1c] sm:$0xf]
        %v287 = vld [vmem:[%s276 + $0x20] sm:$0xf]
        %v288 = vld [vmem:[%s276 + $0x24] sm:$0xf]
        %v289 = vld [vmem:[%s276 + $0x28] sm:$0xf]
        %v290 = vld [vmem:[%s276 + $0x2c] sm:$0xf]
        %v291 = vld [vmem:[%s276 + $0x30] sm:$0xf]
        %v292 = vld [vmem:[%s276 + $0x34] sm:$0xf]
        %v293 = vld [vmem:[%s276 + $0x38] sm:$0xf]
        %v294 = vld [vmem:[%s276 + $0x3c] sm:$0xf]
        %v295 = vld [vmem:[%s276 + $0x40] sm:$0xf]
        %v296 = vld [vmem:[%s276 + $0x44] sm:$0xf]
        %v297 = vld [vmem:[%s276 + $0x48] sm:$0xf]
        %v298 = vld [vmem:[%s276 + $0x4c] sm:$0xf]
        %v299 = vld [vmem:[%s276 + $0x50] sm:$0xf]
        %v300 = vld [vmem:[%s276 + $0x54] sm:$0xf]
        %v301 = vld [vmem:[%s276 + $0x58] sm:$0xf]
        %v302 = vld [vmem:[%s276 + $0x5c] sm:$0xf]
        %v303 = vld [vmem:[%s276 + $0x60] sm:$0xf]
        %v304 = vld [vmem:[%s1] sm:$0xf]
        %v305 = vld [vmem:[%s1 + $0x4] sm:$0xf]
        %v306 = vld [vmem:[%s1 + $0x8] sm:$0xf]
        %v307 = vld [vmem:[%s1 + $0xc] sm:$0xf]
        %v308 = vld [vmem:[%s1 + $0x10] sm:$0xf]
        %v309 = vld [vmem:[%s1 + $0x14] sm:$0xf]
        %v310 = vld [vmem:[%s1 + $0x18] sm:$0xf]
        %v311 = vld [vmem:[%s1 + $0x1c] sm:$0xf]
        %v312 = vld [vmem:[%s1 + $0x20] sm:$0xf]
        %v313 = vld [vmem:[%s1 + $0x24] sm:$0xf]
        %v314 = vld [vmem:[%s1 + $0x28] sm:$0xf]
        %v315 = vld [vmem:[%s1 + $0x2c] sm:$0xf]
        %v316 = vld [vmem:[%s1 + $0x30] sm:$0x3]
        %v342 = vunpack.c.l.b16 %v279
        %v343 = vunpack.c.l.b16 %v280
        %v344 = vunpack.c.l.b16 %v281
        %v345 = vunpack.c.l.b16 %v282
        %v346 = vunpack.c.l.b16 %v283
        %v347 = vunpack.c.l.b16 %v284
        %v348 = vunpack.c.l.b16 %v285
        %v349 = vunpack.c.l.b16 %v286
        %v350 = vunpack.c.l.b16 %v287
        %v351 = vunpack.c.l.b16 %v288
        %v352 = vunpack.c.l.b16 %v289
        %v353 = vunpack.c.l.b16 %v290
        %v354 = vunpack.c.l.b16 %v291
        %v355 = vunpack.c.l.b16 %v292
        %v356 = vunpack.c.l.b16 %v293
        %v357 = vunpack.c.l.b16 %v294
        %v358 = vunpack.c.l.b16 %v295
        %v359 = vunpack.c.l.b16 %v296
        %v360 = vunpack.c.l.b16 %v297
        %v361 = vunpack.c.l.b16 %v298
        %v362 = vunpack.c.l.b16 %v299
        %v363 = vunpack.c.l.b16 %v300
        %v364 = vunpack.c.l.b16 %v301
        %v365 = vunpack.c.l.b16 %v302
        %v366 = vunpack.c.l.b16 %v303
        %v367 = vpack.c.b16 %v343, %v342
        %v368 = vpack.c.b16 %v345, %v344
        %v369 = vpack.c.b16 %v347, %v346
        %v370 = vpack.c.b16 %v349, %v348
        %v371 = vpack.c.b16 %v351, %v350
        %v372 = vpack.c.b16 %v353, %v352
        %v373 = vpack.c.b16 %v355, %v354
        %v374 = vpack.c.b16 %v357, %v356
        %v375 = vpack.c.b16 %v359, %v358
        %v376 = vpack.c.b16 %v361, %v360
        %v377 = vpack.c.b16 %v363, %v362
        %v378 = vpack.c.b16 %v365, %v364
        %v379 = vpack.c.b16 %v366, %v366
        %v393 = vunpack.c.l.b16 %v304
        %v394 = vunpack.c.l.b16 %v305
        %v395 = vunpack.c.l.b16 %v306
        %v396 = vunpack.c.l.b16 %v307
        %v397 = vunpack.c.l.b16 %v308
        %v398 = vunpack.c.l.b16 %v309
        %v399 = vunpack.c.l.b16 %v310
        %v400 = vunpack.c.l.b16 %v311
        %v401 = vunpack.c.l.b16 %v312
        %v402 = vunpack.c.l.b16 %v313
        %v403 = vunpack.c.l.b16 %v314
        %v404 = vunpack.c.l.b16 %v315
        %v405 = vunpack.c.l.b16 %v316
        %v406 = vpack.c.b16 %v394, %v393
        %v407 = vpack.c.b16 %v396, %v395
        %v408 = vpack.c.b16 %v398, %v397
        %v409 = vpack.c.b16 %v400, %v399
        %v410 = vpack.c.b16 %v402, %v401
        %v411 = vpack.c.b16 %v404, %v403
        %v412 = vpack.c.b16 %v405, %v405
        %vm419 = vcmask 818176
        %v421 = vsel %vm419, %v367, 0
        %v424 = vsel %vm419, %v368, 0
        %v427 = vsel %vm419, %v369, 0
        %v430 = vsel %vm419, %v370, 0
        %v433 = vsel %vm419, %v371, 0
        %v436 = vsel %vm419, %v372, 0
        %v439 = vsel %vm419, %v373, 0
        %v442 = vsel %vm419, %v374, 0
        %v445 = vsel %vm419, %v375, 0
        %v448 = vsel %vm419, %v376, 0
        %v451 = vsel %vm419, %v377, 0
        %v454 = vsel %vm419, %v378, 0
        %v457 = vsel %vm419, %v379, 0
        %vm459 = vcmask 1041408
        %v461 = vsel %vm459, %v412, 0
        %463 = vmatprep.subr.bf16.mxu0 0
        %464 = vmatpush1.bf16.msra.mxu0 %v406
        %465 = vmatprep.subr.bf16.mxu0 0
        %466 = vmatpush1.bf16.msra.mxu0 %v407
        %467 = vmatprep.subr.bf16.mxu0 0
        %468 = vmatpush1.bf16.msra.mxu0 %v408
        %469 = vmatprep.subr.bf16.mxu0 0
        %470 = vmatpush1.bf16.msra.mxu0 %v409
        %471 = vmatprep.subr.bf16.mxu0 0
        %472 = vmatpush1.bf16.msra.mxu0 %v410
        %473 = vmatprep.subr.bf16.mxu0 0
        %474 = vmatpush1.bf16.msra.mxu0 %v411
        %475 = vmatprep.subr.bf16.mxu0 0
        %476 = vmatpush1.bf16.msra.mxu0 %v461
        %477 = vmatprep.subr.bf16.mxu0 0
        %478 = vmatpush1.bf16.msra.mxu0 0
        %479 = vmatprep.subr.bf16.mxu0 0
        %480 = vmatpush1.bf16.msra.mxu0 0
        %481 = vmatprep.subr.bf16.mxu0 0
        %482 = vmatpush1.bf16.msra.mxu0 0
        %483 = vmatprep.subr.bf16.mxu0 0
        %484 = vmatpush1.bf16.msra.mxu0 0
        %485 = vmatprep.subr.bf16.mxu0 0
        %486 = vmatpush1.bf16.msra.mxu0 0
        %487 = vmatprep.subr.bf16.mxu0 0
        %488 = vmatpush1.bf16.msra.mxu0 0
        %489 = vmatprep.subr.bf16.mxu0 0
        %490 = vmatpush1.bf16.msra.mxu0 0
        %491 = vmatprep.subr.bf16.mxu0 0
        %492 = vmatpush1.bf16.msra.mxu0 0
        %493 = vmatprep.subr.bf16.mxu0 0
        %494 = vmatpush1.bf16.msra.mxu0 0
        %495 = vmatprep.mubr.bf16.mxu0 0
        %496 = vmatmul.mubr.bf16.gmra.mrb[0].mxu0 %v421
        %v497 = vpop.f32.mrb[0].mxu0
        %v498 = vadd.f32 0.0, %v497
        %v499 = vpop.f32.mrb[0].mxu0
        %v500 = vpop.f32.mrb[0].mxu0
        %v501 = vadd.f32 0.0, %v500
        %v502 = vpop.f32.mrb[0].mxu0
        %503 = vmatprep.mubr.bf16.mxu0 0
        %504 = vmatmul.mubr.bf16.gmra.mrb[0].mxu0 %v424
        %v505 = vpop.f32.mrb[0].mxu0
        %v506 = vadd.f32 0.0, %v505
        %v507 = vpop.f32.mrb[0].mxu0
        %v508 = vpop.f32.mrb[0].mxu0
        %v509 = vadd.f32 0.0, %v508
        %v510 = vpop.f32.mrb[0].mxu0
        %511 = vmatprep.mubr.bf16.mxu0 0
        %512 = vmatmul.mubr.bf16.gmra.mrb[0].mxu0 %v427
        %v513 = vpop.f32.mrb[0].mxu0
        %v514 = vadd.f32 0.0, %v513
        %v515 = vpop.f32.mrb[0].mxu0
        %v516 = vpop.f32.mrb[0].mxu0
        %v517 = vadd.f32 0.0, %v516
        %v518 = vpop.f32.mrb[0].mxu0
        %519 = vmatprep.mubr.bf16.mxu0 0
        %520 = vmatmul.mubr.bf16.gmra.mrb[0].mxu0 %v430
        %v521 = vpop.f32.mrb[0].mxu0
        %v522 = vadd.f32 0.0, %v521
        %v523 = vpop.f32.mrb[0].mxu0
        %v524 = vpop.f32.mrb[0].mxu0
        %v525 = vadd.f32 0.0, %v524
        %v526 = vpop.f32.mrb[0].mxu0
        %527 = vmatprep.mubr.bf16.mxu0 0
        %528 = vmatmul.mubr.bf16.gmra.mrb[0].mxu0 %v433
        %v529 = vpop.f32.mrb[0].mxu0
        %v530 = vadd.f32 0.0, %v529
        %v531 = vpop.f32.mrb[0].mxu0
        %v532 = vpop.f32.mrb[0].mxu0
        %v533 = vadd.f32 0.0, %v532
        %v534 = vpop.f32.mrb[0].mxu0
        %535 = vmatprep.mubr.bf16.mxu0 0
        %536 = vmatmul.mubr.bf16.gmra.mrb[0].mxu0 %v436
        %v537 = vpop.f32.mrb[0].mxu0
        %v538 = vadd.f32 0.0, %v537
        %v539 = vpop.f32.mrb[0].mxu0
        %v540 = vpop.f32.mrb[0].mxu0
        %v541 = vadd.f32 0.0, %v540
        %v542 = vpop.f32.mrb[0].mxu0
        %543 = vmatprep.mubr.bf16.mxu0 0
        %544 = vmatmul.mubr.bf16.gmra.mrb[0].mxu0 %v439
        %v545 = vpop.f32.mrb[0].mxu0
        %v546 = vadd.f32 0.0, %v545
        %v547 = vpop.f32.mrb[0].mxu0
        %v548 = vpop.f32.mrb[0].mxu0
        %v549 = vadd.f32 0.0, %v548
        %v550 = vpop.f32.mrb[0].mxu0
        %551 = vmatprep.mubr.bf16.mxu0 0
        %552 = vmatmul.mubr.bf16.gmra.mrb[0].mxu0 %v442
        %v553 = vpop.f32.mrb[0].mxu0
        %v554 = vadd.f32 0.0, %v553
        %v555 = vpop.f32.mrb[0].mxu0
        %v556 = vpop.f32.mrb[0].mxu0
        %v557 = vadd.f32 0.0, %v556
        %v558 = vpop.f32.mrb[0].mxu0
        %559 = vmatprep.mubr.bf16.mxu0 0
        %560 = vmatmul.mubr.bf16.gmra.mrb[0].mxu0 %v445
        %v561 = vpop.f32.mrb[0].mxu0
        %v562 = vadd.f32 0.0, %v561
        %v563 = vpop.f32.mrb[0].mxu0
        %v564 = vpop.f32.mrb[0].mxu0
        %v565 = vadd.f32 0.0, %v564
        %v566 = vpop.f32.mrb[0].mxu0
        %567 = vmatprep.mubr.bf16.mxu0 0
        %568 = vmatmul.mubr.bf16.gmra.mrb[0].mxu0 %v448
        %v569 = vpop.f32.mrb[0].mxu0
        %v570 = vadd.f32 0.0, %v569
        %v571 = vpop.f32.mrb[0].mxu0
        %v572 = vpop.f32.mrb[0].mxu0
        %v573 = vadd.f32 0.0, %v572
        %v574 = vpop.f32.mrb[0].mxu0
        %575 = vmatprep.mubr.bf16.mxu0 0
        %576 = vmatmul.mubr.bf16.gmra.mrb[0].mxu0 %v451
        %v577 = vpop.f32.mrb[0].mxu0
        %v578 = vadd.f32 0.0, %v577
        %v579 = vpop.f32.mrb[0].mxu0
        %v580 = vpop.f32.mrb[0].mxu0
        %v581 = vadd.f32 0.0, %v580
        %v582 = vpop.f32.mrb[0].mxu0
        %583 = vmatprep.mubr.bf16.mxu0 0
        %584 = vmatmul.mubr.bf16.gmra.mrb[0].mxu0 %v454
        %v585 = vpop.f32.mrb[0].mxu0
        %v586 = vadd.f32 0.0, %v585
        %v587 = vpop.f32.mrb[0].mxu0
        %v588 = vpop.f32.mrb[0].mxu0
        %v589 = vadd.f32 0.0, %v588
        %v590 = vpop.f32.mrb[0].mxu0
        %591 = vmatprep.mubr.bf16.mxu0 0
        %592 = vmatmul.mubr.bf16.gmra.mrb[0].mxu0 %v457
        %v593 = vpop.f32.mrb[0].mxu0
        %v594 = vadd.f32 0.0, %v593
        %v595 = vpop.f32.mrb[0].mxu0
        %v596 = vpop.f32.mrb[0].mxu0
        %v597 = vpop.f32.mrb[0].mxu0
        %598 = vdwg.mxu0
        %624 = vrot.lane.b32.xlu0 %v498, 112
        %v625 = vpop.permute.xlu0 %624
        %626 = vrot.lane.b32.xlu0 %v501, 112
        %v627 = vpop.permute.xlu0 %626
        %628 = vrot.lane.b32.xlu0 %v506, 112
        %v629 = vpop.permute.xlu0 %628
        %630 = vrot.lane.b32.xlu0 %v509, 112
        %v631 = vpop.permute.xlu0 %630
        %632 = vrot.lane.b32.xlu0 %v514, 112
        %v633 = vpop.permute.xlu0 %632
        %634 = vrot.lane.b32.xlu0 %v517, 112
        %v635 = vpop.permute.xlu0 %634
        %636 = vrot.lane.b32.xlu0 %v522, 112
        %v637 = vpop.permute.xlu0 %636
        %638 = vrot.lane.b32.xlu0 %v525, 112
        %v639 = vpop.permute.xlu0 %638
        %640 = vrot.lane.b32.xlu0 %v530, 112
        %v641 = vpop.permute.xlu0 %640
        %642 = vrot.lane.b32.xlu0 %v533, 112
        %v643 = vpop.permute.xlu0 %642
        %644 = vrot.lane.b32.xlu0 %v538, 112
        %v645 = vpop.permute.xlu0 %644
        %646 = vrot.lane.b32.xlu0 %v541, 112
        %v647 = vpop.permute.xlu0 %646
        %648 = vrot.lane.b32.xlu0 %v546, 112
        %v649 = vpop.permute.xlu0 %648
        %650 = vrot.lane.b32.xlu0 %v549, 112
        %v651 = vpop.permute.xlu0 %650
        %652 = vrot.lane.b32.xlu0 %v554, 112
        %v653 = vpop.permute.xlu0 %652
        %654 = vrot.lane.b32.xlu0 %v557, 112
        %v655 = vpop.permute.xlu0 %654
        %656 = vrot.lane.b32.xlu0 %v562, 112
        %v657 = vpop.permute.xlu0 %656
        %658 = vrot.lane.b32.xlu0 %v565, 112
        %v659 = vpop.permute.xlu0 %658
        %660 = vrot.lane.b32.xlu0 %v570, 112
        %v661 = vpop.permute.xlu0 %660
        %662 = vrot.lane.b32.xlu0 %v573, 112
        %v663 = vpop.permute.xlu0 %662
        %664 = vrot.lane.b32.xlu0 %v578, 112
        %v665 = vpop.permute.xlu0 %664
        %666 = vrot.lane.b32.xlu0 %v581, 112
        %v667 = vpop.permute.xlu0 %666
        %668 = vrot.lane.b32.xlu0 %v586, 112
        %v669 = vpop.permute.xlu0 %668
        %670 = vrot.lane.b32.xlu0 %v589, 112
        %v671 = vpop.permute.xlu0 %670
        %672 = vrot.lane.b32.xlu0 %v594, 112
        %v673 = vpop.permute.xlu0 %672
        %v699 = vmax.f32 %v498, %v625
        %v700 = vmax.f32 %v501, %v627
        %v701 = vmax.f32 %v506, %v629
        %v702 = vmax.f32 %v509, %v631
        %v703 = vmax.f32 %v514, %v633
        %v704 = vmax.f32 %v517, %v635
        %v705 = vmax.f32 %v522, %v637
        %v706 = vmax.f32 %v525, %v639
        %v707 = vmax.f32 %v530, %v641
        %v708 = vmax.f32 %v533, %v643
        %v709 = vmax.f32 %v538, %v645
        %v710 = vmax.f32 %v541, %v647
        %v711 = vmax.f32 %v546, %v649
        %v712 = vmax.f32 %v549, %v651
        %v713 = vmax.f32 %v554, %v653
        %v714 = vmax.f32 %v557, %v655
        %v715 = vmax.f32 %v562, %v657
        %v716 = vmax.f32 %v565, %v659
        %v717 = vmax.f32 %v570, %v661
        %v718 = vmax.f32 %v573, %v663
        %v719 = vmax.f32 %v578, %v665
        %v720 = vmax.f32 %v581, %v667
        %v721 = vmax.f32 %v586, %v669
        %v722 = vmax.f32 %v589, %v671
        %v723 = vmax.f32 %v594, %v673
        %749 = vrot.lane.b32.xlu0 %v699, 96
        %v750 = vpop.permute.xlu0 %749
        %751 = vrot.lane.b32.xlu0 %v700, 96
        %v752 = vpop.permute.xlu0 %751
        %753 = vrot.lane.b32.xlu0 %v701, 96
        %v754 = vpop.permute.xlu0 %753
        %755 = vrot.lane.b32.xlu0 %v702, 96
        %v756 = vpop.permute.xlu0 %755
        %757 = vrot.lane.b32.xlu0 %v703, 96
        %v758 = vpop.permute.xlu0 %757
        %759 = vrot.lane.b32.xlu0 %v704, 96
        %v760 = vpop.permute.xlu0 %759
        %761 = vrot.lane.b32.xlu0 %v705, 96
        %v762 = vpop.permute.xlu0 %761
        %763 = vrot.lane.b32.xlu0 %v706, 96
        %v764 = vpop.permute.xlu0 %763
        %765 = vrot.lane.b32.xlu0 %v707, 96
        %v766 = vpop.permute.xlu0 %765
        %767 = vrot.lane.b32.xlu0 %v708, 96
        %v768 = vpop.permute.xlu0 %767
        %769 = vrot.lane.b32.xlu0 %v709, 96
        %v770 = vpop.permute.xlu0 %769
        %771 = vrot.lane.b32.xlu0 %v710, 96
        %v772 = vpop.permute.xlu0 %771
        %773 = vrot.lane.b32.xlu0 %v711, 96
        %v774 = vpop.permute.xlu0 %773
        %775 = vrot.lane.b32.xlu0 %v712, 96
        %v776 = vpop.permute.xlu0 %775
        %777 = vrot.lane.b32.xlu0 %v713, 96
        %v778 = vpop.permute.xlu0 %777
        %779 = vrot.lane.b32.xlu0 %v714, 96
        %v780 = vpop.permute.xlu0 %779
        %781 = vrot.lane.b32.xlu0 %v715, 96
        %v782 = vpop.permute.xlu0 %781
        %783 = vrot.lane.b32.xlu0 %v716, 96
        %v784 = vpop.permute.xlu0 %783
        %785 = vrot.lane.b32.xlu0 %v717, 96
        %v786 = vpop.permute.xlu0 %785
        %787 = vrot.lane.b32.xlu0 %v718, 96
        %v788 = vpop.permute.xlu0 %787
        %789 = vrot.lane.b32.xlu0 %v719, 96
        %v790 = vpop.permute.xlu0 %789
        %791 = vrot.lane.b32.xlu0 %v720, 96
        %v792 = vpop.permute.xlu0 %791
        %793 = vrot.lane.b32.xlu0 %v721, 96
        %v794 = vpop.permute.xlu0 %793
        %795 = vrot.lane.b32.xlu0 %v722, 96
        %v796 = vpop.permute.xlu0 %795
        %797 = vrot.lane.b32.xlu0 %v723, 96
        %v798 = vpop.permute.xlu0 %797
        %v824 = vmax.f32 %v699, %v750
        %v825 = vmax.f32 %v700, %v752
        %v826 = vmax.f32 %v701, %v754
        %v827 = vmax.f32 %v702, %v756
        %v828 = vmax.f32 %v703, %v758
        %v829 = vmax.f32 %v704, %v760
        %v830 = vmax.f32 %v705, %v762
        %v831 = vmax.f32 %v706, %v764
        %v832 = vmax.f32 %v707, %v766
        %v833 = vmax.f32 %v708, %v768
        %v834 = vmax.f32 %v709, %v770
        %v835 = vmax.f32 %v710, %v772
        %v836 = vmax.f32 %v711, %v774
        %v837 = vmax.f32 %v712, %v776
        %v838 = vmax.f32 %v713, %v778
        %v839 = vmax.f32 %v714, %v780
        %v840 = vmax.f32 %v715, %v782
        %v841 = vmax.f32 %v716, %v784
        %v842 = vmax.f32 %v717, %v786
        %v843 = vmax.f32 %v718, %v788
        %v844 = vmax.f32 %v719, %v790
        %v845 = vmax.f32 %v720, %v792
        %v846 = vmax.f32 %v721, %v794
        %v847 = vmax.f32 %v722, %v796
        %v848 = vmax.f32 %v723, %v798
        %v849 = vld [vmem:[%s2] sm:$0x1]
        %v851 = vlaneseq
        %v852 = vshrl.u32 %v851, 7
        %v853 = vsub.s32 0, %v852
        %v854 = vrot.slane %v849, %v853
        %v856 = vadd.f32 %v824, %v854
        %v857 = vadd.f32 %v825, %v854
        %v858 = vadd.f32 %v826, %v854
        %v859 = vadd.f32 %v827, %v854
        %v860 = vadd.f32 %v828, %v854
        %v861 = vadd.f32 %v829, %v854
        %v862 = vadd.f32 %v830, %v854
        %v863 = vadd.f32 %v831, %v854
        %v864 = vadd.f32 %v832, %v854
        %v865 = vadd.f32 %v833, %v854
        %v866 = vadd.f32 %v834, %v854
        %v867 = vadd.f32 %v835, %v854
        %v868 = vadd.f32 %v836, %v854
        %v869 = vadd.f32 %v837, %v854
        %v870 = vadd.f32 %v838, %v854
        %v871 = vadd.f32 %v839, %v854
        %v872 = vadd.f32 %v840, %v854
        %v873 = vadd.f32 %v841, %v854
        %v874 = vadd.f32 %v842, %v854
        %v875 = vadd.f32 %v843, %v854
        %v876 = vadd.f32 %v844, %v854
        %v877 = vadd.f32 %v845, %v854
        %v878 = vadd.f32 %v846, %v854
        %v879 = vadd.f32 %v847, %v854
        %v880 = vadd.f32 %v848, %v854
        %v881 = vmax.f32 %v856, 0.0
        %v882 = vmax.f32 %v857, 0.0
        %v883 = vmax.f32 %v858, 0.0
        %v884 = vmax.f32 %v859, 0.0
        %v885 = vmax.f32 %v860, 0.0
        %v886 = vmax.f32 %v861, 0.0
        %v887 = vmax.f32 %v862, 0.0
        %v888 = vmax.f32 %v863, 0.0
        %v889 = vmax.f32 %v864, 0.0
        %v890 = vmax.f32 %v865, 0.0
        %v891 = vmax.f32 %v866, 0.0
        %v892 = vmax.f32 %v867, 0.0
        %v893 = vmax.f32 %v868, 0.0
        %v894 = vmax.f32 %v869, 0.0
        %v895 = vmax.f32 %v870, 0.0
        %v896 = vmax.f32 %v871, 0.0
        %v897 = vmax.f32 %v872, 0.0
        %v898 = vmax.f32 %v873, 0.0
        %v899 = vmax.f32 %v874, 0.0
        %v900 = vmax.f32 %v875, 0.0
        %v901 = vmax.f32 %v876, 0.0
        %v902 = vmax.f32 %v877, 0.0
        %v903 = vmax.f32 %v878, 0.0
        %v904 = vmax.f32 %v879, 0.0
        %v905 = vmax.f32 %v880, 0.0
        %v931 = vcombine.high %v881, %v881
        %v933 = vunpack.c.l.s4 1983009808
        %v934 = vunpack.c.0.s8 %v933
        %v935 = vlaneseq
        %v936 = vshrl.u32 %v935, 7
        %v937 = vsub.s32 %v934, %v936
        %v938 = vrot.slane %v881, %v937
        %v940 = vunpack.c.l.s4 1983009808
        %v941 = vunpack.c.0.s8 %v940
        %v942 = vlaneseq
        %v943 = vshrl.u32 %v942, 7
        %v944 = vsub.s32 %v941, %v943
        %v945 = vrot.slane %v931, %v944
        %v946 = vcombine.high %v938, %v938
        %v947 = vcombine.high %v945, %v945
        %v948 = vcombine.high %v882, %v882
        %v950 = vunpack.c.l.s4 1983009808
        %v951 = vunpack.c.0.s8 %v950
        %v952 = vlaneseq
        %v953 = vshrl.u32 %v952, 7
        %v954 = vsub.s32 %v951, %v953
        %v955 = vrot.slane %v882, %v954
        %v957 = vunpack.c.l.s4 1983009808
        %v958 = vunpack.c.0.s8 %v957
        %v959 = vlaneseq
        %v960 = vshrl.u32 %v959, 7
        %v961 = vsub.s32 %v958, %v960
        %v962 = vrot.slane %v948, %v961
        %v963 = vcombine.high %v955, %v955
        %v964 = vcombine.high %v962, %v962
        %v965 = vcombine.high %v883, %v883
        %v967 = vunpack.c.l.s4 1983009808
        %v968 = vunpack.c.0.s8 %v967
        %v969 = vlaneseq
        %v970 = vshrl.u32 %v969, 7
        %v971 = vsub.s32 %v968, %v970
        %v972 = vrot.slane %v883, %v971
        %v974 = vunpack.c.l.s4 1983009808
        %v975 = vunpack.c.0.s8 %v974
        %v976 = vlaneseq
        %v977 = vshrl.u32 %v976, 7
        %v978 = vsub.s32 %v975, %v977
        %v979 = vrot.slane %v965, %v978
        %v980 = vcombine.high %v972, %v972
        %v981 = vcombine.high %v979, %v979
        %v982 = vcombine.high %v884, %v884
        %v984 = vunpack.c.l.s4 1983009808
        %v985 = vunpack.c.0.s8 %v984
        %v986 = vlaneseq
        %v987 = vshrl.u32 %v986, 7
        %v988 = vsub.s32 %v985, %v987
        %v989 = vrot.slane %v884, %v988
        %v991 = vunpack.c.l.s4 1983009808
        %v992 = vunpack.c.0.s8 %v991
        %v993 = vlaneseq
        %v994 = vshrl.u32 %v993, 7
        %v995 = vsub.s32 %v992, %v994
        %v996 = vrot.slane %v982, %v995
        %v997 = vcombine.high %v989, %v989
        %v998 = vcombine.high %v996, %v996
        %v999 = vcombine.high %v885, %v885
        %v1001 = vunpack.c.l.s4 1983009808
        %v1002 = vunpack.c.0.s8 %v1001
        %v1003 = vlaneseq
        %v1004 = vshrl.u32 %v1003, 7
        %v1005 = vsub.s32 %v1002, %v1004
        %v1006 = vrot.slane %v885, %v1005
        %v1008 = vunpack.c.l.s4 1983009808
        %v1009 = vunpack.c.0.s8 %v1008
        %v1010 = vlaneseq
        %v1011 = vshrl.u32 %v1010, 7
        %v1012 = vsub.s32 %v1009, %v1011
        %v1013 = vrot.slane %v999, %v1012
        %v1014 = vcombine.high %v1006, %v1006
        %v1015 = vcombine.high %v1013, %v1013
        %v1016 = vcombine.high %v886, %v886
        %v1018 = vunpack.c.l.s4 1983009808
        %v1019 = vunpack.c.0.s8 %v1018
        %v1020 = vlaneseq
        %v1021 = vshrl.u32 %v1020, 7
        %v1022 = vsub.s32 %v1019, %v1021
        %v1023 = vrot.slane %v886, %v1022
        %v1025 = vunpack.c.l.s4 1983009808
        %v1026 = vunpack.c.0.s8 %v1025
        %v1027 = vlaneseq
        %v1028 = vshrl.u32 %v1027, 7
        %v1029 = vsub.s32 %v1026, %v1028
        %v1030 = vrot.slane %v1016, %v1029
        %v1031 = vcombine.high %v1023, %v1023
        %v1032 = vcombine.high %v1030, %v1030
        %v1033 = vcombine.high %v887, %v887
        %v1035 = vunpack.c.l.s4 1983009808
        %v1036 = vunpack.c.0.s8 %v1035
        %v1037 = vlaneseq
        %v1038 = vshrl.u32 %v1037, 7
        %v1039 = vsub.s32 %v1036, %v1038
        %v1040 = vrot.slane %v887, %v1039
        %v1042 = vunpack.c.l.s4 1983009808
        %v1043 = vunpack.c.0.s8 %v1042
        %v1044 = vlaneseq
        %v1045 = vshrl.u32 %v1044, 7
        %v1046 = vsub.s32 %v1043, %v1045
        %v1047 = vrot.slane %v1033, %v1046
        %v1048 = vcombine.high %v1040, %v1040
        %v1049 = vcombine.high %v1047, %v1047
        %v1050 = vcombine.high %v888, %v888
        %v1052 = vunpack.c.l.s4 1983009808
        %v1053 = vunpack.c.0.s8 %v1052
        %v1054 = vlaneseq
        %v1055 = vshrl.u32 %v1054, 7
        %v1056 = vsub.s32 %v1053, %v1055
        %v1057 = vrot.slane %v888, %v1056
        %v1059 = vunpack.c.l.s4 1983009808
        %v1060 = vunpack.c.0.s8 %v1059
        %v1061 = vlaneseq
        %v1062 = vshrl.u32 %v1061, 7
        %v1063 = vsub.s32 %v1060, %v1062
        %v1064 = vrot.slane %v1050, %v1063
        %v1065 = vcombine.high %v1057, %v1057
        %v1066 = vcombine.high %v1064, %v1064
        %v1067 = vcombine.high %v889, %v889
        %v1069 = vunpack.c.l.s4 1983009808
        %v1070 = vunpack.c.0.s8 %v1069
        %v1071 = vlaneseq
        %v1072 = vshrl.u32 %v1071, 7
        %v1073 = vsub.s32 %v1070, %v1072
        %v1074 = vrot.slane %v889, %v1073
        %v1076 = vunpack.c.l.s4 1983009808
        %v1077 = vunpack.c.0.s8 %v1076
        %v1078 = vlaneseq
        %v1079 = vshrl.u32 %v1078, 7
        %v1080 = vsub.s32 %v1077, %v1079
        %v1081 = vrot.slane %v1067, %v1080
        %v1082 = vcombine.high %v1074, %v1074
        %v1083 = vcombine.high %v1081, %v1081
        %v1084 = vcombine.high %v890, %v890
        %v1086 = vunpack.c.l.s4 1983009808
        %v1087 = vunpack.c.0.s8 %v1086
        %v1088 = vlaneseq
        %v1089 = vshrl.u32 %v1088, 7
        %v1090 = vsub.s32 %v1087, %v1089
        %v1091 = vrot.slane %v890, %v1090
        %v1093 = vunpack.c.l.s4 1983009808
        %v1094 = vunpack.c.0.s8 %v1093
        %v1095 = vlaneseq
        %v1096 = vshrl.u32 %v1095, 7
        %v1097 = vsub.s32 %v1094, %v1096
        %v1098 = vrot.slane %v1084, %v1097
        %v1099 = vcombine.high %v1091, %v1091
        %v1100 = vcombine.high %v1098, %v1098
        %v1101 = vcombine.high %v891, %v891
        %v1103 = vunpack.c.l.s4 1983009808
        %v1104 = vunpack.c.0.s8 %v1103
        %v1105 = vlaneseq
        %v1106 = vshrl.u32 %v1105, 7
        %v1107 = vsub.s32 %v1104, %v1106
        %v1108 = vrot.slane %v891, %v1107
        %v1110 = vunpack.c.l.s4 1983009808
        %v1111 = vunpack.c.0.s8 %v1110
        %v1112 = vlaneseq
        %v1113 = vshrl.u32 %v1112, 7
        %v1114 = vsub.s32 %v1111, %v1113
        %v1115 = vrot.slane %v1101, %v1114
        %v1116 = vcombine.high %v1108, %v1108
        %v1117 = vcombine.high %v1115, %v1115
        %v1118 = vcombine.high %v892, %v892
        %v1120 = vunpack.c.l.s4 1983009808
        %v1121 = vunpack.c.0.s8 %v1120
        %v1122 = vlaneseq
        %v1123 = vshrl.u32 %v1122, 7
        %v1124 = vsub.s32 %v1121, %v1123
        %v1125 = vrot.slane %v892, %v1124
        %v1127 = vunpack.c.l.s4 1983009808
        %v1128 = vunpack.c.0.s8 %v1127
        %v1129 = vlaneseq
        %v1130 = vshrl.u32 %v1129, 7
        %v1131 = vsub.s32 %v1128, %v1130
        %v1132 = vrot.slane %v1118, %v1131
        %v1133 = vcombine.high %v1125, %v1125
        %v1134 = vcombine.high %v1132, %v1132
        %v1135 = vcombine.high %v893, %v893
        %v1137 = vunpack.c.l.s4 1983009808
        %v1138 = vunpack.c.0.s8 %v1137
        %v1139 = vlaneseq
        %v1140 = vshrl.u32 %v1139, 7
        %v1141 = vsub.s32 %v1138, %v1140
        %v1142 = vrot.slane %v893, %v1141
        %v1144 = vunpack.c.l.s4 1983009808
        %v1145 = vunpack.c.0.s8 %v1144
        %v1146 = vlaneseq
        %v1147 = vshrl.u32 %v1146, 7
        %v1148 = vsub.s32 %v1145, %v1147
        %v1149 = vrot.slane %v1135, %v1148
        %v1150 = vcombine.high %v1142, %v1142
        %v1151 = vcombine.high %v1149, %v1149
        %v1152 = vcombine.high %v894, %v894
        %v1154 = vunpack.c.l.s4 1983009808
        %v1155 = vunpack.c.0.s8 %v1154
        %v1156 = vlaneseq
        %v1157 = vshrl.u32 %v1156, 7
        %v1158 = vsub.s32 %v1155, %v1157
        %v1159 = vrot.slane %v894, %v1158
        %v1161 = vunpack.c.l.s4 1983009808
        %v1162 = vunpack.c.0.s8 %v1161
        %v1163 = vlaneseq
        %v1164 = vshrl.u32 %v1163, 7
        %v1165 = vsub.s32 %v1162, %v1164
        %v1166 = vrot.slane %v1152, %v1165
        %v1167 = vcombine.high %v1159, %v1159
        %v1168 = vcombine.high %v1166, %v1166
        %v1169 = vcombine.high %v895, %v895
        %v1171 = vunpack.c.l.s4 1983009808
        %v1172 = vunpack.c.0.s8 %v1171
        %v1173 = vlaneseq
        %v1174 = vshrl.u32 %v1173, 7
        %v1175 = vsub.s32 %v1172, %v1174
        %v1176 = vrot.slane %v895, %v1175
        %v1178 = vunpack.c.l.s4 1983009808
        %v1179 = vunpack.c.0.s8 %v1178
        %v1180 = vlaneseq
        %v1181 = vshrl.u32 %v1180, 7
        %v1182 = vsub.s32 %v1179, %v1181
        %v1183 = vrot.slane %v1169, %v1182
        %v1184 = vcombine.high %v1176, %v1176
        %v1185 = vcombine.high %v1183, %v1183
        %v1186 = vcombine.high %v896, %v896
        %v1188 = vunpack.c.l.s4 1983009808
        %v1189 = vunpack.c.0.s8 %v1188
        %v1190 = vlaneseq
        %v1191 = vshrl.u32 %v1190, 7
        %v1192 = vsub.s32 %v1189, %v1191
        %v1193 = vrot.slane %v896, %v1192
        %v1195 = vunpack.c.l.s4 1983009808
        %v1196 = vunpack.c.0.s8 %v1195
        %v1197 = vlaneseq
        %v1198 = vshrl.u32 %v1197, 7
        %v1199 = vsub.s32 %v1196, %v1198
        %v1200 = vrot.slane %v1186, %v1199
        %v1201 = vcombine.high %v1193, %v1193
        %v1202 = vcombine.high %v1200, %v1200
        %v1203 = vcombine.high %v897, %v897
        %v1205 = vunpack.c.l.s4 1983009808
        %v1206 = vunpack.c.0.s8 %v1205
        %v1207 = vlaneseq
        %v1208 = vshrl.u32 %v1207, 7
        %v1209 = vsub.s32 %v1206, %v1208
        %v1210 = vrot.slane %v897, %v1209
        %v1212 = vunpack.c.l.s4 1983009808
        %v1213 = vunpack.c.0.s8 %v1212
        %v1214 = vlaneseq
        %v1215 = vshrl.u32 %v1214, 7
        %v1216 = vsub.s32 %v1213, %v1215
        %v1217 = vrot.slane %v1203, %v1216
        %v1218 = vcombine.high %v1210, %v1210
        %v1219 = vcombine.high %v1217, %v1217
        %v1220 = vcombine.high %v898, %v898
        %v1222 = vunpack.c.l.s4 1983009808
        %v1223 = vunpack.c.0.s8 %v1222
        %v1224 = vlaneseq
        %v1225 = vshrl.u32 %v1224, 7
        %v1226 = vsub.s32 %v1223, %v1225
        %v1227 = vrot.slane %v898, %v1226
        %v1229 = vunpack.c.l.s4 1983009808
        %v1230 = vunpack.c.0.s8 %v1229
        %v1231 = vlaneseq
        %v1232 = vshrl.u32 %v1231, 7
        %v1233 = vsub.s32 %v1230, %v1232
        %v1234 = vrot.slane %v1220, %v1233
        %v1235 = vcombine.high %v1227, %v1227
        %v1236 = vcombine.high %v1234, %v1234
        %v1237 = vcombine.high %v899, %v899
        %v1239 = vunpack.c.l.s4 1983009808
        %v1240 = vunpack.c.0.s8 %v1239
        %v1241 = vlaneseq
        %v1242 = vshrl.u32 %v1241, 7
        %v1243 = vsub.s32 %v1240, %v1242
        %v1244 = vrot.slane %v899, %v1243
        %v1246 = vunpack.c.l.s4 1983009808
        %v1247 = vunpack.c.0.s8 %v1246
        %v1248 = vlaneseq
        %v1249 = vshrl.u32 %v1248, 7
        %v1250 = vsub.s32 %v1247, %v1249
        %v1251 = vrot.slane %v1237, %v1250
        %v1252 = vcombine.high %v1244, %v1244
        %v1253 = vcombine.high %v1251, %v1251
        %v1254 = vcombine.high %v900, %v900
        %v1256 = vunpack.c.l.s4 1983009808
        %v1257 = vunpack.c.0.s8 %v1256
        %v1258 = vlaneseq
        %v1259 = vshrl.u32 %v1258, 7
        %v1260 = vsub.s32 %v1257, %v1259
        %v1261 = vrot.slane %v900, %v1260
        %v1263 = vunpack.c.l.s4 1983009808
        %v1264 = vunpack.c.0.s8 %v1263
        %v1265 = vlaneseq
        %v1266 = vshrl.u32 %v1265, 7
        %v1267 = vsub.s32 %v1264, %v1266
        %v1268 = vrot.slane %v1254, %v1267
        %v1269 = vcombine.high %v1261, %v1261
        %v1270 = vcombine.high %v1268, %v1268
        %v1271 = vcombine.high %v901, %v901
        %v1273 = vunpack.c.l.s4 1983009808
        %v1274 = vunpack.c.0.s8 %v1273
        %v1275 = vlaneseq
        %v1276 = vshrl.u32 %v1275, 7
        %v1277 = vsub.s32 %v1274, %v1276
        %v1278 = vrot.slane %v901, %v1277
        %v1280 = vunpack.c.l.s4 1983009808
        %v1281 = vunpack.c.0.s8 %v1280
        %v1282 = vlaneseq
        %v1283 = vshrl.u32 %v1282, 7
        %v1284 = vsub.s32 %v1281, %v1283
        %v1285 = vrot.slane %v1271, %v1284
        %v1286 = vcombine.high %v1278, %v1278
        %v1287 = vcombine.high %v1285, %v1285
        %v1288 = vcombine.high %v902, %v902
        %v1290 = vunpack.c.l.s4 1983009808
        %v1291 = vunpack.c.0.s8 %v1290
        %v1292 = vlaneseq
        %v1293 = vshrl.u32 %v1292, 7
        %v1294 = vsub.s32 %v1291, %v1293
        %v1295 = vrot.slane %v902, %v1294
        %v1297 = vunpack.c.l.s4 1983009808
        %v1298 = vunpack.c.0.s8 %v1297
        %v1299 = vlaneseq
        %v1300 = vshrl.u32 %v1299, 7
        %v1301 = vsub.s32 %v1298, %v1300
        %v1302 = vrot.slane %v1288, %v1301
        %v1303 = vcombine.high %v1295, %v1295
        %v1304 = vcombine.high %v1302, %v1302
        %v1305 = vcombine.high %v903, %v903
        %v1307 = vunpack.c.l.s4 1983009808
        %v1308 = vunpack.c.0.s8 %v1307
        %v1309 = vlaneseq
        %v1310 = vshrl.u32 %v1309, 7
        %v1311 = vsub.s32 %v1308, %v1310
        %v1312 = vrot.slane %v903, %v1311
        %v1314 = vunpack.c.l.s4 1983009808
        %v1315 = vunpack.c.0.s8 %v1314
        %v1316 = vlaneseq
        %v1317 = vshrl.u32 %v1316, 7
        %v1318 = vsub.s32 %v1315, %v1317
        %v1319 = vrot.slane %v1305, %v1318
        %v1320 = vcombine.high %v1312, %v1312
        %v1321 = vcombine.high %v1319, %v1319
        %v1322 = vcombine.high %v904, %v904
        %v1324 = vunpack.c.l.s4 1983009808
        %v1325 = vunpack.c.0.s8 %v1324
        %v1326 = vlaneseq
        %v1327 = vshrl.u32 %v1326, 7
        %v1328 = vsub.s32 %v1325, %v1327
        %v1329 = vrot.slane %v904, %v1328
        %v1331 = vunpack.c.l.s4 1983009808
        %v1332 = vunpack.c.0.s8 %v1331
        %v1333 = vlaneseq
        %v1334 = vshrl.u32 %v1333, 7
        %v1335 = vsub.s32 %v1332, %v1334
        %v1336 = vrot.slane %v1322, %v1335
        %v1337 = vcombine.high %v1329, %v1329
        %v1338 = vcombine.high %v1336, %v1336
        %v1340 = vunpack.c.l.s4 1983009808
        %v1341 = vunpack.c.0.s8 %v1340
        %v1342 = vlaneseq
        %v1343 = vshrl.u32 %v1342, 7
        %v1344 = vsub.s32 %v1341, %v1343
        %v1345 = vrot.slane %v905, %v1344
        %v1346 = vcombine.high %v1345, %v1345
        %v1347 = vcombine.low %v938, %v946
        %v1348 = vcombine.low %v945, %v947
        %v1350 = vunpack.c.l.s4 1983009808
        %v1351 = vunpack.c.0.s8 %v1350
        %v1352 = vlaneseq
        %v1353 = vshrl.u32 %v1352, 7
        %v1354 = vsub.s32 %v1351, %v1353
        %v1355 = vrot.slane %v1347, %v1354
        %v1357 = vunpack.c.l.s4 1983009808
        %v1358 = vunpack.c.0.s8 %v1357
        %v1359 = vlaneseq
        %v1360 = vshrl.u32 %v1359, 7
        %v1361 = vsub.s32 %v1358, %v1360
        %v1362 = vrot.slane %v1348, %v1361
        %v1363 = vcombine.low %v1355, %v1362
        %v1364 = vcombine.low %v955, %v963
        %v1366 = vunpack.c.l.s4 1983009808
        %v1367 = vunpack.c.0.s8 %v1366
        %v1368 = vlaneseq
        %v1369 = vshrl.u32 %v1368, 7
        %v1370 = vsub.s32 %v1367, %v1369
        %v1371 = vrot.slane %v1364, %v1370
        %v1373 = vunpack.c.l.s4 1983009808
        %v1374 = vunpack.c.0.s8 %v1373
        %v1375 = vlaneseq
        %v1376 = vshrl.u32 %v1375, 7
        %v1377 = vsub.s32 %v1374, %v1376
        %v1378 = vrot.slane %v962, %v1377
        %v1379 = vcombine.low %v1371, %v1378
        %v1380 = vcombine.low %v964, %v972
        %v1381 = vcombine.low %v980, %v979
        %v1383 = vunpack.c.l.s4 1983009808
        %v1384 = vunpack.c.0.s8 %v1383
        %v1385 = vlaneseq
        %v1386 = vshrl.u32 %v1385, 7
        %v1387 = vsub.s32 %v1384, %v1386
        %v1388 = vrot.slane %v1380, %v1387
        %v1390 = vunpack.c.l.s4 1983009808
        %v1391 = vunpack.c.0.s8 %v1390
        %v1392 = vlaneseq
        %v1393 = vshrl.u32 %v1392, 7
        %v1394 = vsub.s32 %v1391, %v1393
        %v1395 = vrot.slane %v1381, %v1394
        %v1396 = vcombine.low %v1388, %v1395
        %v1397 = vcombine.low %v981, %v989
        %v1399 = vunpack.c.l.s4 1983009808
        %v1400 = vunpack.c.0.s8 %v1399
        %v1401 = vlaneseq
        %v1402 = vshrl.u32 %v1401, 7
        %v1403 = vsub.s32 %v1400, %v1402
        %v1404 = vrot.slane %v1397, %v1403
        %v1406 = vunpack.c.l.s4 1983009808
        %v1407 = vunpack.c.0.s8 %v1406
        %v1408 = vlaneseq
        %v1409 = vshrl.u32 %v1408, 7
        %v1410 = vsub.s32 %v1407, %v1409
        %v1411 = vrot.slane %v997, %v1410
        %v1412 = vcombine.low %v1404, %v1411
        %v1413 = vcombine.low %v996, %v998
        %v1414 = vcombine.low %v1006, %v1014
        %v1416 = vunpack.c.l.s4 1983009808
        %v1417 = vunpack.c.0.s8 %v1416
        %v1418 = vlaneseq
        %v1419 = vshrl.u32 %v1418, 7
        %v1420 = vsub.s32 %v1417, %v1419
        %v1421 = vrot.slane %v1413, %v1420
        %v1423 = vunpack.c.l.s4 1983009808
        %v1424 = vunpack.c.0.s8 %v1423
        %v1425 = vlaneseq
        %v1426 = vshrl.u32 %v1425, 7
        %v1427 = vsub.s32 %v1424, %v1426
        %v1428 = vrot.slane %v1414, %v1427
        %v1429 = vcombine.low %v1421, %v1428
        %v1430 = vcombine.low %v1013, %v1015
        %v1432 = vunpack.c.l.s4 1983009808
        %v1433 = vunpack.c.0.s8 %v1432
        %v1434 = vlaneseq
        %v1435 = vshrl.u32 %v1434, 7
        %v1436 = vsub.s32 %v1433, %v1435
        %v1437 = vrot.slane %v1430, %v1436
        %v1439 = vunpack.c.l.s4 1983009808
        %v1440 = vunpack.c.0.s8 %v1439
        %v1441 = vlaneseq
        %v1442 = vshrl.u32 %v1441, 7
        %v1443 = vsub.s32 %v1440, %v1442
        %v1444 = vrot.slane %v1023, %v1443
        %v1445 = vcombine.low %v1437, %v1444
        %v1446 = vcombine.low %v1031, %v1030
        %v1447 = vcombine.low %v1032, %v1040
        %v1449 = vunpack.c.l.s4 1983009808
        %v1450 = vunpack.c.0.s8 %v1449
        %v1451 = vlaneseq
        %v1452 = vshrl.u32 %v1451, 7
        %v1453 = vsub.s32 %v1450, %v1452
        %v1454 = vrot.slane %v1446, %v1453
        %v1456 = vunpack.c.l.s4 1983009808
        %v1457 = vunpack.c.0.s8 %v1456
        %v1458 = vlaneseq
        %v1459 = vshrl.u32 %v1458, 7
        %v1460 = vsub.s32 %v1457, %v1459
        %v1461 = vrot.slane %v1447, %v1460
        %v1462 = vcombine.low %v1454, %v1461
        %v1463 = vcombine.low %v1048, %v1047
        %v1465 = vunpack.c.l.s4 1983009808
        %v1466 = vunpack.c.0.s8 %v1465
        %v1467 = vlaneseq
        %v1468 = vshrl.u32 %v1467, 7
        %v1469 = vsub.s32 %v1466, %v1468
        %v1470 = vrot.slane %v1463, %v1469
        %v1472 = vunpack.c.l.s4 1983009808
        %v1473 = vunpack.c.0.s8 %v1472
        %v1474 = vlaneseq
        %v1475 = vshrl.u32 %v1474, 7
        %v1476 = vsub.s32 %v1473, %v1475
        %v1477 = vrot.slane %v1049, %v1476
        %v1478 = vcombine.low %v1470, %v1477
        %v1479 = vcombine.low %v1057, %v1065
        %v1480 = vcombine.low %v1064, %v1066
        %v1482 = vunpack.c.l.s4 1983009808
        %v1483 = vunpack.c.0.s8 %v1482
        %v1484 = vlaneseq
        %v1485 = vshrl.u32 %v1484, 7
        %v1486 = vsub.s32 %v1483, %v1485
        %v1487 = vrot.slane %v1479, %v1486
        %v1489 = vunpack.c.l.s4 1983009808
        %v1490 = vunpack.c.0.s8 %v1489
        %v1491 = vlaneseq
        %v1492 = vshrl.u32 %v1491, 7
        %v1493 = vsub.s32 %v1490, %v1492
        %v1494 = vrot.slane %v1480, %v1493
        %v1495 = vcombine.low %v1487, %v1494
        %v1496 = vcombine.low %v1074, %v1082
        %v1498 = vunpack.c.l.s4 1983009808
        %v1499 = vunpack.c.0.s8 %v1498
        %v1500 = vlaneseq
        %v1501 = vshrl.u32 %v1500, 7
        %v1502 = vsub.s32 %v1499, %v1501
        %v1503 = vrot.slane %v1496, %v1502
        %v1505 = vunpack.c.l.s4 1983009808
        %v1506 = vunpack.c.0.s8 %v1505
        %v1507 = vlaneseq
        %v1508 = vshrl.u32 %v1507, 7
        %v1509 = vsub.s32 %v1506, %v1508
        %v1510 = vrot.slane %v1081, %v1509
        %v1511 = vcombine.low %v1503, %v1510
        %v1512 = vcombine.low %v1083, %v1091
        %v1513 = vcombine.low %v1099, %v1098
        %v1515 = vunpack.c.l.s4 1983009808
        %v1516 = vunpack.c.0.s8 %v1515
        %v1517 = vlaneseq
        %v1518 = vshrl.u32 %v1517, 7
        %v1519 = vsub.s32 %v1516, %v1518
        %v1520 = vrot.slane %v1512, %v1519
        %v1522 = vunpack.c.l.s4 1983009808
        %v1523 = vunpack.c.0.s8 %v1522
        %v1524 = vlaneseq
        %v1525 = vshrl.u32 %v1524, 7
        %v1526 = vsub.s32 %v1523, %v1525
        %v1527 = vrot.slane %v1513, %v1526
        %v1528 = vcombine.low %v1520, %v1527
        %v1529 = vcombine.low %v1100, %v1108
        %v1531 = vunpack.c.l.s4 1983009808
        %v1532 = vunpack.c.0.s8 %v1531
        %v1533 = vlaneseq
        %v1534 = vshrl.u32 %v1533, 7
        %v1535 = vsub.s32 %v1532, %v1534
        %v1536 = vrot.slane %v1529, %v1535
        %v1538 = vunpack.c.l.s4 1983009808
        %v1539 = vunpack.c.0.s8 %v1538
        %v1540 = vlaneseq
        %v1541 = vshrl.u32 %v1540, 7
        %v1542 = vsub.s32 %v1539, %v1541
        %v1543 = vrot.slane %v1116, %v1542
        %v1544 = vcombine.low %v1536, %v1543
        %v1545 = vcombine.low %v1115, %v1117
        %v1546 = vcombine.low %v1125, %v1133
        %v1548 = vunpack.c.l.s4 1983009808
        %v1549 = vunpack.c.0.s8 %v1548
        %v1550 = vlaneseq
        %v1551 = vshrl.u32 %v1550, 7
        %v1552 = vsub.s32 %v1549, %v1551
        %v1553 = vrot.slane %v1545, %v1552
        %v1555 = vunpack.c.l.s4 1983009808
        %v1556 = vunpack.c.0.s8 %v1555
        %v1557 = vlaneseq
        %v1558 = vshrl.u32 %v1557, 7
        %v1559 = vsub.s32 %v1556, %v1558
        %v1560 = vrot.slane %v1546, %v1559
        %v1561 = vcombine.low %v1553, %v1560
        %v1562 = vcombine.low %v1132, %v1134
        %v1564 = vunpack.c.l.s4 1983009808
        %v1565 = vunpack.c.0.s8 %v1564
        %v1566 = vlaneseq
        %v1567 = vshrl.u32 %v1566, 7
        %v1568 = vsub.s32 %v1565, %v1567
        %v1569 = vrot.slane %v1562, %v1568
        %v1571 = vunpack.c.l.s4 1983009808
        %v1572 = vunpack.c.0.s8 %v1571
        %v1573 = vlaneseq
        %v1574 = vshrl.u32 %v1573, 7
        %v1575 = vsub.s32 %v1572, %v1574
        %v1576 = vrot.slane %v1142, %v1575
        %v1577 = vcombine.low %v1569, %v1576
        %v1578 = vcombine.low %v1150, %v1149
        %v1579 = vcombine.low %v1151, %v1159
        %v1581 = vunpack.c.l.s4 1983009808
        %v1582 = vunpack.c.0.s8 %v1581
        %v1583 = vlaneseq
        %v1584 = vshrl.u32 %v1583, 7
        %v1585 = vsub.s32 %v1582, %v1584
        %v1586 = vrot.slane %v1578, %v1585
        %v1588 = vunpack.c.l.s4 1983009808
        %v1589 = vunpack.c.0.s8 %v1588
        %v1590 = vlaneseq
        %v1591 = vshrl.u32 %v1590, 7
        %v1592 = vsub.s32 %v1589, %v1591
        %v1593 = vrot.slane %v1579, %v1592
        %v1594 = vcombine.low %v1586, %v1593
        %v1595 = vcombine.low %v1167, %v1166
        %v1597 = vunpack.c.l.s4 1983009808
        %v1598 = vunpack.c.0.s8 %v1597
        %v1599 = vlaneseq
        %v1600 = vshrl.u32 %v1599, 7
        %v1601 = vsub.s32 %v1598, %v1600
        %v1602 = vrot.slane %v1595, %v1601
        %v1604 = vunpack.c.l.s4 1983009808
        %v1605 = vunpack.c.0.s8 %v1604
        %v1606 = vlaneseq
        %v1607 = vshrl.u32 %v1606, 7
        %v1608 = vsub.s32 %v1605, %v1607
        %v1609 = vrot.slane %v1168, %v1608
        %v1610 = vcombine.low %v1602, %v1609
        %v1611 = vcombine.low %v1176, %v1184
        %v1612 = vcombine.low %v1183, %v1185
        %v1614 = vunpack.c.l.s4 1983009808
        %v1615 = vunpack.c.0.s8 %v1614
        %v1616 = vlaneseq
        %v1617 = vshrl.u32 %v1616, 7
        %v1618 = vsub.s32 %v1615, %v1617
        %v1619 = vrot.slane %v1611, %v1618
        %v1621 = vunpack.c.l.s4 1983009808
        %v1622 = vunpack.c.0.s8 %v1621
        %v1623 = vlaneseq
        %v1624 = vshrl.u32 %v1623, 7
        %v1625 = vsub.s32 %v1622, %v1624
        %v1626 = vrot.slane %v1612, %v1625
        %v1627 = vcombine.low %v1619, %v1626
        %v1628 = vcombine.low %v1193, %v1201
        %v1630 = vunpack.c.l.s4 1983009808
        %v1631 = vunpack.c.0.s8 %v1630
        %v1632 = vlaneseq
        %v1633 = vshrl.u32 %v1632, 7
        %v1634 = vsub.s32 %v1631, %v1633
        %v1635 = vrot.slane %v1628, %v1634
        %v1637 = vunpack.c.l.s4 1983009808
        %v1638 = vunpack.c.0.s8 %v1637
        %v1639 = vlaneseq
        %v1640 = vshrl.u32 %v1639, 7
        %v1641 = vsub.s32 %v1638, %v1640
        %v1642 = vrot.slane %v1200, %v1641
        %v1643 = vcombine.low %v1635, %v1642
        %v1644 = vcombine.low %v1202, %v1210
        %v1645 = vcombine.low %v1218, %v1217
        %v1647 = vunpack.c.l.s4 1983009808
        %v1648 = vunpack.c.0.s8 %v1647
        %v1649 = vlaneseq
        %v1650 = vshrl.u32 %v1649, 7
        %v1651 = vsub.s32 %v1648, %v1650
        %v1652 = vrot.slane %v1644, %v1651
        %v1654 = vunpack.c.l.s4 1983009808
        %v1655 = vunpack.c.0.s8 %v1654
        %v1656 = vlaneseq
        %v1657 = vshrl.u32 %v1656, 7
        %v1658 = vsub.s32 %v1655, %v1657
        %v1659 = vrot.slane %v1645, %v1658
        %v1660 = vcombine.low %v1652, %v1659
        %v1661 = vcombine.low %v1219, %v1227
        %v1663 = vunpack.c.l.s4 1983009808
        %v1664 = vunpack.c.0.s8 %v1663
        %v1665 = vlaneseq
        %v1666 = vshrl.u32 %v1665, 7
        %v1667 = vsub.s32 %v1664, %v1666
        %v1668 = vrot.slane %v1661, %v1667
        %v1670 = vunpack.c.l.s4 1983009808
        %v1671 = vunpack.c.0.s8 %v1670
        %v1672 = vlaneseq
        %v1673 = vshrl.u32 %v1672, 7
        %v1674 = vsub.s32 %v1671, %v1673
        %v1675 = vrot.slane %v1235, %v1674
        %v1676 = vcombine.low %v1668, %v1675
        %v1677 = vcombine.low %v1234, %v1236
        %v1678 = vcombine.low %v1244, %v1252
        %v1680 = vunpack.c.l.s4 1983009808
        %v1681 = vunpack.c.0.s8 %v1680
        %v1682 = vlaneseq
        %v1683 = vshrl.u32 %v1682, 7
        %v1684 = vsub.s32 %v1681, %v1683
        %v1685 = vrot.slane %v1677, %v1684
        %v1687 = vunpack.c.l.s4 1983009808
        %v1688 = vunpack.c.0.s8 %v1687
        %v1689 = vlaneseq
        %v1690 = vshrl.u32 %v1689, 7
        %v1691 = vsub.s32 %v1688, %v1690
        %v1692 = vrot.slane %v1678, %v1691
        %v1693 = vcombine.low %v1685, %v1692
        %v1694 = vcombine.low %v1251, %v1253
        %v1696 = vunpack.c.l.s4 1983009808
        %v1697 = vunpack.c.0.s8 %v1696
        %v1698 = vlaneseq
        %v1699 = vshrl.u32 %v1698, 7
        %v1700 = vsub.s32 %v1697, %v1699
        %v1701 = vrot.slane %v1694, %v1700
        %v1703 = vunpack.c.l.s4 1983009808
        %v1704 = vunpack.c.0.s8 %v1703
        %v1705 = vlaneseq
        %v1706 = vshrl.u32 %v1705, 7
        %v1707 = vsub.s32 %v1704, %v1706
        %v1708 = vrot.slane %v1261, %v1707
        %v1709 = vcombine.low %v1701, %v1708
        %v1710 = vcombine.low %v1269, %v1268
        %v1711 = vcombine.low %v1270, %v1278
        %v1713 = vunpack.c.l.s4 1983009808
        %v1714 = vunpack.c.0.s8 %v1713
        %v1715 = vlaneseq
        %v1716 = vshrl.u32 %v1715, 7
        %v1717 = vsub.s32 %v1714, %v1716
        %v1718 = vrot.slane %v1710, %v1717
        %v1720 = vunpack.c.l.s4 1983009808
        %v1721 = vunpack.c.0.s8 %v1720
        %v1722 = vlaneseq
        %v1723 = vshrl.u32 %v1722, 7
        %v1724 = vsub.s32 %v1721, %v1723
        %v1725 = vrot.slane %v1711, %v1724
        %v1726 = vcombine.low %v1718, %v1725
        %v1727 = vcombine.low %v1286, %v1285
        %v1729 = vunpack.c.l.s4 1983009808
        %v1730 = vunpack.c.0.s8 %v1729
        %v1731 = vlaneseq
        %v1732 = vshrl.u32 %v1731, 7
        %v1733 = vsub.s32 %v1730, %v1732
        %v1734 = vrot.slane %v1727, %v1733
        %v1736 = vunpack.c.l.s4 1983009808
        %v1737 = vunpack.c.0.s8 %v1736
        %v1738 = vlaneseq
        %v1739 = vshrl.u32 %v1738, 7
        %v1740 = vsub.s32 %v1737, %v1739
        %v1741 = vrot.slane %v1287, %v1740
        %v1742 = vcombine.low %v1734, %v1741
        %v1743 = vcombine.low %v1295, %v1303
        %v1744 = vcombine.low %v1302, %v1304
        %v1746 = vunpack.c.l.s4 1983009808
        %v1747 = vunpack.c.0.s8 %v1746
        %v1748 = vlaneseq
        %v1749 = vshrl.u32 %v1748, 7
        %v1750 = vsub.s32 %v1747, %v1749
        %v1751 = vrot.slane %v1743, %v1750
        %v1753 = vunpack.c.l.s4 1983009808
        %v1754 = vunpack.c.0.s8 %v1753
        %v1755 = vlaneseq
        %v1756 = vshrl.u32 %v1755, 7
        %v1757 = vsub.s32 %v1754, %v1756
        %v1758 = vrot.slane %v1744, %v1757
        %v1759 = vcombine.low %v1751, %v1758
        %v1760 = vcombine.low %v1312, %v1320
        %v1762 = vunpack.c.l.s4 1983009808
        %v1763 = vunpack.c.0.s8 %v1762
        %v1764 = vlaneseq
        %v1765 = vshrl.u32 %v1764, 7
        %v1766 = vsub.s32 %v1763, %v1765
        %v1767 = vrot.slane %v1760, %v1766
        %v1769 = vunpack.c.l.s4 1983009808
        %v1770 = vunpack.c.0.s8 %v1769
        %v1771 = vlaneseq
        %v1772 = vshrl.u32 %v1771, 7
        %v1773 = vsub.s32 %v1770, %v1772
        %v1774 = vrot.slane %v1319, %v1773
        %v1775 = vcombine.low %v1767, %v1774
        %v1776 = vcombine.low %v1321, %v1329
        %v1777 = vcombine.low %v1337, %v1336
        %v1779 = vunpack.c.l.s4 1983009808
        %v1780 = vunpack.c.0.s8 %v1779
        %v1781 = vlaneseq
        %v1782 = vshrl.u32 %v1781, 7
        %v1783 = vsub.s32 %v1780, %v1782
        %v1784 = vrot.slane %v1776, %v1783
        %v1786 = vunpack.c.l.s4 1983009808
        %v1787 = vunpack.c.0.s8 %v1786
        %v1788 = vlaneseq
        %v1789 = vshrl.u32 %v1788, 7
        %v1790 = vsub.s32 %v1787, %v1789
        %v1791 = vrot.slane %v1777, %v1790
        %v1792 = vcombine.low %v1784, %v1791
        %v1793 = vcombine.low %v1338, %v1345
        %v1795 = vunpack.c.l.s4 1983009808
        %v1796 = vunpack.c.0.s8 %v1795
        %v1797 = vlaneseq
        %v1798 = vshrl.u32 %v1797, 7
        %v1799 = vsub.s32 %v1796, %v1798
        %v1800 = vrot.slane %v1793, %v1799
        %v1802 = vunpack.c.l.s4 1983009808
        %v1803 = vunpack.c.0.s8 %v1802
        %v1804 = vlaneseq
        %v1805 = vshrl.u32 %v1804, 7
        %v1806 = vsub.s32 %v1803, %v1805
        %v1807 = vrot.slane %v1346, %v1806
        %v1808 = vcombine.low %v1800, %v1807
        %v1837 = vpack.c.bf16 %v1379, %v1363
        %v1838 = vpack.c.bf16 %v1412, %v1396
        %v1839 = vpack.c.bf16 %v1445, %v1429
        %v1840 = vpack.c.bf16 %v1478, %v1462
        %v1841 = vpack.c.bf16 %v1511, %v1495
        %v1842 = vpack.c.bf16 %v1544, %v1528
        %v1843 = vpack.c.bf16 %v1577, %v1561
        %v1844 = vpack.c.bf16 %v1610, %v1594
        %v1845 = vpack.c.bf16 %v1643, %v1627
        %v1846 = vpack.c.bf16 %v1676, %v1660
        %v1847 = vpack.c.bf16 %v1709, %v1693
        %v1848 = vpack.c.bf16 %v1742, %v1726
        %v1849 = vpack.c.bf16 %v1775, %v1759
        %v1850 = vpack.c.bf16 %v1808, %v1792
        %1851 = vst [vmem:[#allocation2] sm:$0x11] 0
        %vm1852 = vcmask 253952
        %1853 = vst.msk [vmem:[#allocation2 + $0x8] sm:$0x1] %vm1852, 0
        %1854 = vst [vmem:[#allocation2 + $0x18] sm:$0x11] 0
        %1855 = vst.msk [vmem:[#allocation2 + $0x20] sm:$0x1] %vm1852, 0
        %vm1856 = vcmask 257025
        %1857 = vst.msk [vmem:[#allocation2] sm:$0xe] %vm1856, 0
        %vm1858 = vcmask 257024
        %1859 = vst.msk [vmem:[#allocation2 + $0xc] sm:$0xf] %vm1858, 0
        %1860 = vst.msk [vmem:[#allocation2 + $0x8] sm:$0xe] %vm1856, 0
        %1861 = vst.msk [vmem:[#allocation2 + $0x14] sm:$0xf] %vm1858, 0
        %v1876 = vunpack.c.l.b16 %v1837
        %v1877 = vunpack.c.l.b16 %v1838
        %v1878 = vunpack.c.l.b16 %v1839
        %v1879 = vunpack.c.l.b16 %v1840
        %v1880 = vunpack.c.l.b16 %v1841
        %v1881 = vunpack.c.l.b16 %v1842
        %v1882 = vunpack.c.l.b16 %v1843
        %v1883 = vunpack.c.l.b16 %v1844
        %v1884 = vunpack.c.l.b16 %v1845
        %v1885 = vunpack.c.l.b16 %v1846
        %v1886 = vunpack.c.l.b16 %v1847
        %v1887 = vunpack.c.l.b16 %v1848
        %v1888 = vunpack.c.l.b16 %v1849
        %v1889 = vunpack.c.l.b16 %v1850
        %v1890 = vpack.c.b16 %v1876, %v1876
        %v1891 = vpack.c.b16 %v1877, %v1877
        %v1892 = vpack.c.b16 %v1878, %v1878
        %v1893 = vpack.c.b16 %v1879, %v1879
        %v1894 = vpack.c.b16 %v1880, %v1880
        %v1895 = vpack.c.b16 %v1881, %v1881
        %v1896 = vpack.c.b16 %v1882, %v1882
        %v1897 = vpack.c.b16 %v1883, %v1883
        %v1898 = vpack.c.b16 %v1884, %v1884
        %v1899 = vpack.c.b16 %v1885, %v1885
        %v1900 = vpack.c.b16 %v1886, %v1886
        %v1901 = vpack.c.b16 %v1887, %v1887
        %v1902 = vpack.c.b16 %v1888, %v1888
        %v1903 = vpack.c.b16 %v1889, %v1889
        %v1904 = vunpack.c.l.b16 %v1890
        %v1905 = vunpack.c.l.b16 %v1891
        %v1906 = vunpack.c.l.b16 %v1892
        %v1907 = vunpack.c.l.b16 %v1893
        %v1908 = vunpack.c.l.b16 %v1894
        %v1909 = vunpack.c.l.b16 %v1895
        %v1910 = vunpack.c.l.b16 %v1896
        %v1911 = vunpack.c.l.b16 %v1897
        %v1912 = vunpack.c.l.b16 %v1898
        %v1913 = vunpack.c.l.b16 %v1899
        %v1914 = vunpack.c.l.b16 %v1900
        %v1915 = vunpack.c.l.b16 %v1901
        %v1916 = vunpack.c.l.b16 %v1902
        %v1917 = vunpack.c.l.b16 %v1903
        %v1918 = vrot.slane %v1904, 6
        %v1919 = vrot.slane %v1905, 5
        %vm1920 = vcmask 1043459
        %v1921 = vsel %vm1920, %v1919, %v1918
        %v1922 = vrot.slane %v1906, 4
        %vm1923 = vcmask 1044484
        %v1924 = vsel %vm1923, %v1922, %v1921
        %v1925 = vrot.slane %v1907, 3
        %vm1926 = vcmask 1045509
        %v1927 = vsel %vm1926, %v1925, %v1924
        %v1928 = vrot.slane %v1908, 2
        %vm1929 = vcmask 1046534
        %v1930 = vsel %vm1929, %v1928, %v1927
        %v1931 = vrot.slane %v1909, 1
        %vm1932 = vcmask 1047559
        %v1933 = vsel %vm1932, %v1931, %v1930
        %v1934 = vrot.slane %v1911, 7
        %vm1935 = vcmask 1041409
        %v1936 = vsel %vm1935, %v1934, %v1910
        %v1937 = vrot.slane %v1912, 6
        %vm1938 = vcmask 1042434
        %v1939 = vsel %vm1938, %v1937, %v1936
        %v1940 = vrot.slane %v1913, 5
        %v1941 = vsel %vm1920, %v1940, %v1939
        %v1942 = vrot.slane %v1914, 4
        %v1943 = vsel %vm1923, %v1942, %v1941
        %v1944 = vrot.slane %v1915, 3
        %v1945 = vsel %vm1926, %v1944, %v1943
        %v1946 = vrot.slane %v1916, 2
        %v1947 = vsel %vm1929, %v1946, %v1945
        %v1948 = vrot.slane %v1917, 1
        %v1949 = vsel %vm1932, %v1948, %v1947
        %v1950 = vpack.c.b16 %v1933, %v1933
        %v1951 = vpack.c.b16 %v1949, %v1949
        %1952 = vrot.lane.b32.xlu0 %v1950, 32
        %v1953 = vpop.permute.xlu0 %1952
        %1954 = vrot.lane.b32.xlu0 %v1951, 32
        %v1955 = vpop.permute.xlu0 %1954
        %vm1958 = vcmask 388353
        %1959 = vst.msk [vmem:[#allocation2] sm:$0xe] %vm1958, %v1953
        %vm1960 = vcmask 388352
        %1961 = vst.msk [vmem:[#allocation2 + $0xc] sm:$0xf] %vm1960, %v1955
        %v1962 = vrot.slane %v1904, 7
        %v1963 = vrot.slane %v1905, 6
        %v1964 = vsel %vm1920, %v1963, %v1962
        %v1965 = vrot.slane %v1906, 5
        %v1966 = vsel %vm1923, %v1965, %v1964
        %v1967 = vrot.slane %v1907, 4
        %v1968 = vsel %vm1926, %v1967, %v1966
        %v1969 = vrot.slane %v1908, 3
        %v1970 = vsel %vm1929, %v1969, %v1968
        %v1971 = vrot.slane %v1909, 2
        %v1972 = vsel %vm1932, %v1971, %v1970
        %v1973 = vrot.slane %v1910, 1
        %v1974 = vsel %vm1935, %v1911, %v1973
        %v1975 = vrot.slane %v1912, 7
        %v1976 = vsel %vm1938, %v1975, %v1974
        %v1977 = vrot.slane %v1913, 6
        %v1978 = vsel %vm1920, %v1977, %v1976
        %v1979 = vrot.slane %v1914, 5
        %v1980 = vsel %vm1923, %v1979, %v1978
        %v1981 = vrot.slane %v1915, 4
        %v1982 = vsel %vm1926, %v1981, %v1980
        %v1983 = vrot.slane %v1916, 3
        %v1984 = vsel %vm1929, %v1983, %v1982
        %v1985 = vrot.slane %v1917, 2
        %v1986 = vsel %vm1932, %v1985, %v1984
        %v1987 = vpack.c.b16 %v1972, %v1972
        %v1988 = vpack.c.b16 %v1986, %v1986
        %1989 = vrot.lane.b32.xlu0 %v1987, 48
        %v1990 = vpop.permute.xlu0 %1989
        %1991 = vrot.lane.b32.xlu0 %v1988, 48
        %v1992 = vpop.permute.xlu0 %1991
        %vm1995 = vcmask 519553
        %1996 = vst.msk [vmem:[#allocation2] sm:$0xe] %vm1995, %v1990
        %vm1997 = vcmask 519552
        %1998 = vst.msk [vmem:[#allocation2 + $0xc] sm:$0xf] %vm1997, %v1992
        %v1999 = vrot.slane %v1905, 7
        %v2000 = vsel %vm1920, %v1999, %v1904
        %v2001 = vrot.slane %v1906, 6
        %v2002 = vsel %vm1923, %v2001, %v2000
        %v2003 = vrot.slane %v1907, 5
        %v2004 = vsel %vm1926, %v2003, %v2002
        %v2005 = vrot.slane %v1908, 4
        %v2006 = vsel %vm1929, %v2005, %v2004
        %v2007 = vrot.slane %v1909, 3
        %v2008 = vsel %vm1932, %v2007, %v2006
        %v2009 = vrot.slane %v1910, 2
        %v2010 = vrot.slane %v1911, 1
        %v2011 = vsel %vm1935, %v2010, %v2009
        %v2012 = vsel %vm1938, %v1912, %v2011
        %v2013 = vrot.slane %v1913, 7
        %v2014 = vsel %vm1920, %v2013, %v2012
        %v2015 = vrot.slane %v1914, 6
        %v2016 = vsel %vm1923, %v2015, %v2014
        %v2017 = vrot.slane %v1915, 5
        %v2018 = vsel %vm1926, %v2017, %v2016
        %v2019 = vrot.slane %v1916, 4
        %v2020 = vsel %vm1929, %v2019, %v2018
        %v2021 = vrot.slane %v1917, 3
        %v2022 = vsel %vm1932, %v2021, %v2020
        %v2023 = vpack.c.b16 %v2008, %v2008
        %v2024 = vpack.c.b16 %v2022, %v2022
        %2025 = vrot.lane.b32.xlu0 %v2023, 64
        %v2026 = vpop.permute.xlu0 %2025
        %2027 = vrot.lane.b32.xlu0 %v2024, 64
        %v2028 = vpop.permute.xlu0 %2027
        %vm2031 = vcmask 650753
        %2032 = vst.msk [vmem:[#allocation2] sm:$0xe] %vm2031, %v2026
        %vm2033 = vcmask 650752
        %2034 = vst.msk [vmem:[#allocation2 + $0xc] sm:$0xf] %vm2033, %v2028
        %v2035 = vrot.slane %v1904, 1
        %v2036 = vsel %vm1920, %v1905, %v2035
        %v2037 = vrot.slane %v1906, 7
        %v2038 = vsel %vm1923, %v2037, %v2036
        %v2039 = vrot.slane %v1907, 6
        %v2040 = vsel %vm1926, %v2039, %v2038
        %v2041 = vrot.slane %v1908, 5
        %v2042 = vsel %vm1929, %v2041, %v2040
        %v2043 = vrot.slane %v1909, 4
        %v2044 = vsel %vm1932, %v2043, %v2042
        %v2045 = vrot.slane %v1910, 3
        %v2046 = vrot.slane %v1911, 2
        %v2047 = vsel %vm1935, %v2046, %v2045
        %v2048 = vrot.slane %v1912, 1
        %v2049 = vsel %vm1938, %v2048, %v2047
        %v2050 = vsel %vm1920, %v1913, %v2049
        %v2051 = vrot.slane %v1914, 7
        %v2052 = vsel %vm1923, %v2051, %v2050
        %v2053 = vrot.slane %v1915, 6
        %v2054 = vsel %vm1926, %v2053, %v2052
        %v2055 = vrot.slane %v1916, 5
        %v2056 = vsel %vm1929, %v2055, %v2054
        %v2057 = vrot.slane %v1917, 4
        %v2058 = vsel %vm1932, %v2057, %v2056
        %v2059 = vpack.c.b16 %v2044, %v2044
        %v2060 = vpack.c.b16 %v2058, %v2058
        %2061 = vrot.lane.b32.xlu0 %v2059, 80
        %v2062 = vpop.permute.xlu0 %2061
        %2063 = vrot.lane.b32.xlu0 %v2060, 80
        %v2064 = vpop.permute.xlu0 %2063
        %vm2067 = vcmask 781953
        %2068 = vst.msk [vmem:[#allocation2] sm:$0xe] %vm2067, %v2062
        %vm2069 = vcmask 781952
        %2070 = vst.msk [vmem:[#allocation2 + $0xc] sm:$0xf] %vm2069, %v2064
        %v2071 = vrot.slane %v1904, 2
        %v2072 = vrot.slane %v1905, 1
        %v2073 = vsel %vm1920, %v2072, %v2071
        %v2074 = vsel %vm1923, %v1906, %v2073
        %v2075 = vrot.slane %v1907, 7
        %v2076 = vsel %vm1926, %v2075, %v2074
        %v2077 = vrot.slane %v1908, 6
        %v2078 = vsel %vm1929, %v2077, %v2076
        %v2079 = vrot.slane %v1909, 5
        %v2080 = vsel %vm1932, %v2079, %v2078
        %v2081 = vrot.slane %v1910, 4
        %v2082 = vrot.slane %v1911, 3
        %v2083 = vsel %vm1935, %v2082, %v2081
        %v2084 = vrot.slane %v1912, 2
        %v2085 = vsel %vm1938, %v2084, %v2083
        %v2086 = vrot.slane %v1913, 1
        %v2087 = vsel %vm1920, %v2086, %v2085
        %v2088 = vsel %vm1923, %v1914, %v2087
        %v2089 = vrot.slane %v1915, 7
        %v2090 = vsel %vm1926, %v2089, %v2088
        %v2091 = vrot.slane %v1916, 6
        %v2092 = vsel %vm1929, %v2091, %v2090
        %v2093 = vrot.slane %v1917, 5
        %v2094 = vsel %vm1932, %v2093, %v2092
        %v2095 = vpack.c.b16 %v2080, %v2080
        %v2096 = vpack.c.b16 %v2094, %v2094
        %2097 = vrot.lane.b32.xlu0 %v2095, 96
        %v2098 = vpop.permute.xlu0 %2097
        %2099 = vrot.lane.b32.xlu0 %v2096, 96
        %v2100 = vpop.permute.xlu0 %2099
        %vm2103 = vcmask 913153
        %2104 = vst.msk [vmem:[#allocation2] sm:$0xe] %vm2103, %v2098
        %vm2105 = vcmask 913152
        %2106 = vst.msk [vmem:[#allocation2 + $0xc] sm:$0xf] %vm2105, %v2100
        %v2107 = vrot.slane %v1904, 3
        %v2108 = vrot.slane %v1905, 2
        %v2109 = vsel %vm1920, %v2108, %v2107
        %v2110 = vrot.slane %v1906, 1
        %v2111 = vsel %vm1923, %v2110, %v2109
        %v2112 = vsel %vm1926, %v1907, %v2111
        %v2113 = vrot.slane %v1908, 7
        %v2114 = vsel %vm1929, %v2113, %v2112
        %v2115 = vrot.slane %v1909, 6
        %v2116 = vsel %vm1932, %v2115, %v2114
        %v2117 = vrot.slane %v1910, 5
        %v2118 = vrot.slane %v1911, 4
        %v2119 = vsel %vm1935, %v2118, %v2117
        %v2120 = vrot.slane %v1912, 3
        %v2121 = vsel %vm1938, %v2120, %v2119
        %v2122 = vrot.slane %v1913, 2
        %v2123 = vsel %vm1920, %v2122, %v2121
        %v2124 = vrot.slane %v1914, 1
        %v2125 = vsel %vm1923, %v2124, %v2123
        %v2126 = vsel %vm1926, %v1915, %v2125
        %v2127 = vrot.slane %v1916, 7
        %v2128 = vsel %vm1929, %v2127, %v2126
        %v2129 = vrot.slane %v1917, 6
        %v2130 = vsel %vm1932, %v2129, %v2128
        %v2131 = vpack.c.b16 %v2116, %v2116
        %v2132 = vpack.c.b16 %v2130, %v2130
        %2133 = vrot.lane.b32.xlu0 %v2131, 112
        %v2134 = vpop.permute.xlu0 %2133
        %2135 = vrot.lane.b32.xlu0 %v2132, 112
        %v2136 = vpop.permute.xlu0 %2135
        %vm2139 = vcmask 1044353
        %2140 = vst.msk [vmem:[#allocation2] sm:$0xe] %vm2139, %v2134
        %vm2141 = vcmask 1044352
        %2142 = vst.msk [vmem:[#allocation2 + $0xc] sm:$0xf] %vm2141, %v2136
        %v2143 = vrot.slane %v1904, 4
        %v2144 = vrot.slane %v1905, 3
        %v2145 = vsel %vm1920, %v2144, %v2143
        %v2146 = vrot.slane %v1906, 2
        %v2147 = vsel %vm1923, %v2146, %v2145
        %v2148 = vrot.slane %v1907, 1
        %v2149 = vsel %vm1926, %v2148, %v2147
        %v2150 = vsel %vm1929, %v1908, %v2149
        %v2151 = vrot.slane %v1909, 7
        %v2152 = vsel %vm1932, %v2151, %v2150
        %v2153 = vrot.slane %v1910, 6
        %v2154 = vrot.slane %v1911, 5
        %v2155 = vsel %vm1935, %v2154, %v2153
        %v2156 = vrot.slane %v1912, 4
        %v2157 = vsel %vm1938, %v2156, %v2155
        %v2158 = vrot.slane %v1913, 3
        %v2159 = vsel %vm1920, %v2158, %v2157
        %v2160 = vrot.slane %v1914, 2
        %v2161 = vsel %vm1923, %v2160, %v2159
        %v2162 = vrot.slane %v1915, 1
        %v2163 = vsel %vm1926, %v2162, %v2161
        %v2164 = vsel %vm1929, %v1916, %v2163
        %v2165 = vrot.slane %v1917, 7
        %v2166 = vsel %vm1932, %v2165, %v2164
        %v2167 = vpack.c.b16 %v2152, %v2152
        %v2168 = vpack.c.b16 %v2166, %v2166
        %vm2171 = vcmask 125953
        %2172 = vst.msk [vmem:[#allocation2 + $0x4] sm:$0xe] %vm2171, %v2167
        %vm2173 = vcmask 125952
        %2174 = vst.msk [vmem:[#allocation2 + $0x10] sm:$0xf] %vm2173, %v2168
        %v2175 = vrot.slane %v1904, 5
        %v2176 = vrot.slane %v1905, 4
        %v2177 = vsel %vm1920, %v2176, %v2175
        %v2178 = vrot.slane %v1906, 3
        %v2179 = vsel %vm1923, %v2178, %v2177
        %v2180 = vrot.slane %v1907, 2
        %v2181 = vsel %vm1926, %v2180, %v2179
        %v2182 = vrot.slane %v1908, 1
        %v2183 = vsel %vm1929, %v2182, %v2181
        %v2184 = vsel %vm1932, %v1909, %v2183
        %v2185 = vrot.slane %v1910, 7
        %v2186 = vrot.slane %v1911, 6
        %v2187 = vsel %vm1935, %v2186, %v2185
        %v2188 = vrot.slane %v1912, 5
        %v2189 = vsel %vm1938, %v2188, %v2187
        %v2190 = vrot.slane %v1913, 4
        %v2191 = vsel %vm1920, %v2190, %v2189
        %v2192 = vrot.slane %v1914, 3
        %v2193 = vsel %vm1923, %v2192, %v2191
        %v2194 = vrot.slane %v1915, 2
        %v2195 = vsel %vm1926, %v2194, %v2193
        %v2196 = vrot.slane %v1916, 1
        %v2197 = vsel %vm1929, %v2196, %v2195
        %v2198 = vsel %vm1932, %v1917, %v2197
        %v2199 = vpack.c.b16 %v2184, %v2184
        %v2200 = vpack.c.b16 %v2198, %v2198
        %2201 = vrot.lane.b32.xlu0 %v2199, 16
        %v2202 = vpop.permute.xlu0 %2201
        %2203 = vrot.lane.b32.xlu0 %v2200, 16
        %v2204 = vpop.permute.xlu0 %2203
        %vm2207 = vcmask 257153
        %2208 = vst.msk [vmem:[#allocation2 + $0x4] sm:$0xe] %vm2207, %v2202
        %vm2209 = vcmask 257152
        %2210 = vst.msk [vmem:[#allocation2 + $0x10] sm:$0xf] %vm2209, %v2204
        %v2211 = vunpack.c.h.b16 %v1837
        %v2212 = vunpack.c.h.b16 %v1838
        %v2213 = vunpack.c.h.b16 %v1839
        %v2214 = vunpack.c.h.b16 %v1840
        %v2215 = vunpack.c.h.b16 %v1841
        %v2216 = vunpack.c.h.b16 %v1842
        %v2217 = vunpack.c.h.b16 %v1843
        %v2218 = vunpack.c.h.b16 %v1844
        %v2219 = vunpack.c.h.b16 %v1845
        %v2220 = vunpack.c.h.b16 %v1846
        %v2221 = vunpack.c.h.b16 %v1847
        %v2222 = vunpack.c.h.b16 %v1848
        %v2223 = vunpack.c.h.b16 %v1849
        %v2224 = vunpack.c.h.b16 %v1850
        %v2225 = vpack.c.b16 %v2211, %v2211
        %v2226 = vpack.c.b16 %v2212, %v2212
        %v2227 = vpack.c.b16 %v2213, %v2213
        %v2228 = vpack.c.b16 %v2214, %v2214
        %v2229 = vpack.c.b16 %v2215, %v2215
        %v2230 = vpack.c.b16 %v2216, %v2216
        %v2231 = vpack.c.b16 %v2217, %v2217
        %v2232 = vpack.c.b16 %v2218, %v2218
        %v2233 = vpack.c.b16 %v2219, %v2219
        %v2234 = vpack.c.b16 %v2220, %v2220
        %v2235 = vpack.c.b16 %v2221, %v2221
        %v2236 = vpack.c.b16 %v2222, %v2222
        %v2237 = vpack.c.b16 %v2223, %v2223
        %v2238 = vpack.c.b16 %v2224, %v2224
        %v2239 = vunpack.c.l.b16 %v2225
        %v2240 = vunpack.c.l.b16 %v2226
        %v2241 = vunpack.c.l.b16 %v2227
        %v2242 = vunpack.c.l.b16 %v2228
        %v2243 = vunpack.c.l.b16 %v2229
        %v2244 = vunpack.c.l.b16 %v2230
        %v2245 = vunpack.c.l.b16 %v2231
        %v2246 = vunpack.c.l.b16 %v2232
        %v2247 = vunpack.c.l.b16 %v2233
        %v2248 = vunpack.c.l.b16 %v2234
        %v2249 = vunpack.c.l.b16 %v2235
        %v2250 = vunpack.c.l.b16 %v2236
        %v2251 = vunpack.c.l.b16 %v2237
        %v2252 = vunpack.c.l.b16 %v2238
        %v2253 = vrot.slane %v2239, 6
        %v2254 = vrot.slane %v2240, 5
        %v2255 = vsel %vm1920, %v2254, %v2253
        %v2256 = vrot.slane %v2241, 4
        %v2257 = vsel %vm1923, %v2256, %v2255
        %v2258 = vrot.slane %v2242, 3
        %v2259 = vsel %vm1926, %v2258, %v2257
        %v2260 = vrot.slane %v2243, 2
        %v2261 = vsel %vm1929, %v2260, %v2259
        %v2262 = vrot.slane %v2244, 1
        %v2263 = vsel %vm1932, %v2262, %v2261
        %v2264 = vrot.slane %v2246, 7
        %v2265 = vsel %vm1935, %v2264, %v2245
        %v2266 = vrot.slane %v2247, 6
        %v2267 = vsel %vm1938, %v2266, %v2265
        %v2268 = vrot.slane %v2248, 5
        %v2269 = vsel %vm1920, %v2268, %v2267
        %v2270 = vrot.slane %v2249, 4
        %v2271 = vsel %vm1923, %v2270, %v2269
        %v2272 = vrot.slane %v2250, 3
        %v2273 = vsel %vm1926, %v2272, %v2271
        %v2274 = vrot.slane %v2251, 2
        %v2275 = vsel %vm1929, %v2274, %v2273
        %v2276 = vrot.slane %v2252, 1
        %v2277 = vsel %vm1932, %v2276, %v2275
        %v2278 = vpack.c.b16 %v2263, %v2263
        %v2279 = vpack.c.b16 %v2277, %v2277
        %2280 = vrot.lane.b32.xlu0 %v2278, 32
        %v2281 = vpop.permute.xlu0 %2280
        %2282 = vrot.lane.b32.xlu0 %v2279, 32
        %v2283 = vpop.permute.xlu0 %2282
        %2286 = vst.msk [vmem:[#allocation2 + $0x4] sm:$0xe] %vm1958, %v2281
        %2287 = vst.msk [vmem:[#allocation2 + $0x10] sm:$0xf] %vm1960, %v2283
        %v2288 = vrot.slane %v2239, 7
        %v2289 = vrot.slane %v2240, 6
        %v2290 = vsel %vm1920, %v2289, %v2288
        %v2291 = vrot.slane %v2241, 5
        %v2292 = vsel %vm1923, %v2291, %v2290
        %v2293 = vrot.slane %v2242, 4
        %v2294 = vsel %vm1926, %v2293, %v2292
        %v2295 = vrot.slane %v2243, 3
        %v2296 = vsel %vm1929, %v2295, %v2294
        %v2297 = vrot.slane %v2244, 2
        %v2298 = vsel %vm1932, %v2297, %v2296
        %v2299 = vrot.slane %v2245, 1
        %v2300 = vsel %vm1935, %v2246, %v2299
        %v2301 = vrot.slane %v2247, 7
        %v2302 = vsel %vm1938, %v2301, %v2300
        %v2303 = vrot.slane %v2248, 6
        %v2304 = vsel %vm1920, %v2303, %v2302
        %v2305 = vrot.slane %v2249, 5
        %v2306 = vsel %vm1923, %v2305, %v2304
        %v2307 = vrot.slane %v2250, 4
        %v2308 = vsel %vm1926, %v2307, %v2306
        %v2309 = vrot.slane %v2251, 3
        %v2310 = vsel %vm1929, %v2309, %v2308
        %v2311 = vrot.slane %v2252, 2
        %v2312 = vsel %vm1932, %v2311, %v2310
        %v2313 = vpack.c.b16 %v2298, %v2298
        %v2314 = vpack.c.b16 %v2312, %v2312
        %2315 = vrot.lane.b32.xlu0 %v2313, 48
        %v2316 = vpop.permute.xlu0 %2315
        %2317 = vrot.lane.b32.xlu0 %v2314, 48
        %v2318 = vpop.permute.xlu0 %2317
        %2321 = vst.msk [vmem:[#allocation2 + $0x4] sm:$0xe] %vm1995, %v2316
        %2322 = vst.msk [vmem:[#allocation2 + $0x10] sm:$0xf] %vm1997, %v2318
        %v2323 = vrot.slane %v2240, 7
        %v2324 = vsel %vm1920, %v2323, %v2239
        %v2325 = vrot.slane %v2241, 6
        %v2326 = vsel %vm1923, %v2325, %v2324
        %v2327 = vrot.slane %v2242, 5
        %v2328 = vsel %vm1926, %v2327, %v2326
        %v2329 = vrot.slane %v2243, 4
        %v2330 = vsel %vm1929, %v2329, %v2328
        %v2331 = vrot.slane %v2244, 3
        %v2332 = vsel %vm1932, %v2331, %v2330
        %v2333 = vrot.slane %v2245, 2
        %v2334 = vrot.slane %v2246, 1
        %v2335 = vsel %vm1935, %v2334, %v2333
        %v2336 = vsel %vm1938, %v2247, %v2335
        %v2337 = vrot.slane %v2248, 7
        %v2338 = vsel %vm1920, %v2337, %v2336
        %v2339 = vrot.slane %v2249, 6
        %v2340 = vsel %vm1923, %v2339, %v2338
        %v2341 = vrot.slane %v2250, 5
        %v2342 = vsel %vm1926, %v2341, %v2340
        %v2343 = vrot.slane %v2251, 4
        %v2344 = vsel %vm1929, %v2343, %v2342
        %v2345 = vrot.slane %v2252, 3
        %v2346 = vsel %vm1932, %v2345, %v2344
        %v2347 = vpack.c.b16 %v2332, %v2332
        %v2348 = vpack.c.b16 %v2346, %v2346
        %2349 = vrot.lane.b32.xlu0 %v2347, 64
        %v2350 = vpop.permute.xlu0 %2349
        %2351 = vrot.lane.b32.xlu0 %v2348, 64
        %v2352 = vpop.permute.xlu0 %2351
        %2355 = vst.msk [vmem:[#allocation2 + $0x4] sm:$0xe] %vm2031, %v2350
        %2356 = vst.msk [vmem:[#allocation2 + $0x10] sm:$0xf] %vm2033, %v2352
        %v2357 = vrot.slane %v2239, 1
        %v2358 = vsel %vm1920, %v2240, %v2357
        %v2359 = vrot.slane %v2241, 7
        %v2360 = vsel %vm1923, %v2359, %v2358
        %v2361 = vrot.slane %v2242, 6
        %v2362 = vsel %vm1926, %v2361, %v2360
        %v2363 = vrot.slane %v2243, 5
        %v2364 = vsel %vm1929, %v2363, %v2362
        %v2365 = vrot.slane %v2244, 4
        %v2366 = vsel %vm1932, %v2365, %v2364
        %v2367 = vrot.slane %v2245, 3
        %v2368 = vrot.slane %v2246, 2
        %v2369 = vsel %vm1935, %v2368, %v2367
        %v2370 = vrot.slane %v2247, 1
        %v2371 = vsel %vm1938, %v2370, %v2369
        %v2372 = vsel %vm1920, %v2248, %v2371
        %v2373 = vrot.slane %v2249, 7
        %v2374 = vsel %vm1923, %v2373, %v2372
        %v2375 = vrot.slane %v2250, 6
        %v2376 = vsel %vm1926, %v2375, %v2374
        %v2377 = vrot.slane %v2251, 5
        %v2378 = vsel %vm1929, %v2377, %v2376
        %v2379 = vrot.slane %v2252, 4
        %v2380 = vsel %vm1932, %v2379, %v2378
        %v2381 = vpack.c.b16 %v2366, %v2366
        %v2382 = vpack.c.b16 %v2380, %v2380
        %2383 = vrot.lane.b32.xlu0 %v2381, 80
        %v2384 = vpop.permute.xlu0 %2383
        %2385 = vrot.lane.b32.xlu0 %v2382, 80
        %v2386 = vpop.permute.xlu0 %2385
        %2389 = vst.msk [vmem:[#allocation2 + $0x4] sm:$0xe] %vm2067, %v2384
        %2390 = vst.msk [vmem:[#allocation2 + $0x10] sm:$0xf] %vm2069, %v2386
        %v2391 = vrot.slane %v2239, 2
        %v2392 = vrot.slane %v2240, 1
        %v2393 = vsel %vm1920, %v2392, %v2391
        %v2394 = vsel %vm1923, %v2241, %v2393
        %v2395 = vrot.slane %v2242, 7
        %v2396 = vsel %vm1926, %v2395, %v2394
        %v2397 = vrot.slane %v2243, 6
        %v2398 = vsel %vm1929, %v2397, %v2396
        %v2399 = vrot.slane %v2244, 5
        %v2400 = vsel %vm1932, %v2399, %v2398
        %v2401 = vrot.slane %v2245, 4
        %v2402 = vrot.slane %v2246, 3
        %v2403 = vsel %vm1935, %v2402, %v2401
        %v2404 = vrot.slane %v2247, 2
        %v2405 = vsel %vm1938, %v2404, %v2403
        %v2406 = vrot.slane %v2248, 1
        %v2407 = vsel %vm1920, %v2406, %v2405
        %v2408 = vsel %vm1923, %v2249, %v2407
        %v2409 = vrot.slane %v2250, 7
        %v2410 = vsel %vm1926, %v2409, %v2408
        %v2411 = vrot.slane %v2251, 6
        %v2412 = vsel %vm1929, %v2411, %v2410
        %v2413 = vrot.slane %v2252, 5
        %v2414 = vsel %vm1932, %v2413, %v2412
        %v2415 = vpack.c.b16 %v2400, %v2400
        %v2416 = vpack.c.b16 %v2414, %v2414
        %2417 = vrot.lane.b32.xlu0 %v2415, 96
        %v2418 = vpop.permute.xlu0 %2417
        %2419 = vrot.lane.b32.xlu0 %v2416, 96
        %v2420 = vpop.permute.xlu0 %2419
        %2423 = vst.msk [vmem:[#allocation2 + $0x4] sm:$0xe] %vm2103, %v2418
        %2424 = vst.msk [vmem:[#allocation2 + $0x10] sm:$0xf] %vm2105, %v2420
        %v2425 = vrot.slane %v2239, 3
        %v2426 = vrot.slane %v2240, 2
        %v2427 = vsel %vm1920, %v2426, %v2425
        %v2428 = vrot.slane %v2241, 1
        %v2429 = vsel %vm1923, %v2428, %v2427
        %v2430 = vsel %vm1926, %v2242, %v2429
        %v2431 = vrot.slane %v2243, 7
        %v2432 = vsel %vm1929, %v2431, %v2430
        %v2433 = vrot.slane %v2244, 6
        %v2434 = vsel %vm1932, %v2433, %v2432
        %v2435 = vrot.slane %v2245, 5
        %v2436 = vrot.slane %v2246, 4
        %v2437 = vsel %vm1935, %v2436, %v2435
        %v2438 = vrot.slane %v2247, 3
        %v2439 = vsel %vm1938, %v2438, %v2437
        %v2440 = vrot.slane %v2248, 2
        %v2441 = vsel %vm1920, %v2440, %v2439
        %v2442 = vrot.slane %v2249, 1
        %v2443 = vsel %vm1923, %v2442, %v2441
        %v2444 = vsel %vm1926, %v2250, %v2443
        %v2445 = vrot.slane %v2251, 7
        %v2446 = vsel %vm1929, %v2445, %v2444
        %v2447 = vrot.slane %v2252, 6
        %v2448 = vsel %vm1932, %v2447, %v2446
        %v2449 = vpack.c.b16 %v2434, %v2434
        %v2450 = vpack.c.b16 %v2448, %v2448
        %2451 = vrot.lane.b32.xlu0 %v2449, 112
        %v2452 = vpop.permute.xlu0 %2451
        %2453 = vrot.lane.b32.xlu0 %v2450, 112
        %v2454 = vpop.permute.xlu0 %2453
        %2457 = vst.msk [vmem:[#allocation2 + $0x4] sm:$0xe] %vm2139, %v2452
        %2458 = vst.msk [vmem:[#allocation2 + $0x10] sm:$0xf] %vm2141, %v2454
        %v2459 = vld [vmem:[#allocation2] sm:$0xff]
        %v2460 = vld [vmem:[#allocation2 + $0x8] sm:$0xf]
        %v2461 = vld [vmem:[#allocation2 + $0xc] sm:$0x77]
        %v2462 = vld [vmem:[#allocation2 + $0x14] sm:$0x7]
        %v2463 = vld [vmem:[%s3] sm:$0xff]
        %v2464 = vld [vmem:[%s3 + $0x8] sm:$0xff]
        %v2465 = vld [vmem:[%s3 + $0x10] sm:$0xff]
        %v2466 = vld [vmem:[%s3 + $0x18] sm:$0xff]
        %v2467 = vld [vmem:[%s3 + $0x20] sm:$0xff]
        %v2468 = vld [vmem:[%s3 + $0x28] sm:$0xff]
        %v2469 = vld [vmem:[%s3 + $0x30] sm:$0xff]
        %v2470 = vld [vmem:[%s3 + $0x38] sm:$0xff]
        %v2471 = vld [vmem:[%s3 + $0x40] sm:$0xff]
        %v2472 = vld [vmem:[%s3 + $0x48] sm:$0xff]
        %v2473 = vld [vmem:[%s3 + $0x50] sm:$0xff]
        %v2474 = vld [vmem:[%s3 + $0x58] sm:$0xff]
        %v2475 = vld [vmem:[%s3 + $0x60] sm:$0xff]
        %v2476 = vld [vmem:[%s3 + $0x68] sm:$0xff]
        %v2477 = vld [vmem:[%s3 + $0x70] sm:$0xff]
        %v2478 = vld [vmem:[%s3 + $0x78] sm:$0xff]
        %v2479 = vld [vmem:[%s3 + $0x80] sm:$0xff]
        %v2480 = vld [vmem:[%s3 + $0x88] sm:$0xff]
        %v2481 = vld [vmem:[%s3 + $0x90] sm:$0xff]
        %v2482 = vld [vmem:[%s3 + $0x98] sm:$0xff]
        %v2483 = vld [vmem:[%s3 + $0xa0] sm:$0xff]
        %v2484 = vld [vmem:[%s3 + $0xa8] sm:$0xff]
        %v2485 = vld [vmem:[%s3 + $0xb0] sm:$0xff]
        %v2486 = vld [vmem:[%s3 + $0xb8] sm:$0xff]
        %v2487 = vld [vmem:[%s3 + $0xc0] sm:$0xff]
        %v2488 = vld [vmem:[%s3 + $0xc8] sm:$0xff]
        %v2489 = vld [vmem:[%s3 + $0xd0] sm:$0xff]
        %v2490 = vld [vmem:[%s3 + $0xd8] sm:$0xff]
        %v2491 = vld [vmem:[%s3 + $0xe0] sm:$0xff]
        %v2492 = vld [vmem:[%s3 + $0xe8] sm:$0xff]
        %v2493 = vld [vmem:[%s3 + $0xf0] sm:$0xff]
        %v2494 = vld [vmem:[%s3 + $0xf8] sm:$0xff]
        %v2495 = vld [vmem:[%s3 + $0x100] sm:$0xff]
        %v2496 = vld [vmem:[%s3 + $0x108] sm:$0xff]
        %v2497 = vld [vmem:[%s3 + $0x110] sm:$0xff]
        %v2498 = vld [vmem:[%s3 + $0x118] sm:$0xff]
        %v2499 = vld [vmem:[%s3 + $0x120] sm:$0xff]
        %v2500 = vld [vmem:[%s3 + $0x128] sm:$0xff]
        %v2501 = vld [vmem:[%s3 + $0x130] sm:$0xff]
        %v2502 = vld [vmem:[%s3 + $0x138] sm:$0xff]
        %v2503 = vld [vmem:[%s3 + $0x140] sm:$0xff]
        %v2504 = vld [vmem:[%s3 + $0x148] sm:$0xff]
        %v2505 = vld [vmem:[%s3 + $0x150] sm:$0xff]
        %v2506 = vld [vmem:[%s3 + $0x158] sm:$0xff]
        %v2507 = vld [vmem:[%s3 + $0x160] sm:$0xff]
        %v2508 = vld [vmem:[%s3 + $0x168] sm:$0xff]
        %v2509 = vld [vmem:[%s3 + $0x170] sm:$0xff]
        %v2510 = vld [vmem:[%s3 + $0x178] sm:$0xff]
        %v2511 = vld [vmem:[%s3 + $0x180] sm:$0xff]
        %v2512 = vld [vmem:[%s3 + $0x188] sm:$0xff]
        %v2513 = vld [vmem:[%s3 + $0x190] sm:$0xff]
        %v2514 = vld [vmem:[%s3 + $0x198] sm:$0xff]
        %v2515 = vld [vmem:[%s3 + $0x1a0] sm:$0xff]
        %v2516 = vld [vmem:[%s3 + $0x1a8] sm:$0xff]
        %v2517 = vld [vmem:[%s3 + $0x1b0] sm:$0xff]
        %v2518 = vld [vmem:[%s3 + $0x1b8] sm:$0xff]
        %v2519 = vld [vmem:[%s3 + $0x1c0] sm:$0xff]
        %v2520 = vld [vmem:[%s3 + $0x1c8] sm:$0xff]
        %v2521 = vld [vmem:[%s3 + $0x1d0] sm:$0xff]
        %v2522 = vld [vmem:[%s3 + $0x1d8] sm:$0xff]
        %v2523 = vld [vmem:[%s3 + $0x1e0] sm:$0xff]
        %v2524 = vld [vmem:[%s3 + $0x1e8] sm:$0xff]
        %v2525 = vld [vmem:[%s3 + $0x1f0] sm:$0xff]
        %v2526 = vld [vmem:[%s3 + $0x1f8] sm:$0xff]
        %v2527 = vld [vmem:[%s3 + $0x200] sm:$0xff]
        %v2528 = vld [vmem:[%s3 + $0x208] sm:$0xff]
        %v2529 = vld [vmem:[%s3 + $0x210] sm:$0xff]
        %v2530 = vld [vmem:[%s3 + $0x218] sm:$0xff]
        %v2531 = vld [vmem:[%s3 + $0x220] sm:$0xff]
        %v2532 = vld [vmem:[%s3 + $0x228] sm:$0xff]
        %v2533 = vld [vmem:[%s3 + $0x230] sm:$0xff]
        %v2534 = vld [vmem:[%s3 + $0x238] sm:$0xff]
        %v2535 = vld [vmem:[#allocation2 + $0xc] sm:$0xff]
        %v2536 = vld [vmem:[#allocation2 + $0x14] sm:$0xf]
        %s2537 = scalar_lea.vmem %s3, 576
        %v2538 = vld [vmem:[%s2537] sm:$0xff]
        %v2539 = vld [vmem:[%s2537 + $0x8] sm:$0xff]
        %v2540 = vld [vmem:[%s2537 + $0x10] sm:$0xff]
        %v2541 = vld [vmem:[%s2537 + $0x18] sm:$0xff]
        %v2542 = vld [vmem:[%s2537 + $0x20] sm:$0xff]
        %v2543 = vld [vmem:[%s2537 + $0x28] sm:$0xff]
        %v2544 = vld [vmem:[%s2537 + $0x30] sm:$0xff]
        %v2545 = vld [vmem:[%s2537 + $0x38] sm:$0xff]
        %v2546 = vld [vmem:[%s2537 + $0x40] sm:$0xff]
        %v2547 = vld [vmem:[%s2537 + $0x48] sm:$0xff]
        %v2548 = vld [vmem:[%s2537 + $0x50] sm:$0xff]
        %v2549 = vld [vmem:[%s2537 + $0x58] sm:$0xff]
        %v2550 = vld [vmem:[%s2537 + $0x60] sm:$0xff]
        %v2551 = vld [vmem:[%s2537 + $0x68] sm:$0xff]
        %v2552 = vld [vmem:[%s2537 + $0x70] sm:$0xff]
        %v2553 = vld [vmem:[%s2537 + $0x78] sm:$0xff]
        %v2554 = vld [vmem:[%s2537 + $0x80] sm:$0xff]
        %v2555 = vld [vmem:[%s2537 + $0x88] sm:$0xff]
        %v2556 = vld [vmem:[%s2537 + $0x90] sm:$0xff]
        %v2557 = vld [vmem:[%s2537 + $0x98] sm:$0xff]
        %v2558 = vld [vmem:[%s2537 + $0xa0] sm:$0xff]
        %v2559 = vld [vmem:[%s2537 + $0xa8] sm:$0xff]
        %v2560 = vld [vmem:[%s2537 + $0xb0] sm:$0xff]
        %v2561 = vld [vmem:[%s2537 + $0xb8] sm:$0xff]
        %v2562 = vld [vmem:[%s2537 + $0xc0] sm:$0xff]
        %v2563 = vld [vmem:[%s2537 + $0xc8] sm:$0xff]
        %v2564 = vld [vmem:[%s2537 + $0xd0] sm:$0xff]
        %v2565 = vld [vmem:[%s2537 + $0xd8] sm:$0xff]
        %v2566 = vld [vmem:[%s2537 + $0xe0] sm:$0xff]
        %v2567 = vld [vmem:[%s2537 + $0xe8] sm:$0xff]
        %v2568 = vld [vmem:[%s2537 + $0xf0] sm:$0xff]
        %v2569 = vld [vmem:[%s2537 + $0xf8] sm:$0xff]
        %v2570 = vld [vmem:[%s2537 + $0x100] sm:$0xff]
        %v2571 = vld [vmem:[%s2537 + $0x108] sm:$0xff]
        %v2572 = vld [vmem:[%s2537 + $0x110] sm:$0xff]
        %v2573 = vld [vmem:[%s2537 + $0x118] sm:$0xff]
        %v2574 = vld [vmem:[%s2537 + $0x120] sm:$0xff]
        %v2575 = vld [vmem:[%s2537 + $0x128] sm:$0xff]
        %v2576 = vld [vmem:[%s2537 + $0x130] sm:$0xff]
        %v2577 = vld [vmem:[%s2537 + $0x138] sm:$0xff]
        %v2578 = vld [vmem:[%s2537 + $0x140] sm:$0xff]
        %v2579 = vld [vmem:[%s2537 + $0x148] sm:$0xff]
        %v2580 = vld [vmem:[%s2537 + $0x150] sm:$0xff]
        %v2581 = vld [vmem:[%s2537 + $0x158] sm:$0xff]
        %v2582 = vld [vmem:[%s2537 + $0x160] sm:$0xff]
        %v2583 = vld [vmem:[%s2537 + $0x168] sm:$0xff]
        %v2584 = vld [vmem:[%s2537 + $0x170] sm:$0xff]
        %v2585 = vld [vmem:[%s2537 + $0x178] sm:$0xff]
        %v2586 = vld [vmem:[%s2537 + $0x180] sm:$0xff]
        %v2587 = vld [vmem:[%s2537 + $0x188] sm:$0xff]
        %v2588 = vld [vmem:[%s2537 + $0x190] sm:$0xff]
        %v2589 = vld [vmem:[%s2537 + $0x198] sm:$0xff]
        %v2590 = vld [vmem:[%s2537 + $0x1a0] sm:$0xff]
        %v2591 = vld [vmem:[%s2537 + $0x1a8] sm:$0xff]
        %v2592 = vld [vmem:[%s2537 + $0x1b0] sm:$0xff]
        %v2593 = vld [vmem:[%s2537 + $0x1b8] sm:$0xff]
        %v2594 = vld [vmem:[%s2537 + $0x1c0] sm:$0xff]
        %v2595 = vld [vmem:[%s2537 + $0x1c8] sm:$0xff]
        %v2596 = vld [vmem:[%s2537 + $0x1d0] sm:$0xff]
        %v2597 = vld [vmem:[%s2537 + $0x1d8] sm:$0xff]
        %v2598 = vld [vmem:[%s2537 + $0x1e0] sm:$0xff]
        %v2599 = vld [vmem:[%s2537 + $0x1e8] sm:$0xff]
        %v2600 = vld [vmem:[%s2537 + $0x1f0] sm:$0xff]
        %v2601 = vld [vmem:[%s2537 + $0x1f8] sm:$0xff]
        %v2602 = vld [vmem:[%s2537 + $0x200] sm:$0xff]
        %v2603 = vld [vmem:[%s2537 + $0x208] sm:$0xff]
        %v2604 = vld [vmem:[%s2537 + $0x210] sm:$0xff]
        %v2605 = vld [vmem:[%s2537 + $0x218] sm:$0xff]
        %v2606 = vld [vmem:[%s2537 + $0x220] sm:$0xff]
        %v2607 = vld [vmem:[%s2537 + $0x228] sm:$0xff]
        %v2608 = vld [vmem:[%s2537 + $0x230] sm:$0xff]
        %v2609 = vld [vmem:[%s2537 + $0x238] sm:$0xff]
        %v2614 = vunpack.c.l.b16 %v2459
        %v2615 = vunpack.c.h.b16 %v2459
        %v2616 = vunpack.c.l.b16 %v2460
        %v2617 = vunpack.c.l.b16 %v2535
        %v2618 = vunpack.c.h.b16 %v2535
        %v2619 = vunpack.c.l.b16 %v2536
        %v2620 = vpack.c.b16 %v2617, %v2614
        %v2621 = vpack.c.b16 %v2618, %v2615
        %v2622 = vpack.c.b16 %v2619, %v2616
        %v2624 = vshrl.u32 %v2620, 16
        %v2626 = vshll.u32 %v2620, 16
        %v2628 = vrot.slane %v2626, 1
        %v2629 = vor.u32 %v2624, %v2628
        %v2631 = vshrl.u32 %v2621, 16
        %v2633 = vshll.u32 %v2621, 16
        %v2635 = vrot.slane %v2633, 1
        %v2636 = vor.u32 %v2631, %v2635
        %v2638 = vshrl.u32 %v2622, 16
        %v2640 = vshll.u32 %v2622, 16
        %v2642 = vrot.slane %v2640, 1
        %v2643 = vor.u32 %v2638, %v2642
        %v2718 = vunpack.c.l.b16 %v2538
        %v2719 = vunpack.c.h.b16 %v2538
        %v2720 = vunpack.c.l.b16 %v2539
        %v2721 = vunpack.c.h.b16 %v2539
        %v2722 = vunpack.c.l.b16 %v2540
        %v2723 = vunpack.c.h.b16 %v2540
        %v2724 = vunpack.c.l.b16 %v2541
        %v2725 = vunpack.c.h.b16 %v2541
        %v2726 = vunpack.c.l.b16 %v2542
        %v2727 = vunpack.c.h.b16 %v2542
        %v2728 = vunpack.c.l.b16 %v2543
        %v2729 = vunpack.c.h.b16 %v2543
        %v2730 = vunpack.c.l.b16 %v2544
        %v2731 = vunpack.c.h.b16 %v2544
        %v2732 = vunpack.c.l.b16 %v2545
        %v2733 = vunpack.c.h.b16 %v2545
        %v2734 = vunpack.c.l.b16 %v2546
        %v2735 = vunpack.c.h.b16 %v2546
        %v2736 = vunpack.c.l.b16 %v2547
        %v2737 = vunpack.c.h.b16 %v2547
        %v2738 = vunpack.c.l.b16 %v2548
        %v2739 = vunpack.c.h.b16 %v2548
        %v2740 = vunpack.c.l.b16 %v2549
        %v2741 = vunpack.c.h.b16 %v2549
        %v2742 = vunpack.c.l.b16 %v2550
        %v2743 = vunpack.c.h.b16 %v2550
        %v2744 = vunpack.c.l.b16 %v2551
        %v2745 = vunpack.c.h.b16 %v2551
        %v2746 = vunpack.c.l.b16 %v2552
        %v2747 = vunpack.c.h.b16 %v2552
        %v2748 = vunpack.c.l.b16 %v2553
        %v2749 = vunpack.c.h.b16 %v2553
        %v2750 = vunpack.c.l.b16 %v2554
        %v2751 = vunpack.c.h.b16 %v2554
        %v2752 = vunpack.c.l.b16 %v2555
        %v2753 = vunpack.c.h.b16 %v2555
        %v2754 = vunpack.c.l.b16 %v2556
        %v2755 = vunpack.c.h.b16 %v2556
        %v2756 = vunpack.c.l.b16 %v2557
        %v2757 = vunpack.c.h.b16 %v2557
        %v2758 = vunpack.c.l.b16 %v2558
        %v2759 = vunpack.c.h.b16 %v2558
        %v2760 = vunpack.c.l.b16 %v2559
        %v2761 = vunpack.c.h.b16 %v2559
        %v2762 = vunpack.c.l.b16 %v2560
        %v2763 = vunpack.c.h.b16 %v2560
        %v2764 = vunpack.c.l.b16 %v2561
        %v2765 = vunpack.c.h.b16 %v2561
        %v2766 = vunpack.c.l.b16 %v2562
        %v2767 = vunpack.c.h.b16 %v2562
        %v2768 = vunpack.c.l.b16 %v2563
        %v2769 = vunpack.c.h.b16 %v2563
        %v2770 = vunpack.c.l.b16 %v2564
        %v2771 = vunpack.c.h.b16 %v2564
        %v2772 = vunpack.c.l.b16 %v2565
        %v2773 = vunpack.c.h.b16 %v2565
        %v2774 = vunpack.c.l.b16 %v2566
        %v2775 = vunpack.c.h.b16 %v2566
        %v2776 = vunpack.c.l.b16 %v2567
        %v2777 = vunpack.c.h.b16 %v2567
        %v2778 = vunpack.c.l.b16 %v2568
        %v2779 = vunpack.c.h.b16 %v2568
        %v2780 = vunpack.c.l.b16 %v2569
        %v2781 = vunpack.c.h.b16 %v2569
        %v2782 = vunpack.c.l.b16 %v2570
        %v2783 = vunpack.c.h.b16 %v2570
        %v2784 = vunpack.c.l.b16 %v2571
        %v2785 = vunpack.c.h.b16 %v2571
        %v2786 = vunpack.c.l.b16 %v2572
        %v2787 = vunpack.c.h.b16 %v2572
        %v2788 = vunpack.c.l.b16 %v2573
        %v2789 = vunpack.c.h.b16 %v2573
        %v2790 = vunpack.c.l.b16 %v2574
        %v2791 = vunpack.c.h.b16 %v2574
        %v2792 = vunpack.c.l.b16 %v2575
        %v2793 = vunpack.c.h.b16 %v2575
        %v2794 = vunpack.c.l.b16 %v2576
        %v2795 = vunpack.c.h.b16 %v2576
        %v2796 = vunpack.c.l.b16 %v2577
        %v2797 = vunpack.c.h.b16 %v2577
        %v2798 = vunpack.c.l.b16 %v2578
        %v2799 = vunpack.c.h.b16 %v2578
        %v2800 = vunpack.c.l.b16 %v2579
        %v2801 = vunpack.c.h.b16 %v2579
        %v2802 = vunpack.c.l.b16 %v2580
        %v2803 = vunpack.c.h.b16 %v2580
        %v2804 = vunpack.c.l.b16 %v2581
        %v2805 = vunpack.c.h.b16 %v2581
        %v2806 = vunpack.c.l.b16 %v2582
        %v2807 = vunpack.c.h.b16 %v2582
        %v2808 = vunpack.c.l.b16 %v2583
        %v2809 = vunpack.c.h.b16 %v2583
        %v2810 = vunpack.c.l.b16 %v2584
        %v2811 = vunpack.c.h.b16 %v2584
        %v2812 = vunpack.c.l.b16 %v2585
        %v2813 = vunpack.c.h.b16 %v2585
        %v2814 = vunpack.c.l.b16 %v2586
        %v2815 = vunpack.c.h.b16 %v2586
        %v2816 = vunpack.c.l.b16 %v2587
        %v2817 = vunpack.c.h.b16 %v2587
        %v2818 = vunpack.c.l.b16 %v2588
        %v2819 = vunpack.c.h.b16 %v2588
        %v2820 = vunpack.c.l.b16 %v2589
        %v2821 = vunpack.c.h.b16 %v2589
        %v2822 = vunpack.c.l.b16 %v2590
        %v2823 = vunpack.c.h.b16 %v2590
        %v2824 = vunpack.c.l.b16 %v2591
        %v2825 = vunpack.c.h.b16 %v2591
        %v2826 = vunpack.c.l.b16 %v2592
        %v2827 = vunpack.c.h.b16 %v2592
        %v2828 = vunpack.c.l.b16 %v2593
        %v2829 = vunpack.c.h.b16 %v2593
        %v2830 = vunpack.c.l.b16 %v2594
        %v2831 = vunpack.c.h.b16 %v2594
        %v2832 = vunpack.c.l.b16 %v2595
        %v2833 = vunpack.c.h.b16 %v2595
        %v2834 = vunpack.c.l.b16 %v2596
        %v2835 = vunpack.c.h.b16 %v2596
        %v2836 = vunpack.c.l.b16 %v2597
        %v2837 = vunpack.c.h.b16 %v2597
        %v2838 = vunpack.c.l.b16 %v2598
        %v2839 = vunpack.c.h.b16 %v2598
        %v2840 = vunpack.c.l.b16 %v2599
        %v2841 = vunpack.c.h.b16 %v2599
        %v2842 = vunpack.c.l.b16 %v2600
        %v2843 = vunpack.c.h.b16 %v2600
        %v2844 = vunpack.c.l.b16 %v2601
        %v2845 = vunpack.c.h.b16 %v2601
        %v2846 = vunpack.c.l.b16 %v2602
        %v2847 = vunpack.c.h.b16 %v2602
        %v2848 = vunpack.c.l.b16 %v2603
        %v2849 = vunpack.c.h.b16 %v2603
        %v2850 = vunpack.c.l.b16 %v2604
        %v2851 = vunpack.c.h.b16 %v2604
        %v2852 = vunpack.c.l.b16 %v2605
        %v2853 = vunpack.c.h.b16 %v2605
        %v2854 = vunpack.c.l.b16 %v2606
        %v2855 = vunpack.c.h.b16 %v2606
        %v2856 = vunpack.c.l.b16 %v2607
        %v2857 = vunpack.c.h.b16 %v2607
        %v2858 = vunpack.c.l.b16 %v2608
        %v2859 = vunpack.c.h.b16 %v2608
        %v2860 = vunpack.c.l.b16 %v2609
        %v2861 = vunpack.c.h.b16 %v2609
        %v2862 = vpack.c.b16 %v2722, %v2718
        %v2863 = vpack.c.b16 %v2723, %v2719
        %v2864 = vpack.c.b16 %v2724, %v2720
        %v2865 = vpack.c.b16 %v2725, %v2721
        %v2866 = vpack.c.b16 %v2730, %v2726
        %v2867 = vpack.c.b16 %v2731, %v2727
        %v2868 = vpack.c.b16 %v2732, %v2728
        %v2869 = vpack.c.b16 %v2733, %v2729
        %v2870 = vpack.c.b16 %v2738, %v2734
        %v2871 = vpack.c.b16 %v2739, %v2735
        %v2872 = vpack.c.b16 %v2740, %v2736
        %v2873 = vpack.c.b16 %v2741, %v2737
        %v2874 = vpack.c.b16 %v2746, %v2742
        %v2875 = vpack.c.b16 %v2747, %v2743
        %v2876 = vpack.c.b16 %v2748, %v2744
        %v2877 = vpack.c.b16 %v2749, %v2745
        %v2878 = vpack.c.b16 %v2754, %v2750
        %v2879 = vpack.c.b16 %v2755, %v2751
        %v2880 = vpack.c.b16 %v2756, %v2752
        %v2881 = vpack.c.b16 %v2757, %v2753
        %v2882 = vpack.c.b16 %v2762, %v2758
        %v2883 = vpack.c.b16 %v2763, %v2759
        %v2884 = vpack.c.b16 %v2764, %v2760
        %v2885 = vpack.c.b16 %v2765, %v2761
        %v2886 = vpack.c.b16 %v2770, %v2766
        %v2887 = vpack.c.b16 %v2771, %v2767
        %v2888 = vpack.c.b16 %v2772, %v2768
        %v2889 = vpack.c.b16 %v2773, %v2769
        %v2890 = vpack.c.b16 %v2778, %v2774
        %v2891 = vpack.c.b16 %v2779, %v2775
        %v2892 = vpack.c.b16 %v2780, %v2776
        %v2893 = vpack.c.b16 %v2781, %v2777
        %v2894 = vpack.c.b16 %v2786, %v2782
        %v2895 = vpack.c.b16 %v2787, %v2783
        %v2896 = vpack.c.b16 %v2788, %v2784
        %v2897 = vpack.c.b16 %v2789, %v2785
        %v2898 = vpack.c.b16 %v2794, %v2790
        %v2899 = vpack.c.b16 %v2795, %v2791
        %v2900 = vpack.c.b16 %v2796, %v2792
        %v2901 = vpack.c.b16 %v2797, %v2793
        %v2902 = vpack.c.b16 %v2802, %v2798
        %v2903 = vpack.c.b16 %v2803, %v2799
        %v2904 = vpack.c.b16 %v2804, %v2800
        %v2905 = vpack.c.b16 %v2805, %v2801
        %v2906 = vpack.c.b16 %v2810, %v2806
        %v2907 = vpack.c.b16 %v2811, %v2807
        %v2908 = vpack.c.b16 %v2812, %v2808
        %v2909 = vpack.c.b16 %v2813, %v2809
        %v2910 = vpack.c.b16 %v2818, %v2814
        %v2911 = vpack.c.b16 %v2819, %v2815
        %v2912 = vpack.c.b16 %v2820, %v2816
        %v2913 = vpack.c.b16 %v2821, %v2817
        %v2914 = vpack.c.b16 %v2826, %v2822
        %v2915 = vpack.c.b16 %v2827, %v2823
        %v2916 = vpack.c.b16 %v2828, %v2824
        %v2917 = vpack.c.b16 %v2829, %v2825
        %v2918 = vpack.c.b16 %v2834, %v2830
        %v2919 = vpack.c.b16 %v2835, %v2831
        %v2920 = vpack.c.b16 %v2836, %v2832
        %v2921 = vpack.c.b16 %v2837, %v2833
        %v2922 = vpack.c.b16 %v2842, %v2838
        %v2923 = vpack.c.b16 %v2843, %v2839
        %v2924 = vpack.c.b16 %v2844, %v2840
        %v2925 = vpack.c.b16 %v2845, %v2841
        %v2926 = vpack.c.b16 %v2850, %v2846
        %v2927 = vpack.c.b16 %v2851, %v2847
        %v2928 = vpack.c.b16 %v2852, %v2848
        %v2929 = vpack.c.b16 %v2853, %v2849
        %v2930 = vpack.c.b16 %v2858, %v2854
        %v2931 = vpack.c.b16 %v2859, %v2855
        %v2932 = vpack.c.b16 %v2860, %v2856
        %v2933 = vpack.c.b16 %v2861, %v2857
        %vm3006 = vcmask 261120
        %v3008 = vsel %vm3006, %v2643, 0
        %3010 = vmatprep.subr.bf16.mxu0 %v2863
        %3011 = vmatpush1.bf16.msra.mxu0 %v2862
        %3012 = vmatprep.subr.bf16.mxu0 %v2867
        %3013 = vmatpush1.bf16.msra.mxu0 %v2866
        %3014 = vmatprep.subr.bf16.mxu0 %v2871
        %3015 = vmatpush1.bf16.msra.mxu0 %v2870
        %3016 = vmatprep.subr.bf16.mxu0 %v2875
        %3017 = vmatpush1.bf16.msra.mxu0 %v2874
        %3018 = vmatprep.subr.bf16.mxu0 %v2879
        %3019 = vmatpush1.bf16.msra.mxu0 %v2878
        %3020 = vmatprep.subr.bf16.mxu0 %v2883
        %3021 = vmatpush1.bf16.msra.mxu0 %v2882
        %3022 = vmatprep.subr.bf16.mxu0 %v2887
        %3023 = vmatpush1.bf16.msra.mxu0 %v2886
        %3024 = vmatprep.subr.bf16.mxu0 %v2891
        %3025 = vmatpush1.bf16.msra.mxu0 %v2890
        %3026 = vmatprep.subr.bf16.mxu0 %v2895
        %3027 = vmatpush1.bf16.msra.mxu0 %v2894
        %3028 = vmatprep.subr.bf16.mxu0 %v2899
        %3029 = vmatpush1.bf16.msra.mxu0 %v2898
        %3030 = vmatprep.subr.bf16.mxu0 %v2903
        %3031 = vmatpush1.bf16.msra.mxu0 %v2902
        %3032 = vmatprep.subr.bf16.mxu0 %v2907
        %3033 = vmatpush1.bf16.msra.mxu0 %v2906
        %3034 = vmatprep.subr.bf16.mxu0 %v2911
        %3035 = vmatpush1.bf16.msra.mxu0 %v2910
        %3036 = vmatprep.subr.bf16.mxu0 %v2915
        %3037 = vmatpush1.bf16.msra.mxu0 %v2914
        %3038 = vmatprep.subr.bf16.mxu0 %v2919
        %3039 = vmatpush1.bf16.msra.mxu0 %v2918
        %3040 = vmatprep.subr.bf16.mxu0 %v2923
        %3041 = vmatpush1.bf16.msra.mxu0 %v2922
        %3042 = vmatprep.mubr.bf16.mxu0 %v2636
        %3043 = vmatmul.mubr.bf16.gmra.mrb[0].mxu0 %v2629
        %v3044 = vpop.f32.mrb[0].mxu0
        %v3045 = vadd.f32 0.0, %v3044
        %v3046 = vpop.f32.mrb[0].mxu0
        %v3047 = vadd.f32 0.0, %v3046
        %v3048 = vpop.f32.mrb[0].mxu0
        %v3049 = vadd.f32 0.0, %v3048
        %v3050 = vpop.f32.mrb[0].mxu0
        %v3051 = vadd.f32 0.0, %v3050
        %3052 = vdwg.mxu0
        %3053 = vmatprep.subr.bf16.mxu0 %v2927
        %3054 = vmatpush1.bf16.msra.mxu0 %v2926
        %3055 = vmatprep.subr.bf16.mxu0 %v2931
        %3056 = vmatpush1.bf16.msra.mxu0 %v2930
        %3057 = vmatprep.subr.bf16.mxu0 0
        %3058 = vmatpush1.bf16.msra.mxu0 0
        %3059 = vmatprep.subr.bf16.mxu0 0
        %3060 = vmatpush1.bf16.msra.mxu0 0
        %3061 = vmatprep.subr.bf16.mxu0 0
        %3062 = vmatpush1.bf16.msra.mxu0 0
        %3063 = vmatprep.subr.bf16.mxu0 0
        %3064 = vmatpush1.bf16.msra.mxu0 0
        %3065 = vmatprep.subr.bf16.mxu0 0
        %3066 = vmatpush1.bf16.msra.mxu0 0
        %3067 = vmatprep.subr.bf16.mxu0 0
        %3068 = vmatpush1.bf16.msra.mxu0 0
        %3069 = vmatprep.subr.bf16.mxu0 0
        %3070 = vmatpush1.bf16.msra.mxu0 0
        %3071 = vmatprep.subr.bf16.mxu0 0
        %3072 = vmatpush1.bf16.msra.mxu0 0
        %3073 = vmatprep.subr.bf16.mxu0 0
        %3074 = vmatpush1.bf16.msra.mxu0 0
        %3075 = vmatprep.subr.bf16.mxu0 0
        %3076 = vmatpush1.bf16.msra.mxu0 0
        %3077 = vmatprep.subr.bf16.mxu0 0
        %3078 = vmatpush1.bf16.msra.mxu0 0
        %3079 = vmatprep.subr.bf16.mxu0 0
        %3080 = vmatpush1.bf16.msra.mxu0 0
        %3081 = vmatprep.subr.bf16.mxu0 0
        %3082 = vmatpush1.bf16.msra.mxu0 0
        %3083 = vmatprep.subr.bf16.mxu0 0
        %3084 = vmatpush1.bf16.msra.mxu0 0
        %3085 = vmatprep.mubr.bf16.mxu0 0
        %3086 = vmatmul.mubr.bf16.gmra.mrb[0].mxu0 %v3008
        %v3087 = vpop.f32.mrb[0].mxu0
        %v3088 = vadd.f32 %v3045, %v3087
        %v3089 = vpop.f32.mrb[0].mxu0
        %v3090 = vadd.f32 %v3047, %v3089
        %v3091 = vpop.f32.mrb[0].mxu0
        %v3092 = vadd.f32 %v3049, %v3091
        %v3093 = vpop.f32.mrb[0].mxu0
        %v3094 = vadd.f32 %v3051, %v3093
        %3095 = vdwg.mxu0
        %3096 = vmatprep.subr.bf16.mxu0 %v2865
        %3097 = vmatpush1.bf16.msra.mxu0 %v2864
        %3098 = vmatprep.subr.bf16.mxu0 %v2869
        %3099 = vmatpush1.bf16.msra.mxu0 %v2868
        %3100 = vmatprep.subr.bf16.mxu0 %v2873
        %3101 = vmatpush1.bf16.msra.mxu0 %v2872
        %3102 = vmatprep.subr.bf16.mxu0 %v2877
        %3103 = vmatpush1.bf16.msra.mxu0 %v2876
        %3104 = vmatprep.subr.bf16.mxu0 %v2881
        %3105 = vmatpush1.bf16.msra.mxu0 %v2880
        %3106 = vmatprep.subr.bf16.mxu0 %v2885
        %3107 = vmatpush1.bf16.msra.mxu0 %v2884
        %3108 = vmatprep.subr.bf16.mxu0 %v2889
        %3109 = vmatpush1.bf16.msra.mxu0 %v2888
        %3110 = vmatprep.subr.bf16.mxu0 %v2893
        %3111 = vmatpush1.bf16.msra.mxu0 %v2892
        %3112 = vmatprep.subr.bf16.mxu0 %v2897
        %3113 = vmatpush1.bf16.msra.mxu0 %v2896
        %3114 = vmatprep.subr.bf16.mxu0 %v2901
        %3115 = vmatpush1.bf16.msra.mxu0 %v2900
        %3116 = vmatprep.subr.bf16.mxu0 %v2905
        %3117 = vmatpush1.bf16.msra.mxu0 %v2904
        %3118 = vmatprep.subr.bf16.mxu0 %v2909
        %3119 = vmatpush1.bf16.msra.mxu0 %v2908
        %3120 = vmatprep.subr.bf16.mxu0 %v2913
        %3121 = vmatpush1.bf16.msra.mxu0 %v2912
        %3122 = vmatprep.subr.bf16.mxu0 %v2917
        %3123 = vmatpush1.bf16.msra.mxu0 %v2916
        %3124 = vmatprep.subr.bf16.mxu0 %v2921
        %3125 = vmatpush1.bf16.msra.mxu0 %v2920
        %3126 = vmatprep.subr.bf16.mxu0 %v2925
        %3127 = vmatpush1.bf16.msra.mxu0 %v2924
        %3128 = vmatprep.mubr.bf16.mxu0 %v2636
        %3129 = vmatmul.mubr.bf16.gmra.mrb[0].mxu0 %v2629
        %v3130 = vpop.f32.mrb[0].mxu0
        %v3131 = vadd.f32 0.0, %v3130
        %v3132 = vpop.f32.mrb[0].mxu0
        %v3133 = vadd.f32 0.0, %v3132
        %v3134 = vpop.f32.mrb[0].mxu0
        %v3135 = vadd.f32 0.0, %v3134
        %v3136 = vpop.f32.mrb[0].mxu0
        %v3137 = vadd.f32 0.0, %v3136
        %3138 = vdwg.mxu0
        %3139 = vmatprep.subr.bf16.mxu0 %v2929
        %3140 = vmatpush1.bf16.msra.mxu0 %v2928
        %3141 = vmatprep.subr.bf16.mxu0 %v2933
        %3142 = vmatpush1.bf16.msra.mxu0 %v2932
        %3143 = vmatprep.subr.bf16.mxu0 0
        %3144 = vmatpush1.bf16.msra.mxu0 0
        %3145 = vmatprep.subr.bf16.mxu0 0
        %3146 = vmatpush1.bf16.msra.mxu0 0
        %3147 = vmatprep.subr.bf16.mxu0 0
        %3148 = vmatpush1.bf16.msra.mxu0 0
        %3149 = vmatprep.subr.bf16.mxu0 0
        %3150 = vmatpush1.bf16.msra.mxu0 0
        %3151 = vmatprep.subr.bf16.mxu0 0
        %3152 = vmatpush1.bf16.msra.mxu0 0
        %3153 = vmatprep.subr.bf16.mxu0 0
        %3154 = vmatpush1.bf16.msra.mxu0 0
        %3155 = vmatprep.subr.bf16.mxu0 0
        %3156 = vmatpush1.bf16.msra.mxu0 0
        %3157 = vmatprep.subr.bf16.mxu0 0
        %3158 = vmatpush1.bf16.msra.mxu0 0
        %3159 = vmatprep.subr.bf16.mxu0 0
        %3160 = vmatpush1.bf16.msra.mxu0 0
        %3161 = vmatprep.subr.bf16.mxu0 0
        %3162 = vmatpush1.bf16.msra.mxu0 0
        %3163 = vmatprep.subr.bf16.mxu0 0
        %3164 = vmatpush1.bf16.msra.mxu0 0
        %3165 = vmatprep.subr.bf16.mxu0 0
        %3166 = vmatpush1.bf16.msra.mxu0 0
        %3167 = vmatprep.subr.bf16.mxu0 0
        %3168 = vmatpush1.bf16.msra.mxu0 0
        %3169 = vmatprep.subr.bf16.mxu0 0
        %3170 = vmatpush1.bf16.msra.mxu0 0
        %3171 = vmatprep.mubr.bf16.mxu0 0
        %3172 = vmatmul.mubr.bf16.gmra.mrb[0].mxu0 %v3008
        %v3173 = vpop.f32.mrb[0].mxu0
        %v3174 = vadd.f32 %v3131, %v3173
        %v3175 = vpop.f32.mrb[0].mxu0
        %v3176 = vadd.f32 %v3133, %v3175
        %v3177 = vpop.f32.mrb[0].mxu0
        %v3178 = vadd.f32 %v3135, %v3177
        %v3179 = vpop.f32.mrb[0].mxu0
        %v3180 = vadd.f32 %v3137, %v3179
        %3181 = vdwg.mxu0
        %v3184 = vunpack.c.l.b16 %v2461
        %v3185 = vunpack.c.h.b16 %v2461
        %v3186 = vunpack.c.l.b16 %v2462
        %v3187 = vpack.c.b16 %v3184, %v2614
        %v3188 = vpack.c.b16 %v3185, %v2615
        %v3189 = vpack.c.b16 %v3186, %v2616
        %v3264 = vunpack.c.l.b16 %v2463
        %v3265 = vunpack.c.h.b16 %v2463
        %v3266 = vunpack.c.l.b16 %v2464
        %v3267 = vunpack.c.h.b16 %v2464
        %v3268 = vunpack.c.l.b16 %v2465
        %v3269 = vunpack.c.h.b16 %v2465
        %v3270 = vunpack.c.l.b16 %v2466
        %v3271 = vunpack.c.h.b16 %v2466
        %v3272 = vunpack.c.l.b16 %v2467
        %v3273 = vunpack.c.h.b16 %v2467
        %v3274 = vunpack.c.l.b16 %v2468
        %v3275 = vunpack.c.h.b16 %v2468
        %v3276 = vunpack.c.l.b16 %v2469
        %v3277 = vunpack.c.h.b16 %v2469
        %v3278 = vunpack.c.l.b16 %v2470
        %v3279 = vunpack.c.h.b16 %v2470
        %v3280 = vunpack.c.l.b16 %v2471
        %v3281 = vunpack.c.h.b16 %v2471
        %v3282 = vunpack.c.l.b16 %v2472
        %v3283 = vunpack.c.h.b16 %v2472
        %v3284 = vunpack.c.l.b16 %v2473
        %v3285 = vunpack.c.h.b16 %v2473
        %v3286 = vunpack.c.l.b16 %v2474
        %v3287 = vunpack.c.h.b16 %v2474
        %v3288 = vunpack.c.l.b16 %v2475
        %v3289 = vunpack.c.h.b16 %v2475
        %v3290 = vunpack.c.l.b16 %v2476
        %v3291 = vunpack.c.h.b16 %v2476
        %v3292 = vunpack.c.l.b16 %v2477
        %v3293 = vunpack.c.h.b16 %v2477
        %v3294 = vunpack.c.l.b16 %v2478
        %v3295 = vunpack.c.h.b16 %v2478
        %v3296 = vunpack.c.l.b16 %v2479
        %v3297 = vunpack.c.h.b16 %v2479
        %v3298 = vunpack.c.l.b16 %v2480
        %v3299 = vunpack.c.h.b16 %v2480
        %v3300 = vunpack.c.l.b16 %v2481
        %v3301 = vunpack.c.h.b16 %v2481
        %v3302 = vunpack.c.l.b16 %v2482
        %v3303 = vunpack.c.h.b16 %v2482
        %v3304 = vunpack.c.l.b16 %v2483
        %v3305 = vunpack.c.h.b16 %v2483
        %v3306 = vunpack.c.l.b16 %v2484
        %v3307 = vunpack.c.h.b16 %v2484
        %v3308 = vunpack.c.l.b16 %v2485
        %v3309 = vunpack.c.h.b16 %v2485
        %v3310 = vunpack.c.l.b16 %v2486
        %v3311 = vunpack.c.h.b16 %v2486
        %v3312 = vunpack.c.l.b16 %v2487
        %v3313 = vunpack.c.h.b16 %v2487
        %v3314 = vunpack.c.l.b16 %v2488
        %v3315 = vunpack.c.h.b16 %v2488
        %v3316 = vunpack.c.l.b16 %v2489
        %v3317 = vunpack.c.h.b16 %v2489
        %v3318 = vunpack.c.l.b16 %v2490
        %v3319 = vunpack.c.h.b16 %v2490
        %v3320 = vunpack.c.l.b16 %v2491
        %v3321 = vunpack.c.h.b16 %v2491
        %v3322 = vunpack.c.l.b16 %v2492
        %v3323 = vunpack.c.h.b16 %v2492
        %v3324 = vunpack.c.l.b16 %v2493
        %v3325 = vunpack.c.h.b16 %v2493
        %v3326 = vunpack.c.l.b16 %v2494
        %v3327 = vunpack.c.h.b16 %v2494
        %v3328 = vunpack.c.l.b16 %v2495
        %v3329 = vunpack.c.h.b16 %v2495
        %v3330 = vunpack.c.l.b16 %v2496
        %v3331 = vunpack.c.h.b16 %v2496
        %v3332 = vunpack.c.l.b16 %v2497
        %v3333 = vunpack.c.h.b16 %v2497
        %v3334 = vunpack.c.l.b16 %v2498
        %v3335 = vunpack.c.h.b16 %v2498
        %v3336 = vunpack.c.l.b16 %v2499
        %v3337 = vunpack.c.h.b16 %v2499
        %v3338 = vunpack.c.l.b16 %v2500
        %v3339 = vunpack.c.h.b16 %v2500
        %v3340 = vunpack.c.l.b16 %v2501
        %v3341 = vunpack.c.h.b16 %v2501
        %v3342 = vunpack.c.l.b16 %v2502
        %v3343 = vunpack.c.h.b16 %v2502
        %v3344 = vunpack.c.l.b16 %v2503
        %v3345 = vunpack.c.h.b16 %v2503
        %v3346 = vunpack.c.l.b16 %v2504
        %v3347 = vunpack.c.h.b16 %v2504
        %v3348 = vunpack.c.l.b16 %v2505
        %v3349 = vunpack.c.h.b16 %v2505
        %v3350 = vunpack.c.l.b16 %v2506
        %v3351 = vunpack.c.h.b16 %v2506
        %v3352 = vunpack.c.l.b16 %v2507
        %v3353 = vunpack.c.h.b16 %v2507
        %v3354 = vunpack.c.l.b16 %v2508
        %v3355 = vunpack.c.h.b16 %v2508
        %v3356 = vunpack.c.l.b16 %v2509
        %v3357 = vunpack.c.h.b16 %v2509
        %v3358 = vunpack.c.l.b16 %v2510
        %v3359 = vunpack.c.h.b16 %v2510
        %v3360 = vunpack.c.l.b16 %v2511
        %v3361 = vunpack.c.h.b16 %v2511
        %v3362 = vunpack.c.l.b16 %v2512
        %v3363 = vunpack.c.h.b16 %v2512
        %v3364 = vunpack.c.l.b16 %v2513
        %v3365 = vunpack.c.h.b16 %v2513
        %v3366 = vunpack.c.l.b16 %v2514
        %v3367 = vunpack.c.h.b16 %v2514
        %v3368 = vunpack.c.l.b16 %v2515
        %v3369 = vunpack.c.h.b16 %v2515
        %v3370 = vunpack.c.l.b16 %v2516
        %v3371 = vunpack.c.h.b16 %v2516
        %v3372 = vunpack.c.l.b16 %v2517
        %v3373 = vunpack.c.h.b16 %v2517
        %v3374 = vunpack.c.l.b16 %v2518
        %v3375 = vunpack.c.h.b16 %v2518
        %v3376 = vunpack.c.l.b16 %v2519
        %v3377 = vunpack.c.h.b16 %v2519
        %v3378 = vunpack.c.l.b16 %v2520
        %v3379 = vunpack.c.h.b16 %v2520
        %v3380 = vunpack.c.l.b16 %v2521
        %v3381 = vunpack.c.h.b16 %v2521
        %v3382 = vunpack.c.l.b16 %v2522
        %v3383 = vunpack.c.h.b16 %v2522
        %v3384 = vunpack.c.l.b16 %v2523
        %v3385 = vunpack.c.h.b16 %v2523
        %v3386 = vunpack.c.l.b16 %v2524
        %v3387 = vunpack.c.h.b16 %v2524
        %v3388 = vunpack.c.l.b16 %v2525
        %v3389 = vunpack.c.h.b16 %v2525
        %v3390 = vunpack.c.l.b16 %v2526
        %v3391 = vunpack.c.h.b16 %v2526
        %v3392 = vunpack.c.l.b16 %v2527
        %v3393 = vunpack.c.h.b16 %v2527
        %v3394 = vunpack.c.l.b16 %v2528
        %v3395 = vunpack.c.h.b16 %v2528
        %v3396 = vunpack.c.l.b16 %v2529
        %v3397 = vunpack.c.h.b16 %v2529
        %v3398 = vunpack.c.l.b16 %v2530
        %v3399 = vunpack.c.h.b16 %v2530
        %v3400 = vunpack.c.l.b16 %v2531
        %v3401 = vunpack.c.h.b16 %v2531
        %v3402 = vunpack.c.l.b16 %v2532
        %v3403 = vunpack.c.h.b16 %v2532
        %v3404 = vunpack.c.l.b16 %v2533
        %v3405 = vunpack.c.h.b16 %v2533
        %v3406 = vunpack.c.l.b16 %v2534
        %v3407 = vunpack.c.h.b16 %v2534
        %v3408 = vpack.c.b16 %v3268, %v3264
        %v3409 = vpack.c.b16 %v3269, %v3265
        %v3410 = vpack.c.b16 %v3270, %v3266
        %v3411 = vpack.c.b16 %v3271, %v3267
        %v3412 = vpack.c.b16 %v3276, %v3272
        %v3413 = vpack.c.b16 %v3277, %v3273
        %v3414 = vpack.c.b16 %v3278, %v3274
        %v3415 = vpack.c.b16 %v3279, %v3275
        %v3416 = vpack.c.b16 %v3284, %v3280
        %v3417 = vpack.c.b16 %v3285, %v3281
        %v3418 = vpack.c.b16 %v3286, %v3282
        %v3419 = vpack.c.b16 %v3287, %v3283
        %v3420 = vpack.c.b16 %v3292, %v3288
        %v3421 = vpack.c.b16 %v3293, %v3289
        %v3422 = vpack.c.b16 %v3294, %v3290
        %v3423 = vpack.c.b16 %v3295, %v3291
        %v3424 = vpack.c.b16 %v3300, %v3296
        %v3425 = vpack.c.b16 %v3301, %v3297
        %v3426 = vpack.c.b16 %v3302, %v3298
        %v3427 = vpack.c.b16 %v3303, %v3299
        %v3428 = vpack.c.b16 %v3308, %v3304
        %v3429 = vpack.c.b16 %v3309, %v3305
        %v3430 = vpack.c.b16 %v3310, %v3306
        %v3431 = vpack.c.b16 %v3311, %v3307
        %v3432 = vpack.c.b16 %v3316, %v3312
        %v3433 = vpack.c.b16 %v3317, %v3313
        %v3434 = vpack.c.b16 %v3318, %v3314
        %v3435 = vpack.c.b16 %v3319, %v3315
        %v3436 = vpack.c.b16 %v3324, %v3320
        %v3437 = vpack.c.b16 %v3325, %v3321
        %v3438 = vpack.c.b16 %v3326, %v3322
        %v3439 = vpack.c.b16 %v3327, %v3323
        %v3440 = vpack.c.b16 %v3332, %v3328
        %v3441 = vpack.c.b16 %v3333, %v3329
        %v3442 = vpack.c.b16 %v3334, %v3330
        %v3443 = vpack.c.b16 %v3335, %v3331
        %v3444 = vpack.c.b16 %v3340, %v3336
        %v3445 = vpack.c.b16 %v3341, %v3337
        %v3446 = vpack.c.b16 %v3342, %v3338
        %v3447 = vpack.c.b16 %v3343, %v3339
        %v3448 = vpack.c.b16 %v3348, %v3344
        %v3449 = vpack.c.b16 %v3349, %v3345
        %v3450 = vpack.c.b16 %v3350, %v3346
        %v3451 = vpack.c.b16 %v3351, %v3347
        %v3452 = vpack.c.b16 %v3356, %v3352
        %v3453 = vpack.c.b16 %v3357, %v3353
        %v3454 = vpack.c.b16 %v3358, %v3354
        %v3455 = vpack.c.b16 %v3359, %v3355
        %v3456 = vpack.c.b16 %v3364, %v3360
        %v3457 = vpack.c.b16 %v3365, %v3361
        %v3458 = vpack.c.b16 %v3366, %v3362
        %v3459 = vpack.c.b16 %v3367, %v3363
        %v3460 = vpack.c.b16 %v3372, %v3368
        %v3461 = vpack.c.b16 %v3373, %v3369
        %v3462 = vpack.c.b16 %v3374, %v3370
        %v3463 = vpack.c.b16 %v3375, %v3371
        %v3464 = vpack.c.b16 %v3380, %v3376
        %v3465 = vpack.c.b16 %v3381, %v3377
        %v3466 = vpack.c.b16 %v3382, %v3378
        %v3467 = vpack.c.b16 %v3383, %v3379
        %v3468 = vpack.c.b16 %v3388, %v3384
        %v3469 = vpack.c.b16 %v3389, %v3385
        %v3470 = vpack.c.b16 %v3390, %v3386
        %v3471 = vpack.c.b16 %v3391, %v3387
        %v3472 = vpack.c.b16 %v3396, %v3392
        %v3473 = vpack.c.b16 %v3397, %v3393
        %v3474 = vpack.c.b16 %v3398, %v3394
        %v3475 = vpack.c.b16 %v3399, %v3395
        %v3476 = vpack.c.b16 %v3404, %v3400
        %v3477 = vpack.c.b16 %v3405, %v3401
        %v3478 = vpack.c.b16 %v3406, %v3402
        %v3479 = vpack.c.b16 %v3407, %v3403
        %v3553 = vsel %vm3006, %v3189, 0
        %3555 = vmatprep.subr.bf16.mxu0 %v3409
        %3556 = vmatpush1.bf16.msra.mxu0 %v3408
        %3557 = vmatprep.subr.bf16.mxu0 %v3413
        %3558 = vmatpush1.bf16.msra.mxu0 %v3412
        %3559 = vmatprep.subr.bf16.mxu0 %v3417
        %3560 = vmatpush1.bf16.msra.mxu0 %v3416
        %3561 = vmatprep.subr.bf16.mxu0 %v3421
        %3562 = vmatpush1.bf16.msra.mxu0 %v3420
        %3563 = vmatprep.subr.bf16.mxu0 %v3425
        %3564 = vmatpush1.bf16.msra.mxu0 %v3424
        %3565 = vmatprep.subr.bf16.mxu0 %v3429
        %3566 = vmatpush1.bf16.msra.mxu0 %v3428
        %3567 = vmatprep.subr.bf16.mxu0 %v3433
        %3568 = vmatpush1.bf16.msra.mxu0 %v3432
        %3569 = vmatprep.subr.bf16.mxu0 %v3437
        %3570 = vmatpush1.bf16.msra.mxu0 %v3436
        %3571 = vmatprep.subr.bf16.mxu0 %v3441
        %3572 = vmatpush1.bf16.msra.mxu0 %v3440
        %3573 = vmatprep.subr.bf16.mxu0 %v3445
        %3574 = vmatpush1.bf16.msra.mxu0 %v3444
        %3575 = vmatprep.subr.bf16.mxu0 %v3449
        %3576 = vmatpush1.bf16.msra.mxu0 %v3448
        %3577 = vmatprep.subr.bf16.mxu0 %v3453
        %3578 = vmatpush1.bf16.msra.mxu0 %v3452
        %3579 = vmatprep.subr.bf16.mxu0 %v3457
        %3580 = vmatpush1.bf16.msra.mxu0 %v3456
        %3581 = vmatprep.subr.bf16.mxu0 %v3461
        %3582 = vmatpush1.bf16.msra.mxu0 %v3460
        %3583 = vmatprep.subr.bf16.mxu0 %v3465
        %3584 = vmatpush1.bf16.msra.mxu0 %v3464
        %3585 = vmatprep.subr.bf16.mxu0 %v3469
        %3586 = vmatpush1.bf16.msra.mxu0 %v3468
        %3587 = vmatprep.mubr.bf16.mxu0 %v3188
        %3588 = vmatmul.mubr.bf16.gmra.mrb[0].mxu0 %v3187
        %v3589 = vpop.f32.mrb[0].mxu0
        %v3590 = vadd.f32 %v3088, %v3589
        %v3591 = vpop.f32.mrb[0].mxu0
        %v3592 = vadd.f32 %v3090, %v3591
        %v3593 = vpop.f32.mrb[0].mxu0
        %v3594 = vadd.f32 %v3092, %v3593
        %v3595 = vpop.f32.mrb[0].mxu0
        %v3596 = vadd.f32 %v3094, %v3595
        %3597 = vdwg.mxu0
        %3598 = vmatprep.subr.bf16.mxu0 %v3473
        %3599 = vmatpush1.bf16.msra.mxu0 %v3472
        %3600 = vmatprep.subr.bf16.mxu0 %v3477
        %3601 = vmatpush1.bf16.msra.mxu0 %v3476
        %3602 = vmatprep.subr.bf16.mxu0 0
        %3603 = vmatpush1.bf16.msra.mxu0 0
        %3604 = vmatprep.subr.bf16.mxu0 0
        %3605 = vmatpush1.bf16.msra.mxu0 0
        %3606 = vmatprep.subr.bf16.mxu0 0
        %3607 = vmatpush1.bf16.msra.mxu0 0
        %3608 = vmatprep.subr.bf16.mxu0 0
        %3609 = vmatpush1.bf16.msra.mxu0 0
        %3610 = vmatprep.subr.bf16.mxu0 0
        %3611 = vmatpush1.bf16.msra.mxu0 0
        %3612 = vmatprep.subr.bf16.mxu0 0
        %3613 = vmatpush1.bf16.msra.mxu0 0
        %3614 = vmatprep.subr.bf16.mxu0 0
        %3615 = vmatpush1.bf16.msra.mxu0 0
        %3616 = vmatprep.subr.bf16.mxu0 0
        %3617 = vmatpush1.bf16.msra.mxu0 0
        %3618 = vmatprep.subr.bf16.mxu0 0
        %3619 = vmatpush1.bf16.msra.mxu0 0
        %3620 = vmatprep.subr.bf16.mxu0 0
        %3621 = vmatpush1.bf16.msra.mxu0 0
        %3622 = vmatprep.subr.bf16.mxu0 0
        %3623 = vmatpush1.bf16.msra.mxu0 0
        %3624 = vmatprep.subr.bf16.mxu0 0
        %3625 = vmatpush1.bf16.msra.mxu0 0
        %3626 = vmatprep.subr.bf16.mxu0 0
        %3627 = vmatpush1.bf16.msra.mxu0 0
        %3628 = vmatprep.subr.bf16.mxu0 0
        %3629 = vmatpush1.bf16.msra.mxu0 0
        %3630 = vmatprep.mubr.bf16.mxu0 0
        %3631 = vmatmul.mubr.bf16.gmra.mrb[0].mxu0 %v3553
        %v3632 = vpop.f32.mrb[0].mxu0
        %v3633 = vadd.f32 %v3590, %v3632
        %v3634 = vpop.f32.mrb[0].mxu0
        %v3635 = vadd.f32 %v3592, %v3634
        %v3636 = vpop.f32.mrb[0].mxu0
        %v3637 = vadd.f32 %v3594, %v3636
        %v3638 = vpop.f32.mrb[0].mxu0
        %v3639 = vadd.f32 %v3596, %v3638
        %3640 = vdwg.mxu0
        %3641 = vmatprep.subr.bf16.mxu0 %v3411
        %3642 = vmatpush1.bf16.msra.mxu0 %v3410
        %3643 = vmatprep.subr.bf16.mxu0 %v3415
        %3644 = vmatpush1.bf16.msra.mxu0 %v3414
        %3645 = vmatprep.subr.bf16.mxu0 %v3419
        %3646 = vmatpush1.bf16.msra.mxu0 %v3418
        %3647 = vmatprep.subr.bf16.mxu0 %v3423
        %3648 = vmatpush1.bf16.msra.mxu0 %v3422
        %3649 = vmatprep.subr.bf16.mxu0 %v3427
        %3650 = vmatpush1.bf16.msra.mxu0 %v3426
        %3651 = vmatprep.subr.bf16.mxu0 %v3431
        %3652 = vmatpush1.bf16.msra.mxu0 %v3430
        %3653 = vmatprep.subr.bf16.mxu0 %v3435
        %3654 = vmatpush1.bf16.msra.mxu0 %v3434
        %3655 = vmatprep.subr.bf16.mxu0 %v3439
        %3656 = vmatpush1.bf16.msra.mxu0 %v3438
        %3657 = vmatprep.subr.bf16.mxu0 %v3443
        %3658 = vmatpush1.bf16.msra.mxu0 %v3442
        %3659 = vmatprep.subr.bf16.mxu0 %v3447
        %3660 = vmatpush1.bf16.msra.mxu0 %v3446
        %3661 = vmatprep.subr.bf16.mxu0 %v3451
        %3662 = vmatpush1.bf16.msra.mxu0 %v3450
        %3663 = vmatprep.subr.bf16.mxu0 %v3455
        %3664 = vmatpush1.bf16.msra.mxu0 %v3454
        %3665 = vmatprep.subr.bf16.mxu0 %v3459
        %3666 = vmatpush1.bf16.msra.mxu0 %v3458
        %3667 = vmatprep.subr.bf16.mxu0 %v3463
        %3668 = vmatpush1.bf16.msra.mxu0 %v3462
        %3669 = vmatprep.subr.bf16.mxu0 %v3467
        %3670 = vmatpush1.bf16.msra.mxu0 %v3466
        %3671 = vmatprep.subr.bf16.mxu0 %v3471
        %3672 = vmatpush1.bf16.msra.mxu0 %v3470
        %3673 = vmatprep.mubr.bf16.mxu0 %v3188
        %3674 = vmatmul.mubr.bf16.gmra.mrb[0].mxu0 %v3187
        %v3675 = vpop.f32.mrb[0].mxu0
        %v3676 = vadd.f32 %v3174, %v3675
        %v3677 = vpop.f32.mrb[0].mxu0
        %v3678 = vadd.f32 %v3176, %v3677
        %v3679 = vpop.f32.mrb[0].mxu0
        %v3680 = vadd.f32 %v3178, %v3679
        %v3681 = vpop.f32.mrb[0].mxu0
        %v3682 = vadd.f32 %v3180, %v3681
        %3683 = vdwg.mxu0
        %3684 = vmatprep.subr.bf16.mxu0 %v3475
        %3685 = vmatpush1.bf16.msra.mxu0 %v3474
        %3686 = vmatprep.subr.bf16.mxu0 %v3479
        %3687 = vmatpush1.bf16.msra.mxu0 %v3478
        %3688 = vmatprep.subr.bf16.mxu0 0
        %3689 = vmatpush1.bf16.msra.mxu0 0
        %3690 = vmatprep.subr.bf16.mxu0 0
        %3691 = vmatpush1.bf16.msra.mxu0 0
        %3692 = vmatprep.subr.bf16.mxu0 0
        %3693 = vmatpush1.bf16.msra.mxu0 0
        %3694 = vmatprep.subr.bf16.mxu0 0
        %3695 = vmatpush1.bf16.msra.mxu0 0
        %3696 = vmatprep.subr.bf16.mxu0 0
        %3697 = vmatpush1.bf16.msra.mxu0 0
        %3698 = vmatprep.subr.bf16.mxu0 0
        %3699 = vmatpush1.bf16.msra.mxu0 0
        %3700 = vmatprep.subr.bf16.mxu0 0
        %3701 = vmatpush1.bf16.msra.mxu0 0
        %3702 = vmatprep.subr.bf16.mxu0 0
        %3703 = vmatpush1.bf16.msra.mxu0 0
        %3704 = vmatprep.subr.bf16.mxu0 0
        %3705 = vmatpush1.bf16.msra.mxu0 0
        %3706 = vmatprep.subr.bf16.mxu0 0
        %3707 = vmatpush1.bf16.msra.mxu0 0
        %3708 = vmatprep.subr.bf16.mxu0 0
        %3709 = vmatpush1.bf16.msra.mxu0 0
        %3710 = vmatprep.subr.bf16.mxu0 0
        %3711 = vmatpush1.bf16.msra.mxu0 0
        %3712 = vmatprep.subr.bf16.mxu0 0
        %3713 = vmatpush1.bf16.msra.mxu0 0
        %3714 = vmatprep.subr.bf16.mxu0 0
        %3715 = vmatpush1.bf16.msra.mxu0 0
        %3716 = vmatprep.mubr.bf16.mxu0 0
        %3717 = vmatmul.mubr.bf16.gmra.mrb[0].mxu0 %v3553
        %v3718 = vpop.f32.mrb[0].mxu0
        %v3719 = vadd.f32 %v3676, %v3718
        %v3720 = vpop.f32.mrb[0].mxu0
        %v3721 = vadd.f32 %v3678, %v3720
        %v3722 = vpop.f32.mrb[0].mxu0
        %v3723 = vadd.f32 %v3680, %v3722
        %v3724 = vpop.f32.mrb[0].mxu0
        %v3725 = vadd.f32 %v3682, %v3724
        %3726 = vdwg.mxu0
        %v3727 = vld [vmem:[#allocation2] sm:$0xee]
        %v3728 = vld [vmem:[#allocation2 + $0x8] sm:$0xe]
        %s3729 = scalar_lea.vmem %s3, 1152
        %v3730 = vld [vmem:[%s3729] sm:$0xff]
        %v3731 = vld [vmem:[%s3729 + $0x8] sm:$0xff]
        %v3732 = vld [vmem:[%s3729 + $0x10] sm:$0xff]
        %v3733 = vld [vmem:[%s3729 + $0x18] sm:$0xff]
        %v3734 = vld [vmem:[%s3729 + $0x20] sm:$0xff]
        %v3735 = vld [vmem:[%s3729 + $0x28] sm:$0xff]
        %v3736 = vld [vmem:[%s3729 + $0x30] sm:$0xff]
        %v3737 = vld [vmem:[%s3729 + $0x38] sm:$0xff]
        %v3738 = vld [vmem:[%s3729 + $0x40] sm:$0xff]
        %v3739 = vld [vmem:[%s3729 + $0x48] sm:$0xff]
        %v3740 = vld [vmem:[%s3729 + $0x50] sm:$0xff]
        %v3741 = vld [vmem:[%s3729 + $0x58] sm:$0xff]
        %v3742 = vld [vmem:[%s3729 + $0x60] sm:$0xff]
        %v3743 = vld [vmem:[%s3729 + $0x68] sm:$0xff]
        %v3744 = vld [vmem:[%s3729 + $0x70] sm:$0xff]
        %v3745 = vld [vmem:[%s3729 + $0x78] sm:$0xff]
        %v3746 = vld [vmem:[%s3729 + $0x80] sm:$0xff]
        %v3747 = vld [vmem:[%s3729 + $0x88] sm:$0xff]
        %v3748 = vld [vmem:[%s3729 + $0x90] sm:$0xff]
        %v3749 = vld [vmem:[%s3729 + $0x98] sm:$0xff]
        %v3750 = vld [vmem:[%s3729 + $0xa0] sm:$0xff]
        %v3751 = vld [vmem:[%s3729 + $0xa8] sm:$0xff]
        %v3752 = vld [vmem:[%s3729 + $0xb0] sm:$0xff]
        %v3753 = vld [vmem:[%s3729 + $0xb8] sm:$0xff]
        %v3754 = vld [vmem:[%s3729 + $0xc0] sm:$0xff]
        %v3755 = vld [vmem:[%s3729 + $0xc8] sm:$0xff]
        %v3756 = vld [vmem:[%s3729 + $0xd0] sm:$0xff]
        %v3757 = vld [vmem:[%s3729 + $0xd8] sm:$0xff]
        %v3758 = vld [vmem:[%s3729 + $0xe0] sm:$0xff]
        %v3759 = vld [vmem:[%s3729 + $0xe8] sm:$0xff]
        %v3760 = vld [vmem:[%s3729 + $0xf0] sm:$0xff]
        %v3761 = vld [vmem:[%s3729 + $0xf8] sm:$0xff]
        %v3762 = vld [vmem:[%s3729 + $0x100] sm:$0xff]
        %v3763 = vld [vmem:[%s3729 + $0x108] sm:$0xff]
        %v3764 = vld [vmem:[%s3729 + $0x110] sm:$0xff]
        %v3765 = vld [vmem:[%s3729 + $0x118] sm:$0xff]
        %v3766 = vld [vmem:[%s3729 + $0x120] sm:$0xff]
        %v3767 = vld [vmem:[%s3729 + $0x128] sm:$0xff]
        %v3768 = vld [vmem:[%s3729 + $0x130] sm:$0xff]
        %v3769 = vld [vmem:[%s3729 + $0x138] sm:$0xff]
        %v3770 = vld [vmem:[%s3729 + $0x140] sm:$0xff]
        %v3771 = vld [vmem:[%s3729 + $0x148] sm:$0xff]
        %v3772 = vld [vmem:[%s3729 + $0x150] sm:$0xff]
        %v3773 = vld [vmem:[%s3729 + $0x158] sm:$0xff]
        %v3774 = vld [vmem:[%s3729 + $0x160] sm:$0xff]
        %v3775 = vld [vmem:[%s3729 + $0x168] sm:$0xff]
        %v3776 = vld [vmem:[%s3729 + $0x170] sm:$0xff]
        %v3777 = vld [vmem:[%s3729 + $0x178] sm:$0xff]
        %v3778 = vld [vmem:[%s3729 + $0x180] sm:$0xff]
        %v3779 = vld [vmem:[%s3729 + $0x188] sm:$0xff]
        %v3780 = vld [vmem:[%s3729 + $0x190] sm:$0xff]
        %v3781 = vld [vmem:[%s3729 + $0x198] sm:$0xff]
        %v3782 = vld [vmem:[%s3729 + $0x1a0] sm:$0xff]
        %v3783 = vld [vmem:[%s3729 + $0x1a8] sm:$0xff]
        %v3784 = vld [vmem:[%s3729 + $0x1b0] sm:$0xff]
        %v3785 = vld [vmem:[%s3729 + $0x1b8] sm:$0xff]
        %v3786 = vld [vmem:[%s3729 + $0x1c0] sm:$0xff]
        %v3787 = vld [vmem:[%s3729 + $0x1c8] sm:$0xff]
        %v3788 = vld [vmem:[%s3729 + $0x1d0] sm:$0xff]
        %v3789 = vld [vmem:[%s3729 + $0x1d8] sm:$0xff]
        %v3790 = vld [vmem:[%s3729 + $0x1e0] sm:$0xff]
        %v3791 = vld [vmem:[%s3729 + $0x1e8] sm:$0xff]
        %v3792 = vld [vmem:[%s3729 + $0x1f0] sm:$0xff]
        %v3793 = vld [vmem:[%s3729 + $0x1f8] sm:$0xff]
        %v3794 = vld [vmem:[%s3729 + $0x200] sm:$0xff]
        %v3795 = vld [vmem:[%s3729 + $0x208] sm:$0xff]
        %v3796 = vld [vmem:[%s3729 + $0x210] sm:$0xff]
        %v3797 = vld [vmem:[%s3729 + $0x218] sm:$0xff]
        %v3798 = vld [vmem:[%s3729 + $0x220] sm:$0xff]
        %v3799 = vld [vmem:[%s3729 + $0x228] sm:$0xff]
        %v3800 = vld [vmem:[%s3729 + $0x230] sm:$0xff]
        %v3801 = vld [vmem:[%s3729 + $0x238] sm:$0xff]
        %v3804 = vunpack.c.l.b16 %v3727
        %v3805 = vunpack.c.h.b16 %v3727
        %v3806 = vunpack.c.l.b16 %v3728
        %v3807 = vpack.c.b16 %v2617, %v3804
        %v3808 = vpack.c.b16 %v2618, %v3805
        %v3809 = vpack.c.b16 %v2619, %v3806
        %v3810 = vrot.slane %v3807, 1
        %v3811 = vrot.slane %v3808, 1
        %v3812 = vrot.slane %v3809, 1
        %v3887 = vunpack.c.l.b16 %v3730
        %v3888 = vunpack.c.h.b16 %v3730
        %v3889 = vunpack.c.l.b16 %v3731
        %v3890 = vunpack.c.h.b16 %v3731
        %v3891 = vunpack.c.l.b16 %v3732
        %v3892 = vunpack.c.h.b16 %v3732
        %v3893 = vunpack.c.l.b16 %v3733
        %v3894 = vunpack.c.h.b16 %v3733
        %v3895 = vunpack.c.l.b16 %v3734
        %v3896 = vunpack.c.h.b16 %v3734
        %v3897 = vunpack.c.l.b16 %v3735
        %v3898 = vunpack.c.h.b16 %v3735
        %v3899 = vunpack.c.l.b16 %v3736
        %v3900 = vunpack.c.h.b16 %v3736
        %v3901 = vunpack.c.l.b16 %v3737
        %v3902 = vunpack.c.h.b16 %v3737
        %v3903 = vunpack.c.l.b16 %v3738
        %v3904 = vunpack.c.h.b16 %v3738
        %v3905 = vunpack.c.l.b16 %v3739
        %v3906 = vunpack.c.h.b16 %v3739
        %v3907 = vunpack.c.l.b16 %v3740
        %v3908 = vunpack.c.h.b16 %v3740
        %v3909 = vunpack.c.l.b16 %v3741
        %v3910 = vunpack.c.h.b16 %v3741
        %v3911 = vunpack.c.l.b16 %v3742
        %v3912 = vunpack.c.h.b16 %v3742
        %v3913 = vunpack.c.l.b16 %v3743
        %v3914 = vunpack.c.h.b16 %v3743
        %v3915 = vunpack.c.l.b16 %v3744
        %v3916 = vunpack.c.h.b16 %v3744
        %v3917 = vunpack.c.l.b16 %v3745
        %v3918 = vunpack.c.h.b16 %v3745
        %v3919 = vunpack.c.l.b16 %v3746
        %v3920 = vunpack.c.h.b16 %v3746
        %v3921 = vunpack.c.l.b16 %v3747
        %v3922 = vunpack.c.h.b16 %v3747
        %v3923 = vunpack.c.l.b16 %v3748
        %v3924 = vunpack.c.h.b16 %v3748
        %v3925 = vunpack.c.l.b16 %v3749
        %v3926 = vunpack.c.h.b16 %v3749
        %v3927 = vunpack.c.l.b16 %v3750
        %v3928 = vunpack.c.h.b16 %v3750
        %v3929 = vunpack.c.l.b16 %v3751
        %v3930 = vunpack.c.h.b16 %v3751
        %v3931 = vunpack.c.l.b16 %v3752
        %v3932 = vunpack.c.h.b16 %v3752
        %v3933 = vunpack.c.l.b16 %v3753
        %v3934 = vunpack.c.h.b16 %v3753
        %v3935 = vunpack.c.l.b16 %v3754
        %v3936 = vunpack.c.h.b16 %v3754
        %v3937 = vunpack.c.l.b16 %v3755
        %v3938 = vunpack.c.h.b16 %v3755
        %v3939 = vunpack.c.l.b16 %v3756
        %v3940 = vunpack.c.h.b16 %v3756
        %v3941 = vunpack.c.l.b16 %v3757
        %v3942 = vunpack.c.h.b16 %v3757
        %v3943 = vunpack.c.l.b16 %v3758
        %v3944 = vunpack.c.h.b16 %v3758
        %v3945 = vunpack.c.l.b16 %v3759
        %v3946 = vunpack.c.h.b16 %v3759
        %v3947 = vunpack.c.l.b16 %v3760
        %v3948 = vunpack.c.h.b16 %v3760
        %v3949 = vunpack.c.l.b16 %v3761
        %v3950 = vunpack.c.h.b16 %v3761
        %v3951 = vunpack.c.l.b16 %v3762
        %v3952 = vunpack.c.h.b16 %v3762
        %v3953 = vunpack.c.l.b16 %v3763
        %v3954 = vunpack.c.h.b16 %v3763
        %v3955 = vunpack.c.l.b16 %v3764
        %v3956 = vunpack.c.h.b16 %v3764
        %v3957 = vunpack.c.l.b16 %v3765
        %v3958 = vunpack.c.h.b16 %v3765
        %v3959 = vunpack.c.l.b16 %v3766
        %v3960 = vunpack.c.h.b16 %v3766
        %v3961 = vunpack.c.l.b16 %v3767
        %v3962 = vunpack.c.h.b16 %v3767
        %v3963 = vunpack.c.l.b16 %v3768
        %v3964 = vunpack.c.h.b16 %v3768
        %v3965 = vunpack.c.l.b16 %v3769
        %v3966 = vunpack.c.h.b16 %v3769
        %v3967 = vunpack.c.l.b16 %v3770
        %v3968 = vunpack.c.h.b16 %v3770
        %v3969 = vunpack.c.l.b16 %v3771
        %v3970 = vunpack.c.h.b16 %v3771
        %v3971 = vunpack.c.l.b16 %v3772
        %v3972 = vunpack.c.h.b16 %v3772
        %v3973 = vunpack.c.l.b16 %v3773
        %v3974 = vunpack.c.h.b16 %v3773
        %v3975 = vunpack.c.l.b16 %v3774
        %v3976 = vunpack.c.h.b16 %v3774
        %v3977 = vunpack.c.l.b16 %v3775
        %v3978 = vunpack.c.h.b16 %v3775
        %v3979 = vunpack.c.l.b16 %v3776
        %v3980 = vunpack.c.h.b16 %v3776
        %v3981 = vunpack.c.l.b16 %v3777
        %v3982 = vunpack.c.h.b16 %v3777
        %v3983 = vunpack.c.l.b16 %v3778
        %v3984 = vunpack.c.h.b16 %v3778
        %v3985 = vunpack.c.l.b16 %v3779
        %v3986 = vunpack.c.h.b16 %v3779
        %v3987 = vunpack.c.l.b16 %v3780
        %v3988 = vunpack.c.h.b16 %v3780
        %v3989 = vunpack.c.l.b16 %v3781
        %v3990 = vunpack.c.h.b16 %v3781
        %v3991 = vunpack.c.l.b16 %v3782
        %v3992 = vunpack.c.h.b16 %v3782
        %v3993 = vunpack.c.l.b16 %v3783
        %v3994 = vunpack.c.h.b16 %v3783
        %v3995 = vunpack.c.l.b16 %v3784
        %v3996 = vunpack.c.h.b16 %v3784
        %v3997 = vunpack.c.l.b16 %v3785
        %v3998 = vunpack.c.h.b16 %v3785
        %v3999 = vunpack.c.l.b16 %v3786
        %v4000 = vunpack.c.h.b16 %v3786
        %v4001 = vunpack.c.l.b16 %v3787
        %v4002 = vunpack.c.h.b16 %v3787
        %v4003 = vunpack.c.l.b16 %v3788
        %v4004 = vunpack.c.h.b16 %v3788
        %v4005 = vunpack.c.l.b16 %v3789
        %v4006 = vunpack.c.h.b16 %v3789
        %v4007 = vunpack.c.l.b16 %v3790
        %v4008 = vunpack.c.h.b16 %v3790
        %v4009 = vunpack.c.l.b16 %v3791
        %v4010 = vunpack.c.h.b16 %v3791
        %v4011 = vunpack.c.l.b16 %v3792
        %v4012 = vunpack.c.h.b16 %v3792
        %v4013 = vunpack.c.l.b16 %v3793
        %v4014 = vunpack.c.h.b16 %v3793
        %v4015 = vunpack.c.l.b16 %v3794
        %v4016 = vunpack.c.h.b16 %v3794
        %v4017 = vunpack.c.l.b16 %v3795
        %v4018 = vunpack.c.h.b16 %v3795
        %v4019 = vunpack.c.l.b16 %v3796
        %v4020 = vunpack.c.h.b16 %v3796
        %v4021 = vunpack.c.l.b16 %v3797
        %v4022 = vunpack.c.h.b16 %v3797
        %v4023 = vunpack.c.l.b16 %v3798
        %v4024 = vunpack.c.h.b16 %v3798
        %v4025 = vunpack.c.l.b16 %v3799
        %v4026 = vunpack.c.h.b16 %v3799
        %v4027 = vunpack.c.l.b16 %v3800
        %v4028 = vunpack.c.h.b16 %v3800
        %v4029 = vunpack.c.l.b16 %v3801
        %v4030 = vunpack.c.h.b16 %v3801
        %v4031 = vpack.c.b16 %v3891, %v3887
        %v4032 = vpack.c.b16 %v3892, %v3888
        %v4033 = vpack.c.b16 %v3893, %v3889
        %v4034 = vpack.c.b16 %v3894, %v3890
        %v4035 = vpack.c.b16 %v3899, %v3895
        %v4036 = vpack.c.b16 %v3900, %v3896
        %v4037 = vpack.c.b16 %v3901, %v3897
        %v4038 = vpack.c.b16 %v3902, %v3898
        %v4039 = vpack.c.b16 %v3907, %v3903
        %v4040 = vpack.c.b16 %v3908, %v3904
        %v4041 = vpack.c.b16 %v3909, %v3905
        %v4042 = vpack.c.b16 %v3910, %v3906
        %v4043 = vpack.c.b16 %v3915, %v3911
        %v4044 = vpack.c.b16 %v3916, %v3912
        %v4045 = vpack.c.b16 %v3917, %v3913
        %v4046 = vpack.c.b16 %v3918, %v3914
        %v4047 = vpack.c.b16 %v3923, %v3919
        %v4048 = vpack.c.b16 %v3924, %v3920
        %v4049 = vpack.c.b16 %v3925, %v3921
        %v4050 = vpack.c.b16 %v3926, %v3922
        %v4051 = vpack.c.b16 %v3931, %v3927
        %v4052 = vpack.c.b16 %v3932, %v3928
        %v4053 = vpack.c.b16 %v3933, %v3929
        %v4054 = vpack.c.b16 %v3934, %v3930
        %v4055 = vpack.c.b16 %v3939, %v3935
        %v4056 = vpack.c.b16 %v3940, %v3936
        %v4057 = vpack.c.b16 %v3941, %v3937
        %v4058 = vpack.c.b16 %v3942, %v3938
        %v4059 = vpack.c.b16 %v3947, %v3943
        %v4060 = vpack.c.b16 %v3948, %v3944
        %v4061 = vpack.c.b16 %v3949, %v3945
        %v4062 = vpack.c.b16 %v3950, %v3946
        %v4063 = vpack.c.b16 %v3955, %v3951
        %v4064 = vpack.c.b16 %v3956, %v3952
        %v4065 = vpack.c.b16 %v3957, %v3953
        %v4066 = vpack.c.b16 %v3958, %v3954
        %v4067 = vpack.c.b16 %v3963, %v3959
        %v4068 = vpack.c.b16 %v3964, %v3960
        %v4069 = vpack.c.b16 %v3965, %v3961
        %v4070 = vpack.c.b16 %v3966, %v3962
        %v4071 = vpack.c.b16 %v3971, %v3967
        %v4072 = vpack.c.b16 %v3972, %v3968
        %v4073 = vpack.c.b16 %v3973, %v3969
        %v4074 = vpack.c.b16 %v3974, %v3970
        %v4075 = vpack.c.b16 %v3979, %v3975
        %v4076 = vpack.c.b16 %v3980, %v3976
        %v4077 = vpack.c.b16 %v3981, %v3977
        %v4078 = vpack.c.b16 %v3982, %v3978
        %v4079 = vpack.c.b16 %v3987, %v3983
        %v4080 = vpack.c.b16 %v3988, %v3984
        %v4081 = vpack.c.b16 %v3989, %v3985
        %v4082 = vpack.c.b16 %v3990, %v3986
        %v4083 = vpack.c.b16 %v3995, %v3991
        %v4084 = vpack.c.b16 %v3996, %v3992
        %v4085 = vpack.c.b16 %v3997, %v3993
        %v4086 = vpack.c.b16 %v3998, %v3994
        %v4087 = vpack.c.b16 %v4003, %v3999
        %v4088 = vpack.c.b16 %v4004, %v4000
        %v4089 = vpack.c.b16 %v4005, %v4001
        %v4090 = vpack.c.b16 %v4006, %v4002
        %v4091 = vpack.c.b16 %v4011, %v4007
        %v4092 = vpack.c.b16 %v4012, %v4008
        %v4093 = vpack.c.b16 %v4013, %v4009
        %v4094 = vpack.c.b16 %v4014, %v4010
        %v4095 = vpack.c.b16 %v4019, %v4015
        %v4096 = vpack.c.b16 %v4020, %v4016
        %v4097 = vpack.c.b16 %v4021, %v4017
        %v4098 = vpack.c.b16 %v4022, %v4018
        %v4099 = vpack.c.b16 %v4027, %v4023
        %v4100 = vpack.c.b16 %v4028, %v4024
        %v4101 = vpack.c.b16 %v4029, %v4025
        %v4102 = vpack.c.b16 %v4030, %v4026
        %v4176 = vsel %vm3006, %v3812, 0
        %4178 = vmatprep.subr.bf16.mxu0 %v4032
        %4179 = vmatpush1.bf16.msra.mxu0 %v4031
        %4180 = vmatprep.subr.bf16.mxu0 %v4036
        %4181 = vmatpush1.bf16.msra.mxu0 %v4035
        %4182 = vmatprep.subr.bf16.mxu0 %v4040
        %4183 = vmatpush1.bf16.msra.mxu0 %v4039
        %4184 = vmatprep.subr.bf16.mxu0 %v4044
        %4185 = vmatpush1.bf16.msra.mxu0 %v4043
        %4186 = vmatprep.subr.bf16.mxu0 %v4048
        %4187 = vmatpush1.bf16.msra.mxu0 %v4047
        %4188 = vmatprep.subr.bf16.mxu0 %v4052
        %4189 = vmatpush1.bf16.msra.mxu0 %v4051
        %4190 = vmatprep.subr.bf16.mxu0 %v4056
        %4191 = vmatpush1.bf16.msra.mxu0 %v4055
        %4192 = vmatprep.subr.bf16.mxu0 %v4060
        %4193 = vmatpush1.bf16.msra.mxu0 %v4059
        %4194 = vmatprep.subr.bf16.mxu0 %v4064
        %4195 = vmatpush1.bf16.msra.mxu0 %v4063
        %4196 = vmatprep.subr.bf16.mxu0 %v4068
        %4197 = vmatpush1.bf16.msra.mxu0 %v4067
        %4198 = vmatprep.subr.bf16.mxu0 %v4072
        %4199 = vmatpush1.bf16.msra.mxu0 %v4071
        %4200 = vmatprep.subr.bf16.mxu0 %v4076
        %4201 = vmatpush1.bf16.msra.mxu0 %v4075
        %4202 = vmatprep.subr.bf16.mxu0 %v4080
        %4203 = vmatpush1.bf16.msra.mxu0 %v4079
        %4204 = vmatprep.subr.bf16.mxu0 %v4084
        %4205 = vmatpush1.bf16.msra.mxu0 %v4083
        %4206 = vmatprep.subr.bf16.mxu0 %v4088
        %4207 = vmatpush1.bf16.msra.mxu0 %v4087
        %4208 = vmatprep.subr.bf16.mxu0 %v4092
        %4209 = vmatpush1.bf16.msra.mxu0 %v4091
        %4210 = vmatprep.mubr.bf16.mxu0 %v3811
        %4211 = vmatmul.mubr.bf16.gmra.mrb[0].mxu0 %v3810
        %v4212 = vpop.f32.mrb[0].mxu0
        %v4213 = vadd.f32 0.0, %v4212
        %v4214 = vpop.f32.mrb[0].mxu0
        %v4215 = vadd.f32 0.0, %v4214
        %v4216 = vpop.f32.mrb[0].mxu0
        %v4217 = vadd.f32 0.0, %v4216
        %v4218 = vpop.f32.mrb[0].mxu0
        %v4219 = vadd.f32 0.0, %v4218
        %4220 = vdwg.mxu0
        %4221 = vmatprep.subr.bf16.mxu0 %v4096
        %4222 = vmatpush1.bf16.msra.mxu0 %v4095
        %4223 = vmatprep.subr.bf16.mxu0 %v4100
        %4224 = vmatpush1.bf16.msra.mxu0 %v4099
        %4225 = vmatprep.subr.bf16.mxu0 0
        %4226 = vmatpush1.bf16.msra.mxu0 0
        %4227 = vmatprep.subr.bf16.mxu0 0
        %4228 = vmatpush1.bf16.msra.mxu0 0
        %4229 = vmatprep.subr.bf16.mxu0 0
        %4230 = vmatpush1.bf16.msra.mxu0 0
        %4231 = vmatprep.subr.bf16.mxu0 0
        %4232 = vmatpush1.bf16.msra.mxu0 0
        %4233 = vmatprep.subr.bf16.mxu0 0
        %4234 = vmatpush1.bf16.msra.mxu0 0
        %4235 = vmatprep.subr.bf16.mxu0 0
        %4236 = vmatpush1.bf16.msra.mxu0 0
        %4237 = vmatprep.subr.bf16.mxu0 0
        %4238 = vmatpush1.bf16.msra.mxu0 0
        %4239 = vmatprep.subr.bf16.mxu0 0
        %4240 = vmatpush1.bf16.msra.mxu0 0
        %4241 = vmatprep.subr.bf16.mxu0 0
        %4242 = vmatpush1.bf16.msra.mxu0 0
        %4243 = vmatprep.subr.bf16.mxu0 0
        %4244 = vmatpush1.bf16.msra.mxu0 0
        %4245 = vmatprep.subr.bf16.mxu0 0
        %4246 = vmatpush1.bf16.msra.mxu0 0
        %4247 = vmatprep.subr.bf16.mxu0 0
        %4248 = vmatpush1.bf16.msra.mxu0 0
        %4249 = vmatprep.subr.bf16.mxu0 0
        %4250 = vmatpush1.bf16.msra.mxu0 0
        %4251 = vmatprep.subr.bf16.mxu0 0
        %4252 = vmatpush1.bf16.msra.mxu0 0
        %4253 = vmatprep.mubr.bf16.mxu0 0
        %4254 = vmatmul.mubr.bf16.gmra.mrb[0].mxu0 %v4176
        %v4255 = vpop.f32.mrb[0].mxu0
        %v4256 = vadd.f32 %v4213, %v4255
        %v4257 = vpop.f32.mrb[0].mxu0
        %v4258 = vadd.f32 %v4215, %v4257
        %v4259 = vpop.f32.mrb[0].mxu0
        %v4260 = vadd.f32 %v4217, %v4259
        %v4261 = vpop.f32.mrb[0].mxu0
        %v4262 = vadd.f32 %v4219, %v4261
        %4263 = vdwg.mxu0
        %4264 = vmatprep.subr.bf16.mxu0 %v4034
        %4265 = vmatpush1.bf16.msra.mxu0 %v4033
        %4266 = vmatprep.subr.bf16.mxu0 %v4038
        %4267 = vmatpush1.bf16.msra.mxu0 %v4037
        %4268 = vmatprep.subr.bf16.mxu0 %v4042
        %4269 = vmatpush1.bf16.msra.mxu0 %v4041
        %4270 = vmatprep.subr.bf16.mxu0 %v4046
        %4271 = vmatpush1.bf16.msra.mxu0 %v4045
        %4272 = vmatprep.subr.bf16.mxu0 %v4050
        %4273 = vmatpush1.bf16.msra.mxu0 %v4049
        %4274 = vmatprep.subr.bf16.mxu0 %v4054
        %4275 = vmatpush1.bf16.msra.mxu0 %v4053
        %4276 = vmatprep.subr.bf16.mxu0 %v4058
        %4277 = vmatpush1.bf16.msra.mxu0 %v4057
        %4278 = vmatprep.subr.bf16.mxu0 %v4062
        %4279 = vmatpush1.bf16.msra.mxu0 %v4061
        %4280 = vmatprep.subr.bf16.mxu0 %v4066
        %4281 = vmatpush1.bf16.msra.mxu0 %v4065
        %4282 = vmatprep.subr.bf16.mxu0 %v4070
        %4283 = vmatpush1.bf16.msra.mxu0 %v4069
        %4284 = vmatprep.subr.bf16.mxu0 %v4074
        %4285 = vmatpush1.bf16.msra.mxu0 %v4073
        %4286 = vmatprep.subr.bf16.mxu0 %v4078
        %4287 = vmatpush1.bf16.msra.mxu0 %v4077
        %4288 = vmatprep.subr.bf16.mxu0 %v4082
        %4289 = vmatpush1.bf16.msra.mxu0 %v4081
        %4290 = vmatprep.subr.bf16.mxu0 %v4086
        %4291 = vmatpush1.bf16.msra.mxu0 %v4085
        %4292 = vmatprep.subr.bf16.mxu0 %v4090
        %4293 = vmatpush1.bf16.msra.mxu0 %v4089
        %4294 = vmatprep.subr.bf16.mxu0 %v4094
        %4295 = vmatpush1.bf16.msra.mxu0 %v4093
        %4296 = vmatprep.mubr.bf16.mxu0 %v3811
        %4297 = vmatmul.mubr.bf16.gmra.mrb[0].mxu0 %v3810
        %v4298 = vpop.f32.mrb[0].mxu0
        %v4299 = vadd.f32 0.0, %v4298
        %v4300 = vpop.f32.mrb[0].mxu0
        %v4301 = vadd.f32 0.0, %v4300
        %v4302 = vpop.f32.mrb[0].mxu0
        %v4303 = vadd.f32 0.0, %v4302
        %v4304 = vpop.f32.mrb[0].mxu0
        %v4305 = vadd.f32 0.0, %v4304
        %4306 = vdwg.mxu0
        %4307 = vmatprep.subr.bf16.mxu0 %v4098
        %4308 = vmatpush1.bf16.msra.mxu0 %v4097
        %4309 = vmatprep.subr.bf16.mxu0 %v4102
        %4310 = vmatpush1.bf16.msra.mxu0 %v4101
        %4311 = vmatprep.subr.bf16.mxu0 0
        %4312 = vmatpush1.bf16.msra.mxu0 0
        %4313 = vmatprep.subr.bf16.mxu0 0
        %4314 = vmatpush1.bf16.msra.mxu0 0
        %4315 = vmatprep.subr.bf16.mxu0 0
        %4316 = vmatpush1.bf16.msra.mxu0 0
        %4317 = vmatprep.subr.bf16.mxu0 0
        %4318 = vmatpush1.bf16.msra.mxu0 0
        %4319 = vmatprep.subr.bf16.mxu0 0
        %4320 = vmatpush1.bf16.msra.mxu0 0
        %4321 = vmatprep.subr.bf16.mxu0 0
        %4322 = vmatpush1.bf16.msra.mxu0 0
        %4323 = vmatprep.subr.bf16.mxu0 0
        %4324 = vmatpush1.bf16.msra.mxu0 0
        %4325 = vmatprep.subr.bf16.mxu0 0
        %4326 = vmatpush1.bf16.msra.mxu0 0
        %4327 = vmatprep.subr.bf16.mxu0 0
        %4328 = vmatpush1.bf16.msra.mxu0 0
        %4329 = vmatprep.subr.bf16.mxu0 0
        %4330 = vmatpush1.bf16.msra.mxu0 0
        %4331 = vmatprep.subr.bf16.mxu0 0
        %4332 = vmatpush1.bf16.msra.mxu0 0
        %4333 = vmatprep.subr.bf16.mxu0 0
        %4334 = vmatpush1.bf16.msra.mxu0 0
        %4335 = vmatprep.subr.bf16.mxu0 0
        %4336 = vmatpush1.bf16.msra.mxu0 0
        %4337 = vmatprep.subr.bf16.mxu0 0
        %4338 = vmatpush1.bf16.msra.mxu0 0
        %4339 = vmatprep.mubr.bf16.mxu0 0
        %4340 = vmatmul.mubr.bf16.gmra.mrb[0].mxu0 %v4176
        %v4341 = vpop.f32.mrb[0].mxu0
        %v4342 = vadd.f32 %v4299, %v4341
        %v4343 = vpop.f32.mrb[0].mxu0
        %v4344 = vadd.f32 %v4301, %v4343
        %v4345 = vpop.f32.mrb[0].mxu0
        %v4346 = vadd.f32 %v4303, %v4345
        %v4347 = vpop.f32.mrb[0].mxu0
        %v4348 = vadd.f32 %v4305, %v4347
        %4349 = vdwg.mxu0
        %v4350 = vadd.f32 %v3633, %v4256
        %v4351 = vadd.f32 %v3635, %v4258
        %v4352 = vadd.f32 %v3719, %v4342
        %v4353 = vadd.f32 %v3721, %v4344
        %v4354 = vadd.f32 %v3637, %v4260
        %v4355 = vadd.f32 %v3639, %v4262
        %v4356 = vadd.f32 %v3723, %v4346
        %v4357 = vadd.f32 %v3725, %v4348
        %v4358 = vld [vmem:[#allocation2] sm:$0xee]
        %v4359 = vld [vmem:[#allocation2 + $0x8] sm:$0xe]
        %v4360 = vld [vmem:[#allocation2 + $0xc] sm:$0xff]
        %v4361 = vld [vmem:[#allocation2 + $0x14] sm:$0xf]
        %v4362 = vld [vmem:[#allocation2 + $0x18] sm:$0x11]
        %v4363 = vld [vmem:[#allocation2 + $0x20] sm:$0x1]
        %s4364 = scalar_lea.vmem %s3, 1728
        %v4365 = vld [vmem:[%s4364] sm:$0xff]
        %v4366 = vld [vmem:[%s4364 + $0x8] sm:$0xff]
        %v4367 = vld [vmem:[%s4364 + $0x10] sm:$0xff]
        %v4368 = vld [vmem:[%s4364 + $0x18] sm:$0xff]
        %v4369 = vld [vmem:[%s4364 + $0x20] sm:$0xff]
        %v4370 = vld [vmem:[%s4364 + $0x28] sm:$0xff]
        %v4371 = vld [vmem:[%s4364 + $0x30] sm:$0xff]
        %v4372 = vld [vmem:[%s4364 + $0x38] sm:$0xff]
        %v4373 = vld [vmem:[%s4364 + $0x40] sm:$0xff]
        %v4374 = vld [vmem:[%s4364 + $0x48] sm:$0xff]
        %v4375 = vld [vmem:[%s4364 + $0x50] sm:$0xff]
        %v4376 = vld [vmem:[%s4364 + $0x58] sm:$0xff]
        %v4377 = vld [vmem:[%s4364 + $0x60] sm:$0xff]
        %v4378 = vld [vmem:[%s4364 + $0x68] sm:$0xff]
        %v4379 = vld [vmem:[%s4364 + $0x70] sm:$0xff]
        %v4380 = vld [vmem:[%s4364 + $0x78] sm:$0xff]
        %v4381 = vld [vmem:[%s4364 + $0x80] sm:$0xff]
        %v4382 = vld [vmem:[%s4364 + $0x88] sm:$0xff]
        %v4383 = vld [vmem:[%s4364 + $0x90] sm:$0xff]
        %v4384 = vld [vmem:[%s4364 + $0x98] sm:$0xff]
        %v4385 = vld [vmem:[%s4364 + $0xa0] sm:$0xff]
        %v4386 = vld [vmem:[%s4364 + $0xa8] sm:$0xff]
        %v4387 = vld [vmem:[%s4364 + $0xb0] sm:$0xff]
        %v4388 = vld [vmem:[%s4364 + $0xb8] sm:$0xff]
        %v4389 = vld [vmem:[%s4364 + $0xc0] sm:$0xff]
        %v4390 = vld [vmem:[%s4364 + $0xc8] sm:$0xff]
        %v4391 = vld [vmem:[%s4364 + $0xd0] sm:$0xff]
        %v4392 = vld [vmem:[%s4364 + $0xd8] sm:$0xff]
        %v4393 = vld [vmem:[%s4364 + $0xe0] sm:$0xff]
        %v4394 = vld [vmem:[%s4364 + $0xe8] sm:$0xff]
        %v4395 = vld [vmem:[%s4364 + $0xf0] sm:$0xff]
        %v4396 = vld [vmem:[%s4364 + $0xf8] sm:$0xff]
        %v4397 = vld [vmem:[%s4364 + $0x100] sm:$0xff]
        %v4398 = vld [vmem:[%s4364 + $0x108] sm:$0xff]
        %v4399 = vld [vmem:[%s4364 + $0x110] sm:$0xff]
        %v4400 = vld [vmem:[%s4364 + $0x118] sm:$0xff]
        %v4401 = vld [vmem:[%s4364 + $0x120] sm:$0xff]
        %v4402 = vld [vmem:[%s4364 + $0x128] sm:$0xff]
        %v4403 = vld [vmem:[%s4364 + $0x130] sm:$0xff]
        %v4404 = vld [vmem:[%s4364 + $0x138] sm:$0xff]
        %v4405 = vld [vmem:[%s4364 + $0x140] sm:$0xff]
        %v4406 = vld [vmem:[%s4364 + $0x148] sm:$0xff]
        %v4407 = vld [vmem:[%s4364 + $0x150] sm:$0xff]
        %v4408 = vld [vmem:[%s4364 + $0x158] sm:$0xff]
        %v4409 = vld [vmem:[%s4364 + $0x160] sm:$0xff]
        %v4410 = vld [vmem:[%s4364 + $0x168] sm:$0xff]
        %v4411 = vld [vmem:[%s4364 + $0x170] sm:$0xff]
        %v4412 = vld [vmem:[%s4364 + $0x178] sm:$0xff]
        %v4413 = vld [vmem:[%s4364 + $0x180] sm:$0xff]
        %v4414 = vld [vmem:[%s4364 + $0x188] sm:$0xff]
        %v4415 = vld [vmem:[%s4364 + $0x190] sm:$0xff]
        %v4416 = vld [vmem:[%s4364 + $0x198] sm:$0xff]
        %v4417 = vld [vmem:[%s4364 + $0x1a0] sm:$0xff]
        %v4418 = vld [vmem:[%s4364 + $0x1a8] sm:$0xff]
        %v4419 = vld [vmem:[%s4364 + $0x1b0] sm:$0xff]
        %v4420 = vld [vmem:[%s4364 + $0x1b8] sm:$0xff]
        %v4421 = vld [vmem:[%s4364 + $0x1c0] sm:$0xff]
        %v4422 = vld [vmem:[%s4364 + $0x1c8] sm:$0xff]
        %v4423 = vld [vmem:[%s4364 + $0x1d0] sm:$0xff]
        %v4424 = vld [vmem:[%s4364 + $0x1d8] sm:$0xff]
        %v4425 = vld [vmem:[%s4364 + $0x1e0] sm:$0xff]
        %v4426 = vld [vmem:[%s4364 + $0x1e8] sm:$0xff]
        %v4427 = vld [vmem:[%s4364 + $0x1f0] sm:$0xff]
        %v4428 = vld [vmem:[%s4364 + $0x1f8] sm:$0xff]
        %v4429 = vld [vmem:[%s4364 + $0x200] sm:$0xff]
        %v4430 = vld [vmem:[%s4364 + $0x208] sm:$0xff]
        %v4431 = vld [vmem:[%s4364 + $0x210] sm:$0xff]
        %v4432 = vld [vmem:[%s4364 + $0x218] sm:$0xff]
        %v4433 = vld [vmem:[%s4364 + $0x220] sm:$0xff]
        %v4434 = vld [vmem:[%s4364 + $0x228] sm:$0xff]
        %v4435 = vld [vmem:[%s4364 + $0x230] sm:$0xff]
        %v4436 = vld [vmem:[%s4364 + $0x238] sm:$0xff]
        %v4443 = vunpack.c.l.b16 %v4358
        %v4444 = vunpack.c.h.b16 %v4358
        %v4445 = vunpack.c.l.b16 %v4359
        %v4446 = vunpack.c.l.b16 %v4360
        %v4447 = vunpack.c.h.b16 %v4360
        %v4448 = vunpack.c.l.b16 %v4361
        %v4449 = vunpack.c.l.b16 %v4362
        %v4450 = vunpack.c.h.b16 %v4362
        %v4451 = vunpack.c.l.b16 %v4363
        %v4452 = vpack.c.b16 %v4446, %v4443
        %v4453 = vpack.c.b16 %v4447, %v4444
        %v4454 = vpack.c.b16 %v4448, %v4445
        %v4455 = vpack.c.b16 %v4449, %v4449
        %v4456 = vpack.c.b16 %v4450, %v4450
        %v4457 = vpack.c.b16 %v4451, %v4451
        %vm4458 = vsmask.f32 6400
        %v4460 = vshrl.u32 %v4452, 16
        %v4462 = vrot.slane %v4460, 1
        %v4463 = vshll.u32 %v4452, 16
        %v4465 = vrot.slane %v4463, 2
        %v4466 = vor.u32 %v4462, %v4465
        %v4468 = vshll.u32 %v4455, 16
        %v4470 = vrot.slane %v4468, 2
        %v4471 = vsel %vm4458, %v4466, %v4470
        %v4473 = vshrl.u32 %v4453, 16
        %v4475 = vrot.slane %v4473, 1
        %v4476 = vshll.u32 %v4453, 16
        %v4478 = vrot.slane %v4476, 2
        %v4479 = vor.u32 %v4475, %v4478
        %v4481 = vshll.u32 %v4456, 16
        %v4483 = vrot.slane %v4481, 2
        %v4484 = vsel %vm4458, %v4479, %v4483
        %v4486 = vshrl.u32 %v4454, 16
        %v4488 = vrot.slane %v4486, 1
        %v4489 = vshll.u32 %v4454, 16
        %v4491 = vrot.slane %v4489, 2
        %v4492 = vor.u32 %v4488, %v4491
        %v4494 = vshll.u32 %v4457, 16
        %v4496 = vrot.slane %v4494, 2
        %v4497 = vsel %vm4458, %v4492, %v4496
        %v4572 = vunpack.c.l.b16 %v4365
        %v4573 = vunpack.c.h.b16 %v4365
        %v4574 = vunpack.c.l.b16 %v4366
        %v4575 = vunpack.c.h.b16 %v4366
        %v4576 = vunpack.c.l.b16 %v4367
        %v4577 = vunpack.c.h.b16 %v4367
        %v4578 = vunpack.c.l.b16 %v4368
        %v4579 = vunpack.c.h.b16 %v4368
        %v4580 = vunpack.c.l.b16 %v4369
        %v4581 = vunpack.c.h.b16 %v4369
        %v4582 = vunpack.c.l.b16 %v4370
        %v4583 = vunpack.c.h.b16 %v4370
        %v4584 = vunpack.c.l.b16 %v4371
        %v4585 = vunpack.c.h.b16 %v4371
        %v4586 = vunpack.c.l.b16 %v4372
        %v4587 = vunpack.c.h.b16 %v4372
        %v4588 = vunpack.c.l.b16 %v4373
        %v4589 = vunpack.c.h.b16 %v4373
        %v4590 = vunpack.c.l.b16 %v4374
        %v4591 = vunpack.c.h.b16 %v4374
        %v4592 = vunpack.c.l.b16 %v4375
        %v4593 = vunpack.c.h.b16 %v4375
        %v4594 = vunpack.c.l.b16 %v4376
        %v4595 = vunpack.c.h.b16 %v4376
        %v4596 = vunpack.c.l.b16 %v4377
        %v4597 = vunpack.c.h.b16 %v4377
        %v4598 = vunpack.c.l.b16 %v4378
        %v4599 = vunpack.c.h.b16 %v4378
        %v4600 = vunpack.c.l.b16 %v4379
        %v4601 = vunpack.c.h.b16 %v4379
        %v4602 = vunpack.c.l.b16 %v4380
        %v4603 = vunpack.c.h.b16 %v4380
        %v4604 = vunpack.c.l.b16 %v4381
        %v4605 = vunpack.c.h.b16 %v4381
        %v4606 = vunpack.c.l.b16 %v4382
        %v4607 = vunpack.c.h.b16 %v4382
        %v4608 = vunpack.c.l.b16 %v4383
        %v4609 = vunpack.c.h.b16 %v4383
        %v4610 = vunpack.c.l.b16 %v4384
        %v4611 = vunpack.c.h.b16 %v4384
        %v4612 = vunpack.c.l.b16 %v4385
        %v4613 = vunpack.c.h.b16 %v4385
        %v4614 = vunpack.c.l.b16 %v4386
        %v4615 = vunpack.c.h.b16 %v4386
        %v4616 = vunpack.c.l.b16 %v4387
        %v4617 = vunpack.c.h.b16 %v4387
        %v4618 = vunpack.c.l.b16 %v4388
        %v4619 = vunpack.c.h.b16 %v4388
        %v4620 = vunpack.c.l.b16 %v4389
        %v4621 = vunpack.c.h.b16 %v4389
        %v4622 = vunpack.c.l.b16 %v4390
        %v4623 = vunpack.c.h.b16 %v4390
        %v4624 = vunpack.c.l.b16 %v4391
        %v4625 = vunpack.c.h.b16 %v4391
        %v4626 = vunpack.c.l.b16 %v4392
        %v4627 = vunpack.c.h.b16 %v4392
        %v4628 = vunpack.c.l.b16 %v4393
        %v4629 = vunpack.c.h.b16 %v4393
        %v4630 = vunpack.c.l.b16 %v4394
        %v4631 = vunpack.c.h.b16 %v4394
        %v4632 = vunpack.c.l.b16 %v4395
        %v4633 = vunpack.c.h.b16 %v4395
        %v4634 = vunpack.c.l.b16 %v4396
        %v4635 = vunpack.c.h.b16 %v4396
        %v4636 = vunpack.c.l.b16 %v4397
        %v4637 = vunpack.c.h.b16 %v4397
        %v4638 = vunpack.c.l.b16 %v4398
        %v4639 = vunpack.c.h.b16 %v4398
        %v4640 = vunpack.c.l.b16 %v4399
        %v4641 = vunpack.c.h.b16 %v4399
        %v4642 = vunpack.c.l.b16 %v4400
        %v4643 = vunpack.c.h.b16 %v4400
        %v4644 = vunpack.c.l.b16 %v4401
        %v4645 = vunpack.c.h.b16 %v4401
        %v4646 = vunpack.c.l.b16 %v4402
        %v4647 = vunpack.c.h.b16 %v4402
        %v4648 = vunpack.c.l.b16 %v4403
        %v4649 = vunpack.c.h.b16 %v4403
        %v4650 = vunpack.c.l.b16 %v4404
        %v4651 = vunpack.c.h.b16 %v4404
        %v4652 = vunpack.c.l.b16 %v4405
        %v4653 = vunpack.c.h.b16 %v4405
        %v4654 = vunpack.c.l.b16 %v4406
        %v4655 = vunpack.c.h.b16 %v4406
        %v4656 = vunpack.c.l.b16 %v4407
        %v4657 = vunpack.c.h.b16 %v4407
        %v4658 = vunpack.c.l.b16 %v4408
        %v4659 = vunpack.c.h.b16 %v4408
        %v4660 = vunpack.c.l.b16 %v4409
        %v4661 = vunpack.c.h.b16 %v4409
        %v4662 = vunpack.c.l.b16 %v4410
        %v4663 = vunpack.c.h.b16 %v4410
        %v4664 = vunpack.c.l.b16 %v4411
        %v4665 = vunpack.c.h.b16 %v4411
        %v4666 = vunpack.c.l.b16 %v4412
        %v4667 = vunpack.c.h.b16 %v4412
        %v4668 = vunpack.c.l.b16 %v4413
        %v4669 = vunpack.c.h.b16 %v4413
        %v4670 = vunpack.c.l.b16 %v4414
        %v4671 = vunpack.c.h.b16 %v4414
        %v4672 = vunpack.c.l.b16 %v4415
        %v4673 = vunpack.c.h.b16 %v4415
        %v4674 = vunpack.c.l.b16 %v4416
        %v4675 = vunpack.c.h.b16 %v4416
        %v4676 = vunpack.c.l.b16 %v4417
        %v4677 = vunpack.c.h.b16 %v4417
        %v4678 = vunpack.c.l.b16 %v4418
        %v4679 = vunpack.c.h.b16 %v4418
        %v4680 = vunpack.c.l.b16 %v4419
        %v4681 = vunpack.c.h.b16 %v4419
        %v4682 = vunpack.c.l.b16 %v4420
        %v4683 = vunpack.c.h.b16 %v4420
        %v4684 = vunpack.c.l.b16 %v4421
        %v4685 = vunpack.c.h.b16 %v4421
        %v4686 = vunpack.c.l.b16 %v4422
        %v4687 = vunpack.c.h.b16 %v4422
        %v4688 = vunpack.c.l.b16 %v4423
        %v4689 = vunpack.c.h.b16 %v4423
        %v4690 = vunpack.c.l.b16 %v4424
        %v4691 = vunpack.c.h.b16 %v4424
        %v4692 = vunpack.c.l.b16 %v4425
        %v4693 = vunpack.c.h.b16 %v4425
        %v4694 = vunpack.c.l.b16 %v4426
        %v4695 = vunpack.c.h.b16 %v4426
        %v4696 = vunpack.c.l.b16 %v4427
        %v4697 = vunpack.c.h.b16 %v4427
        %v4698 = vunpack.c.l.b16 %v4428
        %v4699 = vunpack.c.h.b16 %v4428
        %v4700 = vunpack.c.l.b16 %v4429
        %v4701 = vunpack.c.h.b16 %v4429
        %v4702 = vunpack.c.l.b16 %v4430
        %v4703 = vunpack.c.h.b16 %v4430
        %v4704 = vunpack.c.l.b16 %v4431
        %v4705 = vunpack.c.h.b16 %v4431
        %v4706 = vunpack.c.l.b16 %v4432
        %v4707 = vunpack.c.h.b16 %v4432
        %v4708 = vunpack.c.l.b16 %v4433
        %v4709 = vunpack.c.h.b16 %v4433
        %v4710 = vunpack.c.l.b16 %v4434
        %v4711 = vunpack.c.h.b16 %v4434
        %v4712 = vunpack.c.l.b16 %v4435
        %v4713 = vunpack.c.h.b16 %v4435
        %v4714 = vunpack.c.l.b16 %v4436
        %v4715 = vunpack.c.h.b16 %v4436
        %v4716 = vpack.c.b16 %v4576, %v4572
        %v4717 = vpack.c.b16 %v4577, %v4573
        %v4718 = vpack.c.b16 %v4578, %v4574
        %v4719 = vpack.c.b16 %v4579, %v4575
        %v4720 = vpack.c.b16 %v4584, %v4580
        %v4721 = vpack.c.b16 %v4585, %v4581
        %v4722 = vpack.c.b16 %v4586, %v4582
        %v4723 = vpack.c.b16 %v4587, %v4583
        %v4724 = vpack.c.b16 %v4592, %v4588
        %v4725 = vpack.c.b16 %v4593, %v4589
        %v4726 = vpack.c.b16 %v4594, %v4590
        %v4727 = vpack.c.b16 %v4595, %v4591
        %v4728 = vpack.c.b16 %v4600, %v4596
        %v4729 = vpack.c.b16 %v4601, %v4597
        %v4730 = vpack.c.b16 %v4602, %v4598
        %v4731 = vpack.c.b16 %v4603, %v4599
        %v4732 = vpack.c.b16 %v4608, %v4604
        %v4733 = vpack.c.b16 %v4609, %v4605
        %v4734 = vpack.c.b16 %v4610, %v4606
        %v4735 = vpack.c.b16 %v4611, %v4607
        %v4736 = vpack.c.b16 %v4616, %v4612
        %v4737 = vpack.c.b16 %v4617, %v4613
        %v4738 = vpack.c.b16 %v4618, %v4614
        %v4739 = vpack.c.b16 %v4619, %v4615
        %v4740 = vpack.c.b16 %v4624, %v4620
        %v4741 = vpack.c.b16 %v4625, %v4621
        %v4742 = vpack.c.b16 %v4626, %v4622
        %v4743 = vpack.c.b16 %v4627, %v4623
        %v4744 = vpack.c.b16 %v4632, %v4628
        %v4745 = vpack.c.b16 %v4633, %v4629
        %v4746 = vpack.c.b16 %v4634, %v4630
        %v4747 = vpack.c.b16 %v4635, %v4631
        %v4748 = vpack.c.b16 %v4640, %v4636
        %v4749 = vpack.c.b16 %v4641, %v4637
        %v4750 = vpack.c.b16 %v4642, %v4638
        %v4751 = vpack.c.b16 %v4643, %v4639
        %v4752 = vpack.c.b16 %v4648, %v4644
        %v4753 = vpack.c.b16 %v4649, %v4645
        %v4754 = vpack.c.b16 %v4650, %v4646
        %v4755 = vpack.c.b16 %v4651, %v4647
        %v4756 = vpack.c.b16 %v4656, %v4652
        %v4757 = vpack.c.b16 %v4657, %v4653
        %v4758 = vpack.c.b16 %v4658, %v4654
        %v4759 = vpack.c.b16 %v4659, %v4655
        %v4760 = vpack.c.b16 %v4664, %v4660
        %v4761 = vpack.c.b16 %v4665, %v4661
        %v4762 = vpack.c.b16 %v4666, %v4662
        %v4763 = vpack.c.b16 %v4667, %v4663
        %v4764 = vpack.c.b16 %v4672, %v4668
        %v4765 = vpack.c.b16 %v4673, %v4669
        %v4766 = vpack.c.b16 %v4674, %v4670
        %v4767 = vpack.c.b16 %v4675, %v4671
        %v4768 = vpack.c.b16 %v4680, %v4676
        %v4769 = vpack.c.b16 %v4681, %v4677
        %v4770 = vpack.c.b16 %v4682, %v4678
        %v4771 = vpack.c.b16 %v4683, %v4679
        %v4772 = vpack.c.b16 %v4688, %v4684
        %v4773 = vpack.c.b16 %v4689, %v4685
        %v4774 = vpack.c.b16 %v4690, %v4686
        %v4775 = vpack.c.b16 %v4691, %v4687
        %v4776 = vpack.c.b16 %v4696, %v4692
        %v4777 = vpack.c.b16 %v4697, %v4693
        %v4778 = vpack.c.b16 %v4698, %v4694
        %v4779 = vpack.c.b16 %v4699, %v4695
        %v4780 = vpack.c.b16 %v4704, %v4700
        %v4781 = vpack.c.b16 %v4705, %v4701
        %v4782 = vpack.c.b16 %v4706, %v4702
        %v4783 = vpack.c.b16 %v4707, %v4703
        %v4784 = vpack.c.b16 %v4712, %v4708
        %v4785 = vpack.c.b16 %v4713, %v4709
        %v4786 = vpack.c.b16 %v4714, %v4710
        %v4787 = vpack.c.b16 %v4715, %v4711
        %v4861 = vsel %vm3006, %v4497, 0
        %4863 = vmatprep.subr.bf16.mxu0 %v4717
        %4864 = vmatpush1.bf16.msra.mxu0 %v4716
        %4865 = vmatprep.subr.bf16.mxu0 %v4721
        %4866 = vmatpush1.bf16.msra.mxu0 %v4720
        %4867 = vmatprep.subr.bf16.mxu0 %v4725
        %4868 = vmatpush1.bf16.msra.mxu0 %v4724
        %4869 = vmatprep.subr.bf16.mxu0 %v4729
        %4870 = vmatpush1.bf16.msra.mxu0 %v4728
        %4871 = vmatprep.subr.bf16.mxu0 %v4733
        %4872 = vmatpush1.bf16.msra.mxu0 %v4732
        %4873 = vmatprep.subr.bf16.mxu0 %v4737
        %4874 = vmatpush1.bf16.msra.mxu0 %v4736
        %4875 = vmatprep.subr.bf16.mxu0 %v4741
        %4876 = vmatpush1.bf16.msra.mxu0 %v4740
        %4877 = vmatprep.subr.bf16.mxu0 %v4745
        %4878 = vmatpush1.bf16.msra.mxu0 %v4744
        %4879 = vmatprep.subr.bf16.mxu0 %v4749
        %4880 = vmatpush1.bf16.msra.mxu0 %v4748
        %4881 = vmatprep.subr.bf16.mxu0 %v4753
        %4882 = vmatpush1.bf16.msra.mxu0 %v4752
        %4883 = vmatprep.subr.bf16.mxu0 %v4757
        %4884 = vmatpush1.bf16.msra.mxu0 %v4756
        %4885 = vmatprep.subr.bf16.mxu0 %v4761
        %4886 = vmatpush1.bf16.msra.mxu0 %v4760
        %4887 = vmatprep.subr.bf16.mxu0 %v4765
        %4888 = vmatpush1.bf16.msra.mxu0 %v4764
        %4889 = vmatprep.subr.bf16.mxu0 %v4769
        %4890 = vmatpush1.bf16.msra.mxu0 %v4768
        %4891 = vmatprep.subr.bf16.mxu0 %v4773
        %4892 = vmatpush1.bf16.msra.mxu0 %v4772
        %4893 = vmatprep.subr.bf16.mxu0 %v4777
        %4894 = vmatpush1.bf16.msra.mxu0 %v4776
        %4895 = vmatprep.mubr.bf16.mxu0 %v4484
        %4896 = vmatmul.mubr.bf16.gmra.mrb[0].mxu0 %v4471
        %v4897 = vpop.f32.mrb[0].mxu0
        %v4898 = vadd.f32 0.0, %v4897
        %v4899 = vpop.f32.mrb[0].mxu0
        %v4900 = vadd.f32 0.0, %v4899
        %v4901 = vpop.f32.mrb[0].mxu0
        %v4902 = vadd.f32 0.0, %v4901
        %v4903 = vpop.f32.mrb[0].mxu0
        %v4904 = vadd.f32 0.0, %v4903
        %4905 = vdwg.mxu0
        %4906 = vmatprep.subr.bf16.mxu0 %v4781
        %4907 = vmatpush1.bf16.msra.mxu0 %v4780
        %4908 = vmatprep.subr.bf16.mxu0 %v4785
        %4909 = vmatpush1.bf16.msra.mxu0 %v4784
        %4910 = vmatprep.subr.bf16.mxu0 0
        %4911 = vmatpush1.bf16.msra.mxu0 0
        %4912 = vmatprep.subr.bf16.mxu0 0
        %4913 = vmatpush1.bf16.msra.mxu0 0
        %4914 = vmatprep.subr.bf16.mxu0 0
        %4915 = vmatpush1.bf16.msra.mxu0 0
        %4916 = vmatprep.subr.bf16.mxu0 0
        %4917 = vmatpush1.bf16.msra.mxu0 0
        %4918 = vmatprep.subr.bf16.mxu0 0
        %4919 = vmatpush1.bf16.msra.mxu0 0
        %4920 = vmatprep.subr.bf16.mxu0 0
        %4921 = vmatpush1.bf16.msra.mxu0 0
        %4922 = vmatprep.subr.bf16.mxu0 0
        %4923 = vmatpush1.bf16.msra.mxu0 0
        %4924 = vmatprep.subr.bf16.mxu0 0
        %4925 = vmatpush1.bf16.msra.mxu0 0
        %4926 = vmatprep.subr.bf16.mxu0 0
        %4927 = vmatpush1.bf16.msra.mxu0 0
        %4928 = vmatprep.subr.bf16.mxu0 0
        %4929 = vmatpush1.bf16.msra.mxu0 0
        %4930 = vmatprep.subr.bf16.mxu0 0
        %4931 = vmatpush1.bf16.msra.mxu0 0
        %4932 = vmatprep.subr.bf16.mxu0 0
        %4933 = vmatpush1.bf16.msra.mxu0 0
        %4934 = vmatprep.subr.bf16.mxu0 0
        %4935 = vmatpush1.bf16.msra.mxu0 0
        %4936 = vmatprep.subr.bf16.mxu0 0
        %4937 = vmatpush1.bf16.msra.mxu0 0
        %4938 = vmatprep.mubr.bf16.mxu0 0
        %4939 = vmatmul.mubr.bf16.gmra.mrb[0].mxu0 %v4861
        %v4940 = vpop.f32.mrb[0].mxu0
        %v4941 = vadd.f32 %v4898, %v4940
        %v4942 = vpop.f32.mrb[0].mxu0
        %v4943 = vadd.f32 %v4900, %v4942
        %v4944 = vpop.f32.mrb[0].mxu0
        %v4945 = vadd.f32 %v4902, %v4944
        %v4946 = vpop.f32.mrb[0].mxu0
        %v4947 = vadd.f32 %v4904, %v4946
        %4948 = vdwg.mxu0
        %4949 = vmatprep.subr.bf16.mxu0 %v4719
        %4950 = vmatpush1.bf16.msra.mxu0 %v4718
        %4951 = vmatprep.subr.bf16.mxu0 %v4723
        %4952 = vmatpush1.bf16.msra.mxu0 %v4722
        %4953 = vmatprep.subr.bf16.mxu0 %v4727
        %4954 = vmatpush1.bf16.msra.mxu0 %v4726
        %4955 = vmatprep.subr.bf16.mxu0 %v4731
        %4956 = vmatpush1.bf16.msra.mxu0 %v4730
        %4957 = vmatprep.subr.bf16.mxu0 %v4735
        %4958 = vmatpush1.bf16.msra.mxu0 %v4734
        %4959 = vmatprep.subr.bf16.mxu0 %v4739
        %4960 = vmatpush1.bf16.msra.mxu0 %v4738
        %4961 = vmatprep.subr.bf16.mxu0 %v4743
        %4962 = vmatpush1.bf16.msra.mxu0 %v4742
        %4963 = vmatprep.subr.bf16.mxu0 %v4747
        %4964 = vmatpush1.bf16.msra.mxu0 %v4746
        %4965 = vmatprep.subr.bf16.mxu0 %v4751
        %4966 = vmatpush1.bf16.msra.mxu0 %v4750
        %4967 = vmatprep.subr.bf16.mxu0 %v4755
        %4968 = vmatpush1.bf16.msra.mxu0 %v4754
        %4969 = vmatprep.subr.bf16.mxu0 %v4759
        %4970 = vmatpush1.bf16.msra.mxu0 %v4758
        %4971 = vmatprep.subr.bf16.mxu0 %v4763
        %4972 = vmatpush1.bf16.msra.mxu0 %v4762
        %4973 = vmatprep.subr.bf16.mxu0 %v4767
        %4974 = vmatpush1.bf16.msra.mxu0 %v4766
        %4975 = vmatprep.subr.bf16.mxu0 %v4771
        %4976 = vmatpush1.bf16.msra.mxu0 %v4770
        %4977 = vmatprep.subr.bf16.mxu0 %v4775
        %4978 = vmatpush1.bf16.msra.mxu0 %v4774
        %4979 = vmatprep.subr.bf16.mxu0 %v4779
        %4980 = vmatpush1.bf16.msra.mxu0 %v4778
        %4981 = vmatprep.mubr.bf16.mxu0 %v4484
        %4982 = vmatmul.mubr.bf16.gmra.mrb[0].mxu0 %v4471
        %v4983 = vpop.f32.mrb[0].mxu0
        %v4984 = vadd.f32 0.0, %v4983
        %v4985 = vpop.f32.mrb[0].mxu0
        %v4986 = vadd.f32 0.0, %v4985
        %v4987 = vpop.f32.mrb[0].mxu0
        %v4988 = vadd.f32 0.0, %v4987
        %v4989 = vpop.f32.mrb[0].mxu0
        %v4990 = vadd.f32 0.0, %v4989
        %4991 = vdwg.mxu0
        %4992 = vmatprep.subr.bf16.mxu0 %v4783
        %4993 = vmatpush1.bf16.msra.mxu0 %v4782
        %4994 = vmatprep.subr.bf16.mxu0 %v4787
        %4995 = vmatpush1.bf16.msra.mxu0 %v4786
        %4996 = vmatprep.subr.bf16.mxu0 0
        %4997 = vmatpush1.bf16.msra.mxu0 0
        %4998 = vmatprep.subr.bf16.mxu0 0
        %4999 = vmatpush1.bf16.msra.mxu0 0
        %5000 = vmatprep.subr.bf16.mxu0 0
        %5001 = vmatpush1.bf16.msra.mxu0 0
        %5002 = vmatprep.subr.bf16.mxu0 0
        %5003 = vmatpush1.bf16.msra.mxu0 0
        %5004 = vmatprep.subr.bf16.mxu0 0
        %5005 = vmatpush1.bf16.msra.mxu0 0
        %5006 = vmatprep.subr.bf16.mxu0 0
        %5007 = vmatpush1.bf16.msra.mxu0 0
        %5008 = vmatprep.subr.bf16.mxu0 0
        %5009 = vmatpush1.bf16.msra.mxu0 0
        %5010 = vmatprep.subr.bf16.mxu0 0
        %5011 = vmatpush1.bf16.msra.mxu0 0
        %5012 = vmatprep.subr.bf16.mxu0 0
        %5013 = vmatpush1.bf16.msra.mxu0 0
        %5014 = vmatprep.subr.bf16.mxu0 0
        %5015 = vmatpush1.bf16.msra.mxu0 0
        %5016 = vmatprep.subr.bf16.mxu0 0
        %5017 = vmatpush1.bf16.msra.mxu0 0
        %5018 = vmatprep.subr.bf16.mxu0 0
        %5019 = vmatpush1.bf16.msra.mxu0 0
        %5020 = vmatprep.subr.bf16.mxu0 0
        %5021 = vmatpush1.bf16.msra.mxu0 0
        %5022 = vmatprep.subr.bf16.mxu0 0
        %5023 = vmatpush1.bf16.msra.mxu0 0
        %5024 = vmatprep.mubr.bf16.mxu0 0
        %5025 = vmatmul.mubr.bf16.gmra.mrb[0].mxu0 %v4861
        %v5026 = vpop.f32.mrb[0].mxu0
        %v5027 = vadd.f32 %v4984, %v5026
        %v5028 = vpop.f32.mrb[0].mxu0
        %v5029 = vadd.f32 %v4986, %v5028
        %v5030 = vpop.f32.mrb[0].mxu0
        %v5031 = vadd.f32 %v4988, %v5030
        %v5032 = vpop.f32.mrb[0].mxu0
        %v5033 = vadd.f32 %v4990, %v5032
        %5034 = vdwg.mxu0
        %v5035 = vadd.f32 %v4350, %v4941
        %v5036 = vadd.f32 %v4351, %v4943
        %v5037 = vadd.f32 %v4352, %v5027
        %v5038 = vadd.f32 %v4353, %v5029
        %v5039 = vadd.f32 %v4354, %v4945
        %v5040 = vadd.f32 %v4355, %v4947
        %v5041 = vadd.f32 %v4356, %v5031
        %v5042 = vadd.f32 %v4357, %v5033
        %v5043 = vld [vmem:[#allocation2] sm:$0xcc]
        %v5044 = vld [vmem:[#allocation2 + $0x8] sm:$0xc]
        %s5045 = scalar_lea.vmem %s3, 2304
        %v5046 = vld [vmem:[%s5045] sm:$0xff]
        %v5047 = vld [vmem:[%s5045 + $0x8] sm:$0xff]
        %v5048 = vld [vmem:[%s5045 + $0x10] sm:$0xff]
        %v5049 = vld [vmem:[%s5045 + $0x18] sm:$0xff]
        %v5050 = vld [vmem:[%s5045 + $0x20] sm:$0xff]
        %v5051 = vld [vmem:[%s5045 + $0x28] sm:$0xff]
        %v5052 = vld [vmem:[%s5045 + $0x30] sm:$0xff]
        %v5053 = vld [vmem:[%s5045 + $0x38] sm:$0xff]
        %v5054 = vld [vmem:[%s5045 + $0x40] sm:$0xff]
        %v5055 = vld [vmem:[%s5045 + $0x48] sm:$0xff]
        %v5056 = vld [vmem:[%s5045 + $0x50] sm:$0xff]
        %v5057 = vld [vmem:[%s5045 + $0x58] sm:$0xff]
        %v5058 = vld [vmem:[%s5045 + $0x60] sm:$0xff]
        %v5059 = vld [vmem:[%s5045 + $0x68] sm:$0xff]
        %v5060 = vld [vmem:[%s5045 + $0x70] sm:$0xff]
        %v5061 = vld [vmem:[%s5045 + $0x78] sm:$0xff]
        %v5062 = vld [vmem:[%s5045 + $0x80] sm:$0xff]
        %v5063 = vld [vmem:[%s5045 + $0x88] sm:$0xff]
        %v5064 = vld [vmem:[%s5045 + $0x90] sm:$0xff]
        %v5065 = vld [vmem:[%s5045 + $0x98] sm:$0xff]
        %v5066 = vld [vmem:[%s5045 + $0xa0] sm:$0xff]
        %v5067 = vld [vmem:[%s5045 + $0xa8] sm:$0xff]
        %v5068 = vld [vmem:[%s5045 + $0xb0] sm:$0xff]
        %v5069 = vld [vmem:[%s5045 + $0xb8] sm:$0xff]
        %v5070 = vld [vmem:[%s5045 + $0xc0] sm:$0xff]
        %v5071 = vld [vmem:[%s5045 + $0xc8] sm:$0xff]
        %v5072 = vld [vmem:[%s5045 + $0xd0] sm:$0xff]
        %v5073 = vld [vmem:[%s5045 + $0xd8] sm:$0xff]
        %v5074 = vld [vmem:[%s5045 + $0xe0] sm:$0xff]
        %v5075 = vld [vmem:[%s5045 + $0xe8] sm:$0xff]
        %v5076 = vld [vmem:[%s5045 + $0xf0] sm:$0xff]
        %v5077 = vld [vmem:[%s5045 + $0xf8] sm:$0xff]
        %v5078 = vld [vmem:[%s5045 + $0x100] sm:$0xff]
        %v5079 = vld [vmem:[%s5045 + $0x108] sm:$0xff]
        %v5080 = vld [vmem:[%s5045 + $0x110] sm:$0xff]
        %v5081 = vld [vmem:[%s5045 + $0x118] sm:$0xff]
        %v5082 = vld [vmem:[%s5045 + $0x120] sm:$0xff]
        %v5083 = vld [vmem:[%s5045 + $0x128] sm:$0xff]
        %v5084 = vld [vmem:[%s5045 + $0x130] sm:$0xff]
        %v5085 = vld [vmem:[%s5045 + $0x138] sm:$0xff]
        %v5086 = vld [vmem:[%s5045 + $0x140] sm:$0xff]
        %v5087 = vld [vmem:[%s5045 + $0x148] sm:$0xff]
        %v5088 = vld [vmem:[%s5045 + $0x150] sm:$0xff]
        %v5089 = vld [vmem:[%s5045 + $0x158] sm:$0xff]
        %v5090 = vld [vmem:[%s5045 + $0x160] sm:$0xff]
        %v5091 = vld [vmem:[%s5045 + $0x168] sm:$0xff]
        %v5092 = vld [vmem:[%s5045 + $0x170] sm:$0xff]
        %v5093 = vld [vmem:[%s5045 + $0x178] sm:$0xff]
        %v5094 = vld [vmem:[%s5045 + $0x180] sm:$0xff]
        %v5095 = vld [vmem:[%s5045 + $0x188] sm:$0xff]
        %v5096 = vld [vmem:[%s5045 + $0x190] sm:$0xff]
        %v5097 = vld [vmem:[%s5045 + $0x198] sm:$0xff]
        %v5098 = vld [vmem:[%s5045 + $0x1a0] sm:$0xff]
        %v5099 = vld [vmem:[%s5045 + $0x1a8] sm:$0xff]
        %v5100 = vld [vmem:[%s5045 + $0x1b0] sm:$0xff]
        %v5101 = vld [vmem:[%s5045 + $0x1b8] sm:$0xff]
        %v5102 = vld [vmem:[%s5045 + $0x1c0] sm:$0xff]
        %v5103 = vld [vmem:[%s5045 + $0x1c8] sm:$0xff]
        %v5104 = vld [vmem:[%s5045 + $0x1d0] sm:$0xff]
        %v5105 = vld [vmem:[%s5045 + $0x1d8] sm:$0xff]
        %v5106 = vld [vmem:[%s5045 + $0x1e0] sm:$0xff]
        %v5107 = vld [vmem:[%s5045 + $0x1e8] sm:$0xff]
        %v5108 = vld [vmem:[%s5045 + $0x1f0] sm:$0xff]
        %v5109 = vld [vmem:[%s5045 + $0x1f8] sm:$0xff]
        %v5110 = vld [vmem:[%s5045 + $0x200] sm:$0xff]
        %v5111 = vld [vmem:[%s5045 + $0x208] sm:$0xff]
        %v5112 = vld [vmem:[%s5045 + $0x210] sm:$0xff]
        %v5113 = vld [vmem:[%s5045 + $0x218] sm:$0xff]
        %v5114 = vld [vmem:[%s5045 + $0x220] sm:$0xff]
        %v5115 = vld [vmem:[%s5045 + $0x228] sm:$0xff]
        %v5116 = vld [vmem:[%s5045 + $0x230] sm:$0xff]
        %v5117 = vld [vmem:[%s5045 + $0x238] sm:$0xff]
        %v5120 = vunpack.c.l.b16 %v5043
        %v5121 = vunpack.c.h.b16 %v5043
        %v5122 = vunpack.c.l.b16 %v5044
        %v5123 = vpack.c.b16 %v4446, %v5120
        %v5124 = vpack.c.b16 %v4447, %v5121
        %v5125 = vpack.c.b16 %v4448, %v5122
        %vm5126 = vcmask 1045504
        %v5127 = vrot.slane %v5123, 2
        %v5128 = vrot.slane %v4455, 2
        %v5129 = vsel %vm5126, %v5127, %v5128
        %v5130 = vrot.slane %v5124, 2
        %v5131 = vrot.slane %v4456, 2
        %v5132 = vsel %vm5126, %v5130, %v5131
        %v5133 = vrot.slane %v5125, 2
        %v5134 = vrot.slane %v4457, 2
        %v5135 = vsel %vm5126, %v5133, %v5134
        %v5210 = vunpack.c.l.b16 %v5046
        %v5211 = vunpack.c.h.b16 %v5046
        %v5212 = vunpack.c.l.b16 %v5047
        %v5213 = vunpack.c.h.b16 %v5047
        %v5214 = vunpack.c.l.b16 %v5048
        %v5215 = vunpack.c.h.b16 %v5048
        %v5216 = vunpack.c.l.b16 %v5049
        %v5217 = vunpack.c.h.b16 %v5049
        %v5218 = vunpack.c.l.b16 %v5050
        %v5219 = vunpack.c.h.b16 %v5050
        %v5220 = vunpack.c.l.b16 %v5051
        %v5221 = vunpack.c.h.b16 %v5051
        %v5222 = vunpack.c.l.b16 %v5052
        %v5223 = vunpack.c.h.b16 %v5052
        %v5224 = vunpack.c.l.b16 %v5053
        %v5225 = vunpack.c.h.b16 %v5053
        %v5226 = vunpack.c.l.b16 %v5054
        %v5227 = vunpack.c.h.b16 %v5054
        %v5228 = vunpack.c.l.b16 %v5055
        %v5229 = vunpack.c.h.b16 %v5055
        %v5230 = vunpack.c.l.b16 %v5056
        %v5231 = vunpack.c.h.b16 %v5056
        %v5232 = vunpack.c.l.b16 %v5057
        %v5233 = vunpack.c.h.b16 %v5057
        %v5234 = vunpack.c.l.b16 %v5058
        %v5235 = vunpack.c.h.b16 %v5058
        %v5236 = vunpack.c.l.b16 %v5059
        %v5237 = vunpack.c.h.b16 %v5059
        %v5238 = vunpack.c.l.b16 %v5060
        %v5239 = vunpack.c.h.b16 %v5060
        %v5240 = vunpack.c.l.b16 %v5061
        %v5241 = vunpack.c.h.b16 %v5061
        %v5242 = vunpack.c.l.b16 %v5062
        %v5243 = vunpack.c.h.b16 %v5062
        %v5244 = vunpack.c.l.b16 %v5063
        %v5245 = vunpack.c.h.b16 %v5063
        %v5246 = vunpack.c.l.b16 %v5064
        %v5247 = vunpack.c.h.b16 %v5064
        %v5248 = vunpack.c.l.b16 %v5065
        %v5249 = vunpack.c.h.b16 %v5065
        %v5250 = vunpack.c.l.b16 %v5066
        %v5251 = vunpack.c.h.b16 %v5066
        %v5252 = vunpack.c.l.b16 %v5067
        %v5253 = vunpack.c.h.b16 %v5067
        %v5254 = vunpack.c.l.b16 %v5068
        %v5255 = vunpack.c.h.b16 %v5068
        %v5256 = vunpack.c.l.b16 %v5069
        %v5257 = vunpack.c.h.b16 %v5069
        %v5258 = vunpack.c.l.b16 %v5070
        %v5259 = vunpack.c.h.b16 %v5070
        %v5260 = vunpack.c.l.b16 %v5071
        %v5261 = vunpack.c.h.b16 %v5071
        %v5262 = vunpack.c.l.b16 %v5072
        %v5263 = vunpack.c.h.b16 %v5072
        %v5264 = vunpack.c.l.b16 %v5073
        %v5265 = vunpack.c.h.b16 %v5073
        %v5266 = vunpack.c.l.b16 %v5074
        %v5267 = vunpack.c.h.b16 %v5074
        %v5268 = vunpack.c.l.b16 %v5075
        %v5269 = vunpack.c.h.b16 %v5075
        %v5270 = vunpack.c.l.b16 %v5076
        %v5271 = vunpack.c.h.b16 %v5076
        %v5272 = vunpack.c.l.b16 %v5077
        %v5273 = vunpack.c.h.b16 %v5077
        %v5274 = vunpack.c.l.b16 %v5078
        %v5275 = vunpack.c.h.b16 %v5078
        %v5276 = vunpack.c.l.b16 %v5079
        %v5277 = vunpack.c.h.b16 %v5079
        %v5278 = vunpack.c.l.b16 %v5080
        %v5279 = vunpack.c.h.b16 %v5080
        %v5280 = vunpack.c.l.b16 %v5081
        %v5281 = vunpack.c.h.b16 %v5081
        %v5282 = vunpack.c.l.b16 %v5082
        %v5283 = vunpack.c.h.b16 %v5082
        %v5284 = vunpack.c.l.b16 %v5083
        %v5285 = vunpack.c.h.b16 %v5083
        %v5286 = vunpack.c.l.b16 %v5084
        %v5287 = vunpack.c.h.b16 %v5084
        %v5288 = vunpack.c.l.b16 %v5085
        %v5289 = vunpack.c.h.b16 %v5085
        %v5290 = vunpack.c.l.b16 %v5086
        %v5291 = vunpack.c.h.b16 %v5086
        %v5292 = vunpack.c.l.b16 %v5087
        %v5293 = vunpack.c.h.b16 %v5087
        %v5294 = vunpack.c.l.b16 %v5088
        %v5295 = vunpack.c.h.b16 %v5088
        %v5296 = vunpack.c.l.b16 %v5089
        %v5297 = vunpack.c.h.b16 %v5089
        %v5298 = vunpack.c.l.b16 %v5090
        %v5299 = vunpack.c.h.b16 %v5090
        %v5300 = vunpack.c.l.b16 %v5091
        %v5301 = vunpack.c.h.b16 %v5091
        %v5302 = vunpack.c.l.b16 %v5092
        %v5303 = vunpack.c.h.b16 %v5092
        %v5304 = vunpack.c.l.b16 %v5093
        %v5305 = vunpack.c.h.b16 %v5093
        %v5306 = vunpack.c.l.b16 %v5094
        %v5307 = vunpack.c.h.b16 %v5094
        %v5308 = vunpack.c.l.b16 %v5095
        %v5309 = vunpack.c.h.b16 %v5095
        %v5310 = vunpack.c.l.b16 %v5096
        %v5311 = vunpack.c.h.b16 %v5096
        %v5312 = vunpack.c.l.b16 %v5097
        %v5313 = vunpack.c.h.b16 %v5097
        %v5314 = vunpack.c.l.b16 %v5098
        %v5315 = vunpack.c.h.b16 %v5098
        %v5316 = vunpack.c.l.b16 %v5099
        %v5317 = vunpack.c.h.b16 %v5099
        %v5318 = vunpack.c.l.b16 %v5100
        %v5319 = vunpack.c.h.b16 %v5100
        %v5320 = vunpack.c.l.b16 %v5101
        %v5321 = vunpack.c.h.b16 %v5101
        %v5322 = vunpack.c.l.b16 %v5102
        %v5323 = vunpack.c.h.b16 %v5102
        %v5324 = vunpack.c.l.b16 %v5103
        %v5325 = vunpack.c.h.b16 %v5103
        %v5326 = vunpack.c.l.b16 %v5104
        %v5327 = vunpack.c.h.b16 %v5104
        %v5328 = vunpack.c.l.b16 %v5105
        %v5329 = vunpack.c.h.b16 %v5105
        %v5330 = vunpack.c.l.b16 %v5106
        %v5331 = vunpack.c.h.b16 %v5106
        %v5332 = vunpack.c.l.b16 %v5107
        %v5333 = vunpack.c.h.b16 %v5107
        %v5334 = vunpack.c.l.b16 %v5108
        %v5335 = vunpack.c.h.b16 %v5108
        %v5336 = vunpack.c.l.b16 %v5109
        %v5337 = vunpack.c.h.b16 %v5109
        %v5338 = vunpack.c.l.b16 %v5110
        %v5339 = vunpack.c.h.b16 %v5110
        %v5340 = vunpack.c.l.b16 %v5111
        %v5341 = vunpack.c.h.b16 %v5111
        %v5342 = vunpack.c.l.b16 %v5112
        %v5343 = vunpack.c.h.b16 %v5112
        %v5344 = vunpack.c.l.b16 %v5113
        %v5345 = vunpack.c.h.b16 %v5113
        %v5346 = vunpack.c.l.b16 %v5114
        %v5347 = vunpack.c.h.b16 %v5114
        %v5348 = vunpack.c.l.b16 %v5115
        %v5349 = vunpack.c.h.b16 %v5115
        %v5350 = vunpack.c.l.b16 %v5116
        %v5351 = vunpack.c.h.b16 %v5116
        %v5352 = vunpack.c.l.b16 %v5117
        %v5353 = vunpack.c.h.b16 %v5117
        %v5354 = vpack.c.b16 %v5214, %v5210
        %v5355 = vpack.c.b16 %v5215, %v5211
        %v5356 = vpack.c.b16 %v5216, %v5212
        %v5357 = vpack.c.b16 %v5217, %v5213
        %v5358 = vpack.c.b16 %v5222, %v5218
        %v5359 = vpack.c.b16 %v5223, %v5219
        %v5360 = vpack.c.b16 %v5224, %v5220
        %v5361 = vpack.c.b16 %v5225, %v5221
        %v5362 = vpack.c.b16 %v5230, %v5226
        %v5363 = vpack.c.b16 %v5231, %v5227
        %v5364 = vpack.c.b16 %v5232, %v5228
        %v5365 = vpack.c.b16 %v5233, %v5229
        %v5366 = vpack.c.b16 %v5238, %v5234
        %v5367 = vpack.c.b16 %v5239, %v5235
        %v5368 = vpack.c.b16 %v5240, %v5236
        %v5369 = vpack.c.b16 %v5241, %v5237
        %v5370 = vpack.c.b16 %v5246, %v5242
        %v5371 = vpack.c.b16 %v5247, %v5243
        %v5372 = vpack.c.b16 %v5248, %v5244
        %v5373 = vpack.c.b16 %v5249, %v5245
        %v5374 = vpack.c.b16 %v5254, %v5250
        %v5375 = vpack.c.b16 %v5255, %v5251
        %v5376 = vpack.c.b16 %v5256, %v5252
        %v5377 = vpack.c.b16 %v5257, %v5253
        %v5378 = vpack.c.b16 %v5262, %v5258
        %v5379 = vpack.c.b16 %v5263, %v5259
        %v5380 = vpack.c.b16 %v5264, %v5260
        %v5381 = vpack.c.b16 %v5265, %v5261
        %v5382 = vpack.c.b16 %v5270, %v5266
        %v5383 = vpack.c.b16 %v5271, %v5267
        %v5384 = vpack.c.b16 %v5272, %v5268
        %v5385 = vpack.c.b16 %v5273, %v5269
        %v5386 = vpack.c.b16 %v5278, %v5274
        %v5387 = vpack.c.b16 %v5279, %v5275
        %v5388 = vpack.c.b16 %v5280, %v5276
        %v5389 = vpack.c.b16 %v5281, %v5277
        %v5390 = vpack.c.b16 %v5286, %v5282
        %v5391 = vpack.c.b16 %v5287, %v5283
        %v5392 = vpack.c.b16 %v5288, %v5284
        %v5393 = vpack.c.b16 %v5289, %v5285
        %v5394 = vpack.c.b16 %v5294, %v5290
        %v5395 = vpack.c.b16 %v5295, %v5291
        %v5396 = vpack.c.b16 %v5296, %v5292
        %v5397 = vpack.c.b16 %v5297, %v5293
        %v5398 = vpack.c.b16 %v5302, %v5298
        %v5399 = vpack.c.b16 %v5303, %v5299
        %v5400 = vpack.c.b16 %v5304, %v5300
        %v5401 = vpack.c.b16 %v5305, %v5301
        %v5402 = vpack.c.b16 %v5310, %v5306
        %v5403 = vpack.c.b16 %v5311, %v5307
        %v5404 = vpack.c.b16 %v5312, %v5308
        %v5405 = vpack.c.b16 %v5313, %v5309
        %v5406 = vpack.c.b16 %v5318, %v5314
        %v5407 = vpack.c.b16 %v5319, %v5315
        %v5408 = vpack.c.b16 %v5320, %v5316
        %v5409 = vpack.c.b16 %v5321, %v5317
        %v5410 = vpack.c.b16 %v5326, %v5322
        %v5411 = vpack.c.b16 %v5327, %v5323
        %v5412 = vpack.c.b16 %v5328, %v5324
        %v5413 = vpack.c.b16 %v5329, %v5325
        %v5414 = vpack.c.b16 %v5334, %v5330
        %v5415 = vpack.c.b16 %v5335, %v5331
        %v5416 = vpack.c.b16 %v5336, %v5332
        %v5417 = vpack.c.b16 %v5337, %v5333
        %v5418 = vpack.c.b16 %v5342, %v5338
        %v5419 = vpack.c.b16 %v5343, %v5339
        %v5420 = vpack.c.b16 %v5344, %v5340
        %v5421 = vpack.c.b16 %v5345, %v5341
        %v5422 = vpack.c.b16 %v5350, %v5346
        %v5423 = vpack.c.b16 %v5351, %v5347
        %v5424 = vpack.c.b16 %v5352, %v5348
        %v5425 = vpack.c.b16 %v5353, %v5349
        %v5499 = vsel %vm3006, %v5135, 0
        %5501 = vmatprep.subr.bf16.mxu0 %v5355
        %5502 = vmatpush1.bf16.msra.mxu0 %v5354
        %5503 = vmatprep.subr.bf16.mxu0 %v5359
        %5504 = vmatpush1.bf16.msra.mxu0 %v5358
        %5505 = vmatprep.subr.bf16.mxu0 %v5363
        %5506 = vmatpush1.bf16.msra.mxu0 %v5362
        %5507 = vmatprep.subr.bf16.mxu0 %v5367
        %5508 = vmatpush1.bf16.msra.mxu0 %v5366
        %5509 = vmatprep.subr.bf16.mxu0 %v5371
        %5510 = vmatpush1.bf16.msra.mxu0 %v5370
        %5511 = vmatprep.subr.bf16.mxu0 %v5375
        %5512 = vmatpush1.bf16.msra.mxu0 %v5374
        %5513 = vmatprep.subr.bf16.mxu0 %v5379
        %5514 = vmatpush1.bf16.msra.mxu0 %v5378
        %5515 = vmatprep.subr.bf16.mxu0 %v5383
        %5516 = vmatpush1.bf16.msra.mxu0 %v5382
        %5517 = vmatprep.subr.bf16.mxu0 %v5387
        %5518 = vmatpush1.bf16.msra.mxu0 %v5386
        %5519 = vmatprep.subr.bf16.mxu0 %v5391
        %5520 = vmatpush1.bf16.msra.mxu0 %v5390
        %5521 = vmatprep.subr.bf16.mxu0 %v5395
        %5522 = vmatpush1.bf16.msra.mxu0 %v5394
        %5523 = vmatprep.subr.bf16.mxu0 %v5399
        %5524 = vmatpush1.bf16.msra.mxu0 %v5398
        %5525 = vmatprep.subr.bf16.mxu0 %v5403
        %5526 = vmatpush1.bf16.msra.mxu0 %v5402
        %5527 = vmatprep.subr.bf16.mxu0 %v5407
        %5528 = vmatpush1.bf16.msra.mxu0 %v5406
        %5529 = vmatprep.subr.bf16.mxu0 %v5411
        %5530 = vmatpush1.bf16.msra.mxu0 %v5410
        %5531 = vmatprep.subr.bf16.mxu0 %v5415
        %5532 = vmatpush1.bf16.msra.mxu0 %v5414
        %5533 = vmatprep.mubr.bf16.mxu0 %v5132
        %5534 = vmatmul.mubr.bf16.gmra.mrb[0].mxu0 %v5129
        %v5535 = vpop.f32.mrb[0].mxu0
        %v5536 = vadd.f32 0.0, %v5535
        %v5537 = vpop.f32.mrb[0].mxu0
        %v5538 = vadd.f32 0.0, %v5537
        %v5539 = vpop.f32.mrb[0].mxu0
        %v5540 = vadd.f32 0.0, %v5539
        %v5541 = vpop.f32.mrb[0].mxu0
        %v5542 = vadd.f32 0.0, %v5541
        %5543 = vdwg.mxu0
        %5544 = vmatprep.subr.bf16.mxu0 %v5419
        %5545 = vmatpush1.bf16.msra.mxu0 %v5418
        %5546 = vmatprep.subr.bf16.mxu0 %v5423
        %5547 = vmatpush1.bf16.msra.mxu0 %v5422
        %5548 = vmatprep.subr.bf16.mxu0 0
        %5549 = vmatpush1.bf16.msra.mxu0 0
        %5550 = vmatprep.subr.bf16.mxu0 0
        %5551 = vmatpush1.bf16.msra.mxu0 0
        %5552 = vmatprep.subr.bf16.mxu0 0
        %5553 = vmatpush1.bf16.msra.mxu0 0
        %5554 = vmatprep.subr.bf16.mxu0 0
        %5555 = vmatpush1.bf16.msra.mxu0 0
        %5556 = vmatprep.subr.bf16.mxu0 0
        %5557 = vmatpush1.bf16.msra.mxu0 0
        %5558 = vmatprep.subr.bf16.mxu0 0
        %5559 = vmatpush1.bf16.msra.mxu0 0
        %5560 = vmatprep.subr.bf16.mxu0 0
        %5561 = vmatpush1.bf16.msra.mxu0 0
        %5562 = vmatprep.subr.bf16.mxu0 0
        %5563 = vmatpush1.bf16.msra.mxu0 0
        %5564 = vmatprep.subr.bf16.mxu0 0
        %5565 = vmatpush1.bf16.msra.mxu0 0
        %5566 = vmatprep.subr.bf16.mxu0 0
        %5567 = vmatpush1.bf16.msra.mxu0 0
        %5568 = vmatprep.subr.bf16.mxu0 0
        %5569 = vmatpush1.bf16.msra.mxu0 0
        %5570 = vmatprep.subr.bf16.mxu0 0
        %5571 = vmatpush1.bf16.msra.mxu0 0
        %5572 = vmatprep.subr.bf16.mxu0 0
        %5573 = vmatpush1.bf16.msra.mxu0 0
        %5574 = vmatprep.subr.bf16.mxu0 0
        %5575 = vmatpush1.bf16.msra.mxu0 0
        %5576 = vmatprep.mubr.bf16.mxu0 0
        %5577 = vmatmul.mubr.bf16.gmra.mrb[0].mxu0 %v5499
        %v5578 = vpop.f32.mrb[0].mxu0
        %v5579 = vadd.f32 %v5536, %v5578
        %v5580 = vpop.f32.mrb[0].mxu0
        %v5581 = vadd.f32 %v5538, %v5580
        %v5582 = vpop.f32.mrb[0].mxu0
        %v5583 = vadd.f32 %v5540, %v5582
        %v5584 = vpop.f32.mrb[0].mxu0
        %v5585 = vadd.f32 %v5542, %v5584
        %5586 = vdwg.mxu0
        %5587 = vmatprep.subr.bf16.mxu0 %v5357
        %5588 = vmatpush1.bf16.msra.mxu0 %v5356
        %5589 = vmatprep.subr.bf16.mxu0 %v5361
        %5590 = vmatpush1.bf16.msra.mxu0 %v5360
        %5591 = vmatprep.subr.bf16.mxu0 %v5365
        %5592 = vmatpush1.bf16.msra.mxu0 %v5364
        %5593 = vmatprep.subr.bf16.mxu0 %v5369
        %5594 = vmatpush1.bf16.msra.mxu0 %v5368
        %5595 = vmatprep.subr.bf16.mxu0 %v5373
        %5596 = vmatpush1.bf16.msra.mxu0 %v5372
        %5597 = vmatprep.subr.bf16.mxu0 %v5377
        %5598 = vmatpush1.bf16.msra.mxu0 %v5376
        %5599 = vmatprep.subr.bf16.mxu0 %v5381
        %5600 = vmatpush1.bf16.msra.mxu0 %v5380
        %5601 = vmatprep.subr.bf16.mxu0 %v5385
        %5602 = vmatpush1.bf16.msra.mxu0 %v5384
        %5603 = vmatprep.subr.bf16.mxu0 %v5389
        %5604 = vmatpush1.bf16.msra.mxu0 %v5388
        %5605 = vmatprep.subr.bf16.mxu0 %v5393
        %5606 = vmatpush1.bf16.msra.mxu0 %v5392
        %5607 = vmatprep.subr.bf16.mxu0 %v5397
        %5608 = vmatpush1.bf16.msra.mxu0 %v5396
        %5609 = vmatprep.subr.bf16.mxu0 %v5401
        %5610 = vmatpush1.bf16.msra.mxu0 %v5400
        %5611 = vmatprep.subr.bf16.mxu0 %v5405
        %5612 = vmatpush1.bf16.msra.mxu0 %v5404
        %5613 = vmatprep.subr.bf16.mxu0 %v5409
        %5614 = vmatpush1.bf16.msra.mxu0 %v5408
        %5615 = vmatprep.subr.bf16.mxu0 %v5413
        %5616 = vmatpush1.bf16.msra.mxu0 %v5412
        %5617 = vmatprep.subr.bf16.mxu0 %v5417
        %5618 = vmatpush1.bf16.msra.mxu0 %v5416
        %5619 = vmatprep.mubr.bf16.mxu0 %v5132
        %5620 = vmatmul.mubr.bf16.gmra.mrb[0].mxu0 %v5129
        %v5621 = vpop.f32.mrb[0].mxu0
        %v5622 = vadd.f32 0.0, %v5621
        %v5623 = vpop.f32.mrb[0].mxu0
        %v5624 = vadd.f32 0.0, %v5623
        %v5625 = vpop.f32.mrb[0].mxu0
        %v5626 = vadd.f32 0.0, %v5625
        %v5627 = vpop.f32.mrb[0].mxu0
        %v5628 = vadd.f32 0.0, %v5627
        %5629 = vdwg.mxu0
        %5630 = vmatprep.subr.bf16.mxu0 %v5421
        %5631 = vmatpush1.bf16.msra.mxu0 %v5420
        %5632 = vmatprep.subr.bf16.mxu0 %v5425
        %5633 = vmatpush1.bf16.msra.mxu0 %v5424
        %5634 = vmatprep.subr.bf16.mxu0 0
        %5635 = vmatpush1.bf16.msra.mxu0 0
        %5636 = vmatprep.subr.bf16.mxu0 0
        %5637 = vmatpush1.bf16.msra.mxu0 0
        %5638 = vmatprep.subr.bf16.mxu0 0
        %5639 = vmatpush1.bf16.msra.mxu0 0
        %5640 = vmatprep.subr.bf16.mxu0 0
        %5641 = vmatpush1.bf16.msra.mxu0 0
        %5642 = vmatprep.subr.bf16.mxu0 0
        %5643 = vmatpush1.bf16.msra.mxu0 0
        %5644 = vmatprep.subr.bf16.mxu0 0
        %5645 = vmatpush1.bf16.msra.mxu0 0
        %5646 = vmatprep.subr.bf16.mxu0 0
        %5647 = vmatpush1.bf16.msra.mxu0 0
        %5648 = vmatprep.subr.bf16.mxu0 0
        %5649 = vmatpush1.bf16.msra.mxu0 0
        %5650 = vmatprep.subr.bf16.mxu0 0
        %5651 = vmatpush1.bf16.msra.mxu0 0
        %5652 = vmatprep.subr.bf16.mxu0 0
        %5653 = vmatpush1.bf16.msra.mxu0 0
        %5654 = vmatprep.subr.bf16.mxu0 0
        %5655 = vmatpush1.bf16.msra.mxu0 0
        %5656 = vmatprep.subr.bf16.mxu0 0
        %5657 = vmatpush1.bf16.msra.mxu0 0
        %5658 = vmatprep.subr.bf16.mxu0 0
        %5659 = vmatpush1.bf16.msra.mxu0 0
        %5660 = vmatprep.subr.bf16.mxu0 0
        %5661 = vmatpush1.bf16.msra.mxu0 0
        %5662 = vmatprep.mubr.bf16.mxu0 0
        %5663 = vmatmul.mubr.bf16.gmra.mrb[0].mxu0 %v5499
        %v5664 = vpop.f32.mrb[0].mxu0
        %v5665 = vadd.f32 %v5622, %v5664
        %v5666 = vpop.f32.mrb[0].mxu0
        %v5667 = vadd.f32 %v5624, %v5666
        %v5668 = vpop.f32.mrb[0].mxu0
        %v5669 = vadd.f32 %v5626, %v5668
        %v5670 = vpop.f32.mrb[0].mxu0
        %v5671 = vadd.f32 %v5628, %v5670
        %5672 = vdwg.mxu0
        %v5673 = vadd.f32 %v5035, %v5579
        %v5674 = vadd.f32 %v5036, %v5581
        %v5675 = vadd.f32 %v5037, %v5665
        %v5676 = vadd.f32 %v5038, %v5667
        %v5677 = vadd.f32 %v5039, %v5583
        %v5678 = vadd.f32 %v5040, %v5585
        %v5679 = vadd.f32 %v5041, %v5669
        %v5680 = vadd.f32 %v5042, %v5671
        %v5681 = vld [vmem:[%s4] sm:$0xf]
        %v5683 = vlaneseq
        %v5684 = vshrl.u32 %v5683, 7
        %v5685 = vsub.s32 0, %v5684
        %v5686 = vrot.slane %v5681, %v5685
        %v5687 = vlaneseq
        %v5688 = vshrl.u32 %v5687, 7
        %v5689 = vsub.s32 1, %v5688
        %v5690 = vrot.slane %v5681, %v5689
        %v5691 = vlaneseq
        %v5692 = vshrl.u32 %v5691, 7
        %v5693 = vsub.s32 2, %v5692
        %v5694 = vrot.slane %v5681, %v5693
        %v5695 = vlaneseq
        %v5696 = vshrl.u32 %v5695, 7
        %v5697 = vsub.s32 3, %v5696
        %v5698 = vrot.slane %v5681, %v5697
        %v5703 = vadd.f32 %v5673, %v5686
        %v5704 = vadd.f32 %v5674, %v5690
        %v5705 = vadd.f32 %v5675, %v5694
        %v5706 = vadd.f32 %v5676, %v5698
        %v5707 = vadd.f32 %v5677, %v5686
        %v5708 = vadd.f32 %v5678, %v5690
        %v5709 = vadd.f32 %v5679, %v5694
        %v5710 = vadd.f32 %v5680, %v5698
        %v5711 = vmax.f32 %v5703, 0.0
        %v5712 = vmax.f32 %v5704, 0.0
        %v5713 = vmax.f32 %v5705, 0.0
        %v5714 = vmax.f32 %v5706, 0.0
        %v5715 = vmax.f32 %v5707, 0.0
        %v5716 = vmax.f32 %v5708, 0.0
        %v5717 = vmax.f32 %v5709, 0.0
        %v5718 = vmax.f32 %v5710, 0.0
        %5725 = vrot.lane.b32.xlu0 %v5712, 32
        %v5726 = vpop.permute.xlu0 %5725
        %5727 = vrot.lane.b32.xlu0 %v5713, 32
        %v5728 = vpop.permute.xlu0 %5727
        %5729 = vrot.lane.b32.xlu0 %v5714, 32
        %v5730 = vpop.permute.xlu0 %5729
        %5731 = vrot.lane.b32.xlu0 %v5716, 32
        %v5732 = vpop.permute.xlu0 %5731
        %5733 = vrot.lane.b32.xlu0 %v5717, 32
        %v5734 = vpop.permute.xlu0 %5733
        %5735 = vrot.lane.b32.xlu0 %v5718, 32
        %v5736 = vpop.permute.xlu0 %5735
        %v5737 = vsel %vm3006, %v5726, %v5728
        %v5738 = vsel %vm3006, %v5728, %v5730
        %v5739 = vsel %vm3006, %v5732, %v5734
        %v5740 = vsel %vm3006, %v5734, %v5736
        %v5745 = vmax.f32 %v5711, %v5737
        %v5746 = vmax.f32 %v5712, %v5738
        %v5747 = vmax.f32 %v5715, %v5739
        %v5748 = vmax.f32 %v5716, %v5740
        %v5753 = vcombine.low %v5745, %v5746
        %v5754 = vcombine.high %v5745, %v5746
        %v5756 = vunpack.c.l.s4 1983009808
        %v5757 = vunpack.c.0.s8 %v5756
        %v5758 = vlaneseq
        %v5759 = vshrl.u32 %v5758, 7
        %v5760 = vsub.s32 %v5757, %v5759
        %v5761 = vrot.slane %v5753, %v5760
        %v5763 = vunpack.c.l.s4 1983009808
        %v5764 = vunpack.c.0.s8 %v5763
        %v5765 = vlaneseq
        %v5766 = vshrl.u32 %v5765, 7
        %v5767 = vsub.s32 %v5764, %v5766
        %v5768 = vrot.slane %v5754, %v5767
        %v5769 = vcombine.high %v5761, %v5761
        %v5770 = vcombine.high %v5768, %v5768
        %v5771 = vcombine.low %v5747, %v5748
        %v5772 = vcombine.high %v5747, %v5748
        %v5774 = vunpack.c.l.s4 1983009808
        %v5775 = vunpack.c.0.s8 %v5774
        %v5776 = vlaneseq
        %v5777 = vshrl.u32 %v5776, 7
        %v5778 = vsub.s32 %v5775, %v5777
        %v5779 = vrot.slane %v5771, %v5778
        %v5781 = vunpack.c.l.s4 1983009808
        %v5782 = vunpack.c.0.s8 %v5781
        %v5783 = vlaneseq
        %v5784 = vshrl.u32 %v5783, 7
        %v5785 = vsub.s32 %v5782, %v5784
        %v5786 = vrot.slane %v5772, %v5785
        %v5787 = vcombine.high %v5779, %v5779
        %v5795 = vrot.slane %v5761, 7
        %v5796 = vrot.slane %v5795, 2
        %v5797 = vrot.slane %v5769, 7
        %v5798 = vrot.slane %v5797, 2
        %v5799 = vrot.slane %v5768, 7
        %v5800 = vrot.slane %v5799, 2
        %v5801 = vrot.slane %v5770, 7
        %v5802 = vrot.slane %v5801, 2
        %v5803 = vrot.slane %v5779, 7
        %v5804 = vrot.slane %v5803, 2
        %v5805 = vrot.slane %v5787, 7
        %v5806 = vrot.slane %v5805, 2
        %v5807 = vrot.slane %v5786, 7
        %v5808 = vrot.slane %v5807, 2
        %v5816 = vmax.f32 %v5761, %v5796
        %v5817 = vmax.f32 %v5769, %v5798
        %v5818 = vmax.f32 %v5768, %v5800
        %v5819 = vmax.f32 %v5770, %v5802
        %v5820 = vmax.f32 %v5779, %v5804
        %v5821 = vmax.f32 %v5787, %v5806
        %v5822 = vmax.f32 %v5786, %v5808
        %v5830 = vlaneseq
        %v5831 = vshrl.u32 %v5830, 7
        %v5832 = vsub.s32 0, %v5831
        %v5833 = vrot.slane %v5816, %v5832
        %v5834 = vlaneseq
        %v5835 = vshrl.u32 %v5834, 7
        %v5836 = vsub.s32 2, %v5835
        %v5837 = vrot.slane %v5816, %v5836
        %v5838 = vlaneseq
        %v5839 = vshrl.u32 %v5838, 7
        %v5840 = vsub.s32 0, %v5839
        %v5841 = vrot.slane %v5817, %v5840
        %v5842 = vlaneseq
        %v5843 = vshrl.u32 %v5842, 7
        %v5844 = vsub.s32 2, %v5843
        %v5845 = vrot.slane %v5817, %v5844
        %v5846 = vlaneseq
        %v5847 = vshrl.u32 %v5846, 7
        %v5848 = vsub.s32 0, %v5847
        %v5849 = vrot.slane %v5818, %v5848
        %v5850 = vlaneseq
        %v5851 = vshrl.u32 %v5850, 7
        %v5852 = vsub.s32 2, %v5851
        %v5853 = vrot.slane %v5818, %v5852
        %v5854 = vlaneseq
        %v5855 = vshrl.u32 %v5854, 7
        %v5856 = vsub.s32 0, %v5855
        %v5857 = vrot.slane %v5819, %v5856
        %v5858 = vlaneseq
        %v5859 = vshrl.u32 %v5858, 7
        %v5860 = vsub.s32 2, %v5859
        %v5861 = vrot.slane %v5819, %v5860
        %v5862 = vlaneseq
        %v5863 = vshrl.u32 %v5862, 7
        %v5864 = vsub.s32 0, %v5863
        %v5865 = vrot.slane %v5820, %v5864
        %v5866 = vlaneseq
        %v5867 = vshrl.u32 %v5866, 7
        %v5868 = vsub.s32 2, %v5867
        %v5869 = vrot.slane %v5820, %v5868
        %v5870 = vlaneseq
        %v5871 = vshrl.u32 %v5870, 7
        %v5872 = vsub.s32 0, %v5871
        %v5873 = vrot.slane %v5821, %v5872
        %v5874 = vlaneseq
        %v5875 = vshrl.u32 %v5874, 7
        %v5876 = vsub.s32 2, %v5875
        %v5877 = vrot.slane %v5821, %v5876
        %v5878 = vlaneseq
        %v5879 = vshrl.u32 %v5878, 7
        %v5880 = vsub.s32 0, %v5879
        %v5881 = vrot.slane %v5822, %v5880
        %v5882 = vlaneseq
        %v5883 = vshrl.u32 %v5882, 7
        %v5884 = vsub.s32 2, %v5883
        %v5885 = vrot.slane %v5822, %v5884
        %v5900 = vpack.c.bf16 %v5833, %v5833
        %v5901 = vpack.c.bf16 %v5837, %v5837
        %v5902 = vpack.c.bf16 %v5841, %v5841
        %v5903 = vpack.c.bf16 %v5845, %v5845
        %v5904 = vpack.c.bf16 %v5849, %v5849
        %v5905 = vpack.c.bf16 %v5853, %v5853
        %v5906 = vpack.c.bf16 %v5857, %v5857
        %v5907 = vpack.c.bf16 %v5861, %v5861
        %v5908 = vpack.c.bf16 %v5865, %v5865
        %v5909 = vpack.c.bf16 %v5869, %v5869
        %v5910 = vpack.c.bf16 %v5873, %v5873
        %v5911 = vpack.c.bf16 %v5877, %v5877
        %v5912 = vpack.c.bf16 %v5881, %v5881
        %v5913 = vpack.c.bf16 %v5885, %v5885
        %v5916 = vcombine.low %v5900, %v5901
        %v5918 = vunpack.c.l.s4 1966171168
        %v5919 = vunpack.c.0.s8 %v5918
        %v5920 = vlaneseq
        %v5921 = vshrl.u32 %v5920, 7
        %v5922 = vsub.s32 %v5919, %v5921
        %v5923 = vrot.slane %v5916, %v5922
        %v5925 = vunpack.c.l.s4 1966171168
        %v5926 = vunpack.c.0.s8 %v5925
        %v5927 = vlaneseq
        %v5928 = vshrl.u32 %v5927, 7
        %v5929 = vsub.s32 %v5926, %v5928
        %v5930 = vrot.slane %v5923, %v5929
        %vm5932 = vcmask 1040384
        %vm5933 = vsmask.f32 256
        %vm5934 = vmand %vm5932, %vm5933
        %vm5935 = vcmask 779265
        %vm5936 = vsmask.f32 1280
        %vm5937 = vmand %vm5935, %vm5936
        %vm5938 = vmor %vm5937, %vm5934
        %v5939 = vld [vmem:[#allocation3] sm:$0x3]
        %v5940 = vsel %vm5938, %v5930, %v5939
        %5941 = vst [vmem:[#allocation3] sm:$0x3] %v5940
        %v5944 = vcombine.low %v5902, %v5903
        %v5946 = vunpack.c.l.s4 1966171168
        %v5947 = vunpack.c.0.s8 %v5946
        %v5948 = vlaneseq
        %v5949 = vshrl.u32 %v5948, 7
        %v5950 = vsub.s32 %v5947, %v5949
        %v5951 = vrot.slane %v5944, %v5950
        %v5953 = vunpack.c.l.s4 1966171168
        %v5954 = vunpack.c.0.s8 %v5953
        %v5955 = vlaneseq
        %v5956 = vshrl.u32 %v5955, 7
        %v5957 = vsub.s32 %v5954, %v5956
        %v5958 = vrot.slane %v5951, %v5957
        %5959 = vrot.lane.b32.xlu0 %v5958, 96
        %v5960 = vpop.permute.xlu0 %5959
        %v5961 = vrot.slane %v5960, 7
        %vm5962 = vcmask 785408
        %v5963 = vsel %vm5962, %v5961, %v5960
        %vm5965 = vcmask 1041152
        %vm5966 = vmand %vm5965, %vm5933
        %vm5967 = vcmask 1041409
        %vm5968 = vmand %vm5967, %vm5936
        %vm5969 = vmor %vm5968, %vm5966
        %vm5970 = vcmask 518146
        %vm5971 = vsmask.f32 2304
        %vm5972 = vmand %vm5970, %vm5971
        %vm5973 = vmor %vm5972, %vm5969
        %v5974 = vld [vmem:[#allocation3 + $0x1] sm:$0x7]
        %v5975 = vsel %vm5973, %v5963, %v5974
        %5976 = vst [vmem:[#allocation3 + $0x1] sm:$0x7] %v5975
        %v5979 = vcombine.low %v5904, %v5905
        %v5981 = vunpack.c.l.s4 1966171168
        %v5982 = vunpack.c.0.s8 %v5981
        %v5983 = vlaneseq
        %v5984 = vshrl.u32 %v5983, 7
        %v5985 = vsub.s32 %v5982, %v5984
        %v5986 = vrot.slane %v5979, %v5985
        %v5988 = vunpack.c.l.s4 1966171168
        %v5989 = vunpack.c.0.s8 %v5988
        %v5990 = vlaneseq
        %v5991 = vshrl.u32 %v5990, 7
        %v5992 = vsub.s32 %v5989, %v5991
        %v5993 = vrot.slane %v5986, %v5992
        %5994 = vrot.lane.b32.xlu0 %v5993, 64
        %v5995 = vpop.permute.xlu0 %5994
        %v5996 = vrot.slane %v5995, 7
        %vm5997 = vcmask 523264
        %v5998 = vsel %vm5997, %v5996, %v5995
        %vm6000 = vcmask 1040896
        %vm6001 = vmand %vm6000, %vm5933
        %vm6002 = vmor %vm5968, %vm6001
        %vm6003 = vcmask 256002
        %vm6004 = vmand %vm6003, %vm5971
        %vm6005 = vmor %vm6004, %vm6002
        %v6006 = vld [vmem:[#allocation3 + $0x3] sm:$0x7]
        %v6007 = vsel %vm6005, %v5998, %v6006
        %6008 = vst [vmem:[#allocation3 + $0x3] sm:$0x7] %v6007
        %v6011 = vcombine.low %v5906, %v5907
        %v6013 = vunpack.c.l.s4 1966171168
        %v6014 = vunpack.c.0.s8 %v6013
        %v6015 = vlaneseq
        %v6016 = vshrl.u32 %v6015, 7
        %v6017 = vsub.s32 %v6014, %v6016
        %v6018 = vrot.slane %v6011, %v6017
        %v6020 = vunpack.c.l.s4 1966171168
        %v6021 = vunpack.c.0.s8 %v6020
        %v6022 = vlaneseq
        %v6023 = vshrl.u32 %v6022, 7
        %v6024 = vsub.s32 %v6021, %v6023
        %v6025 = vrot.slane %v6018, %v6024
        %6026 = vrot.lane.b32.xlu0 %v6025, 32
        %v6027 = vpop.permute.xlu0 %6026
        %v6028 = vrot.slane %v6027, 7
        %vm6029 = vcmask 261120
        %v6030 = vsel %vm6029, %v6028, %v6027
        %vm6032 = vcmask 1040640
        %vm6033 = vmand %vm6032, %vm5933
        %vm6034 = vmor %vm5968, %vm6033
        %v6035 = vld [vmem:[#allocation3 + $0x5] sm:$0x3]
        %v6036 = vsel %vm6034, %v6030, %v6035
        %6037 = vst [vmem:[#allocation3 + $0x5] sm:$0x3] %v6036
        %v6040 = vcombine.low %v5908, %v5909
        %v6042 = vunpack.c.l.s4 1966171168
        %v6043 = vunpack.c.0.s8 %v6042
        %v6044 = vlaneseq
        %v6045 = vshrl.u32 %v6044, 7
        %v6046 = vsub.s32 %v6043, %v6045
        %v6047 = vrot.slane %v6040, %v6046
        %v6049 = vunpack.c.l.s4 1966171168
        %v6050 = vunpack.c.0.s8 %v6049
        %v6051 = vlaneseq
        %v6052 = vshrl.u32 %v6051, 7
        %v6053 = vsub.s32 %v6050, %v6052
        %v6054 = vrot.slane %v6047, %v6053
        %v6056 = vld [vmem:[#allocation3 + $0x7] sm:$0x3]
        %v6057 = vsel %vm5938, %v6054, %v6056
        %6058 = vst [vmem:[#allocation3 + $0x7] sm:$0x3] %v6057
        %v6061 = vcombine.low %v5910, %v5911
        %v6063 = vunpack.c.l.s4 1966171168
        %v6064 = vunpack.c.0.s8 %v6063
        %v6065 = vlaneseq
        %v6066 = vshrl.u32 %v6065, 7
        %v6067 = vsub.s32 %v6064, %v6066
        %v6068 = vrot.slane %v6061, %v6067
        %v6070 = vunpack.c.l.s4 1966171168
        %v6071 = vunpack.c.0.s8 %v6070
        %v6072 = vlaneseq
        %v6073 = vshrl.u32 %v6072, 7
        %v6074 = vsub.s32 %v6071, %v6073
        %v6075 = vrot.slane %v6068, %v6074
        %6076 = vrot.lane.b32.xlu0 %v6075, 96
        %v6077 = vpop.permute.xlu0 %6076
        %v6078 = vrot.slane %v6077, 7
        %v6079 = vsel %vm5962, %v6078, %v6077
        %v6081 = vld [vmem:[#allocation3 + $0x8] sm:$0x7]
        %v6082 = vsel %vm5973, %v6079, %v6081
        %6083 = vst [vmem:[#allocation3 + $0x8] sm:$0x7] %v6082
        %v6086 = vcombine.low %v5912, %v5913
        %v6088 = vunpack.c.l.s4 1966171168
        %v6089 = vunpack.c.0.s8 %v6088
        %v6090 = vlaneseq
        %v6091 = vshrl.u32 %v6090, 7
        %v6092 = vsub.s32 %v6089, %v6091
        %v6093 = vrot.slane %v6086, %v6092
        %v6095 = vunpack.c.l.s4 1966171168
        %v6096 = vunpack.c.0.s8 %v6095
        %v6097 = vlaneseq
        %v6098 = vshrl.u32 %v6097, 7
        %v6099 = vsub.s32 %v6096, %v6098
        %v6100 = vrot.slane %v6093, %v6099
        %6101 = vrot.lane.b32.xlu0 %v6100, 64
        %v6102 = vpop.permute.xlu0 %6101
        %v6103 = vrot.slane %v6102, 7
        %v6104 = vsel %vm5997, %v6103, %v6102
        %v6106 = vld [vmem:[#allocation3 + $0xa] sm:$0x7]
        %v6107 = vsel %vm6005, %v6104, %v6106
        %6108 = vst [vmem:[#allocation3 + $0xa] sm:$0x7] %v6107
        %v6109 = vld [vmem:[#allocation3] sm:$0xff]
        %v6110 = vld [vmem:[#allocation3 + $0x8] sm:$0x1f]
        %v6111 = vld [vmem:[%s5] sm:$0xf]
        %v6112 = vld [vmem:[%s5 + $0x4] sm:$0xf]
        %v6113 = vld [vmem:[%s5 + $0x8] sm:$0xf]
        %v6114 = vld [vmem:[%s5 + $0xc] sm:$0xf]
        %v6115 = vld [vmem:[%s5 + $0x10] sm:$0xf]
        %v6116 = vld [vmem:[%s5 + $0x14] sm:$0xf]
        %v6117 = vld [vmem:[%s5 + $0x18] sm:$0xf]
        %v6118 = vld [vmem:[%s5 + $0x1c] sm:$0xf]
        %v6119 = vld [vmem:[%s5 + $0x20] sm:$0xf]
        %v6120 = vld [vmem:[%s5 + $0x24] sm:$0xf]
        %v6121 = vld [vmem:[%s5 + $0x28] sm:$0xf]
        %v6122 = vld [vmem:[%s5 + $0x2c] sm:$0xf]
        %v6123 = vld [vmem:[%s5 + $0x30] sm:$0xf]
        %v6124 = vld [vmem:[%s5 + $0x34] sm:$0xf]
        %v6125 = vld [vmem:[%s5 + $0x38] sm:$0xf]
        %v6126 = vld [vmem:[%s5 + $0x3c] sm:$0xf]
        %v6127 = vld [vmem:[%s5 + $0x40] sm:$0xf]
        %v6128 = vld [vmem:[%s5 + $0x44] sm:$0xf]
        %v6129 = vld [vmem:[%s5 + $0x48] sm:$0xf]
        %v6130 = vld [vmem:[%s5 + $0x4c] sm:$0xf]
        %v6131 = vld [vmem:[%s5 + $0x50] sm:$0xf]
        %v6132 = vld [vmem:[%s5 + $0x54] sm:$0xf]
        %v6133 = vld [vmem:[%s5 + $0x58] sm:$0xf]
        %v6134 = vld [vmem:[%s5 + $0x5c] sm:$0xf]
        %v6135 = vld [vmem:[%s5 + $0x60] sm:$0xf]
        %v6136 = vld [vmem:[%s5 + $0x64] sm:$0xf]
        %v6137 = vld [vmem:[%s5 + $0x68] sm:$0xf]
        %v6138 = vld [vmem:[%s5 + $0x6c] sm:$0xf]
        %v6139 = vld [vmem:[%s5 + $0x70] sm:$0xf]
        %v6140 = vld [vmem:[%s5 + $0x74] sm:$0xf]
        %v6141 = vld [vmem:[%s5 + $0x78] sm:$0xf]
        %v6142 = vld [vmem:[%s5 + $0x7c] sm:$0xf]
        %v6143 = vld [vmem:[%s5 + $0x80] sm:$0xf]
        %v6144 = vld [vmem:[%s5 + $0x84] sm:$0xf]
        %v6145 = vld [vmem:[%s5 + $0x88] sm:$0xf]
        %v6146 = vld [vmem:[%s5 + $0x8c] sm:$0xf]
        %v6147 = vld [vmem:[%s5 + $0x90] sm:$0xf]
        %v6148 = vld [vmem:[%s5 + $0x94] sm:$0xf]
        %v6149 = vld [vmem:[%s5 + $0x98] sm:$0xf]
        %v6150 = vld [vmem:[%s5 + $0x9c] sm:$0xf]
        %v6151 = vld [vmem:[%s5 + $0xa0] sm:$0xf]
        %v6152 = vld [vmem:[%s5 + $0xa4] sm:$0xf]
        %v6153 = vld [vmem:[%s5 + $0xa8] sm:$0xf]
        %v6154 = vld [vmem:[%s5 + $0xac] sm:$0xf]
        %v6155 = vld [vmem:[%s5 + $0xb0] sm:$0xf]
        %v6156 = vld [vmem:[%s5 + $0xb4] sm:$0xf]
        %v6157 = vld [vmem:[%s5 + $0xb8] sm:$0xf]
        %v6158 = vld [vmem:[%s5 + $0xbc] sm:$0xf]
        %v6159 = vld [vmem:[%s5 + $0xc0] sm:$0xf]
        %v6160 = vld [vmem:[%s5 + $0xc4] sm:$0xf]
        %v6161 = vld [vmem:[%s5 + $0xc8] sm:$0xf]
        %v6162 = vld [vmem:[%s5 + $0xcc] sm:$0xf]
        %v6163 = vld [vmem:[%s5 + $0xd0] sm:$0xf]
        %v6164 = vld [vmem:[%s5 + $0xd4] sm:$0xf]
        %v6165 = vld [vmem:[%s5 + $0xd8] sm:$0xf]
        %v6166 = vld [vmem:[%s5 + $0xdc] sm:$0xf]
        %v6167 = vld [vmem:[%s5 + $0xe0] sm:$0xf]
        %v6168 = vld [vmem:[%s5 + $0xe4] sm:$0xf]
        %v6169 = vld [vmem:[%s5 + $0xe8] sm:$0xf]
        %v6170 = vld [vmem:[%s5 + $0xec] sm:$0xf]
        %v6171 = vld [vmem:[%s5 + $0xf0] sm:$0xf]
        %v6172 = vld [vmem:[%s5 + $0xf4] sm:$0xf]
        %v6173 = vld [vmem:[%s5 + $0xf8] sm:$0xf]
        %v6174 = vld [vmem:[%s5 + $0xfc] sm:$0xf]
        %v6175 = vld [vmem:[%s5 + $0x100] sm:$0xf]
        %v6176 = vld [vmem:[%s5 + $0x104] sm:$0xf]
        %v6177 = vld [vmem:[%s5 + $0x108] sm:$0xf]
        %v6178 = vld [vmem:[%s5 + $0x10c] sm:$0xf]
        %v6179 = vld [vmem:[%s5 + $0x110] sm:$0xf]
        %v6180 = vld [vmem:[%s5 + $0x114] sm:$0xf]
        %v6181 = vld [vmem:[%s5 + $0x118] sm:$0xf]
        %v6182 = vld [vmem:[%s5 + $0x11c] sm:$0xf]
        %v6183 = vld [vmem:[%s5 + $0x120] sm:$0xf]
        %v6184 = vld [vmem:[%s5 + $0x124] sm:$0xf]
        %v6185 = vld [vmem:[%s5 + $0x128] sm:$0xf]
        %v6186 = vld [vmem:[%s5 + $0x12c] sm:$0xf]
        %v6187 = vld [vmem:[%s5 + $0x130] sm:$0xf]
        %v6188 = vld [vmem:[%s5 + $0x134] sm:$0xf]
        %v6189 = vld [vmem:[%s5 + $0x138] sm:$0xf]
        %v6190 = vld [vmem:[%s5 + $0x13c] sm:$0xf]
        %v6191 = vld [vmem:[%s5 + $0x140] sm:$0xf]
        %v6192 = vld [vmem:[%s5 + $0x144] sm:$0xf]
        %v6193 = vld [vmem:[%s5 + $0x148] sm:$0xf]
        %v6194 = vld [vmem:[%s5 + $0x14c] sm:$0xf]
        %v6195 = vld [vmem:[%s5 + $0x150] sm:$0xf]
        %v6196 = vld [vmem:[%s5 + $0x154] sm:$0xf]
        %v6197 = vld [vmem:[%s5 + $0x158] sm:$0xf]
        %v6198 = vld [vmem:[%s5 + $0x15c] sm:$0xf]
        %v6199 = vld [vmem:[%s5 + $0x160] sm:$0xf]
        %v6200 = vld [vmem:[%s5 + $0x164] sm:$0xf]
        %v6201 = vld [vmem:[%s5 + $0x168] sm:$0xf]
        %v6202 = vld [vmem:[%s5 + $0x16c] sm:$0xf]
        %v6203 = vld [vmem:[%s5 + $0x170] sm:$0xf]
        %v6204 = vld [vmem:[%s5 + $0x174] sm:$0xf]
        %v6205 = vld [vmem:[%s5 + $0x178] sm:$0xf]
        %v6206 = vld [vmem:[%s5 + $0x17c] sm:$0xf]
        %v6207 = vld [vmem:[%s5 + $0x180] sm:$0xf]
        %v6208 = vld [vmem:[%s5 + $0x184] sm:$0xf]
        %v6209 = vld [vmem:[%s5 + $0x188] sm:$0xf]
        %v6210 = vld [vmem:[%s5 + $0x18c] sm:$0xf]
        %v6211 = vld [vmem:[%s5 + $0x190] sm:$0xf]
        %v6212 = vld [vmem:[%s5 + $0x194] sm:$0xf]
        %v6213 = vld [vmem:[%s5 + $0x198] sm:$0xf]
        %v6214 = vld [vmem:[%s5 + $0x19c] sm:$0xf]
        %v6215 = vld [vmem:[%s5 + $0x1a0] sm:$0xf]
        %v6216 = vld [vmem:[%s5 + $0x1a4] sm:$0xf]
        %v6217 = vld [vmem:[%s5 + $0x1a8] sm:$0xf]
        %v6218 = vld [vmem:[%s5 + $0x1ac] sm:$0xf]
        %v6219 = vld [vmem:[%s5 + $0x1b0] sm:$0xf]
        %v6220 = vld [vmem:[%s5 + $0x1b4] sm:$0xf]
        %v6221 = vld [vmem:[%s5 + $0x1b8] sm:$0xf]
        %v6222 = vld [vmem:[%s5 + $0x1bc] sm:$0xf]
        %v6223 = vld [vmem:[%s5 + $0x1c0] sm:$0xf]
        %v6224 = vld [vmem:[%s5 + $0x1c4] sm:$0xf]
        %v6225 = vld [vmem:[%s5 + $0x1c8] sm:$0xf]
        %v6226 = vld [vmem:[%s5 + $0x1cc] sm:$0xf]
        %v6227 = vld [vmem:[%s5 + $0x1d0] sm:$0xf]
        %v6228 = vld [vmem:[%s5 + $0x1d4] sm:$0xf]
        %v6229 = vld [vmem:[%s5 + $0x1d8] sm:$0xf]
        %v6230 = vld [vmem:[%s5 + $0x1dc] sm:$0xf]
        %v6231 = vld [vmem:[%s5 + $0x1e0] sm:$0xf]
        %v6232 = vld [vmem:[%s5 + $0x1e4] sm:$0xf]
        %v6233 = vld [vmem:[%s5 + $0x1e8] sm:$0xf]
        %v6234 = vld [vmem:[%s5 + $0x1ec] sm:$0xf]
        %v6235 = vld [vmem:[%s5 + $0x1f0] sm:$0xf]
        %v6236 = vld [vmem:[%s5 + $0x1f4] sm:$0xf]
        %v6237 = vld [vmem:[%s5 + $0x1f8] sm:$0xf]
        %v6238 = vld [vmem:[%s5 + $0x1fc] sm:$0xf]
        %v6239 = vld [vmem:[%s5 + $0x200] sm:$0xf]
        %v6240 = vld [vmem:[%s5 + $0x204] sm:$0xf]
        %v6241 = vld [vmem:[%s5 + $0x208] sm:$0xf]
        %v6242 = vld [vmem:[%s5 + $0x20c] sm:$0xf]
        %v6243 = vld [vmem:[%s5 + $0x210] sm:$0xf]
        %v6244 = vld [vmem:[%s5 + $0x214] sm:$0xf]
        %v6245 = vld [vmem:[%s5 + $0x218] sm:$0xf]
        %v6246 = vld [vmem:[%s5 + $0x21c] sm:$0xf]
        %v6247 = vld [vmem:[%s5 + $0x220] sm:$0xf]
        %v6248 = vld [vmem:[%s5 + $0x224] sm:$0xf]
        %v6249 = vld [vmem:[%s5 + $0x228] sm:$0xf]
        %v6250 = vld [vmem:[%s5 + $0x22c] sm:$0xf]
        %v6251 = vld [vmem:[%s5 + $0x230] sm:$0xf]
        %v6252 = vld [vmem:[%s5 + $0x234] sm:$0xf]
        %v6253 = vld [vmem:[%s5 + $0x238] sm:$0xf]
        %v6254 = vld [vmem:[%s5 + $0x23c] sm:$0xf]
        %v6255 = vld [vmem:[%s5 + $0x240] sm:$0xf]
        %v6256 = vld [vmem:[%s5 + $0x244] sm:$0xf]
        %v6257 = vld [vmem:[%s5 + $0x248] sm:$0xf]
        %v6258 = vld [vmem:[%s5 + $0x24c] sm:$0xf]
        %v6259 = vld [vmem:[%s5 + $0x250] sm:$0xf]
        %v6260 = vld [vmem:[%s5 + $0x254] sm:$0xf]
        %v6261 = vld [vmem:[%s5 + $0x258] sm:$0xf]
        %v6262 = vld [vmem:[%s5 + $0x25c] sm:$0xf]
        %v6263 = vld [vmem:[%s5 + $0x260] sm:$0xf]
        %v6264 = vld [vmem:[%s5 + $0x264] sm:$0xf]
        %v6265 = vld [vmem:[%s5 + $0x268] sm:$0xf]
        %v6266 = vld [vmem:[%s5 + $0x26c] sm:$0xf]
        %v6267 = vld [vmem:[%s5 + $0x270] sm:$0xf]
        %v6268 = vld [vmem:[%s5 + $0x274] sm:$0xf]
        %v6269 = vld [vmem:[%s5 + $0x278] sm:$0xf]
        %v6270 = vld [vmem:[%s5 + $0x27c] sm:$0xf]
        %v6271 = vld [vmem:[%s5 + $0x280] sm:$0xf]
        %v6272 = vld [vmem:[%s5 + $0x284] sm:$0xf]
        %v6273 = vld [vmem:[%s5 + $0x288] sm:$0xf]
        %v6274 = vld [vmem:[%s5 + $0x28c] sm:$0xf]
        %v6275 = vld [vmem:[%s5 + $0x290] sm:$0xf]
        %v6276 = vld [vmem:[%s5 + $0x294] sm:$0xf]
        %v6277 = vld [vmem:[%s5 + $0x298] sm:$0xf]
        %v6278 = vld [vmem:[%s5 + $0x29c] sm:$0xf]
        %v6279 = vld [vmem:[%s5 + $0x2a0] sm:$0xf]
        %v6280 = vld [vmem:[%s5 + $0x2a4] sm:$0xf]
        %v6281 = vld [vmem:[%s5 + $0x2a8] sm:$0xf]
        %v6282 = vld [vmem:[%s5 + $0x2ac] sm:$0xf]
        %v6283 = vld [vmem:[%s5 + $0x2b0] sm:$0xf]
        %v6284 = vld [vmem:[%s5 + $0x2b4] sm:$0xf]
        %v6285 = vld [vmem:[%s5 + $0x2b8] sm:$0xf]
        %v6286 = vld [vmem:[%s5 + $0x2bc] sm:$0xf]
        %v6287 = vld [vmem:[%s5 + $0x2c0] sm:$0xf]
        %v6288 = vld [vmem:[%s5 + $0x2c4] sm:$0xf]
        %v6289 = vld [vmem:[%s5 + $0x2c8] sm:$0xf]
        %v6290 = vld [vmem:[%s5 + $0x2cc] sm:$0xf]
        %v6291 = vld [vmem:[%s5 + $0x2d0] sm:$0xf]
        %v6292 = vld [vmem:[%s5 + $0x2d4] sm:$0xf]
        %v6293 = vld [vmem:[%s5 + $0x2d8] sm:$0xf]
        %v6294 = vld [vmem:[%s5 + $0x2dc] sm:$0xf]
        %v6295 = vld [vmem:[%s5 + $0x2e0] sm:$0xf]
        %v6296 = vld [vmem:[%s5 + $0x2e4] sm:$0xf]
        %v6297 = vld [vmem:[%s5 + $0x2e8] sm:$0xf]
        %v6298 = vld [vmem:[%s5 + $0x2ec] sm:$0xf]
        %v6299 = vld [vmem:[%s5 + $0x2f0] sm:$0xf]
        %v6300 = vld [vmem:[%s5 + $0x2f4] sm:$0xf]
        %v6301 = vld [vmem:[%s5 + $0x2f8] sm:$0xf]
        %v6302 = vld [vmem:[%s5 + $0x2fc] sm:$0xf]
        %v6303 = vld [vmem:[%s5 + $0x300] sm:$0xf]
        %v6304 = vld [vmem:[%s5 + $0x304] sm:$0xf]
        %v6305 = vld [vmem:[%s5 + $0x308] sm:$0xf]
        %v6306 = vld [vmem:[%s5 + $0x30c] sm:$0xf]
        %v6307 = vld [vmem:[%s6] sm:$0x1]
        %v6310 = vcombine.high %v6109, %v6109
        %v6312 = vunpack.c.l.s4 1966171168
        %v6313 = vunpack.c.0.s8 %v6312
        %v6314 = vlaneseq
        %v6315 = vshrl.u32 %v6314, 7
        %v6316 = vsub.s32 %v6313, %v6315
        %v6317 = vrot.slane %v6109, %v6316
        %v6319 = vunpack.c.l.s4 1966171168
        %v6320 = vunpack.c.0.s8 %v6319
        %v6321 = vlaneseq
        %v6322 = vshrl.u32 %v6321, 7
        %v6323 = vsub.s32 %v6320, %v6322
        %v6324 = vrot.slane %v6310, %v6323
        %v6325 = vcombine.high %v6317, %v6317
        %v6326 = vcombine.high %v6324, %v6324
        %v6328 = vunpack.c.l.s4 1966171168
        %v6329 = vunpack.c.0.s8 %v6328
        %v6330 = vlaneseq
        %v6331 = vshrl.u32 %v6330, 7
        %v6332 = vsub.s32 %v6329, %v6331
        %v6333 = vrot.slane %v6317, %v6332
        %v6335 = vunpack.c.l.s4 1966171168
        %v6336 = vunpack.c.0.s8 %v6335
        %v6337 = vlaneseq
        %v6338 = vshrl.u32 %v6337, 7
        %v6339 = vsub.s32 %v6336, %v6338
        %v6340 = vrot.slane %v6324, %v6339
        %v6342 = vunpack.c.l.s4 1966171168
        %v6343 = vunpack.c.0.s8 %v6342
        %v6344 = vlaneseq
        %v6345 = vshrl.u32 %v6344, 7
        %v6346 = vsub.s32 %v6343, %v6345
        %v6347 = vrot.slane %v6325, %v6346
        %v6349 = vunpack.c.l.s4 1966171168
        %v6350 = vunpack.c.0.s8 %v6349
        %v6351 = vlaneseq
        %v6352 = vshrl.u32 %v6351, 7
        %v6353 = vsub.s32 %v6350, %v6352
        %v6354 = vrot.slane %v6326, %v6353
        %v6355 = vcombine.high %v6333, %v6333
        %v6356 = vcombine.high %v6340, %v6340
        %v6357 = vcombine.high %v6347, %v6347
        %v6358 = vcombine.high %v6354, %v6354
        %v6359 = vcombine.high %v6110, %v6110
        %v6361 = vunpack.c.l.s4 1966171168
        %v6362 = vunpack.c.0.s8 %v6361
        %v6363 = vlaneseq
        %v6364 = vshrl.u32 %v6363, 7
        %v6365 = vsub.s32 %v6362, %v6364
        %v6366 = vrot.slane %v6110, %v6365
        %v6368 = vunpack.c.l.s4 1966171168
        %v6369 = vunpack.c.0.s8 %v6368
        %v6370 = vlaneseq
        %v6371 = vshrl.u32 %v6370, 7
        %v6372 = vsub.s32 %v6369, %v6371
        %v6373 = vrot.slane %v6359, %v6372
        %v6374 = vcombine.high %v6366, %v6366
        %v6376 = vunpack.c.l.s4 1966171168
        %v6377 = vunpack.c.0.s8 %v6376
        %v6378 = vlaneseq
        %v6379 = vshrl.u32 %v6378, 7
        %v6380 = vsub.s32 %v6377, %v6379
        %v6381 = vrot.slane %v6366, %v6380
        %v6383 = vunpack.c.l.s4 1966171168
        %v6384 = vunpack.c.0.s8 %v6383
        %v6385 = vlaneseq
        %v6386 = vshrl.u32 %v6385, 7
        %v6387 = vsub.s32 %v6384, %v6386
        %v6388 = vrot.slane %v6373, %v6387
        %v6390 = vunpack.c.l.s4 1966171168
        %v6391 = vunpack.c.0.s8 %v6390
        %v6392 = vlaneseq
        %v6393 = vshrl.u32 %v6392, 7
        %v6394 = vsub.s32 %v6391, %v6393
        %v6395 = vrot.slane %v6374, %v6394
        %v6396 = vcombine.high %v6381, %v6381
        %v6397 = vcombine.high %v6395, %v6395
        %v6606 = vunpack.c.l.b16 %v6111
        %v6607 = vunpack.c.l.b16 %v6112
        %v6608 = vunpack.c.l.b16 %v6113
        %v6609 = vunpack.c.l.b16 %v6114
        %v6610 = vunpack.c.l.b16 %v6115
        %v6611 = vunpack.c.l.b16 %v6116
        %v6612 = vunpack.c.l.b16 %v6117
        %v6613 = vunpack.c.l.b16 %v6118
        %v6614 = vunpack.c.l.b16 %v6119
        %v6615 = vunpack.c.l.b16 %v6120
        %v6616 = vunpack.c.l.b16 %v6121
        %v6617 = vunpack.c.l.b16 %v6122
        %v6618 = vunpack.c.l.b16 %v6123
        %v6619 = vunpack.c.l.b16 %v6124
        %v6620 = vunpack.c.l.b16 %v6125
        %v6621 = vunpack.c.l.b16 %v6126
        %v6622 = vunpack.c.l.b16 %v6127
        %v6623 = vunpack.c.l.b16 %v6128
        %v6624 = vunpack.c.l.b16 %v6129
        %v6625 = vunpack.c.l.b16 %v6130
        %v6626 = vunpack.c.l.b16 %v6131
        %v6627 = vunpack.c.l.b16 %v6132
        %v6628 = vunpack.c.l.b16 %v6133
        %v6629 = vunpack.c.l.b16 %v6134
        %v6630 = vunpack.c.l.b16 %v6135
        %v6631 = vunpack.c.l.b16 %v6136
        %v6632 = vunpack.c.l.b16 %v6137
        %v6633 = vunpack.c.l.b16 %v6138
        %v6634 = vunpack.c.l.b16 %v6139
        %v6635 = vunpack.c.l.b16 %v6140
        %v6636 = vunpack.c.l.b16 %v6141
        %v6637 = vunpack.c.l.b16 %v6142
        %v6638 = vunpack.c.l.b16 %v6143
        %v6639 = vunpack.c.l.b16 %v6144
        %v6640 = vunpack.c.l.b16 %v6145
        %v6641 = vunpack.c.l.b16 %v6146
        %v6642 = vunpack.c.l.b16 %v6147
        %v6643 = vunpack.c.l.b16 %v6148
        %v6644 = vunpack.c.l.b16 %v6149
        %v6645 = vunpack.c.l.b16 %v6150
        %v6646 = vunpack.c.l.b16 %v6151
        %v6647 = vunpack.c.l.b16 %v6152
        %v6648 = vunpack.c.l.b16 %v6153
        %v6649 = vunpack.c.l.b16 %v6154
        %v6650 = vunpack.c.l.b16 %v6155
        %v6651 = vunpack.c.l.b16 %v6156
        %v6652 = vunpack.c.l.b16 %v6157
        %v6653 = vunpack.c.l.b16 %v6158
        %v6654 = vunpack.c.l.b16 %v6159
        %v6655 = vunpack.c.l.b16 %v6160
        %v6656 = vunpack.c.l.b16 %v6161
        %v6657 = vunpack.c.l.b16 %v6162
        %v6658 = vunpack.c.l.b16 %v6163
        %v6659 = vunpack.c.l.b16 %v6164
        %v6660 = vunpack.c.l.b16 %v6165
        %v6661 = vunpack.c.l.b16 %v6166
        %v6662 = vunpack.c.l.b16 %v6167
        %v6663 = vunpack.c.l.b16 %v6168
        %v6664 = vunpack.c.l.b16 %v6169
        %v6665 = vunpack.c.l.b16 %v6170
        %v6666 = vunpack.c.l.b16 %v6171
        %v6667 = vunpack.c.l.b16 %v6172
        %v6668 = vunpack.c.l.b16 %v6173
        %v6669 = vunpack.c.l.b16 %v6174
        %v6670 = vunpack.c.l.b16 %v6175
        %v6671 = vunpack.c.l.b16 %v6176
        %v6672 = vunpack.c.l.b16 %v6177
        %v6673 = vunpack.c.l.b16 %v6178
        %v6674 = vunpack.c.l.b16 %v6179
        %v6675 = vunpack.c.l.b16 %v6180
        %v6676 = vunpack.c.l.b16 %v6181
        %v6677 = vunpack.c.l.b16 %v6182
        %v6678 = vunpack.c.l.b16 %v6183
        %v6679 = vunpack.c.l.b16 %v6184
        %v6680 = vunpack.c.l.b16 %v6185
        %v6681 = vunpack.c.l.b16 %v6186
        %v6682 = vunpack.c.l.b16 %v6187
        %v6683 = vunpack.c.l.b16 %v6188
        %v6684 = vunpack.c.l.b16 %v6189
        %v6685 = vunpack.c.l.b16 %v6190
        %v6686 = vunpack.c.l.b16 %v6191
        %v6687 = vunpack.c.l.b16 %v6192
        %v6688 = vunpack.c.l.b16 %v6193
        %v6689 = vunpack.c.l.b16 %v6194
        %v6690 = vunpack.c.l.b16 %v6195
        %v6691 = vunpack.c.l.b16 %v6196
        %v6692 = vunpack.c.l.b16 %v6197
        %v6693 = vunpack.c.l.b16 %v6198
        %v6694 = vunpack.c.l.b16 %v6199
        %v6695 = vunpack.c.l.b16 %v6200
        %v6696 = vunpack.c.l.b16 %v6201
        %v6697 = vunpack.c.l.b16 %v6202
        %v6698 = vunpack.c.l.b16 %v6203
        %v6699 = vunpack.c.l.b16 %v6204
        %v6700 = vunpack.c.l.b16 %v6205
        %v6701 = vunpack.c.l.b16 %v6206
        %v6702 = vunpack.c.l.b16 %v6207
        %v6703 = vunpack.c.l.b16 %v6208
        %v6704 = vunpack.c.l.b16 %v6209
        %v6705 = vunpack.c.l.b16 %v6210
        %v6706 = vunpack.c.l.b16 %v6211
        %v6707 = vunpack.c.l.b16 %v6212
        %v6708 = vunpack.c.l.b16 %v6213
        %v6709 = vunpack.c.l.b16 %v6214
        %v6710 = vunpack.c.l.b16 %v6215
        %v6711 = vunpack.c.l.b16 %v6216
        %v6712 = vunpack.c.l.b16 %v6217
        %v6713 = vunpack.c.l.b16 %v6218
        %v6714 = vunpack.c.l.b16 %v6219
        %v6715 = vunpack.c.l.b16 %v6220
        %v6716 = vunpack.c.l.b16 %v6221
        %v6717 = vunpack.c.l.b16 %v6222
        %v6718 = vunpack.c.l.b16 %v6223
        %v6719 = vunpack.c.l.b16 %v6224
        %v6720 = vunpack.c.l.b16 %v6225
        %v6721 = vunpack.c.l.b16 %v6226
        %v6722 = vunpack.c.l.b16 %v6227
        %v6723 = vunpack.c.l.b16 %v6228
        %v6724 = vunpack.c.l.b16 %v6229
        %v6725 = vunpack.c.l.b16 %v6230
        %v6726 = vunpack.c.l.b16 %v6231
        %v6727 = vunpack.c.l.b16 %v6232
        %v6728 = vunpack.c.l.b16 %v6233
        %v6729 = vunpack.c.l.b16 %v6234
        %v6730 = vunpack.c.l.b16 %v6235
        %v6731 = vunpack.c.l.b16 %v6236
        %v6732 = vunpack.c.l.b16 %v6237
        %v6733 = vunpack.c.l.b16 %v6238
        %v6734 = vunpack.c.l.b16 %v6239
        %v6735 = vunpack.c.l.b16 %v6240
        %v6736 = vunpack.c.l.b16 %v6241
        %v6737 = vunpack.c.l.b16 %v6242
        %v6738 = vunpack.c.l.b16 %v6243
        %v6739 = vunpack.c.l.b16 %v6244
        %v6740 = vunpack.c.l.b16 %v6245
        %v6741 = vunpack.c.l.b16 %v6246
        %v6742 = vunpack.c.l.b16 %v6247
        %v6743 = vunpack.c.l.b16 %v6248
        %v6744 = vunpack.c.l.b16 %v6249
        %v6745 = vunpack.c.l.b16 %v6250
        %v6746 = vunpack.c.l.b16 %v6251
        %v6747 = vunpack.c.l.b16 %v6252
        %v6748 = vunpack.c.l.b16 %v6253
        %v6749 = vunpack.c.l.b16 %v6254
        %v6750 = vunpack.c.l.b16 %v6255
        %v6751 = vunpack.c.l.b16 %v6256
        %v6752 = vunpack.c.l.b16 %v6257
        %v6753 = vunpack.c.l.b16 %v6258
        %v6754 = vunpack.c.l.b16 %v6259
        %v6755 = vunpack.c.l.b16 %v6260
        %v6756 = vunpack.c.l.b16 %v6261
        %v6757 = vunpack.c.l.b16 %v6262
        %v6758 = vunpack.c.l.b16 %v6263
        %v6759 = vunpack.c.l.b16 %v6264
        %v6760 = vunpack.c.l.b16 %v6265
        %v6761 = vunpack.c.l.b16 %v6266
        %v6762 = vunpack.c.l.b16 %v6267
        %v6763 = vunpack.c.l.b16 %v6268
        %v6764 = vunpack.c.l.b16 %v6269
        %v6765 = vunpack.c.l.b16 %v6270
        %v6766 = vunpack.c.l.b16 %v6271
        %v6767 = vunpack.c.l.b16 %v6272
        %v6768 = vunpack.c.l.b16 %v6273
        %v6769 = vunpack.c.l.b16 %v6274
        %v6770 = vunpack.c.l.b16 %v6275
        %v6771 = vunpack.c.l.b16 %v6276
        %v6772 = vunpack.c.l.b16 %v6277
        %v6773 = vunpack.c.l.b16 %v6278
        %v6774 = vunpack.c.l.b16 %v6279
        %v6775 = vunpack.c.l.b16 %v6280
        %v6776 = vunpack.c.l.b16 %v6281
        %v6777 = vunpack.c.l.b16 %v6282
        %v6778 = vunpack.c.l.b16 %v6283
        %v6779 = vunpack.c.l.b16 %v6284
        %v6780 = vunpack.c.l.b16 %v6285
        %v6781 = vunpack.c.l.b16 %v6286
        %v6782 = vunpack.c.l.b16 %v6287
        %v6783 = vunpack.c.l.b16 %v6288
        %v6784 = vunpack.c.l.b16 %v6289
        %v6785 = vunpack.c.l.b16 %v6290
        %v6786 = vunpack.c.l.b16 %v6291
        %v6787 = vunpack.c.l.b16 %v6292
        %v6788 = vunpack.c.l.b16 %v6293
        %v6789 = vunpack.c.l.b16 %v6294
        %v6790 = vunpack.c.l.b16 %v6295
        %v6791 = vunpack.c.l.b16 %v6296
        %v6792 = vunpack.c.l.b16 %v6297
        %v6793 = vunpack.c.l.b16 %v6298
        %v6794 = vunpack.c.l.b16 %v6299
        %v6795 = vunpack.c.l.b16 %v6300
        %v6796 = vunpack.c.l.b16 %v6301
        %v6797 = vunpack.c.l.b16 %v6302
        %v6798 = vunpack.c.l.b16 %v6303
        %v6799 = vunpack.c.l.b16 %v6304
        %v6800 = vunpack.c.l.b16 %v6305
        %v6801 = vunpack.c.l.b16 %v6306
        %v6802 = vpack.c.b16 %v6607, %v6606
        %v6803 = vpack.c.b16 %v6609, %v6608
        %v6804 = vpack.c.b16 %v6611, %v6610
        %v6805 = vpack.c.b16 %v6613, %v6612
        %v6806 = vpack.c.b16 %v6615, %v6614
        %v6807 = vpack.c.b16 %v6617, %v6616
        %v6808 = vpack.c.b16 %v6619, %v6618
        %v6809 = vpack.c.b16 %v6621, %v6620
        %v6810 = vpack.c.b16 %v6623, %v6622
        %v6811 = vpack.c.b16 %v6625, %v6624
        %v6812 = vpack.c.b16 %v6627, %v6626
        %v6813 = vpack.c.b16 %v6629, %v6628
        %v6814 = vpack.c.b16 %v6631, %v6630
        %v6815 = vpack.c.b16 %v6633, %v6632
        %v6816 = vpack.c.b16 %v6635, %v6634
        %v6817 = vpack.c.b16 %v6637, %v6636
        %v6818 = vpack.c.b16 %v6639, %v6638
        %v6819 = vpack.c.b16 %v6641, %v6640
        %v6820 = vpack.c.b16 %v6643, %v6642
        %v6821 = vpack.c.b16 %v6645, %v6644
        %v6822 = vpack.c.b16 %v6647, %v6646
        %v6823 = vpack.c.b16 %v6649, %v6648
        %v6824 = vpack.c.b16 %v6651, %v6650
        %v6825 = vpack.c.b16 %v6653, %v6652
        %v6826 = vpack.c.b16 %v6655, %v6654
        %v6827 = vpack.c.b16 %v6657, %v6656
        %v6828 = vpack.c.b16 %v6659, %v6658
        %v6829 = vpack.c.b16 %v6661, %v6660
        %v6830 = vpack.c.b16 %v6663, %v6662
        %v6831 = vpack.c.b16 %v6665, %v6664
        %v6832 = vpack.c.b16 %v6667, %v6666
        %v6833 = vpack.c.b16 %v6669, %v6668
        %v6834 = vpack.c.b16 %v6671, %v6670
        %v6835 = vpack.c.b16 %v6673, %v6672
        %v6836 = vpack.c.b16 %v6675, %v6674
        %v6837 = vpack.c.b16 %v6677, %v6676
        %v6838 = vpack.c.b16 %v6679, %v6678
        %v6839 = vpack.c.b16 %v6681, %v6680
        %v6840 = vpack.c.b16 %v6683, %v6682
        %v6841 = vpack.c.b16 %v6685, %v6684
        %v6842 = vpack.c.b16 %v6687, %v6686
        %v6843 = vpack.c.b16 %v6689, %v6688
        %v6844 = vpack.c.b16 %v6691, %v6690
        %v6845 = vpack.c.b16 %v6693, %v6692
        %v6846 = vpack.c.b16 %v6695, %v6694
        %v6847 = vpack.c.b16 %v6697, %v6696
        %v6848 = vpack.c.b16 %v6699, %v6698
        %v6849 = vpack.c.b16 %v6701, %v6700
        %v6850 = vpack.c.b16 %v6703, %v6702
        %v6851 = vpack.c.b16 %v6705, %v6704
        %v6852 = vpack.c.b16 %v6707, %v6706
        %v6853 = vpack.c.b16 %v6709, %v6708
        %v6854 = vpack.c.b16 %v6711, %v6710
        %v6855 = vpack.c.b16 %v6713, %v6712
        %v6856 = vpack.c.b16 %v6715, %v6714
        %v6857 = vpack.c.b16 %v6717, %v6716
        %v6858 = vpack.c.b16 %v6719, %v6718
        %v6859 = vpack.c.b16 %v6721, %v6720
        %v6860 = vpack.c.b16 %v6723, %v6722
        %v6861 = vpack.c.b16 %v6725, %v6724
        %v6862 = vpack.c.b16 %v6727, %v6726
        %v6863 = vpack.c.b16 %v6729, %v6728
        %v6864 = vpack.c.b16 %v6731, %v6730
        %v6865 = vpack.c.b16 %v6733, %v6732
        %v6866 = vpack.c.b16 %v6735, %v6734
        %v6867 = vpack.c.b16 %v6737, %v6736
        %v6868 = vpack.c.b16 %v6739, %v6738
        %v6869 = vpack.c.b16 %v6741, %v6740
        %v6870 = vpack.c.b16 %v6743, %v6742
        %v6871 = vpack.c.b16 %v6745, %v6744
        %v6872 = vpack.c.b16 %v6747, %v6746
        %v6873 = vpack.c.b16 %v6749, %v6748
        %v6874 = vpack.c.b16 %v6751, %v6750
        %v6875 = vpack.c.b16 %v6753, %v6752
        %v6876 = vpack.c.b16 %v6755, %v6754
        %v6877 = vpack.c.b16 %v6757, %v6756
        %v6878 = vpack.c.b16 %v6759, %v6758
        %v6879 = vpack.c.b16 %v6761, %v6760
        %v6880 = vpack.c.b16 %v6763, %v6762
        %v6881 = vpack.c.b16 %v6765, %v6764
        %v6882 = vpack.c.b16 %v6767, %v6766
        %v6883 = vpack.c.b16 %v6769, %v6768
        %v6884 = vpack.c.b16 %v6771, %v6770
        %v6885 = vpack.c.b16 %v6773, %v6772
        %v6886 = vpack.c.b16 %v6775, %v6774
        %v6887 = vpack.c.b16 %v6777, %v6776
        %v6888 = vpack.c.b16 %v6779, %v6778
        %v6889 = vpack.c.b16 %v6781, %v6780
        %v6890 = vpack.c.b16 %v6783, %v6782
        %v6891 = vpack.c.b16 %v6785, %v6784
        %v6892 = vpack.c.b16 %v6787, %v6786
        %v6893 = vpack.c.b16 %v6789, %v6788
        %v6894 = vpack.c.b16 %v6791, %v6790
        %v6895 = vpack.c.b16 %v6793, %v6792
        %v6896 = vpack.c.b16 %v6795, %v6794
        %v6897 = vpack.c.b16 %v6797, %v6796
        %v6898 = vpack.c.b16 %v6799, %v6798
        %v6899 = vpack.c.b16 %v6801, %v6800
        %v6999 = vsel %vm3006, %v6388, 0
        %7001 = vmatprep.subr.bf16.mxu0 0
        %7002 = vmatpush1.bf16.msra.mxu0 %v6802
        %7003 = vmatprep.subr.bf16.mxu0 0
        %7004 = vmatpush1.bf16.msra.mxu0 %v6803
        %7005 = vmatprep.subr.bf16.mxu0 0
        %7006 = vmatpush1.bf16.msra.mxu0 %v6804
        %7007 = vmatprep.subr.bf16.mxu0 0
        %7008 = vmatpush1.bf16.msra.mxu0 %v6805
        %7009 = vmatprep.subr.bf16.mxu0 0
        %7010 = vmatpush1.bf16.msra.mxu0 %v6806
        %7011 = vmatprep.subr.bf16.mxu0 0
        %7012 = vmatpush1.bf16.msra.mxu0 %v6807
        %7013 = vmatprep.subr.bf16.mxu0 0
        %7014 = vmatpush1.bf16.msra.mxu0 %v6808
        %7015 = vmatprep.subr.bf16.mxu0 0
        %7016 = vmatpush1.bf16.msra.mxu0 %v6809
        %7017 = vmatprep.subr.bf16.mxu0 0
        %7018 = vmatpush1.bf16.msra.mxu0 %v6810
        %7019 = vmatprep.subr.bf16.mxu0 0
        %7020 = vmatpush1.bf16.msra.mxu0 %v6811
        %7021 = vmatprep.subr.bf16.mxu0 0
        %7022 = vmatpush1.bf16.msra.mxu0 %v6812
        %7023 = vmatprep.subr.bf16.mxu0 0
        %7024 = vmatpush1.bf16.msra.mxu0 %v6813
        %7025 = vmatprep.subr.bf16.mxu0 0
        %7026 = vmatpush1.bf16.msra.mxu0 %v6814
        %7027 = vmatprep.subr.bf16.mxu0 0
        %7028 = vmatpush1.bf16.msra.mxu0 %v6815
        %7029 = vmatprep.subr.bf16.mxu0 0
        %7030 = vmatpush1.bf16.msra.mxu0 %v6816
        %7031 = vmatprep.subr.bf16.mxu0 0
        %7032 = vmatpush1.bf16.msra.mxu0 %v6817
        %7033 = vmatprep.mubr.bf16.mxu0 %v6347
        %7034 = vmatmul.mubr.bf16.gmra.mrb[0].mxu0 %v6333
        %v7035 = vpop.f32.mrb[0].mxu0
        %v7036 = vadd.f32 %v6307, %v7035
        %v7037 = vpop.f32.mrb[0].mxu0
        %v7038 = vpop.f32.mrb[0].mxu0
        %v7039 = vpop.f32.mrb[0].mxu0
        %7040 = vdwg.mxu0
        %7041 = vmatprep.subr.bf16.mxu0 0
        %7042 = vmatpush1.bf16.msra.mxu0 %v6818
        %7043 = vmatprep.subr.bf16.mxu0 0
        %7044 = vmatpush1.bf16.msra.mxu0 %v6819
        %7045 = vmatprep.subr.bf16.mxu0 0
        %7046 = vmatpush1.bf16.msra.mxu0 %v6820
        %7047 = vmatprep.subr.bf16.mxu0 0
        %7048 = vmatpush1.bf16.msra.mxu0 %v6821
        %7049 = vmatprep.subr.bf16.mxu0 0
        %7050 = vmatpush1.bf16.msra.mxu0 %v6822
        %7051 = vmatprep.subr.bf16.mxu0 0
        %7052 = vmatpush1.bf16.msra.mxu0 %v6823
        %7053 = vmatprep.subr.bf16.mxu0 0
        %7054 = vmatpush1.bf16.msra.mxu0 %v6824
        %7055 = vmatprep.subr.bf16.mxu0 0
        %7056 = vmatpush1.bf16.msra.mxu0 %v6825
        %7057 = vmatprep.subr.bf16.mxu0 0
        %7058 = vmatpush1.bf16.msra.mxu0 %v6826
        %7059 = vmatprep.subr.bf16.mxu0 0
        %7060 = vmatpush1.bf16.msra.mxu0 %v6827
        %7061 = vmatprep.subr.bf16.mxu0 0
        %7062 = vmatpush1.bf16.msra.mxu0 %v6828
        %7063 = vmatprep.subr.bf16.mxu0 0
        %7064 = vmatpush1.bf16.msra.mxu0 %v6829
        %7065 = vmatprep.subr.bf16.mxu0 0
        %7066 = vmatpush1.bf16.msra.mxu0 %v6830
        %7067 = vmatprep.subr.bf16.mxu0 0
        %7068 = vmatpush1.bf16.msra.mxu0 %v6831
        %7069 = vmatprep.subr.bf16.mxu0 0
        %7070 = vmatpush1.bf16.msra.mxu0 %v6832
        %7071 = vmatprep.subr.bf16.mxu0 0
        %7072 = vmatpush1.bf16.msra.mxu0 %v6833
        %7073 = vmatprep.mubr.bf16.mxu0 %v6357
        %7074 = vmatmul.mubr.bf16.gmra.mrb[0].mxu0 %v6355
        %v7075 = vpop.f32.mrb[0].mxu0
        %v7076 = vadd.f32 %v7036, %v7075
        %v7077 = vpop.f32.mrb[0].mxu0
        %v7078 = vpop.f32.mrb[0].mxu0
        %v7079 = vpop.f32.mrb[0].mxu0
        %7080 = vdwg.mxu0
        %7081 = vmatprep.subr.bf16.mxu0 0
        %7082 = vmatpush1.bf16.msra.mxu0 %v6834
        %7083 = vmatprep.subr.bf16.mxu0 0
        %7084 = vmatpush1.bf16.msra.mxu0 %v6835
        %7085 = vmatprep.subr.bf16.mxu0 0
        %7086 = vmatpush1.bf16.msra.mxu0 %v6836
        %7087 = vmatprep.subr.bf16.mxu0 0
        %7088 = vmatpush1.bf16.msra.mxu0 %v6837
        %7089 = vmatprep.subr.bf16.mxu0 0
        %7090 = vmatpush1.bf16.msra.mxu0 %v6838
        %7091 = vmatprep.subr.bf16.mxu0 0
        %7092 = vmatpush1.bf16.msra.mxu0 %v6839
        %7093 = vmatprep.subr.bf16.mxu0 0
        %7094 = vmatpush1.bf16.msra.mxu0 %v6840
        %7095 = vmatprep.subr.bf16.mxu0 0
        %7096 = vmatpush1.bf16.msra.mxu0 %v6841
        %7097 = vmatprep.subr.bf16.mxu0 0
        %7098 = vmatpush1.bf16.msra.mxu0 %v6842
        %7099 = vmatprep.subr.bf16.mxu0 0
        %7100 = vmatpush1.bf16.msra.mxu0 %v6843
        %7101 = vmatprep.subr.bf16.mxu0 0
        %7102 = vmatpush1.bf16.msra.mxu0 %v6844
        %7103 = vmatprep.subr.bf16.mxu0 0
        %7104 = vmatpush1.bf16.msra.mxu0 %v6845
        %7105 = vmatprep.subr.bf16.mxu0 0
        %7106 = vmatpush1.bf16.msra.mxu0 %v6846
        %7107 = vmatprep.subr.bf16.mxu0 0
        %7108 = vmatpush1.bf16.msra.mxu0 %v6847
        %7109 = vmatprep.subr.bf16.mxu0 0
        %7110 = vmatpush1.bf16.msra.mxu0 %v6848
        %7111 = vmatprep.subr.bf16.mxu0 0
        %7112 = vmatpush1.bf16.msra.mxu0 %v6849
        %7113 = vmatprep.mubr.bf16.mxu0 %v6354
        %7114 = vmatmul.mubr.bf16.gmra.mrb[0].mxu0 %v6340
        %v7115 = vpop.f32.mrb[0].mxu0
        %v7116 = vadd.f32 %v7076, %v7115
        %v7117 = vpop.f32.mrb[0].mxu0
        %v7118 = vpop.f32.mrb[0].mxu0
        %v7119 = vpop.f32.mrb[0].mxu0
        %7120 = vdwg.mxu0
        %7121 = vmatprep.subr.bf16.mxu0 0
        %7122 = vmatpush1.bf16.msra.mxu0 %v6850
        %7123 = vmatprep.subr.bf16.mxu0 0
        %7124 = vmatpush1.bf16.msra.mxu0 %v6851
        %7125 = vmatprep.subr.bf16.mxu0 0
        %7126 = vmatpush1.bf16.msra.mxu0 %v6852
        %7127 = vmatprep.subr.bf16.mxu0 0
        %7128 = vmatpush1.bf16.msra.mxu0 %v6853
        %7129 = vmatprep.subr.bf16.mxu0 0
        %7130 = vmatpush1.bf16.msra.mxu0 %v6854
        %7131 = vmatprep.subr.bf16.mxu0 0
        %7132 = vmatpush1.bf16.msra.mxu0 %v6855
        %7133 = vmatprep.subr.bf16.mxu0 0
        %7134 = vmatpush1.bf16.msra.mxu0 %v6856
        %7135 = vmatprep.subr.bf16.mxu0 0
        %7136 = vmatpush1.bf16.msra.mxu0 %v6857
        %7137 = vmatprep.subr.bf16.mxu0 0
        %7138 = vmatpush1.bf16.msra.mxu0 %v6858
        %7139 = vmatprep.subr.bf16.mxu0 0
        %7140 = vmatpush1.bf16.msra.mxu0 %v6859
        %7141 = vmatprep.subr.bf16.mxu0 0
        %7142 = vmatpush1.bf16.msra.mxu0 %v6860
        %7143 = vmatprep.subr.bf16.mxu0 0
        %7144 = vmatpush1.bf16.msra.mxu0 %v6861
        %7145 = vmatprep.subr.bf16.mxu0 0
        %7146 = vmatpush1.bf16.msra.mxu0 %v6862
        %7147 = vmatprep.subr.bf16.mxu0 0
        %7148 = vmatpush1.bf16.msra.mxu0 %v6863
        %7149 = vmatprep.subr.bf16.mxu0 0
        %7150 = vmatpush1.bf16.msra.mxu0 %v6864
        %7151 = vmatprep.subr.bf16.mxu0 0
        %7152 = vmatpush1.bf16.msra.mxu0 %v6865
        %7153 = vmatprep.mubr.bf16.mxu0 %v6358
        %7154 = vmatmul.mubr.bf16.gmra.mrb[0].mxu0 %v6356
        %v7155 = vpop.f32.mrb[0].mxu0
        %v7156 = vadd.f32 %v7116, %v7155
        %v7157 = vpop.f32.mrb[0].mxu0
        %v7158 = vpop.f32.mrb[0].mxu0
        %v7159 = vpop.f32.mrb[0].mxu0
        %7160 = vdwg.mxu0
        %7161 = vmatprep.subr.bf16.mxu0 0
        %7162 = vmatpush1.bf16.msra.mxu0 %v6866
        %7163 = vmatprep.subr.bf16.mxu0 0
        %7164 = vmatpush1.bf16.msra.mxu0 %v6867
        %7165 = vmatprep.subr.bf16.mxu0 0
        %7166 = vmatpush1.bf16.msra.mxu0 %v6868
        %7167 = vmatprep.subr.bf16.mxu0 0
        %7168 = vmatpush1.bf16.msra.mxu0 %v6869
        %7169 = vmatprep.subr.bf16.mxu0 0
        %7170 = vmatpush1.bf16.msra.mxu0 %v6870
        %7171 = vmatprep.subr.bf16.mxu0 0
        %7172 = vmatpush1.bf16.msra.mxu0 %v6871
        %7173 = vmatprep.subr.bf16.mxu0 0
        %7174 = vmatpush1.bf16.msra.mxu0 %v6872
        %7175 = vmatprep.subr.bf16.mxu0 0
        %7176 = vmatpush1.bf16.msra.mxu0 %v6873
        %7177 = vmatprep.subr.bf16.mxu0 0
        %7178 = vmatpush1.bf16.msra.mxu0 %v6874
        %7179 = vmatprep.subr.bf16.mxu0 0
        %7180 = vmatpush1.bf16.msra.mxu0 %v6875
        %7181 = vmatprep.subr.bf16.mxu0 0
        %7182 = vmatpush1.bf16.msra.mxu0 %v6876
        %7183 = vmatprep.subr.bf16.mxu0 0
        %7184 = vmatpush1.bf16.msra.mxu0 %v6877
        %7185 = vmatprep.subr.bf16.mxu0 0
        %7186 = vmatpush1.bf16.msra.mxu0 %v6878
        %7187 = vmatprep.subr.bf16.mxu0 0
        %7188 = vmatpush1.bf16.msra.mxu0 %v6879
        %7189 = vmatprep.subr.bf16.mxu0 0
        %7190 = vmatpush1.bf16.msra.mxu0 %v6880
        %7191 = vmatprep.subr.bf16.mxu0 0
        %7192 = vmatpush1.bf16.msra.mxu0 %v6881
        %7193 = vmatprep.mubr.bf16.mxu0 %v6395
        %7194 = vmatmul.mubr.bf16.gmra.mrb[0].mxu0 %v6381
        %v7195 = vpop.f32.mrb[0].mxu0
        %v7196 = vadd.f32 %v7156, %v7195
        %v7197 = vpop.f32.mrb[0].mxu0
        %v7198 = vpop.f32.mrb[0].mxu0
        %v7199 = vpop.f32.mrb[0].mxu0
        %7200 = vdwg.mxu0
        %7201 = vmatprep.subr.bf16.mxu0 0
        %7202 = vmatpush1.bf16.msra.mxu0 %v6882
        %7203 = vmatprep.subr.bf16.mxu0 0
        %7204 = vmatpush1.bf16.msra.mxu0 %v6883
        %7205 = vmatprep.subr.bf16.mxu0 0
        %7206 = vmatpush1.bf16.msra.mxu0 %v6884
        %7207 = vmatprep.subr.bf16.mxu0 0
        %7208 = vmatpush1.bf16.msra.mxu0 %v6885
        %7209 = vmatprep.subr.bf16.mxu0 0
        %7210 = vmatpush1.bf16.msra.mxu0 %v6886
        %7211 = vmatprep.subr.bf16.mxu0 0
        %7212 = vmatpush1.bf16.msra.mxu0 %v6887
        %7213 = vmatprep.subr.bf16.mxu0 0
        %7214 = vmatpush1.bf16.msra.mxu0 %v6888
        %7215 = vmatprep.subr.bf16.mxu0 0
        %7216 = vmatpush1.bf16.msra.mxu0 %v6889
        %7217 = vmatprep.subr.bf16.mxu0 0
        %7218 = vmatpush1.bf16.msra.mxu0 %v6890
        %7219 = vmatprep.subr.bf16.mxu0 0
        %7220 = vmatpush1.bf16.msra.mxu0 %v6891
        %7221 = vmatprep.subr.bf16.mxu0 0
        %7222 = vmatpush1.bf16.msra.mxu0 %v6892
        %7223 = vmatprep.subr.bf16.mxu0 0
        %7224 = vmatpush1.bf16.msra.mxu0 %v6893
        %7225 = vmatprep.subr.bf16.mxu0 0
        %7226 = vmatpush1.bf16.msra.mxu0 %v6894
        %7227 = vmatprep.subr.bf16.mxu0 0
        %7228 = vmatpush1.bf16.msra.mxu0 %v6895
        %7229 = vmatprep.subr.bf16.mxu0 0
        %7230 = vmatpush1.bf16.msra.mxu0 %v6896
        %7231 = vmatprep.subr.bf16.mxu0 0
        %7232 = vmatpush1.bf16.msra.mxu0 %v6897
        %7233 = vmatprep.mubr.bf16.mxu0 %v6397
        %7234 = vmatmul.mubr.bf16.gmra.mrb[0].mxu0 %v6396
        %v7235 = vpop.f32.mrb[0].mxu0
        %v7236 = vadd.f32 %v7196, %v7235
        %v7237 = vpop.f32.mrb[0].mxu0
        %v7238 = vpop.f32.mrb[0].mxu0
        %v7239 = vpop.f32.mrb[0].mxu0
        %7240 = vdwg.mxu0
        %7241 = vmatprep.subr.bf16.mxu0 0
        %7242 = vmatpush1.bf16.msra.mxu0 %v6898
        %7243 = vmatprep.subr.bf16.mxu0 0
        %7244 = vmatpush1.bf16.msra.mxu0 %v6899
        %7245 = vmatprep.subr.bf16.mxu0 0
        %7246 = vmatpush1.bf16.msra.mxu0 0
        %7247 = vmatprep.subr.bf16.mxu0 0
        %7248 = vmatpush1.bf16.msra.mxu0 0
        %7249 = vmatprep.subr.bf16.mxu0 0
        %7250 = vmatpush1.bf16.msra.mxu0 0
        %7251 = vmatprep.subr.bf16.mxu0 0
        %7252 = vmatpush1.bf16.msra.mxu0 0
        %7253 = vmatprep.subr.bf16.mxu0 0
        %7254 = vmatpush1.bf16.msra.mxu0 0
        %7255 = vmatprep.subr.bf16.mxu0 0
        %7256 = vmatpush1.bf16.msra.mxu0 0
        %7257 = vmatprep.subr.bf16.mxu0 0
        %7258 = vmatpush1.bf16.msra.mxu0 0
        %7259 = vmatprep.subr.bf16.mxu0 0
        %7260 = vmatpush1.bf16.msra.mxu0 0
        %7261 = vmatprep.subr.bf16.mxu0 0
        %7262 = vmatpush1.bf16.msra.mxu0 0
        %7263 = vmatprep.subr.bf16.mxu0 0
        %7264 = vmatpush1.bf16.msra.mxu0 0
        %7265 = vmatprep.subr.bf16.mxu0 0
        %7266 = vmatpush1.bf16.msra.mxu0 0
        %7267 = vmatprep.subr.bf16.mxu0 0
        %7268 = vmatpush1.bf16.msra.mxu0 0
        %7269 = vmatprep.subr.bf16.mxu0 0
        %7270 = vmatpush1.bf16.msra.mxu0 0
        %7271 = vmatprep.subr.bf16.mxu0 0
        %7272 = vmatpush1.bf16.msra.mxu0 0
        %7273 = vmatprep.mubr.bf16.mxu0 0
        %7274 = vmatmul.mubr.bf16.gmra.mrb[0].mxu0 %v6999
        %v7275 = vpop.f32.mrb[0].mxu0
        %v7276 = vadd.f32 %v7236, %v7275
        %v7277 = vpop.f32.mrb[0].mxu0
        %v7278 = vpop.f32.mrb[0].mxu0
        %v7279 = vpop.f32.mrb[0].mxu0
        %7280 = vdwg.mxu0
        %vm7281 = vcmask 73728
        %7282 = vst.msk [vmem:[%s271] sm:$0x1] %vm7281, %v7276
        %s7283 = sand.u32 %s181, 1
        %s7284 = scalar_lea.sflag [#allocation5], %s7283
        %s7285 = sand.u32 %s181, 1
        %s7286 = scalar_lea.vmem [#allocation4], %s7285
        // Predicated region
        $region49: #{cnn_forward.1} parent=47 // pred_check
          %p7287 = pneg %p191
        $region50: #{cnn_forward.1} parent=47 // pred_check_branch
          %7289 = sbr.rel (%p7287) target = $region52
        $region51: #{cnn_forward.1} parent=47 // pred_region
          %s7291 = ssub.s32 16, 16
          %7292 = vsyncadd %s7284, %s7291
          %s7293 = smul.addr %s21, 16
          %s7294 = scalar_lea.hbm %s7, %s7293
          %s7296 = sshll.u32 %s7286, 4
          %s7297 = int_to_ptr.vmem [resolvable:$true] %s7296
          %7299 = dma.vmem_to_hbm [thread:$0]  %s7297, 16, %s7294, %s7284
        $region52: #{cnn_forward.1} parent=47 // pred_fallthru
          _
      $region48: #{cnn_forward.1} parent=5 // pred_fallthru
        _
      %p7300 = scmp.le.s32.totalorder 2, %s16
      // Predicated region
      $region53: #{cnn_forward.1} parent=5 // pred_check
        %p7301 = pneg %p7300
      $region54: #{cnn_forward.1} parent=5 // pred_check_branch
        %7303 = sbr.rel (%p7301) target = $region56
      $region55: #{cnn_forward.1} parent=5 // pred_region
        %s7304 = ssub.s32 %s16, 2
        // Predicated region
        $region57: #{cnn_forward.1} parent=55 // pred_check
          %p7305 = pneg %p197
        $region58: #{cnn_forward.1} parent=55 // pred_check_branch
          %7307 = sbr.rel (%p7305) target = $region60
        $region59: #{cnn_forward.1} parent=55 // pred_region
          %s7308 = sand.u32 %s182, 1
          %s7309 = scalar_lea.sflag [#allocation5], %s7308
          %s7310 = sand.u32 %s182, 1
          %s7311 = scalar_lea.vmem [#allocation4], %s7310
          %7312 = dma.done %s7309, 16
        $region60: #{cnn_forward.1} parent=55 // pred_fallthru
          _
      $region56: #{cnn_forward.1} parent=5 // pred_fallthru
        _
    $region6: #{cnn_forward.1} parent=1 // loop_footer
      %s20 = sadd.s32 1, %s16
    $region7: #{cnn_forward.1} parent=1 // loop_footer_branch
      %15 = sbr.rel target = $region3
    $region8: #{cnn_forward.1} parent=1 // loop_exit
      _
    %7313 = vsyncpa [#allocation5], 1
    %s7314 = scalar_lea.sflag [#allocation5], 1
    %7315 = vsyncpa %s7314, 1

</llo_original>
